<compile_context>
chip_gen: v6e
topology: v6e:2x2x1
jax: 0.10.0
libtpu: 0.0.40
codegen_flags: <defaults>
</compile_context>

<pallas_src>
import functools

import jax
import jax.numpy as jnp
from jax.experimental import pallas as pl
from jax.experimental.pallas import tpu as pltpu


# ----------------------------------------------------------------------------
# Small helpers
# ----------------------------------------------------------------------------
def _round_up(x, m):
    return (x + m - 1) // m * m


def _pad_gate_cols(w, H, Hp):
    """`w` has gates (r,z,n) concatenated in chunks of H along the LAST axis.
    Zero-pad each gate chunk to Hp so gate slices are 128-lane aligned."""
    if Hp == H:
        return w
    parts = jnp.split(w, 3, axis=-1)
    pad = [(0, 0)] * (w.ndim - 1) + [(0, Hp - H)]
    return jnp.concatenate([jnp.pad(p, pad) for p in parts], axis=-1)


def _pad_rows(w, rows_p):
    if w.shape[0] == rows_p:
        return w
    return jnp.pad(w, ((0, rows_p - w.shape[0]), (0, 0)))


def _pick_chunk(S, Bpb, Ep, Hp, L, act_bytes, max_chunk, budget_bytes=38 << 20):
    """Largest chunk length T whose VMEM working set fits the budget."""
    G = 3 * Hp
    # single-buffered weights + biases + carried hidden + (double-buffered) out
    fixed = (Ep + (2 * L - 1) * Hp) * G * act_bytes + L * (G + Hp) * 4
    fixed += L * Bpb * Hp * 4 + 2 * Bpb * Hp * 4
    # per-timestep: double-buffered x chunk (bf16) + f32 seq + f32 gates scratch
    per_t = Bpb * (2 * Ep * act_bytes + Hp * 4 + G * 4)
    t_budget = max(1, (budget_bytes - fixed) // per_t)
    T = int(max(1, min(S, max_chunk, t_budget)))
    if T >= 16:
        T -= T % 8
    return T


# ----------------------------------------------------------------------------
# Fused multi-layer GRU Pallas kernel.
#   x       : (n_blocks * S_pad * Bpb, Ep) embedded tokens, row ((blk*S_pad+t)*Bpb+b)
#   flat_w  : per layer [wih (in,3Hp) cdt, whh (Hp,3Hp) cdt,
#                        bias (1,3Hp) f32 (= b_ih + b_hh[r,z] folded),
#                        bhh_n (1,Hp) f32]
# Returns (n_blocks*Bpb, Hp): final hidden state of the last layer.
# ----------------------------------------------------------------------------
def _fused_gru_stack(x, flat_w, *, L, Bpb, n_blocks, T, S, Hp, cdt, num_chunks):
    G = 3 * Hp
    n_w = len(flat_w)
    rows = T * Bpb
    needs_mask = (num_chunks * T != S)
    unroll = min(T, 8 if Hp <= 512 else 4)

    def kernel(*refs):
        x_ref = refs[0]
        w_hbm = refs[1:1 + n_w]
        out_ref = refs[1 + n_w]
        scr = refs[2 + n_w:]
        w_vmem = scr[:n_w]
        h_scr = scr[n_w]                       # (L, Bpb, Hp) carried hidden, f32
        gates = scr[n_w + 1]                   # (rows, 3Hp) f32 per-chunk gates
        seq = scr[n_w + 2] if L > 1 else None  # (rows, Hp) f32 layer output seq
        w_sem = scr[-1]

        c = pl.program_id(1)

        # One-time per batch-block: zero the carried hidden and DMA all weights
        # from HBM into single-buffered VMEM scratch (no pipeline 2x buffering).
        @pl.when(c == 0)
        def _():
            h_scr[...] = jnp.zeros_like(h_scr)
            copies = [pltpu.make_async_copy(src, dst, w_sem.at[i])
                      for i, (src, dst) in enumerate(zip(w_hbm, w_vmem))]
            for cp in copies:
                cp.start()
            for cp in copies:
                cp.wait()

        def rows_at(t):
            # rows [t*Bpb, t*Bpb + Bpb) of the current chunk; sublane-aligned.
            return pl.ds(pl.multiple_of(t * Bpb, 8), Bpb)

        def run_layer(l, src_val, write_seq):
            wih, whh, bias, bhh_n = w_vmem[4 * l:4 * l + 4]

            # Hoisted input projection for the whole chunk: one big MXU matmul
            # (bf16 operands, f32 accumulation). b_ih and the r/z parts of b_hh
            # are already folded into `bias`.
            gates[...] = (jnp.dot(src_val, wih[...],
                                  preferred_element_type=jnp.float32)
                          + bias[...])

            def step(t, h):
                gi = gates[rows_at(t), :]
                gh = jnp.dot(h.astype(cdt), whh[...],
                             preferred_element_type=jnp.float32)
                r = jax.nn.sigmoid(gi[:, 0:Hp] + gh[:, 0:Hp])
                z = jax.nn.sigmoid(gi[:, Hp:2 * Hp] + gh[:, Hp:2 * Hp])
                n = jnp.tanh(gi[:, 2 * Hp:] + r * (gh[:, 2 * Hp:] + bhh_n[...]))
                h_next = (1.0 - z) * n + z * h
                if needs_mask:
                    # Padded timesteps (t_global >= S) leave h unchanged.
                    h_next = jnp.where(c * T + t < S, h_next, h)
                if write_seq:
                    seq[rows_at(t), :] = h_next
                return h_next

            h_scr[l] = jax.lax.fori_loop(0, T, step, h_scr[l], unroll=unroll)

        # Layer 0 consumes the streamed embedded chunk; layers >= 1 consume the
        # previous layer's chunk output kept resident in VMEM.
        run_layer(0, x_ref[...], write_seq=(L > 1))
        for l in range(1, L):
            run_layer(l, seq[...].astype(cdt), write_seq=(l < L - 1))

        # Only the last layer's final hidden state ever leaves the kernel.
        @pl.when(c == num_chunks - 1)
        def _():
            out_ref[...] = h_scr[L - 1]

    in_specs = [pl.BlockSpec((rows, x.shape[1]),
                             lambda blk, c: (blk * num_chunks + c, 0))]
    in_specs += [pl.BlockSpec(memory_space=pl.ANY)] * n_w

    scratch = [pltpu.VMEM(w.shape, w.dtype) for w in flat_w]
    scratch += [pltpu.VMEM((L, Bpb, Hp), jnp.float32),
                pltpu.VMEM((rows, G), jnp.float32)]
    if L > 1:
        scratch.append(pltpu.VMEM((rows, Hp), jnp.float32))
    scratch.append(pltpu.SemaphoreType.DMA((n_w,)))

    return pl.pallas_call(
        kernel,
        out_shape=jax.ShapeDtypeStruct((n_blocks * Bpb, Hp), jnp.float32),
        grid_spec=pltpu.PrefetchScalarGridSpec(
            num_scalar_prefetch=0,
            grid=(n_blocks, num_chunks),
            in_specs=in_specs,
            out_specs=pl.BlockSpec((Bpb, Hp), lambda blk, c: (blk, 0)),
            scratch_shapes=scratch,
        ),
        compiler_params=pltpu.CompilerParams(
            dimension_semantics=("parallel", "arbitrary"),
            vmem_limit_bytes=48 << 20),
    )(x, *flat_w)


# ----------------------------------------------------------------------------
# Parameter construction (PyTorch-shaped weights; embedding renorm hoisted here).
# ----------------------------------------------------------------------------
def init_params(key, vocab_size, embedding_dim, max_norm, hidden_size,
                num_layers):
    keys = jax.random.split(key, 1 + 4 * num_layers)
    emb = jax.random.normal(keys[0], (vocab_size, embedding_dim),
                            dtype=jnp.float32)
    norms = jnp.linalg.norm(emb, axis=-1, keepdims=True)
    scale = jnp.where(norms > max_norm, max_norm / (norms + 1e-7), 1.0)
    emb_renormed = emb * scale

    bound = 1.0 / jnp.sqrt(hidden_size)
    gru_layers = []
    for l in range(num_layers):
        in_dim = embedding_dim if l == 0 else hidden_size
        k0, k1, k2, k3 = keys[1 + 4 * l:1 + 4 * (l + 1)]
        gru_layers.append({
            "w_ih": jax.random.uniform(k0, (3 * hidden_size, in_dim),
                                       minval=-bound, maxval=bound,
                                       dtype=jnp.float32),
            "w_hh": jax.random.uniform(k1, (3 * hidden_size, hidden_size),
                                       minval=-bound, maxval=bound,
                                       dtype=jnp.float32),
            "b_ih": jax.random.uniform(k2, (3 * hidden_size,),
                                       minval=-bound, maxval=bound,
                                       dtype=jnp.float32),
            "b_hh": jax.random.uniform(k3, (3 * hidden_size,),
                                       minval=-bound, maxval=bound,
                                       dtype=jnp.float32),
        })
    return {"embedding": emb, "embedding_renormed": emb_renormed,
            "max_norm": jnp.float32(max_norm), "gru": gru_layers}


# ----------------------------------------------------------------------------
# SequenceEncoder forward (inference / eval mode).
# ----------------------------------------------------------------------------
@functools.partial(jax.jit, static_argnames=("use_bf16", "max_chunk"))
def sequence_encoder_forward(inputs_, params, *, use_bf16=True, max_chunk=256):
    """inputs_: (3, B, S) int32 token ids. Returns (B, 3*H) float32."""
    gru = params["gru"]
    L = len(gru)
    H = gru[0]["w_hh"].shape[1]
    E = gru[0]["w_ih"].shape[1]
    Hp = _round_up(H, 128)                      # lane-aligned gate width
    Ep = _round_up(E, 8)
    G = 3 * Hp
    cdt = jnp.bfloat16 if use_bf16 else jnp.float32
    act_bytes = 2 if use_bf16 else 4

    n_streams, B, S = inputs_.shape
    BE = n_streams * B                          # stacked batch (3 streams)
    # Padded batch is a multiple of 16 (dense bf16 sublane packing); when it is
    # large enough, split into 2 blocks for the leading "parallel" grid axis
    # (uses v7x's second TensorCore; near-free on 1-TC chips).
    Bp = _round_up(BE, 16)
    if Bp >= 32:
        n_blocks = 2
        Bp = _round_up(BE, 32)
    else:
        n_blocks = 1
    Bpb = Bp // n_blocks
    assert Bpb % 16 == 0

    T = _pick_chunk(S, Bpb, Ep, Hp, L, act_bytes, max_chunk)
    S_pad = _round_up(S, T)
    num_chunks = S_pad // T

    # Stack streams along batch, pad batch & sequence, and reorder the cheap
    # int ids to (block, time, batch-in-block) so the gather directly emits the
    # kernel's streaming layout (row ((blk*S_pad + t)*Bpb + b)).
    tok = inputs_.reshape(BE, S).astype(jnp.int32)
    tok = jnp.pad(tok, ((0, Bp - BE), (0, S_pad - S)))
    tok = tok.reshape(n_blocks, Bpb, S_pad).transpose(0, 2, 1).reshape(-1)

    emb_c = jnp.pad(params["embedding_renormed"],
                    ((0, 0), (0, Ep - E))).astype(cdt)
    x = jnp.take(emb_c, tok, axis=0)            # (n_blocks*S_pad*Bpb, Ep)
    # drop_1: identity in eval mode.

    # Padded / transposed weights. b_ih plus the r/z parts of b_hh are folded
    # into one hoisted bias; only the n-gate recurrent bias stays per-step.
    flat_w = []
    zeros_h = jnp.zeros((H,), jnp.float32)
    for l in range(L):
        g = gru[l]
        in_rows = Ep if l == 0 else Hp
        wih = _pad_rows(_pad_gate_cols(g["w_ih"].T, H, Hp), in_rows).astype(cdt)
        whh = _pad_rows(_pad_gate_cols(g["w_hh"].T, H, Hp), Hp).astype(cdt)
        bhh = g["b_hh"]
        bias = _pad_gate_cols(
            g["b_ih"] + jnp.concatenate([bhh[:H], bhh[H:2 * H], zeros_h]),
            H, Hp).reshape(1, G).astype(jnp.float32)
        bhh_n = jnp.pad(bhh[2 * H:], (0, Hp - H)).reshape(1, Hp)
        flat_w += [wih, whh, bias, bhh_n]

    h_pad = _fused_gru_stack(
        x, flat_w, L=L, Bpb=Bpb, n_blocks=n_blocks, T=T, S=S,
        Hp=Hp, cdt=cdt, num_chunks=num_chunks)  # (n_blocks*Bpb, Hp)

    # rnn(x)[-1][-1]; drop_2: identity. Strip padding, un-stack the 3 streams
    # and concatenate [text, keywords, locations] along the feature axis.
    h = h_pad[:BE, :H].reshape(n_streams, B, H)
    return jnp.transpose(h, (1, 0, 2)).reshape(B, n_streams * H)


# ----------------------------------------------------------------------------
# Pure-JAX reference (lax.scan GRU), used as the correctness check.
# ----------------------------------------------------------------------------
def _gru_layer_ref(x_sbe, w_ih, w_hh, b_ih, b_hh):
    H = w_hh.shape[1]
    wih_t, whh_t = w_ih.T, w_hh.T

    def step(h, x):
        gi = x @ wih_t + b_ih
        gh = h @ whh_t + b_hh
        r = jax.nn.sigmoid(gi[:, :H] + gh[:, :H])
        z = jax.nn.sigmoid(gi[:, H:2 * H] + gh[:, H:2 * H])
        n = jnp.tanh(gi[:, 2 * H:] + r * gh[:, 2 * H:])
        h_new = (1.0 - z) * n + z * h
        return h_new, h_new

    h0 = jnp.zeros((x_sbe.shape[1], H), jnp.float32)
    _, ys = jax.lax.scan(step, h0, x_sbe)
    return ys


def sequence_encoder_reference(inputs_, params):
    emb = params["embedding"]
    max_norm = params["max_norm"]
    norms = jnp.linalg.norm(emb, axis=-1, keepdims=True)
    scale = jnp.where(norms > max_norm, max_norm / (norms + 1e-7), 1.0)
    emb_c = emb * scale
    outs = []
    for i in range(3):
        x = jnp.take(emb_c, inputs_[i], axis=0)     # (B, S, E)
        x = jnp.transpose(x, (1, 0, 2))             # (S, B, E)
        for layer in params["gru"]:
            x = _gru_layer_ref(x, layer["w_ih"], layer["w_hh"],
                               layer["b_ih"], layer["b_hh"])
        outs.append(x[-1])
    return jnp.concatenate(outs, axis=-1)


if __name__ == "__main__":
    VOCAB, EMB, MAX_NORM, HIDDEN, LAYERS = 50, 32, 1, 32, 2
    key = jax.random.PRNGKey(0)
    k_params, k_tok1, k_tok2 = jax.random.split(key, 3)
    params = init_params(k_params, VOCAB, EMB, MAX_NORM, HIDDEN, LAYERS)

    # Config 1: small batch, single chunk, single batch block.
    B, S = 2, 8
    inputs_ = jax.random.randint(k_tok1, (3, B, S), 0, VOCAB, dtype=jnp.int32)
    ref = jax.block_until_ready(sequence_encoder_reference(inputs_, params))

    out_bf16 = jax.block_until_ready(sequence_encoder_forward(inputs_, params))
    assert out_bf16.shape == (B, 3 * HIDDEN), out_bf16.shape
    assert jnp.allclose(out_bf16, ref, atol=5e-2, rtol=5e-2), \
        f"bf16 max abs err {jnp.max(jnp.abs(out_bf16 - ref))}"

    out_f32 = jax.block_until_ready(
        sequence_encoder_forward(inputs_, params, use_bf16=False))
    assert jnp.allclose(out_f32, ref, atol=1e-4, rtol=1e-4), \
        f"f32 max abs err {jnp.max(jnp.abs(out_f32 - ref))}"

    # Config 2: exercises sequence chunking + padded-timestep masking
    # (S % T != 0) and the 2-block parallel batch split.
    B2, S2 = 12, 13
    inputs2 = jax.random.randint(k_tok2, (3, B2, S2), 0, VOCAB, dtype=jnp.int32)
    ref2 = jax.block_until_ready(sequence_encoder_reference(inputs2, params))
    out2 = jax.block_until_ready(
        sequence_encoder_forward(inputs2, params, max_chunk=4))
    assert out2.shape == (B2, 3 * HIDDEN), out2.shape
    assert jnp.allclose(out2, ref2, atol=5e-2, rtol=5e-2), \
        f"chunked bf16 max abs err {jnp.max(jnp.abs(out2 - ref2))}"

    print("KERNEL_OK")
</pallas_src>

<mosaic_0001>
module attributes {stable_mosaic.version = 11 : i64} {
  func.func @kernel(%arg0: i32, %arg1: i32, %arg2: memref<128x32xbf16, #tpu.memory_space<vmem>>, %arg3: memref<32x384xbf16, #tpu.memory_space<any>>, %arg4: memref<128x384xbf16, #tpu.memory_space<any>>, %arg5: memref<1x384xf32, #tpu.memory_space<any>>, %arg6: memref<1x128xf32, #tpu.memory_space<any>>, %arg7: memref<128x384xbf16, #tpu.memory_space<any>>, %arg8: memref<128x384xbf16, #tpu.memory_space<any>>, %arg9: memref<1x384xf32, #tpu.memory_space<any>>, %arg10: memref<1x128xf32, #tpu.memory_space<any>>, %arg11: memref<16x128xf32, #tpu.memory_space<vmem>>, %arg12: memref<32x384xbf16, #tpu.memory_space<vmem>>, %arg13: memref<128x384xbf16, #tpu.memory_space<vmem>>, %arg14: memref<1x384xf32, #tpu.memory_space<vmem>>, %arg15: memref<1x128xf32, #tpu.memory_space<vmem>>, %arg16: memref<128x384xbf16, #tpu.memory_space<vmem>>, %arg17: memref<128x384xbf16, #tpu.memory_space<vmem>>, %arg18: memref<1x384xf32, #tpu.memory_space<vmem>>, %arg19: memref<1x128xf32, #tpu.memory_space<vmem>>, %arg20: memref<2x16x128xf32, #tpu.memory_space<vmem>>, %arg21: memref<128x384xf32, #tpu.memory_space<vmem>>, %arg22: memref<128x128xf32, #tpu.memory_space<vmem>>, %arg23: memref<8x!tpu.dma_semaphore, #tpu.memory_space<semaphore_mem>>) attributes {dimension_semantics = [#tpu.dimension_semantics<parallel>, #tpu.dimension_semantics<arbitrary>], iteration_bounds = array<i64: 1, 1>, scalar_prefetch = 0 : i64, scratch_operands = 12 : i64, tpu.core_type = #tpu.core_type<tc>, window_params = [{transform_indices = @transform_0, window_bounds = array<i64: 128, 32>}, {}, {}, {}, {}, {}, {}, {}, {}, {transform_indices = @transform_9, window_bounds = array<i64: 16, 128>}]} {
    %c0_i32 = arith.constant 0 : i32
    %0 = arith.cmpi eq, %arg1, %c0_i32 : i32
    %1 = arith.extui %0 : i1 to i32
    %c0_i32_0 = arith.constant 0 : i32
    %2 = arith.cmpi ne, %1, %c0_i32_0 : i32
    scf.if %2 {
      %cst_215 = arith.constant 0.000000e+00 : f32
      %639 = vector.broadcast %cst_215 : f32 to vector<2x16x128xf32>
      %c0_216 = arith.constant 0 : index
      %c0_217 = arith.constant 0 : index
      %c0_218 = arith.constant 0 : index
      %640 = vector.load %arg20[%c0_216, %c0_217, %c0_218] : memref<2x16x128xf32, #tpu.memory_space<vmem>>, vector<2x16x128xf32>
      tpu.vector_store %arg20[%c0_216, %c0_217, %c0_218], %639 {strides = array<i32>} : memref<2x16x128xf32, #tpu.memory_space<vmem>>, vector<2x16x128xf32>,
      %c0_i32_219 = arith.constant 0 : i32
      %641 = tpu.memref_slice %arg23[%c0_i32_219] : memref<8x!tpu.dma_semaphore, #tpu.memory_space<semaphore_mem>> -> memref<1x!tpu.dma_semaphore, #tpu.memory_space<semaphore_mem>>
      %642 = tpu.memref_squeeze %641 : memref<1x!tpu.dma_semaphore, #tpu.memory_space<semaphore_mem>> -> memref<!tpu.dma_semaphore, #tpu.memory_space<semaphore_mem>>
      tpu.enqueue_dma source(%arg3 : memref<32x384xbf16, #tpu.memory_space<any>>) target(%arg12 : memref<32x384xbf16, #tpu.memory_space<vmem>>) target_semaphore(%642 : memref<!tpu.dma_semaphore, #tpu.memory_space<semaphore_mem>>)
      %c1_i32_220 = arith.constant 1 : i32
      %643 = tpu.memref_slice %arg23[%c1_i32_220] : memref<8x!tpu.dma_semaphore, #tpu.memory_space<semaphore_mem>> -> memref<1x!tpu.dma_semaphore, #tpu.memory_space<semaphore_mem>>
      %644 = tpu.memref_squeeze %643 : memref<1x!tpu.dma_semaphore, #tpu.memory_space<semaphore_mem>> -> memref<!tpu.dma_semaphore, #tpu.memory_space<semaphore_mem>>
      tpu.enqueue_dma source(%arg4 : memref<128x384xbf16, #tpu.memory_space<any>>) target(%arg13 : memref<128x384xbf16, #tpu.memory_space<vmem>>) target_semaphore(%644 : memref<!tpu.dma_semaphore, #tpu.memory_space<semaphore_mem>>)
      %c2_i32_221 = arith.constant 2 : i32
      %645 = tpu.memref_slice %arg23[%c2_i32_221] : memref<8x!tpu.dma_semaphore, #tpu.memory_space<semaphore_mem>> -> memref<1x!tpu.dma_semaphore, #tpu.memory_space<semaphore_mem>>
      %646 = tpu.memref_squeeze %645 : memref<1x!tpu.dma_semaphore, #tpu.memory_space<semaphore_mem>> -> memref<!tpu.dma_semaphore, #tpu.memory_space<semaphore_mem>>
      tpu.enqueue_dma source(%arg5 : memref<1x384xf32, #tpu.memory_space<any>>) target(%arg14 : memref<1x384xf32, #tpu.memory_space<vmem>>) target_semaphore(%646 : memref<!tpu.dma_semaphore, #tpu.memory_space<semaphore_mem>>)
      %c3_i32_222 = arith.constant 3 : i32
      %647 = tpu.memref_slice %arg23[%c3_i32_222] : memref<8x!tpu.dma_semaphore, #tpu.memory_space<semaphore_mem>> -> memref<1x!tpu.dma_semaphore, #tpu.memory_space<semaphore_mem>>
      %648 = tpu.memref_squeeze %647 : memref<1x!tpu.dma_semaphore, #tpu.memory_space<semaphore_mem>> -> memref<!tpu.dma_semaphore, #tpu.memory_space<semaphore_mem>>
      tpu.enqueue_dma source(%arg6 : memref<1x128xf32, #tpu.memory_space<any>>) target(%arg15 : memref<1x128xf32, #tpu.memory_space<vmem>>) target_semaphore(%648 : memref<!tpu.dma_semaphore, #tpu.memory_space<semaphore_mem>>)
      %c4_i32_223 = arith.constant 4 : i32
      %649 = tpu.memref_slice %arg23[%c4_i32_223] : memref<8x!tpu.dma_semaphore, #tpu.memory_space<semaphore_mem>> -> memref<1x!tpu.dma_semaphore, #tpu.memory_space<semaphore_mem>>
      %650 = tpu.memref_squeeze %649 : memref<1x!tpu.dma_semaphore, #tpu.memory_space<semaphore_mem>> -> memref<!tpu.dma_semaphore, #tpu.memory_space<semaphore_mem>>
      tpu.enqueue_dma source(%arg7 : memref<128x384xbf16, #tpu.memory_space<any>>) target(%arg16 : memref<128x384xbf16, #tpu.memory_space<vmem>>) target_semaphore(%650 : memref<!tpu.dma_semaphore, #tpu.memory_space<semaphore_mem>>)
      %c5_i32_224 = arith.constant 5 : i32
      %651 = tpu.memref_slice %arg23[%c5_i32_224] : memref<8x!tpu.dma_semaphore, #tpu.memory_space<semaphore_mem>> -> memref<1x!tpu.dma_semaphore, #tpu.memory_space<semaphore_mem>>
      %652 = tpu.memref_squeeze %651 : memref<1x!tpu.dma_semaphore, #tpu.memory_space<semaphore_mem>> -> memref<!tpu.dma_semaphore, #tpu.memory_space<semaphore_mem>>
      tpu.enqueue_dma source(%arg8 : memref<128x384xbf16, #tpu.memory_space<any>>) target(%arg17 : memref<128x384xbf16, #tpu.memory_space<vmem>>) target_semaphore(%652 : memref<!tpu.dma_semaphore, #tpu.memory_space<semaphore_mem>>)
      %c6_i32_225 = arith.constant 6 : i32
      %653 = tpu.memref_slice %arg23[%c6_i32_225] : memref<8x!tpu.dma_semaphore, #tpu.memory_space<semaphore_mem>> -> memref<1x!tpu.dma_semaphore, #tpu.memory_space<semaphore_mem>>
      %654 = tpu.memref_squeeze %653 : memref<1x!tpu.dma_semaphore, #tpu.memory_space<semaphore_mem>> -> memref<!tpu.dma_semaphore, #tpu.memory_space<semaphore_mem>>
      tpu.enqueue_dma source(%arg9 : memref<1x384xf32, #tpu.memory_space<any>>) target(%arg18 : memref<1x384xf32, #tpu.memory_space<vmem>>) target_semaphore(%654 : memref<!tpu.dma_semaphore, #tpu.memory_space<semaphore_mem>>)
      %c7_i32_226 = arith.constant 7 : i32
      %655 = tpu.memref_slice %arg23[%c7_i32_226] : memref<8x!tpu.dma_semaphore, #tpu.memory_space<semaphore_mem>> -> memref<1x!tpu.dma_semaphore, #tpu.memory_space<semaphore_mem>>
      %656 = tpu.memref_squeeze %655 : memref<1x!tpu.dma_semaphore, #tpu.memory_space<semaphore_mem>> -> memref<!tpu.dma_semaphore, #tpu.memory_space<semaphore_mem>>
      tpu.enqueue_dma source(%arg10 : memref<1x128xf32, #tpu.memory_space<any>>) target(%arg19 : memref<1x128xf32, #tpu.memory_space<vmem>>) target_semaphore(%656 : memref<!tpu.dma_semaphore, #tpu.memory_space<semaphore_mem>>)
      %c0_i32_227 = arith.constant 0 : i32
      %657 = tpu.memref_slice %arg23[%c0_i32_227] : memref<8x!tpu.dma_semaphore, #tpu.memory_space<semaphore_mem>> -> memref<1x!tpu.dma_semaphore, #tpu.memory_space<semaphore_mem>>
      %658 = tpu.memref_squeeze %657 : memref<1x!tpu.dma_semaphore, #tpu.memory_space<semaphore_mem>> -> memref<!tpu.dma_semaphore, #tpu.memory_space<semaphore_mem>>
      tpu.wait_dma2 semaphore(%658 : memref<!tpu.dma_semaphore, #tpu.memory_space<semaphore_mem>>) src(%arg3 : memref<32x384xbf16, #tpu.memory_space<any>>) dst(%arg12 : memref<32x384xbf16, #tpu.memory_space<vmem>>)
      %c1_i32_228 = arith.constant 1 : i32
      %659 = tpu.memref_slice %arg23[%c1_i32_228] : memref<8x!tpu.dma_semaphore, #tpu.memory_space<semaphore_mem>> -> memref<1x!tpu.dma_semaphore, #tpu.memory_space<semaphore_mem>>
      %660 = tpu.memref_squeeze %659 : memref<1x!tpu.dma_semaphore, #tpu.memory_space<semaphore_mem>> -> memref<!tpu.dma_semaphore, #tpu.memory_space<semaphore_mem>>
      tpu.wait_dma2 semaphore(%660 : memref<!tpu.dma_semaphore, #tpu.memory_space<semaphore_mem>>) src(%arg4 : memref<128x384xbf16, #tpu.memory_space<any>>) dst(%arg13 : memref<128x384xbf16, #tpu.memory_space<vmem>>)
      %c2_i32_229 = arith.constant 2 : i32
      %661 = tpu.memref_slice %arg23[%c2_i32_229] : memref<8x!tpu.dma_semaphore, #tpu.memory_space<semaphore_mem>> -> memref<1x!tpu.dma_semaphore, #tpu.memory_space<semaphore_mem>>
      %662 = tpu.memref_squeeze %661 : memref<1x!tpu.dma_semaphore, #tpu.memory_space<semaphore_mem>> -> memref<!tpu.dma_semaphore, #tpu.memory_space<semaphore_mem>>
      tpu.wait_dma2 semaphore(%662 : memref<!tpu.dma_semaphore, #tpu.memory_space<semaphore_mem>>) src(%arg5 : memref<1x384xf32, #tpu.memory_space<any>>) dst(%arg14 : memref<1x384xf32, #tpu.memory_space<vmem>>)
      %c3_i32_230 = arith.constant 3 : i32
      %663 = tpu.memref_slice %arg23[%c3_i32_230] : memref<8x!tpu.dma_semaphore, #tpu.memory_space<semaphore_mem>> -> memref<1x!tpu.dma_semaphore, #tpu.memory_space<semaphore_mem>>
      %664 = tpu.memref_squeeze %663 : memref<1x!tpu.dma_semaphore, #tpu.memory_space<semaphore_mem>> -> memref<!tpu.dma_semaphore, #tpu.memory_space<semaphore_mem>>
      tpu.wait_dma2 semaphore(%664 : memref<!tpu.dma_semaphore, #tpu.memory_space<semaphore_mem>>) src(%arg6 : memref<1x128xf32, #tpu.memory_space<any>>) dst(%arg15 : memref<1x128xf32, #tpu.memory_space<vmem>>)
      %c4_i32_231 = arith.constant 4 : i32
      %665 = tpu.memref_slice %arg23[%c4_i32_231] : memref<8x!tpu.dma_semaphore, #tpu.memory_space<semaphore_mem>> -> memref<1x!tpu.dma_semaphore, #tpu.memory_space<semaphore_mem>>
      %666 = tpu.memref_squeeze %665 : memref<1x!tpu.dma_semaphore, #tpu.memory_space<semaphore_mem>> -> memref<!tpu.dma_semaphore, #tpu.memory_space<semaphore_mem>>
      tpu.wait_dma2 semaphore(%666 : memref<!tpu.dma_semaphore, #tpu.memory_space<semaphore_mem>>) src(%arg7 : memref<128x384xbf16, #tpu.memory_space<any>>) dst(%arg16 : memref<128x384xbf16, #tpu.memory_space<vmem>>)
      %c5_i32_232 = arith.constant 5 : i32
      %667 = tpu.memref_slice %arg23[%c5_i32_232] : memref<8x!tpu.dma_semaphore, #tpu.memory_space<semaphore_mem>> -> memref<1x!tpu.dma_semaphore, #tpu.memory_space<semaphore_mem>>
      %668 = tpu.memref_squeeze %667 : memref<1x!tpu.dma_semaphore, #tpu.memory_space<semaphore_mem>> -> memref<!tpu.dma_semaphore, #tpu.memory_space<semaphore_mem>>
      tpu.wait_dma2 semaphore(%668 : memref<!tpu.dma_semaphore, #tpu.memory_space<semaphore_mem>>) src(%arg8 : memref<128x384xbf16, #tpu.memory_space<any>>) dst(%arg17 : memref<128x384xbf16, #tpu.memory_space<vmem>>)
      %c6_i32_233 = arith.constant 6 : i32
      %669 = tpu.memref_slice %arg23[%c6_i32_233] : memref<8x!tpu.dma_semaphore, #tpu.memory_space<semaphore_mem>> -> memref<1x!tpu.dma_semaphore, #tpu.memory_space<semaphore_mem>>
      %670 = tpu.memref_squeeze %669 : memref<1x!tpu.dma_semaphore, #tpu.memory_space<semaphore_mem>> -> memref<!tpu.dma_semaphore, #tpu.memory_space<semaphore_mem>>
      tpu.wait_dma2 semaphore(%670 : memref<!tpu.dma_semaphore, #tpu.memory_space<semaphore_mem>>) src(%arg9 : memref<1x384xf32, #tpu.memory_space<any>>) dst(%arg18 : memref<1x384xf32, #tpu.memory_space<vmem>>)
      %c7_i32_234 = arith.constant 7 : i32
      %671 = tpu.memref_slice %arg23[%c7_i32_234] : memref<8x!tpu.dma_semaphore, #tpu.memory_space<semaphore_mem>> -> memref<1x!tpu.dma_semaphore, #tpu.memory_space<semaphore_mem>>
      %672 = tpu.memref_squeeze %671 : memref<1x!tpu.dma_semaphore, #tpu.memory_space<semaphore_mem>> -> memref<!tpu.dma_semaphore, #tpu.memory_space<semaphore_mem>>
      tpu.wait_dma2 semaphore(%672 : memref<!tpu.dma_semaphore, #tpu.memory_space<semaphore_mem>>) src(%arg10 : memref<1x128xf32, #tpu.memory_space<any>>) dst(%arg19 : memref<1x128xf32, #tpu.memory_space<vmem>>)
    } else {
    }
    %c0 = arith.constant 0 : index
    %c0_1 = arith.constant 0 : index
    %3 = vector.load %arg2[%c0, %c0_1] : memref<128x32xbf16, #tpu.memory_space<vmem>>, vector<128x32xbf16>
    %c0_2 = arith.constant 0 : index
    %c0_3 = arith.constant 0 : index
    %4 = vector.load %arg12[%c0_2, %c0_3] : memref<32x384xbf16, #tpu.memory_space<vmem>>, vector<32x384xbf16>
    %cst = arith.constant dense<0.000000e+00> : vector<128x384xf32>
    %5 = tpu.matmul %3, %4, %cst {dimension_numbers = #tpu.dot_dimension_numbers<[1], [0], [0], [1], [0, 0, 1, 1], [], []>} : vector<128x32xbf16>, vector<32x384xbf16>, vector<128x384xf32> -> vector<128x384xf32>
    %c0_4 = arith.constant 0 : index
    %c0_5 = arith.constant 0 : index
    %6 = vector.load %arg14[%c0_4, %c0_5] : memref<1x384xf32, #tpu.memory_space<vmem>>, vector<1x384xf32>
    %7 = vector.broadcast %6 : vector<1x384xf32> to vector<128x384xf32>
    %8 = arith.addf %5, %7 : vector<128x384xf32>
    %c0_6 = arith.constant 0 : index
    %c0_7 = arith.constant 0 : index
    %9 = vector.load %arg21[%c0_6, %c0_7] : memref<128x384xf32, #tpu.memory_space<vmem>>, vector<128x384xf32>
    tpu.vector_store %arg21[%c0_6, %c0_7], %8 {strides = array<i32>} : memref<128x384xf32, #tpu.memory_space<vmem>>, vector<128x384xf32>,
    %c0_8 = arith.constant 0 : index
    %c0_9 = arith.constant 0 : index
    %c0_10 = arith.constant 0 : index
    %10 = vector.load %arg20[%c0_8, %c0_9, %c0_10] : memref<2x16x128xf32, #tpu.memory_space<vmem>>, vector<1x16x128xf32>
    %11 = vector.shape_cast %10 : vector<1x16x128xf32> to vector<16x128xf32>
    %c0_i32_11 = arith.constant 0 : i32
    %c16_i32 = arith.constant 16 : i32
    %12 = arith.muli %c0_i32_11, %c16_i32 : i32
    %13 = tpu.assume_multiple %12, 8 : i32
    %14 = arith.index_cast %13 : i32 to index
    %c0_12 = arith.constant 0 : index
    %15 = vector.load %arg21[%14, %c0_12] : memref<128x384xf32, #tpu.memory_space<vmem>>, vector<16x384xf32>
    %16 = arith.truncf %11 : vector<16x128xf32> to vector<16x128xbf16>
    %c0_13 = arith.constant 0 : index
    %c0_14 = arith.constant 0 : index
    %17 = vector.load %arg13[%c0_13, %c0_14] : memref<128x384xbf16, #tpu.memory_space<vmem>>, vector<128x384xbf16>
    %cst_15 = arith.constant dense<0.000000e+00> : vector<16x384xf32>
    %18 = tpu.matmul %16, %17, %cst_15 {dimension_numbers = #tpu.dot_dimension_numbers<[1], [0], [0], [1], [0, 0, 1, 1], [], []>} : vector<16x128xbf16>, vector<128x384xbf16>, vector<16x384xf32> -> vector<16x384xf32>
    %19 = vector.extract_strided_slice %15 {offsets = [0, 0], sizes = [16, 128], strides = [1, 1]} : vector<16x384xf32> to vector<16x128xf32>
    %20 = vector.extract_strided_slice %18 {offsets = [0, 0], sizes = [16, 128], strides = [1, 1]} : vector<16x384xf32> to vector<16x128xf32>
    %21 = arith.addf %19, %20 : vector<16x128xf32>
    %22 = arith.negf %21 : vector<16x128xf32>
    %23 = math.exp %22 : vector<16x128xf32>
    %cst_16 = arith.constant 1.000000e+00 : f32
    %24 = vector.broadcast %cst_16 : f32 to vector<16x128xf32>
    %25 = arith.addf %24, %23 : vector<16x128xf32>
    %26 = arith.divf %24, %25 : vector<16x128xf32>
    %27 = vector.extract_strided_slice %15 {offsets = [0, 128], sizes = [16, 128], strides = [1, 1]} : vector<16x384xf32> to vector<16x128xf32>
    %28 = vector.extract_strided_slice %18 {offsets = [0, 128], sizes = [16, 128], strides = [1, 1]} : vector<16x384xf32> to vector<16x128xf32>
    %29 = arith.addf %27, %28 : vector<16x128xf32>
    %30 = arith.negf %29 : vector<16x128xf32>
    %31 = math.exp %30 : vector<16x128xf32>
    %cst_17 = arith.constant 1.000000e+00 : f32
    %32 = vector.broadcast %cst_17 : f32 to vector<16x128xf32>
    %33 = arith.addf %32, %31 : vector<16x128xf32>
    %34 = arith.divf %32, %33 : vector<16x128xf32>
    %35 = vector.extract_strided_slice %15 {offsets = [0, 256], sizes = [16, 128], strides = [1, 1]} : vector<16x384xf32> to vector<16x128xf32>
    %36 = vector.extract_strided_slice %18 {offsets = [0, 256], sizes = [16, 128], strides = [1, 1]} : vector<16x384xf32> to vector<16x128xf32>
    %c0_18 = arith.constant 0 : index
    %c0_19 = arith.constant 0 : index
    %37 = vector.load %arg15[%c0_18, %c0_19] : memref<1x128xf32, #tpu.memory_space<vmem>>, vector<1x128xf32>
    %38 = vector.broadcast %37 : vector<1x128xf32> to vector<16x128xf32>
    %39 = arith.addf %36, %38 : vector<16x128xf32>
    %40 = arith.mulf %26, %39 : vector<16x128xf32>
    %41 = arith.addf %35, %40 : vector<16x128xf32>
    %42 = math.tanh %41 : vector<16x128xf32>
    %cst_20 = arith.constant 1.000000e+00 : f32
    %43 = vector.broadcast %cst_20 : f32 to vector<16x128xf32>
    %44 = arith.subf %43, %34 : vector<16x128xf32>
    %45 = arith.mulf %44, %42 : vector<16x128xf32>
    %46 = arith.mulf %34, %11 : vector<16x128xf32>
    %47 = arith.addf %45, %46 : vector<16x128xf32>
    %c16_i32_21 = arith.constant 16 : i32
    %48 = arith.muli %c0_i32_11, %c16_i32_21 : i32
    %49 = tpu.assume_multiple %48, 8 : i32
    %50 = arith.index_cast %49 : i32 to index
    %c0_22 = arith.constant 0 : index
    %51 = vector.load %arg22[%50, %c0_22] : memref<128x128xf32, #tpu.memory_space<vmem>>, vector<16x128xf32>
    tpu.vector_store %arg22[%50, %c0_22], %47 {strides = array<i32>} : memref<128x128xf32, #tpu.memory_space<vmem>>, vector<16x128xf32>,
    %c1_i32 = arith.constant 1 : i32
    %c16_i32_23 = arith.constant 16 : i32
    %52 = arith.muli %c1_i32, %c16_i32_23 : i32
    %53 = tpu.assume_multiple %52, 8 : i32
    %54 = arith.index_cast %53 : i32 to index
    %c0_24 = arith.constant 0 : index
    %55 = vector.load %arg21[%54, %c0_24] : memref<128x384xf32, #tpu.memory_space<vmem>>, vector<16x384xf32>
    %56 = arith.truncf %47 : vector<16x128xf32> to vector<16x128xbf16>
    %c0_25 = arith.constant 0 : index
    %c0_26 = arith.constant 0 : index
    %57 = vector.load %arg13[%c0_25, %c0_26] : memref<128x384xbf16, #tpu.memory_space<vmem>>, vector<128x384xbf16>
    %cst_27 = arith.constant dense<0.000000e+00> : vector<16x384xf32>
    %58 = tpu.matmul %56, %57, %cst_27 {dimension_numbers = #tpu.dot_dimension_numbers<[1], [0], [0], [1], [0, 0, 1, 1], [], []>} : vector<16x128xbf16>, vector<128x384xbf16>, vector<16x384xf32> -> vector<16x384xf32>
    %59 = vector.extract_strided_slice %55 {offsets = [0, 0], sizes = [16, 128], strides = [1, 1]} : vector<16x384xf32> to vector<16x128xf32>
    %60 = vector.extract_strided_slice %58 {offsets = [0, 0], sizes = [16, 128], strides = [1, 1]} : vector<16x384xf32> to vector<16x128xf32>
    %61 = arith.addf %59, %60 : vector<16x128xf32>
    %62 = arith.negf %61 : vector<16x128xf32>
    %63 = math.exp %62 : vector<16x128xf32>
    %cst_28 = arith.constant 1.000000e+00 : f32
    %64 = vector.broadcast %cst_28 : f32 to vector<16x128xf32>
    %65 = arith.addf %64, %63 : vector<16x128xf32>
    %66 = arith.divf %64, %65 : vector<16x128xf32>
    %67 = vector.extract_strided_slice %55 {offsets = [0, 128], sizes = [16, 128], strides = [1, 1]} : vector<16x384xf32> to vector<16x128xf32>
    %68 = vector.extract_strided_slice %58 {offsets = [0, 128], sizes = [16, 128], strides = [1, 1]} : vector<16x384xf32> to vector<16x128xf32>
    %69 = arith.addf %67, %68 : vector<16x128xf32>
    %70 = arith.negf %69 : vector<16x128xf32>
    %71 = math.exp %70 : vector<16x128xf32>
    %cst_29 = arith.constant 1.000000e+00 : f32
    %72 = vector.broadcast %cst_29 : f32 to vector<16x128xf32>
    %73 = arith.addf %72, %71 : vector<16x128xf32>
    %74 = arith.divf %72, %73 : vector<16x128xf32>
    %75 = vector.extract_strided_slice %55 {offsets = [0, 256], sizes = [16, 128], strides = [1, 1]} : vector<16x384xf32> to vector<16x128xf32>
    %76 = vector.extract_strided_slice %58 {offsets = [0, 256], sizes = [16, 128], strides = [1, 1]} : vector<16x384xf32> to vector<16x128xf32>
    %c0_30 = arith.constant 0 : index
    %c0_31 = arith.constant 0 : index
    %77 = vector.load %arg15[%c0_30, %c0_31] : memref<1x128xf32, #tpu.memory_space<vmem>>, vector<1x128xf32>
    %78 = vector.broadcast %77 : vector<1x128xf32> to vector<16x128xf32>
    %79 = arith.addf %76, %78 : vector<16x128xf32>
    %80 = arith.mulf %66, %79 : vector<16x128xf32>
    %81 = arith.addf %75, %80 : vector<16x128xf32>
    %82 = math.tanh %81 : vector<16x128xf32>
    %cst_32 = arith.constant 1.000000e+00 : f32
    %83 = vector.broadcast %cst_32 : f32 to vector<16x128xf32>
    %84 = arith.subf %83, %74 : vector<16x128xf32>
    %85 = arith.mulf %84, %82 : vector<16x128xf32>
    %86 = arith.mulf %74, %47 : vector<16x128xf32>
    %87 = arith.addf %85, %86 : vector<16x128xf32>
    %c16_i32_33 = arith.constant 16 : i32
    %88 = arith.muli %c1_i32, %c16_i32_33 : i32
    %89 = tpu.assume_multiple %88, 8 : i32
    %90 = arith.index_cast %89 : i32 to index
    %c0_34 = arith.constant 0 : index
    %91 = vector.load %arg22[%90, %c0_34] : memref<128x128xf32, #tpu.memory_space<vmem>>, vector<16x128xf32>
    tpu.vector_store %arg22[%90, %c0_34], %87 {strides = array<i32>} : memref<128x128xf32, #tpu.memory_space<vmem>>, vector<16x128xf32>,
    %c2_i32 = arith.constant 2 : i32
    %c16_i32_35 = arith.constant 16 : i32
    %92 = arith.muli %c2_i32, %c16_i32_35 : i32
    %93 = tpu.assume_multiple %92, 8 : i32
    %94 = arith.index_cast %93 : i32 to index
    %c0_36 = arith.constant 0 : index
    %95 = vector.load %arg21[%94, %c0_36] : memref<128x384xf32, #tpu.memory_space<vmem>>, vector<16x384xf32>
    %96 = arith.truncf %87 : vector<16x128xf32> to vector<16x128xbf16>
    %c0_37 = arith.constant 0 : index
    %c0_38 = arith.constant 0 : index
    %97 = vector.load %arg13[%c0_37, %c0_38] : memref<128x384xbf16, #tpu.memory_space<vmem>>, vector<128x384xbf16>
    %cst_39 = arith.constant dense<0.000000e+00> : vector<16x384xf32>
    %98 = tpu.matmul %96, %97, %cst_39 {dimension_numbers = #tpu.dot_dimension_numbers<[1], [0], [0], [1], [0, 0, 1, 1], [], []>} : vector<16x128xbf16>, vector<128x384xbf16>, vector<16x384xf32> -> vector<16x384xf32>
    %99 = vector.extract_strided_slice %95 {offsets = [0, 0], sizes = [16, 128], strides = [1, 1]} : vector<16x384xf32> to vector<16x128xf32>
    %100 = vector.extract_strided_slice %98 {offsets = [0, 0], sizes = [16, 128], strides = [1, 1]} : vector<16x384xf32> to vector<16x128xf32>
    %101 = arith.addf %99, %100 : vector<16x128xf32>
    %102 = arith.negf %101 : vector<16x128xf32>
    %103 = math.exp %102 : vector<16x128xf32>
    %cst_40 = arith.constant 1.000000e+00 : f32
    %104 = vector.broadcast %cst_40 : f32 to vector<16x128xf32>
    %105 = arith.addf %104, %103 : vector<16x128xf32>
    %106 = arith.divf %104, %105 : vector<16x128xf32>
    %107 = vector.extract_strided_slice %95 {offsets = [0, 128], sizes = [16, 128], strides = [1, 1]} : vector<16x384xf32> to vector<16x128xf32>
    %108 = vector.extract_strided_slice %98 {offsets = [0, 128], sizes = [16, 128], strides = [1, 1]} : vector<16x384xf32> to vector<16x128xf32>
    %109 = arith.addf %107, %108 : vector<16x128xf32>
    %110 = arith.negf %109 : vector<16x128xf32>
    %111 = math.exp %110 : vector<16x128xf32>
    %cst_41 = arith.constant 1.000000e+00 : f32
    %112 = vector.broadcast %cst_41 : f32 to vector<16x128xf32>
    %113 = arith.addf %112, %111 : vector<16x128xf32>
    %114 = arith.divf %112, %113 : vector<16x128xf32>
    %115 = vector.extract_strided_slice %95 {offsets = [0, 256], sizes = [16, 128], strides = [1, 1]} : vector<16x384xf32> to vector<16x128xf32>
    %116 = vector.extract_strided_slice %98 {offsets = [0, 256], sizes = [16, 128], strides = [1, 1]} : vector<16x384xf32> to vector<16x128xf32>
    %c0_42 = arith.constant 0 : index
    %c0_43 = arith.constant 0 : index
    %117 = vector.load %arg15[%c0_42, %c0_43] : memref<1x128xf32, #tpu.memory_space<vmem>>, vector<1x128xf32>
    %118 = vector.broadcast %117 : vector<1x128xf32> to vector<16x128xf32>
    %119 = arith.addf %116, %118 : vector<16x128xf32>
    %120 = arith.mulf %106, %119 : vector<16x128xf32>
    %121 = arith.addf %115, %120 : vector<16x128xf32>
    %122 = math.tanh %121 : vector<16x128xf32>
    %cst_44 = arith.constant 1.000000e+00 : f32
    %123 = vector.broadcast %cst_44 : f32 to vector<16x128xf32>
    %124 = arith.subf %123, %114 : vector<16x128xf32>
    %125 = arith.mulf %124, %122 : vector<16x128xf32>
    %126 = arith.mulf %114, %87 : vector<16x128xf32>
    %127 = arith.addf %125, %126 : vector<16x128xf32>
    %c16_i32_45 = arith.constant 16 : i32
    %128 = arith.muli %c2_i32, %c16_i32_45 : i32
    %129 = tpu.assume_multiple %128, 8 : i32
    %130 = arith.index_cast %129 : i32 to index
    %c0_46 = arith.constant 0 : index
    %131 = vector.load %arg22[%130, %c0_46] : memref<128x128xf32, #tpu.memory_space<vmem>>, vector<16x128xf32>
    tpu.vector_store %arg22[%130, %c0_46], %127 {strides = array<i32>} : memref<128x128xf32, #tpu.memory_space<vmem>>, vector<16x128xf32>,
    %c3_i32 = arith.constant 3 : i32
    %c16_i32_47 = arith.constant 16 : i32
    %132 = arith.muli %c3_i32, %c16_i32_47 : i32
    %133 = tpu.assume_multiple %132, 8 : i32
    %134 = arith.index_cast %133 : i32 to index
    %c0_48 = arith.constant 0 : index
    %135 = vector.load %arg21[%134, %c0_48] : memref<128x384xf32, #tpu.memory_space<vmem>>, vector<16x384xf32>
    %136 = arith.truncf %127 : vector<16x128xf32> to vector<16x128xbf16>
    %c0_49 = arith.constant 0 : index
    %c0_50 = arith.constant 0 : index
    %137 = vector.load %arg13[%c0_49, %c0_50] : memref<128x384xbf16, #tpu.memory_space<vmem>>, vector<128x384xbf16>
    %cst_51 = arith.constant dense<0.000000e+00> : vector<16x384xf32>
    %138 = tpu.matmul %136, %137, %cst_51 {dimension_numbers = #tpu.dot_dimension_numbers<[1], [0], [0], [1], [0, 0, 1, 1], [], []>} : vector<16x128xbf16>, vector<128x384xbf16>, vector<16x384xf32> -> vector<16x384xf32>
    %139 = vector.extract_strided_slice %135 {offsets = [0, 0], sizes = [16, 128], strides = [1, 1]} : vector<16x384xf32> to vector<16x128xf32>
    %140 = vector.extract_strided_slice %138 {offsets = [0, 0], sizes = [16, 128], strides = [1, 1]} : vector<16x384xf32> to vector<16x128xf32>
    %141 = arith.addf %139, %140 : vector<16x128xf32>
    %142 = arith.negf %141 : vector<16x128xf32>
    %143 = math.exp %142 : vector<16x128xf32>
    %cst_52 = arith.constant 1.000000e+00 : f32
    %144 = vector.broadcast %cst_52 : f32 to vector<16x128xf32>
    %145 = arith.addf %144, %143 : vector<16x128xf32>
    %146 = arith.divf %144, %145 : vector<16x128xf32>
    %147 = vector.extract_strided_slice %135 {offsets = [0, 128], sizes = [16, 128], strides = [1, 1]} : vector<16x384xf32> to vector<16x128xf32>
    %148 = vector.extract_strided_slice %138 {offsets = [0, 128], sizes = [16, 128], strides = [1, 1]} : vector<16x384xf32> to vector<16x128xf32>
    %149 = arith.addf %147, %148 : vector<16x128xf32>
    %150 = arith.negf %149 : vector<16x128xf32>
    %151 = math.exp %150 : vector<16x128xf32>
    %cst_53 = arith.constant 1.000000e+00 : f32
    %152 = vector.broadcast %cst_53 : f32 to vector<16x128xf32>
    %153 = arith.addf %152, %151 : vector<16x128xf32>
    %154 = arith.divf %152, %153 : vector<16x128xf32>
    %155 = vector.extract_strided_slice %135 {offsets = [0, 256], sizes = [16, 128], strides = [1, 1]} : vector<16x384xf32> to vector<16x128xf32>
    %156 = vector.extract_strided_slice %138 {offsets = [0, 256], sizes = [16, 128], strides = [1, 1]} : vector<16x384xf32> to vector<16x128xf32>
    %c0_54 = arith.constant 0 : index
    %c0_55 = arith.constant 0 : index
    %157 = vector.load %arg15[%c0_54, %c0_55] : memref<1x128xf32, #tpu.memory_space<vmem>>, vector<1x128xf32>
    %158 = vector.broadcast %157 : vector<1x128xf32> to vector<16x128xf32>
    %159 = arith.addf %156, %158 : vector<16x128xf32>
    %160 = arith.mulf %146, %159 : vector<16x128xf32>
    %161 = arith.addf %155, %160 : vector<16x128xf32>
    %162 = math.tanh %161 : vector<16x128xf32>
    %cst_56 = arith.constant 1.000000e+00 : f32
    %163 = vector.broadcast %cst_56 : f32 to vector<16x128xf32>
    %164 = arith.subf %163, %154 : vector<16x128xf32>
    %165 = arith.mulf %164, %162 : vector<16x128xf32>
    %166 = arith.mulf %154, %127 : vector<16x128xf32>
    %167 = arith.addf %165, %166 : vector<16x128xf32>
    %c16_i32_57 = arith.constant 16 : i32
    %168 = arith.muli %c3_i32, %c16_i32_57 : i32
    %169 = tpu.assume_multiple %168, 8 : i32
    %170 = arith.index_cast %169 : i32 to index
    %c0_58 = arith.constant 0 : index
    %171 = vector.load %arg22[%170, %c0_58] : memref<128x128xf32, #tpu.memory_space<vmem>>, vector<16x128xf32>
    tpu.vector_store %arg22[%170, %c0_58], %167 {strides = array<i32>} : memref<128x128xf32, #tpu.memory_space<vmem>>, vector<16x128xf32>,
    %c4_i32 = arith.constant 4 : i32
    %c16_i32_59 = arith.constant 16 : i32
    %172 = arith.muli %c4_i32, %c16_i32_59 : i32
    %173 = tpu.assume_multiple %172, 8 : i32
    %174 = arith.index_cast %173 : i32 to index
    %c0_60 = arith.constant 0 : index
    %175 = vector.load %arg21[%174, %c0_60] : memref<128x384xf32, #tpu.memory_space<vmem>>, vector<16x384xf32>
    %176 = arith.truncf %167 : vector<16x128xf32> to vector<16x128xbf16>
    %c0_61 = arith.constant 0 : index
    %c0_62 = arith.constant 0 : index
    %177 = vector.load %arg13[%c0_61, %c0_62] : memref<128x384xbf16, #tpu.memory_space<vmem>>, vector<128x384xbf16>
    %cst_63 = arith.constant dense<0.000000e+00> : vector<16x384xf32>
    %178 = tpu.matmul %176, %177, %cst_63 {dimension_numbers = #tpu.dot_dimension_numbers<[1], [0], [0], [1], [0, 0, 1, 1], [], []>} : vector<16x128xbf16>, vector<128x384xbf16>, vector<16x384xf32> -> vector<16x384xf32>
    %179 = vector.extract_strided_slice %175 {offsets = [0, 0], sizes = [16, 128], strides = [1, 1]} : vector<16x384xf32> to vector<16x128xf32>
    %180 = vector.extract_strided_slice %178 {offsets = [0, 0], sizes = [16, 128], strides = [1, 1]} : vector<16x384xf32> to vector<16x128xf32>
    %181 = arith.addf %179, %180 : vector<16x128xf32>
    %182 = arith.negf %181 : vector<16x128xf32>
    %183 = math.exp %182 : vector<16x128xf32>
    %cst_64 = arith.constant 1.000000e+00 : f32
    %184 = vector.broadcast %cst_64 : f32 to vector<16x128xf32>
    %185 = arith.addf %184, %183 : vector<16x128xf32>
    %186 = arith.divf %184, %185 : vector<16x128xf32>
    %187 = vector.extract_strided_slice %175 {offsets = [0, 128], sizes = [16, 128], strides = [1, 1]} : vector<16x384xf32> to vector<16x128xf32>
    %188 = vector.extract_strided_slice %178 {offsets = [0, 128], sizes = [16, 128], strides = [1, 1]} : vector<16x384xf32> to vector<16x128xf32>
    %189 = arith.addf %187, %188 : vector<16x128xf32>
    %190 = arith.negf %189 : vector<16x128xf32>
    %191 = math.exp %190 : vector<16x128xf32>
    %cst_65 = arith.constant 1.000000e+00 : f32
    %192 = vector.broadcast %cst_65 : f32 to vector<16x128xf32>
    %193 = arith.addf %192, %191 : vector<16x128xf32>
    %194 = arith.divf %192, %193 : vector<16x128xf32>
    %195 = vector.extract_strided_slice %175 {offsets = [0, 256], sizes = [16, 128], strides = [1, 1]} : vector<16x384xf32> to vector<16x128xf32>
    %196 = vector.extract_strided_slice %178 {offsets = [0, 256], sizes = [16, 128], strides = [1, 1]} : vector<16x384xf32> to vector<16x128xf32>
    %c0_66 = arith.constant 0 : index
    %c0_67 = arith.constant 0 : index
    %197 = vector.load %arg15[%c0_66, %c0_67] : memref<1x128xf32, #tpu.memory_space<vmem>>, vector<1x128xf32>
    %198 = vector.broadcast %197 : vector<1x128xf32> to vector<16x128xf32>
    %199 = arith.addf %196, %198 : vector<16x128xf32>
    %200 = arith.mulf %186, %199 : vector<16x128xf32>
    %201 = arith.addf %195, %200 : vector<16x128xf32>
    %202 = math.tanh %201 : vector<16x128xf32>
    %cst_68 = arith.constant 1.000000e+00 : f32
    %203 = vector.broadcast %cst_68 : f32 to vector<16x128xf32>
    %204 = arith.subf %203, %194 : vector<16x128xf32>
    %205 = arith.mulf %204, %202 : vector<16x128xf32>
    %206 = arith.mulf %194, %167 : vector<16x128xf32>
    %207 = arith.addf %205, %206 : vector<16x128xf32>
    %c16_i32_69 = arith.constant 16 : i32
    %208 = arith.muli %c4_i32, %c16_i32_69 : i32
    %209 = tpu.assume_multiple %208, 8 : i32
    %210 = arith.index_cast %209 : i32 to index
    %c0_70 = arith.constant 0 : index
    %211 = vector.load %arg22[%210, %c0_70] : memref<128x128xf32, #tpu.memory_space<vmem>>, vector<16x128xf32>
    tpu.vector_store %arg22[%210, %c0_70], %207 {strides = array<i32>} : memref<128x128xf32, #tpu.memory_space<vmem>>, vector<16x128xf32>,
    %c5_i32 = arith.constant 5 : i32
    %c16_i32_71 = arith.constant 16 : i32
    %212 = arith.muli %c5_i32, %c16_i32_71 : i32
    %213 = tpu.assume_multiple %212, 8 : i32
    %214 = arith.index_cast %213 : i32 to index
    %c0_72 = arith.constant 0 : index
    %215 = vector.load %arg21[%214, %c0_72] : memref<128x384xf32, #tpu.memory_space<vmem>>, vector<16x384xf32>
    %216 = arith.truncf %207 : vector<16x128xf32> to vector<16x128xbf16>
    %c0_73 = arith.constant 0 : index
    %c0_74 = arith.constant 0 : index
    %217 = vector.load %arg13[%c0_73, %c0_74] : memref<128x384xbf16, #tpu.memory_space<vmem>>, vector<128x384xbf16>
    %cst_75 = arith.constant dense<0.000000e+00> : vector<16x384xf32>
    %218 = tpu.matmul %216, %217, %cst_75 {dimension_numbers = #tpu.dot_dimension_numbers<[1], [0], [0], [1], [0, 0, 1, 1], [], []>} : vector<16x128xbf16>, vector<128x384xbf16>, vector<16x384xf32> -> vector<16x384xf32>
    %219 = vector.extract_strided_slice %215 {offsets = [0, 0], sizes = [16, 128], strides = [1, 1]} : vector<16x384xf32> to vector<16x128xf32>
    %220 = vector.extract_strided_slice %218 {offsets = [0, 0], sizes = [16, 128], strides = [1, 1]} : vector<16x384xf32> to vector<16x128xf32>
    %221 = arith.addf %219, %220 : vector<16x128xf32>
    %222 = arith.negf %221 : vector<16x128xf32>
    %223 = math.exp %222 : vector<16x128xf32>
    %cst_76 = arith.constant 1.000000e+00 : f32
    %224 = vector.broadcast %cst_76 : f32 to vector<16x128xf32>
    %225 = arith.addf %224, %223 : vector<16x128xf32>
    %226 = arith.divf %224, %225 : vector<16x128xf32>
    %227 = vector.extract_strided_slice %215 {offsets = [0, 128], sizes = [16, 128], strides = [1, 1]} : vector<16x384xf32> to vector<16x128xf32>
    %228 = vector.extract_strided_slice %218 {offsets = [0, 128], sizes = [16, 128], strides = [1, 1]} : vector<16x384xf32> to vector<16x128xf32>
    %229 = arith.addf %227, %228 : vector<16x128xf32>
    %230 = arith.negf %229 : vector<16x128xf32>
    %231 = math.exp %230 : vector<16x128xf32>
    %cst_77 = arith.constant 1.000000e+00 : f32
    %232 = vector.broadcast %cst_77 : f32 to vector<16x128xf32>
    %233 = arith.addf %232, %231 : vector<16x128xf32>
    %234 = arith.divf %232, %233 : vector<16x128xf32>
    %235 = vector.extract_strided_slice %215 {offsets = [0, 256], sizes = [16, 128], strides = [1, 1]} : vector<16x384xf32> to vector<16x128xf32>
    %236 = vector.extract_strided_slice %218 {offsets = [0, 256], sizes = [16, 128], strides = [1, 1]} : vector<16x384xf32> to vector<16x128xf32>
    %c0_78 = arith.constant 0 : index
    %c0_79 = arith.constant 0 : index
    %237 = vector.load %arg15[%c0_78, %c0_79] : memref<1x128xf32, #tpu.memory_space<vmem>>, vector<1x128xf32>
    %238 = vector.broadcast %237 : vector<1x128xf32> to vector<16x128xf32>
    %239 = arith.addf %236, %238 : vector<16x128xf32>
    %240 = arith.mulf %226, %239 : vector<16x128xf32>
    %241 = arith.addf %235, %240 : vector<16x128xf32>
    %242 = math.tanh %241 : vector<16x128xf32>
    %cst_80 = arith.constant 1.000000e+00 : f32
    %243 = vector.broadcast %cst_80 : f32 to vector<16x128xf32>
    %244 = arith.subf %243, %234 : vector<16x128xf32>
    %245 = arith.mulf %244, %242 : vector<16x128xf32>
    %246 = arith.mulf %234, %207 : vector<16x128xf32>
    %247 = arith.addf %245, %246 : vector<16x128xf32>
    %c16_i32_81 = arith.constant 16 : i32
    %248 = arith.muli %c5_i32, %c16_i32_81 : i32
    %249 = tpu.assume_multiple %248, 8 : i32
    %250 = arith.index_cast %249 : i32 to index
    %c0_82 = arith.constant 0 : index
    %251 = vector.load %arg22[%250, %c0_82] : memref<128x128xf32, #tpu.memory_space<vmem>>, vector<16x128xf32>
    tpu.vector_store %arg22[%250, %c0_82], %247 {strides = array<i32>} : memref<128x128xf32, #tpu.memory_space<vmem>>, vector<16x128xf32>,
    %c6_i32 = arith.constant 6 : i32
    %c16_i32_83 = arith.constant 16 : i32
    %252 = arith.muli %c6_i32, %c16_i32_83 : i32
    %253 = tpu.assume_multiple %252, 8 : i32
    %254 = arith.index_cast %253 : i32 to index
    %c0_84 = arith.constant 0 : index
    %255 = vector.load %arg21[%254, %c0_84] : memref<128x384xf32, #tpu.memory_space<vmem>>, vector<16x384xf32>
    %256 = arith.truncf %247 : vector<16x128xf32> to vector<16x128xbf16>
    %c0_85 = arith.constant 0 : index
    %c0_86 = arith.constant 0 : index
    %257 = vector.load %arg13[%c0_85, %c0_86] : memref<128x384xbf16, #tpu.memory_space<vmem>>, vector<128x384xbf16>
    %cst_87 = arith.constant dense<0.000000e+00> : vector<16x384xf32>
    %258 = tpu.matmul %256, %257, %cst_87 {dimension_numbers = #tpu.dot_dimension_numbers<[1], [0], [0], [1], [0, 0, 1, 1], [], []>} : vector<16x128xbf16>, vector<128x384xbf16>, vector<16x384xf32> -> vector<16x384xf32>
    %259 = vector.extract_strided_slice %255 {offsets = [0, 0], sizes = [16, 128], strides = [1, 1]} : vector<16x384xf32> to vector<16x128xf32>
    %260 = vector.extract_strided_slice %258 {offsets = [0, 0], sizes = [16, 128], strides = [1, 1]} : vector<16x384xf32> to vector<16x128xf32>
    %261 = arith.addf %259, %260 : vector<16x128xf32>
    %262 = arith.negf %261 : vector<16x128xf32>
    %263 = math.exp %262 : vector<16x128xf32>
    %cst_88 = arith.constant 1.000000e+00 : f32
    %264 = vector.broadcast %cst_88 : f32 to vector<16x128xf32>
    %265 = arith.addf %264, %263 : vector<16x128xf32>
    %266 = arith.divf %264, %265 : vector<16x128xf32>
    %267 = vector.extract_strided_slice %255 {offsets = [0, 128], sizes = [16, 128], strides = [1, 1]} : vector<16x384xf32> to vector<16x128xf32>
    %268 = vector.extract_strided_slice %258 {offsets = [0, 128], sizes = [16, 128], strides = [1, 1]} : vector<16x384xf32> to vector<16x128xf32>
    %269 = arith.addf %267, %268 : vector<16x128xf32>
    %270 = arith.negf %269 : vector<16x128xf32>
    %271 = math.exp %270 : vector<16x128xf32>
    %cst_89 = arith.constant 1.000000e+00 : f32
    %272 = vector.broadcast %cst_89 : f32 to vector<16x128xf32>
    %273 = arith.addf %272, %271 : vector<16x128xf32>
    %274 = arith.divf %272, %273 : vector<16x128xf32>
    %275 = vector.extract_strided_slice %255 {offsets = [0, 256], sizes = [16, 128], strides = [1, 1]} : vector<16x384xf32> to vector<16x128xf32>
    %276 = vector.extract_strided_slice %258 {offsets = [0, 256], sizes = [16, 128], strides = [1, 1]} : vector<16x384xf32> to vector<16x128xf32>
    %c0_90 = arith.constant 0 : index
    %c0_91 = arith.constant 0 : index
    %277 = vector.load %arg15[%c0_90, %c0_91] : memref<1x128xf32, #tpu.memory_space<vmem>>, vector<1x128xf32>
    %278 = vector.broadcast %277 : vector<1x128xf32> to vector<16x128xf32>
    %279 = arith.addf %276, %278 : vector<16x128xf32>
    %280 = arith.mulf %266, %279 : vector<16x128xf32>
    %281 = arith.addf %275, %280 : vector<16x128xf32>
    %282 = math.tanh %281 : vector<16x128xf32>
    %cst_92 = arith.constant 1.000000e+00 : f32
    %283 = vector.broadcast %cst_92 : f32 to vector<16x128xf32>
    %284 = arith.subf %283, %274 : vector<16x128xf32>
    %285 = arith.mulf %284, %282 : vector<16x128xf32>
    %286 = arith.mulf %274, %247 : vector<16x128xf32>
    %287 = arith.addf %285, %286 : vector<16x128xf32>
    %c16_i32_93 = arith.constant 16 : i32
    %288 = arith.muli %c6_i32, %c16_i32_93 : i32
    %289 = tpu.assume_multiple %288, 8 : i32
    %290 = arith.index_cast %289 : i32 to index
    %c0_94 = arith.constant 0 : index
    %291 = vector.load %arg22[%290, %c0_94] : memref<128x128xf32, #tpu.memory_space<vmem>>, vector<16x128xf32>
    tpu.vector_store %arg22[%290, %c0_94], %287 {strides = array<i32>} : memref<128x128xf32, #tpu.memory_space<vmem>>, vector<16x128xf32>,
    %c7_i32 = arith.constant 7 : i32
    %c16_i32_95 = arith.constant 16 : i32
    %292 = arith.muli %c7_i32, %c16_i32_95 : i32
    %293 = tpu.assume_multiple %292, 8 : i32
    %294 = arith.index_cast %293 : i32 to index
    %c0_96 = arith.constant 0 : index
    %295 = vector.load %arg21[%294, %c0_96] : memref<128x384xf32, #tpu.memory_space<vmem>>, vector<16x384xf32>
    %296 = arith.truncf %287 : vector<16x128xf32> to vector<16x128xbf16>
    %c0_97 = arith.constant 0 : index
    %c0_98 = arith.constant 0 : index
    %297 = vector.load %arg13[%c0_97, %c0_98] : memref<128x384xbf16, #tpu.memory_space<vmem>>, vector<128x384xbf16>
    %cst_99 = arith.constant dense<0.000000e+00> : vector<16x384xf32>
    %298 = tpu.matmul %296, %297, %cst_99 {dimension_numbers = #tpu.dot_dimension_numbers<[1], [0], [0], [1], [0, 0, 1, 1], [], []>} : vector<16x128xbf16>, vector<128x384xbf16>, vector<16x384xf32> -> vector<16x384xf32>
    %299 = vector.extract_strided_slice %295 {offsets = [0, 0], sizes = [16, 128], strides = [1, 1]} : vector<16x384xf32> to vector<16x128xf32>
    %300 = vector.extract_strided_slice %298 {offsets = [0, 0], sizes = [16, 128], strides = [1, 1]} : vector<16x384xf32> to vector<16x128xf32>
    %301 = arith.addf %299, %300 : vector<16x128xf32>
    %302 = arith.negf %301 : vector<16x128xf32>
    %303 = math.exp %302 : vector<16x128xf32>
    %cst_100 = arith.constant 1.000000e+00 : f32
    %304 = vector.broadcast %cst_100 : f32 to vector<16x128xf32>
    %305 = arith.addf %304, %303 : vector<16x128xf32>
    %306 = arith.divf %304, %305 : vector<16x128xf32>
    %307 = vector.extract_strided_slice %295 {offsets = [0, 128], sizes = [16, 128], strides = [1, 1]} : vector<16x384xf32> to vector<16x128xf32>
    %308 = vector.extract_strided_slice %298 {offsets = [0, 128], sizes = [16, 128], strides = [1, 1]} : vector<16x384xf32> to vector<16x128xf32>
    %309 = arith.addf %307, %308 : vector<16x128xf32>
    %310 = arith.negf %309 : vector<16x128xf32>
    %311 = math.exp %310 : vector<16x128xf32>
    %cst_101 = arith.constant 1.000000e+00 : f32
    %312 = vector.broadcast %cst_101 : f32 to vector<16x128xf32>
    %313 = arith.addf %312, %311 : vector<16x128xf32>
    %314 = arith.divf %312, %313 : vector<16x128xf32>
    %315 = vector.extract_strided_slice %295 {offsets = [0, 256], sizes = [16, 128], strides = [1, 1]} : vector<16x384xf32> to vector<16x128xf32>
    %316 = vector.extract_strided_slice %298 {offsets = [0, 256], sizes = [16, 128], strides = [1, 1]} : vector<16x384xf32> to vector<16x128xf32>
    %c0_102 = arith.constant 0 : index
    %c0_103 = arith.constant 0 : index
    %317 = vector.load %arg15[%c0_102, %c0_103] : memref<1x128xf32, #tpu.memory_space<vmem>>, vector<1x128xf32>
    %318 = vector.broadcast %317 : vector<1x128xf32> to vector<16x128xf32>
    %319 = arith.addf %316, %318 : vector<16x128xf32>
    %320 = arith.mulf %306, %319 : vector<16x128xf32>
    %321 = arith.addf %315, %320 : vector<16x128xf32>
    %322 = math.tanh %321 : vector<16x128xf32>
    %cst_104 = arith.constant 1.000000e+00 : f32
    %323 = vector.broadcast %cst_104 : f32 to vector<16x128xf32>
    %324 = arith.subf %323, %314 : vector<16x128xf32>
    %325 = arith.mulf %324, %322 : vector<16x128xf32>
    %326 = arith.mulf %314, %287 : vector<16x128xf32>
    %327 = arith.addf %325, %326 : vector<16x128xf32>
    %c16_i32_105 = arith.constant 16 : i32
    %328 = arith.muli %c7_i32, %c16_i32_105 : i32
    %329 = tpu.assume_multiple %328, 8 : i32
    %330 = arith.index_cast %329 : i32 to index
    %c0_106 = arith.constant 0 : index
    %331 = vector.load %arg22[%330, %c0_106] : memref<128x128xf32, #tpu.memory_space<vmem>>, vector<16x128xf32>
    tpu.vector_store %arg22[%330, %c0_106], %327 {strides = array<i32>} : memref<128x128xf32, #tpu.memory_space<vmem>>, vector<16x128xf32>,
    %c8_i32 = arith.constant 8 : i32
    %c0_107 = arith.constant 0 : index
    %c0_108 = arith.constant 0 : index
    %c0_109 = arith.constant 0 : index
    %332 = vector.load %arg20[%c0_107, %c0_108, %c0_109] : memref<2x16x128xf32, #tpu.memory_space<vmem>>, vector<1x16x128xf32>
    %333 = vector.shape_cast %332 : vector<1x16x128xf32> to vector<16x128xf32>
    %334 = vector.shape_cast %327 : vector<16x128xf32> to vector<1x16x128xf32>
    tpu.vector_store %arg20[%c0_107, %c0_108, %c0_109], %334 {strides = array<i32>} : memref<2x16x128xf32, #tpu.memory_space<vmem>>, vector<1x16x128xf32>,
    %c0_110 = arith.constant 0 : index
    %c0_111 = arith.constant 0 : index
    %335 = vector.load %arg22[%c0_110, %c0_111] : memref<128x128xf32, #tpu.memory_space<vmem>>, vector<128x128xf32>
    %336 = arith.truncf %335 : vector<128x128xf32> to vector<128x128xbf16>
    %c0_112 = arith.constant 0 : index
    %c0_113 = arith.constant 0 : index
    %337 = vector.load %arg16[%c0_112, %c0_113] : memref<128x384xbf16, #tpu.memory_space<vmem>>, vector<128x384xbf16>
    %cst_114 = arith.constant dense<0.000000e+00> : vector<128x384xf32>
    %338 = tpu.matmul %336, %337, %cst_114 {dimension_numbers = #tpu.dot_dimension_numbers<[1], [0], [0], [1], [0, 0, 1, 1], [], []>} : vector<128x128xbf16>, vector<128x384xbf16>, vector<128x384xf32> -> vector<128x384xf32>
    %c0_115 = arith.constant 0 : index
    %c0_116 = arith.constant 0 : index
    %339 = vector.load %arg18[%c0_115, %c0_116] : memref<1x384xf32, #tpu.memory_space<vmem>>, vector<1x384xf32>
    %340 = vector.broadcast %339 : vector<1x384xf32> to vector<128x384xf32>
    %341 = arith.addf %338, %340 : vector<128x384xf32>
    %c0_117 = arith.constant 0 : index
    %c0_118 = arith.constant 0 : index
    %342 = vector.load %arg21[%c0_117, %c0_118] : memref<128x384xf32, #tpu.memory_space<vmem>>, vector<128x384xf32>
    tpu.vector_store %arg21[%c0_117, %c0_118], %341 {strides = array<i32>} : memref<128x384xf32, #tpu.memory_space<vmem>>, vector<128x384xf32>,
    %c1 = arith.constant 1 : index
    %c0_119 = arith.constant 0 : index
    %c0_120 = arith.constant 0 : index
    %343 = vector.load %arg20[%c1, %c0_119, %c0_120] : memref<2x16x128xf32, #tpu.memory_space<vmem>>, vector<1x16x128xf32>
    %344 = vector.shape_cast %343 : vector<1x16x128xf32> to vector<16x128xf32>
    %c0_i32_121 = arith.constant 0 : i32
    %c16_i32_122 = arith.constant 16 : i32
    %345 = arith.muli %c0_i32_121, %c16_i32_122 : i32
    %346 = tpu.assume_multiple %345, 8 : i32
    %347 = arith.index_cast %346 : i32 to index
    %c0_123 = arith.constant 0 : index
    %348 = vector.load %arg21[%347, %c0_123] : memref<128x384xf32, #tpu.memory_space<vmem>>, vector<16x384xf32>
    %349 = arith.truncf %344 : vector<16x128xf32> to vector<16x128xbf16>
    %c0_124 = arith.constant 0 : index
    %c0_125 = arith.constant 0 : index
    %350 = vector.load %arg17[%c0_124, %c0_125] : memref<128x384xbf16, #tpu.memory_space<vmem>>, vector<128x384xbf16>
    %cst_126 = arith.constant dense<0.000000e+00> : vector<16x384xf32>
    %351 = tpu.matmul %349, %350, %cst_126 {dimension_numbers = #tpu.dot_dimension_numbers<[1], [0], [0], [1], [0, 0, 1, 1], [], []>} : vector<16x128xbf16>, vector<128x384xbf16>, vector<16x384xf32> -> vector<16x384xf32>
    %352 = vector.extract_strided_slice %348 {offsets = [0, 0], sizes = [16, 128], strides = [1, 1]} : vector<16x384xf32> to vector<16x128xf32>
    %353 = vector.extract_strided_slice %351 {offsets = [0, 0], sizes = [16, 128], strides = [1, 1]} : vector<16x384xf32> to vector<16x128xf32>
    %354 = arith.addf %352, %353 : vector<16x128xf32>
    %355 = arith.negf %354 : vector<16x128xf32>
    %356 = math.exp %355 : vector<16x128xf32>
    %cst_127 = arith.constant 1.000000e+00 : f32
    %357 = vector.broadcast %cst_127 : f32 to vector<16x128xf32>
    %358 = arith.addf %357, %356 : vector<16x128xf32>
    %359 = arith.divf %357, %358 : vector<16x128xf32>
    %360 = vector.extract_strided_slice %348 {offsets = [0, 128], sizes = [16, 128], strides = [1, 1]} : vector<16x384xf32> to vector<16x128xf32>
    %361 = vector.extract_strided_slice %351 {offsets = [0, 128], sizes = [16, 128], strides = [1, 1]} : vector<16x384xf32> to vector<16x128xf32>
    %362 = arith.addf %360, %361 : vector<16x128xf32>
    %363 = arith.negf %362 : vector<16x128xf32>
    %364 = math.exp %363 : vector<16x128xf32>
    %cst_128 = arith.constant 1.000000e+00 : f32
    %365 = vector.broadcast %cst_128 : f32 to vector<16x128xf32>
    %366 = arith.addf %365, %364 : vector<16x128xf32>
    %367 = arith.divf %365, %366 : vector<16x128xf32>
    %368 = vector.extract_strided_slice %348 {offsets = [0, 256], sizes = [16, 128], strides = [1, 1]} : vector<16x384xf32> to vector<16x128xf32>
    %369 = vector.extract_strided_slice %351 {offsets = [0, 256], sizes = [16, 128], strides = [1, 1]} : vector<16x384xf32> to vector<16x128xf32>
    %c0_129 = arith.constant 0 : index
    %c0_130 = arith.constant 0 : index
    %370 = vector.load %arg19[%c0_129, %c0_130] : memref<1x128xf32, #tpu.memory_space<vmem>>, vector<1x128xf32>
    %371 = vector.broadcast %370 : vector<1x128xf32> to vector<16x128xf32>
    %372 = arith.addf %369, %371 : vector<16x128xf32>
    %373 = arith.mulf %359, %372 : vector<16x128xf32>
    %374 = arith.addf %368, %373 : vector<16x128xf32>
    %375 = math.tanh %374 : vector<16x128xf32>
    %cst_131 = arith.constant 1.000000e+00 : f32
    %376 = vector.broadcast %cst_131 : f32 to vector<16x128xf32>
    %377 = arith.subf %376, %367 : vector<16x128xf32>
    %378 = arith.mulf %377, %375 : vector<16x128xf32>
    %379 = arith.mulf %367, %344 : vector<16x128xf32>
    %380 = arith.addf %378, %379 : vector<16x128xf32>
    %c1_i32_132 = arith.constant 1 : i32
    %c16_i32_133 = arith.constant 16 : i32
    %381 = arith.muli %c1_i32_132, %c16_i32_133 : i32
    %382 = tpu.assume_multiple %381, 8 : i32
    %383 = arith.index_cast %382 : i32 to index
    %c0_134 = arith.constant 0 : index
    %384 = vector.load %arg21[%383, %c0_134] : memref<128x384xf32, #tpu.memory_space<vmem>>, vector<16x384xf32>
    %385 = arith.truncf %380 : vector<16x128xf32> to vector<16x128xbf16>
    %c0_135 = arith.constant 0 : index
    %c0_136 = arith.constant 0 : index
    %386 = vector.load %arg17[%c0_135, %c0_136] : memref<128x384xbf16, #tpu.memory_space<vmem>>, vector<128x384xbf16>
    %cst_137 = arith.constant dense<0.000000e+00> : vector<16x384xf32>
    %387 = tpu.matmul %385, %386, %cst_137 {dimension_numbers = #tpu.dot_dimension_numbers<[1], [0], [0], [1], [0, 0, 1, 1], [], []>} : vector<16x128xbf16>, vector<128x384xbf16>, vector<16x384xf32> -> vector<16x384xf32>
    %388 = vector.extract_strided_slice %384 {offsets = [0, 0], sizes = [16, 128], strides = [1, 1]} : vector<16x384xf32> to vector<16x128xf32>
    %389 = vector.extract_strided_slice %387 {offsets = [0, 0], sizes = [16, 128], strides = [1, 1]} : vector<16x384xf32> to vector<16x128xf32>
    %390 = arith.addf %388, %389 : vector<16x128xf32>
    %391 = arith.negf %390 : vector<16x128xf32>
    %392 = math.exp %391 : vector<16x128xf32>
    %cst_138 = arith.constant 1.000000e+00 : f32
    %393 = vector.broadcast %cst_138 : f32 to vector<16x128xf32>
    %394 = arith.addf %393, %392 : vector<16x128xf32>
    %395 = arith.divf %393, %394 : vector<16x128xf32>
    %396 = vector.extract_strided_slice %384 {offsets = [0, 128], sizes = [16, 128], strides = [1, 1]} : vector<16x384xf32> to vector<16x128xf32>
    %397 = vector.extract_strided_slice %387 {offsets = [0, 128], sizes = [16, 128], strides = [1, 1]} : vector<16x384xf32> to vector<16x128xf32>
    %398 = arith.addf %396, %397 : vector<16x128xf32>
    %399 = arith.negf %398 : vector<16x128xf32>
    %400 = math.exp %399 : vector<16x128xf32>
    %cst_139 = arith.constant 1.000000e+00 : f32
    %401 = vector.broadcast %cst_139 : f32 to vector<16x128xf32>
    %402 = arith.addf %401, %400 : vector<16x128xf32>
    %403 = arith.divf %401, %402 : vector<16x128xf32>
    %404 = vector.extract_strided_slice %384 {offsets = [0, 256], sizes = [16, 128], strides = [1, 1]} : vector<16x384xf32> to vector<16x128xf32>
    %405 = vector.extract_strided_slice %387 {offsets = [0, 256], sizes = [16, 128], strides = [1, 1]} : vector<16x384xf32> to vector<16x128xf32>
    %c0_140 = arith.constant 0 : index
    %c0_141 = arith.constant 0 : index
    %406 = vector.load %arg19[%c0_140, %c0_141] : memref<1x128xf32, #tpu.memory_space<vmem>>, vector<1x128xf32>
    %407 = vector.broadcast %406 : vector<1x128xf32> to vector<16x128xf32>
    %408 = arith.addf %405, %407 : vector<16x128xf32>
    %409 = arith.mulf %395, %408 : vector<16x128xf32>
    %410 = arith.addf %404, %409 : vector<16x128xf32>
    %411 = math.tanh %410 : vector<16x128xf32>
    %cst_142 = arith.constant 1.000000e+00 : f32
    %412 = vector.broadcast %cst_142 : f32 to vector<16x128xf32>
    %413 = arith.subf %412, %403 : vector<16x128xf32>
    %414 = arith.mulf %413, %411 : vector<16x128xf32>
    %415 = arith.mulf %403, %380 : vector<16x128xf32>
    %416 = arith.addf %414, %415 : vector<16x128xf32>
    %c2_i32_143 = arith.constant 2 : i32
    %c16_i32_144 = arith.constant 16 : i32
    %417 = arith.muli %c2_i32_143, %c16_i32_144 : i32
    %418 = tpu.assume_multiple %417, 8 : i32
    %419 = arith.index_cast %418 : i32 to index
    %c0_145 = arith.constant 0 : index
    %420 = vector.load %arg21[%419, %c0_145] : memref<128x384xf32, #tpu.memory_space<vmem>>, vector<16x384xf32>
    %421 = arith.truncf %416 : vector<16x128xf32> to vector<16x128xbf16>
    %c0_146 = arith.constant 0 : index
    %c0_147 = arith.constant 0 : index
    %422 = vector.load %arg17[%c0_146, %c0_147] : memref<128x384xbf16, #tpu.memory_space<vmem>>, vector<128x384xbf16>
    %cst_148 = arith.constant dense<0.000000e+00> : vector<16x384xf32>
    %423 = tpu.matmul %421, %422, %cst_148 {dimension_numbers = #tpu.dot_dimension_numbers<[1], [0], [0], [1], [0, 0, 1, 1], [], []>} : vector<16x128xbf16>, vector<128x384xbf16>, vector<16x384xf32> -> vector<16x384xf32>
    %424 = vector.extract_strided_slice %420 {offsets = [0, 0], sizes = [16, 128], strides = [1, 1]} : vector<16x384xf32> to vector<16x128xf32>
    %425 = vector.extract_strided_slice %423 {offsets = [0, 0], sizes = [16, 128], strides = [1, 1]} : vector<16x384xf32> to vector<16x128xf32>
    %426 = arith.addf %424, %425 : vector<16x128xf32>
    %427 = arith.negf %426 : vector<16x128xf32>
    %428 = math.exp %427 : vector<16x128xf32>
    %cst_149 = arith.constant 1.000000e+00 : f32
    %429 = vector.broadcast %cst_149 : f32 to vector<16x128xf32>
    %430 = arith.addf %429, %428 : vector<16x128xf32>
    %431 = arith.divf %429, %430 : vector<16x128xf32>
    %432 = vector.extract_strided_slice %420 {offsets = [0, 128], sizes = [16, 128], strides = [1, 1]} : vector<16x384xf32> to vector<16x128xf32>
    %433 = vector.extract_strided_slice %423 {offsets = [0, 128], sizes = [16, 128], strides = [1, 1]} : vector<16x384xf32> to vector<16x128xf32>
    %434 = arith.addf %432, %433 : vector<16x128xf32>
    %435 = arith.negf %434 : vector<16x128xf32>
    %436 = math.exp %435 : vector<16x128xf32>
    %cst_150 = arith.constant 1.000000e+00 : f32
    %437 = vector.broadcast %cst_150 : f32 to vector<16x128xf32>
    %438 = arith.addf %437, %436 : vector<16x128xf32>
    %439 = arith.divf %437, %438 : vector<16x128xf32>
    %440 = vector.extract_strided_slice %420 {offsets = [0, 256], sizes = [16, 128], strides = [1, 1]} : vector<16x384xf32> to vector<16x128xf32>
    %441 = vector.extract_strided_slice %423 {offsets = [0, 256], sizes = [16, 128], strides = [1, 1]} : vector<16x384xf32> to vector<16x128xf32>
    %c0_151 = arith.constant 0 : index
    %c0_152 = arith.constant 0 : index
    %442 = vector.load %arg19[%c0_151, %c0_152] : memref<1x128xf32, #tpu.memory_space<vmem>>, vector<1x128xf32>
    %443 = vector.broadcast %442 : vector<1x128xf32> to vector<16x128xf32>
    %444 = arith.addf %441, %443 : vector<16x128xf32>
    %445 = arith.mulf %431, %444 : vector<16x128xf32>
    %446 = arith.addf %440, %445 : vector<16x128xf32>
    %447 = math.tanh %446 : vector<16x128xf32>
    %cst_153 = arith.constant 1.000000e+00 : f32
    %448 = vector.broadcast %cst_153 : f32 to vector<16x128xf32>
    %449 = arith.subf %448, %439 : vector<16x128xf32>
    %450 = arith.mulf %449, %447 : vector<16x128xf32>
    %451 = arith.mulf %439, %416 : vector<16x128xf32>
    %452 = arith.addf %450, %451 : vector<16x128xf32>
    %c3_i32_154 = arith.constant 3 : i32
    %c16_i32_155 = arith.constant 16 : i32
    %453 = arith.muli %c3_i32_154, %c16_i32_155 : i32
    %454 = tpu.assume_multiple %453, 8 : i32
    %455 = arith.index_cast %454 : i32 to index
    %c0_156 = arith.constant 0 : index
    %456 = vector.load %arg21[%455, %c0_156] : memref<128x384xf32, #tpu.memory_space<vmem>>, vector<16x384xf32>
    %457 = arith.truncf %452 : vector<16x128xf32> to vector<16x128xbf16>
    %c0_157 = arith.constant 0 : index
    %c0_158 = arith.constant 0 : index
    %458 = vector.load %arg17[%c0_157, %c0_158] : memref<128x384xbf16, #tpu.memory_space<vmem>>, vector<128x384xbf16>
    %cst_159 = arith.constant dense<0.000000e+00> : vector<16x384xf32>
    %459 = tpu.matmul %457, %458, %cst_159 {dimension_numbers = #tpu.dot_dimension_numbers<[1], [0], [0], [1], [0, 0, 1, 1], [], []>} : vector<16x128xbf16>, vector<128x384xbf16>, vector<16x384xf32> -> vector<16x384xf32>
    %460 = vector.extract_strided_slice %456 {offsets = [0, 0], sizes = [16, 128], strides = [1, 1]} : vector<16x384xf32> to vector<16x128xf32>
    %461 = vector.extract_strided_slice %459 {offsets = [0, 0], sizes = [16, 128], strides = [1, 1]} : vector<16x384xf32> to vector<16x128xf32>
    %462 = arith.addf %460, %461 : vector<16x128xf32>
    %463 = arith.negf %462 : vector<16x128xf32>
    %464 = math.exp %463 : vector<16x128xf32>
    %cst_160 = arith.constant 1.000000e+00 : f32
    %465 = vector.broadcast %cst_160 : f32 to vector<16x128xf32>
    %466 = arith.addf %465, %464 : vector<16x128xf32>
    %467 = arith.divf %465, %466 : vector<16x128xf32>
    %468 = vector.extract_strided_slice %456 {offsets = [0, 128], sizes = [16, 128], strides = [1, 1]} : vector<16x384xf32> to vector<16x128xf32>
    %469 = vector.extract_strided_slice %459 {offsets = [0, 128], sizes = [16, 128], strides = [1, 1]} : vector<16x384xf32> to vector<16x128xf32>
    %470 = arith.addf %468, %469 : vector<16x128xf32>
    %471 = arith.negf %470 : vector<16x128xf32>
    %472 = math.exp %471 : vector<16x128xf32>
    %cst_161 = arith.constant 1.000000e+00 : f32
    %473 = vector.broadcast %cst_161 : f32 to vector<16x128xf32>
    %474 = arith.addf %473, %472 : vector<16x128xf32>
    %475 = arith.divf %473, %474 : vector<16x128xf32>
    %476 = vector.extract_strided_slice %456 {offsets = [0, 256], sizes = [16, 128], strides = [1, 1]} : vector<16x384xf32> to vector<16x128xf32>
    %477 = vector.extract_strided_slice %459 {offsets = [0, 256], sizes = [16, 128], strides = [1, 1]} : vector<16x384xf32> to vector<16x128xf32>
    %c0_162 = arith.constant 0 : index
    %c0_163 = arith.constant 0 : index
    %478 = vector.load %arg19[%c0_162, %c0_163] : memref<1x128xf32, #tpu.memory_space<vmem>>, vector<1x128xf32>
    %479 = vector.broadcast %478 : vector<1x128xf32> to vector<16x128xf32>
    %480 = arith.addf %477, %479 : vector<16x128xf32>
    %481 = arith.mulf %467, %480 : vector<16x128xf32>
    %482 = arith.addf %476, %481 : vector<16x128xf32>
    %483 = math.tanh %482 : vector<16x128xf32>
    %cst_164 = arith.constant 1.000000e+00 : f32
    %484 = vector.broadcast %cst_164 : f32 to vector<16x128xf32>
    %485 = arith.subf %484, %475 : vector<16x128xf32>
    %486 = arith.mulf %485, %483 : vector<16x128xf32>
    %487 = arith.mulf %475, %452 : vector<16x128xf32>
    %488 = arith.addf %486, %487 : vector<16x128xf32>
    %c4_i32_165 = arith.constant 4 : i32
    %c16_i32_166 = arith.constant 16 : i32
    %489 = arith.muli %c4_i32_165, %c16_i32_166 : i32
    %490 = tpu.assume_multiple %489, 8 : i32
    %491 = arith.index_cast %490 : i32 to index
    %c0_167 = arith.constant 0 : index
    %492 = vector.load %arg21[%491, %c0_167] : memref<128x384xf32, #tpu.memory_space<vmem>>, vector<16x384xf32>
    %493 = arith.truncf %488 : vector<16x128xf32> to vector<16x128xbf16>
    %c0_168 = arith.constant 0 : index
    %c0_169 = arith.constant 0 : index
    %494 = vector.load %arg17[%c0_168, %c0_169] : memref<128x384xbf16, #tpu.memory_space<vmem>>, vector<128x384xbf16>
    %cst_170 = arith.constant dense<0.000000e+00> : vector<16x384xf32>
    %495 = tpu.matmul %493, %494, %cst_170 {dimension_numbers = #tpu.dot_dimension_numbers<[1], [0], [0], [1], [0, 0, 1, 1], [], []>} : vector<16x128xbf16>, vector<128x384xbf16>, vector<16x384xf32> -> vector<16x384xf32>
    %496 = vector.extract_strided_slice %492 {offsets = [0, 0], sizes = [16, 128], strides = [1, 1]} : vector<16x384xf32> to vector<16x128xf32>
    %497 = vector.extract_strided_slice %495 {offsets = [0, 0], sizes = [16, 128], strides = [1, 1]} : vector<16x384xf32> to vector<16x128xf32>
    %498 = arith.addf %496, %497 : vector<16x128xf32>
    %499 = arith.negf %498 : vector<16x128xf32>
    %500 = math.exp %499 : vector<16x128xf32>
    %cst_171 = arith.constant 1.000000e+00 : f32
    %501 = vector.broadcast %cst_171 : f32 to vector<16x128xf32>
    %502 = arith.addf %501, %500 : vector<16x128xf32>
    %503 = arith.divf %501, %502 : vector<16x128xf32>
    %504 = vector.extract_strided_slice %492 {offsets = [0, 128], sizes = [16, 128], strides = [1, 1]} : vector<16x384xf32> to vector<16x128xf32>
    %505 = vector.extract_strided_slice %495 {offsets = [0, 128], sizes = [16, 128], strides = [1, 1]} : vector<16x384xf32> to vector<16x128xf32>
    %506 = arith.addf %504, %505 : vector<16x128xf32>
    %507 = arith.negf %506 : vector<16x128xf32>
    %508 = math.exp %507 : vector<16x128xf32>
    %cst_172 = arith.constant 1.000000e+00 : f32
    %509 = vector.broadcast %cst_172 : f32 to vector<16x128xf32>
    %510 = arith.addf %509, %508 : vector<16x128xf32>
    %511 = arith.divf %509, %510 : vector<16x128xf32>
    %512 = vector.extract_strided_slice %492 {offsets = [0, 256], sizes = [16, 128], strides = [1, 1]} : vector<16x384xf32> to vector<16x128xf32>
    %513 = vector.extract_strided_slice %495 {offsets = [0, 256], sizes = [16, 128], strides = [1, 1]} : vector<16x384xf32> to vector<16x128xf32>
    %c0_173 = arith.constant 0 : index
    %c0_174 = arith.constant 0 : index
    %514 = vector.load %arg19[%c0_173, %c0_174] : memref<1x128xf32, #tpu.memory_space<vmem>>, vector<1x128xf32>
    %515 = vector.broadcast %514 : vector<1x128xf32> to vector<16x128xf32>
    %516 = arith.addf %513, %515 : vector<16x128xf32>
    %517 = arith.mulf %503, %516 : vector<16x128xf32>
    %518 = arith.addf %512, %517 : vector<16x128xf32>
    %519 = math.tanh %518 : vector<16x128xf32>
    %cst_175 = arith.constant 1.000000e+00 : f32
    %520 = vector.broadcast %cst_175 : f32 to vector<16x128xf32>
    %521 = arith.subf %520, %511 : vector<16x128xf32>
    %522 = arith.mulf %521, %519 : vector<16x128xf32>
    %523 = arith.mulf %511, %488 : vector<16x128xf32>
    %524 = arith.addf %522, %523 : vector<16x128xf32>
    %c5_i32_176 = arith.constant 5 : i32
    %c16_i32_177 = arith.constant 16 : i32
    %525 = arith.muli %c5_i32_176, %c16_i32_177 : i32
    %526 = tpu.assume_multiple %525, 8 : i32
    %527 = arith.index_cast %526 : i32 to index
    %c0_178 = arith.constant 0 : index
    %528 = vector.load %arg21[%527, %c0_178] : memref<128x384xf32, #tpu.memory_space<vmem>>, vector<16x384xf32>
    %529 = arith.truncf %524 : vector<16x128xf32> to vector<16x128xbf16>
    %c0_179 = arith.constant 0 : index
    %c0_180 = arith.constant 0 : index
    %530 = vector.load %arg17[%c0_179, %c0_180] : memref<128x384xbf16, #tpu.memory_space<vmem>>, vector<128x384xbf16>
    %cst_181 = arith.constant dense<0.000000e+00> : vector<16x384xf32>
    %531 = tpu.matmul %529, %530, %cst_181 {dimension_numbers = #tpu.dot_dimension_numbers<[1], [0], [0], [1], [0, 0, 1, 1], [], []>} : vector<16x128xbf16>, vector<128x384xbf16>, vector<16x384xf32> -> vector<16x384xf32>
    %532 = vector.extract_strided_slice %528 {offsets = [0, 0], sizes = [16, 128], strides = [1, 1]} : vector<16x384xf32> to vector<16x128xf32>
    %533 = vector.extract_strided_slice %531 {offsets = [0, 0], sizes = [16, 128], strides = [1, 1]} : vector<16x384xf32> to vector<16x128xf32>
    %534 = arith.addf %532, %533 : vector<16x128xf32>
    %535 = arith.negf %534 : vector<16x128xf32>
    %536 = math.exp %535 : vector<16x128xf32>
    %cst_182 = arith.constant 1.000000e+00 : f32
    %537 = vector.broadcast %cst_182 : f32 to vector<16x128xf32>
    %538 = arith.addf %537, %536 : vector<16x128xf32>
    %539 = arith.divf %537, %538 : vector<16x128xf32>
    %540 = vector.extract_strided_slice %528 {offsets = [0, 128], sizes = [16, 128], strides = [1, 1]} : vector<16x384xf32> to vector<16x128xf32>
    %541 = vector.extract_strided_slice %531 {offsets = [0, 128], sizes = [16, 128], strides = [1, 1]} : vector<16x384xf32> to vector<16x128xf32>
    %542 = arith.addf %540, %541 : vector<16x128xf32>
    %543 = arith.negf %542 : vector<16x128xf32>
    %544 = math.exp %543 : vector<16x128xf32>
    %cst_183 = arith.constant 1.000000e+00 : f32
    %545 = vector.broadcast %cst_183 : f32 to vector<16x128xf32>
    %546 = arith.addf %545, %544 : vector<16x128xf32>
    %547 = arith.divf %545, %546 : vector<16x128xf32>
    %548 = vector.extract_strided_slice %528 {offsets = [0, 256], sizes = [16, 128], strides = [1, 1]} : vector<16x384xf32> to vector<16x128xf32>
    %549 = vector.extract_strided_slice %531 {offsets = [0, 256], sizes = [16, 128], strides = [1, 1]} : vector<16x384xf32> to vector<16x128xf32>
    %c0_184 = arith.constant 0 : index
    %c0_185 = arith.constant 0 : index
    %550 = vector.load %arg19[%c0_184, %c0_185] : memref<1x128xf32, #tpu.memory_space<vmem>>, vector<1x128xf32>
    %551 = vector.broadcast %550 : vector<1x128xf32> to vector<16x128xf32>
    %552 = arith.addf %549, %551 : vector<16x128xf32>
    %553 = arith.mulf %539, %552 : vector<16x128xf32>
    %554 = arith.addf %548, %553 : vector<16x128xf32>
    %555 = math.tanh %554 : vector<16x128xf32>
    %cst_186 = arith.constant 1.000000e+00 : f32
    %556 = vector.broadcast %cst_186 : f32 to vector<16x128xf32>
    %557 = arith.subf %556, %547 : vector<16x128xf32>
    %558 = arith.mulf %557, %555 : vector<16x128xf32>
    %559 = arith.mulf %547, %524 : vector<16x128xf32>
    %560 = arith.addf %558, %559 : vector<16x128xf32>
    %c6_i32_187 = arith.constant 6 : i32
    %c16_i32_188 = arith.constant 16 : i32
    %561 = arith.muli %c6_i32_187, %c16_i32_188 : i32
    %562 = tpu.assume_multiple %561, 8 : i32
    %563 = arith.index_cast %562 : i32 to index
    %c0_189 = arith.constant 0 : index
    %564 = vector.load %arg21[%563, %c0_189] : memref<128x384xf32, #tpu.memory_space<vmem>>, vector<16x384xf32>
    %565 = arith.truncf %560 : vector<16x128xf32> to vector<16x128xbf16>
    %c0_190 = arith.constant 0 : index
    %c0_191 = arith.constant 0 : index
    %566 = vector.load %arg17[%c0_190, %c0_191] : memref<128x384xbf16, #tpu.memory_space<vmem>>, vector<128x384xbf16>
    %cst_192 = arith.constant dense<0.000000e+00> : vector<16x384xf32>
    %567 = tpu.matmul %565, %566, %cst_192 {dimension_numbers = #tpu.dot_dimension_numbers<[1], [0], [0], [1], [0, 0, 1, 1], [], []>} : vector<16x128xbf16>, vector<128x384xbf16>, vector<16x384xf32> -> vector<16x384xf32>
    %568 = vector.extract_strided_slice %564 {offsets = [0, 0], sizes = [16, 128], strides = [1, 1]} : vector<16x384xf32> to vector<16x128xf32>
    %569 = vector.extract_strided_slice %567 {offsets = [0, 0], sizes = [16, 128], strides = [1, 1]} : vector<16x384xf32> to vector<16x128xf32>
    %570 = arith.addf %568, %569 : vector<16x128xf32>
    %571 = arith.negf %570 : vector<16x128xf32>
    %572 = math.exp %571 : vector<16x128xf32>
    %cst_193 = arith.constant 1.000000e+00 : f32
    %573 = vector.broadcast %cst_193 : f32 to vector<16x128xf32>
    %574 = arith.addf %573, %572 : vector<16x128xf32>
    %575 = arith.divf %573, %574 : vector<16x128xf32>
    %576 = vector.extract_strided_slice %564 {offsets = [0, 128], sizes = [16, 128], strides = [1, 1]} : vector<16x384xf32> to vector<16x128xf32>
    %577 = vector.extract_strided_slice %567 {offsets = [0, 128], sizes = [16, 128], strides = [1, 1]} : vector<16x384xf32> to vector<16x128xf32>
    %578 = arith.addf %576, %577 : vector<16x128xf32>
    %579 = arith.negf %578 : vector<16x128xf32>
    %580 = math.exp %579 : vector<16x128xf32>
    %cst_194 = arith.constant 1.000000e+00 : f32
    %581 = vector.broadcast %cst_194 : f32 to vector<16x128xf32>
    %582 = arith.addf %581, %580 : vector<16x128xf32>
    %583 = arith.divf %581, %582 : vector<16x128xf32>
    %584 = vector.extract_strided_slice %564 {offsets = [0, 256], sizes = [16, 128], strides = [1, 1]} : vector<16x384xf32> to vector<16x128xf32>
    %585 = vector.extract_strided_slice %567 {offsets = [0, 256], sizes = [16, 128], strides = [1, 1]} : vector<16x384xf32> to vector<16x128xf32>
    %c0_195 = arith.constant 0 : index
    %c0_196 = arith.constant 0 : index
    %586 = vector.load %arg19[%c0_195, %c0_196] : memref<1x128xf32, #tpu.memory_space<vmem>>, vector<1x128xf32>
    %587 = vector.broadcast %586 : vector<1x128xf32> to vector<16x128xf32>
    %588 = arith.addf %585, %587 : vector<16x128xf32>
    %589 = arith.mulf %575, %588 : vector<16x128xf32>
    %590 = arith.addf %584, %589 : vector<16x128xf32>
    %591 = math.tanh %590 : vector<16x128xf32>
    %cst_197 = arith.constant 1.000000e+00 : f32
    %592 = vector.broadcast %cst_197 : f32 to vector<16x128xf32>
    %593 = arith.subf %592, %583 : vector<16x128xf32>
    %594 = arith.mulf %593, %591 : vector<16x128xf32>
    %595 = arith.mulf %583, %560 : vector<16x128xf32>
    %596 = arith.addf %594, %595 : vector<16x128xf32>
    %c7_i32_198 = arith.constant 7 : i32
    %c16_i32_199 = arith.constant 16 : i32
    %597 = arith.muli %c7_i32_198, %c16_i32_199 : i32
    %598 = tpu.assume_multiple %597, 8 : i32
    %599 = arith.index_cast %598 : i32 to index
    %c0_200 = arith.constant 0 : index
    %600 = vector.load %arg21[%599, %c0_200] : memref<128x384xf32, #tpu.memory_space<vmem>>, vector<16x384xf32>
    %601 = arith.truncf %596 : vector<16x128xf32> to vector<16x128xbf16>
    %c0_201 = arith.constant 0 : index
    %c0_202 = arith.constant 0 : index
    %602 = vector.load %arg17[%c0_201, %c0_202] : memref<128x384xbf16, #tpu.memory_space<vmem>>, vector<128x384xbf16>
    %cst_203 = arith.constant dense<0.000000e+00> : vector<16x384xf32>
    %603 = tpu.matmul %601, %602, %cst_203 {dimension_numbers = #tpu.dot_dimension_numbers<[1], [0], [0], [1], [0, 0, 1, 1], [], []>} : vector<16x128xbf16>, vector<128x384xbf16>, vector<16x384xf32> -> vector<16x384xf32>
    %604 = vector.extract_strided_slice %600 {offsets = [0, 0], sizes = [16, 128], strides = [1, 1]} : vector<16x384xf32> to vector<16x128xf32>
    %605 = vector.extract_strided_slice %603 {offsets = [0, 0], sizes = [16, 128], strides = [1, 1]} : vector<16x384xf32> to vector<16x128xf32>
    %606 = arith.addf %604, %605 : vector<16x128xf32>
    %607 = arith.negf %606 : vector<16x128xf32>
    %608 = math.exp %607 : vector<16x128xf32>
    %cst_204 = arith.constant 1.000000e+00 : f32
    %609 = vector.broadcast %cst_204 : f32 to vector<16x128xf32>
    %610 = arith.addf %609, %608 : vector<16x128xf32>
    %611 = arith.divf %609, %610 : vector<16x128xf32>
    %612 = vector.extract_strided_slice %600 {offsets = [0, 128], sizes = [16, 128], strides = [1, 1]} : vector<16x384xf32> to vector<16x128xf32>
    %613 = vector.extract_strided_slice %603 {offsets = [0, 128], sizes = [16, 128], strides = [1, 1]} : vector<16x384xf32> to vector<16x128xf32>
    %614 = arith.addf %612, %613 : vector<16x128xf32>
    %615 = arith.negf %614 : vector<16x128xf32>
    %616 = math.exp %615 : vector<16x128xf32>
    %cst_205 = arith.constant 1.000000e+00 : f32
    %617 = vector.broadcast %cst_205 : f32 to vector<16x128xf32>
    %618 = arith.addf %617, %616 : vector<16x128xf32>
    %619 = arith.divf %617, %618 : vector<16x128xf32>
    %620 = vector.extract_strided_slice %600 {offsets = [0, 256], sizes = [16, 128], strides = [1, 1]} : vector<16x384xf32> to vector<16x128xf32>
    %621 = vector.extract_strided_slice %603 {offsets = [0, 256], sizes = [16, 128], strides = [1, 1]} : vector<16x384xf32> to vector<16x128xf32>
    %c0_206 = arith.constant 0 : index
    %c0_207 = arith.constant 0 : index
    %622 = vector.load %arg19[%c0_206, %c0_207] : memref<1x128xf32, #tpu.memory_space<vmem>>, vector<1x128xf32>
    %623 = vector.broadcast %622 : vector<1x128xf32> to vector<16x128xf32>
    %624 = arith.addf %621, %623 : vector<16x128xf32>
    %625 = arith.mulf %611, %624 : vector<16x128xf32>
    %626 = arith.addf %620, %625 : vector<16x128xf32>
    %627 = math.tanh %626 : vector<16x128xf32>
    %cst_208 = arith.constant 1.000000e+00 : f32
    %628 = vector.broadcast %cst_208 : f32 to vector<16x128xf32>
    %629 = arith.subf %628, %619 : vector<16x128xf32>
    %630 = arith.mulf %629, %627 : vector<16x128xf32>
    %631 = arith.mulf %619, %596 : vector<16x128xf32>
    %632 = arith.addf %630, %631 : vector<16x128xf32>
    %c8_i32_209 = arith.constant 8 : i32
    %c1_210 = arith.constant 1 : index
    %c0_211 = arith.constant 0 : index
    %c0_212 = arith.constant 0 : index
    %633 = vector.load %arg20[%c1_210, %c0_211, %c0_212] : memref<2x16x128xf32, #tpu.memory_space<vmem>>, vector<1x16x128xf32>
    %634 = vector.shape_cast %633 : vector<1x16x128xf32> to vector<16x128xf32>
    %635 = vector.shape_cast %632 : vector<16x128xf32> to vector<1x16x128xf32>
    tpu.vector_store %arg20[%c1_210, %c0_211, %c0_212], %635 {strides = array<i32>} : memref<2x16x128xf32, #tpu.memory_space<vmem>>, vector<1x16x128xf32>,
    %c0_i32_213 = arith.constant 0 : i32
    %636 = arith.cmpi eq, %arg1, %c0_i32_213 : i32
    %637 = arith.extui %636 : i1 to i32
    %c0_i32_214 = arith.constant 0 : i32
    %638 = arith.cmpi ne, %637, %c0_i32_214 : i32
    scf.if %638 {
      %c1_215 = arith.constant 1 : index
      %c0_216 = arith.constant 0 : index
      %c0_217 = arith.constant 0 : index
      %639 = vector.load %arg20[%c1_215, %c0_216, %c0_217] : memref<2x16x128xf32, #tpu.memory_space<vmem>>, vector<1x16x128xf32>
      %640 = vector.shape_cast %639 : vector<1x16x128xf32> to vector<16x128xf32>
      %c0_218 = arith.constant 0 : index
      %c0_219 = arith.constant 0 : index
      %641 = vector.load %arg11[%c0_218, %c0_219] : memref<16x128xf32, #tpu.memory_space<vmem>>, vector<16x128xf32>
      tpu.vector_store %arg11[%c0_218, %c0_219], %640 {strides = array<i32>} : memref<16x128xf32, #tpu.memory_space<vmem>>, vector<16x128xf32>,
    } else {
    }
    return
  }
  func.func @transform_0(%arg0: i32, %arg1: i32) -> (i32, i32) {
    %c1_i32 = arith.constant 1 : i32
    %0 = arith.muli %arg0, %c1_i32 : i32
    %1 = arith.addi %0, %arg1 : i32
    %c0_i32 = arith.constant 0 : i32
    %c0_i32_0 = arith.constant 0 : i32
    return %1, %c0_i32 : i32, i32
  }
  func.func @transform_9(%arg0: i32, %arg1: i32) -> (i32, i32) {
    %c0_i32 = arith.constant 0 : i32
    %c0_i32_0 = arith.constant 0 : i32
    return %arg0, %c0_i32 : i32, i32
  }
}

</mosaic_0001>

<llo_original>
// kernel: sequence_encoder_forward.1
$region0: #{sequence_encoder_forward.1}
  #allocation0 [shape = 'u32[]', space=smem, size = 0x4, offset = 0x4, fixed_abs, tag = 'smem constant byte address 0x4 - core index']
  #allocation1 [shape = 'u32[144,128]{1,0:T(1,128)}', space=vmem, size = 0x12000, scoped, tag = 'internal scratch']
  #allocation2 [shape = 'bf16[32,384]{1,0:T(8,128)(2,1)}', space=vmem, size = 0x6000, scoped, tag = 'scratch operand']
  #allocation3 [shape = 'bf16[128,384]{1,0:T(8,128)(2,1)}', space=vmem, size = 0x18000, scoped, tag = 'scratch operand']
  #allocation4 [shape = 'f32[1,384]{1,0:T(1,128)}', space=vmem, size = 0x600, scoped, tag = 'scratch operand']
  #allocation5 [shape = 'f32[1,128]{1,0:T(1,128)}', space=vmem, size = 0x200, scoped, tag = 'scratch operand']
  #allocation6 [shape = 'bf16[128,384]{1,0:T(8,128)(2,1)}', space=vmem, size = 0x18000, scoped, tag = 'scratch operand']
  #allocation7 [shape = 'bf16[128,384]{1,0:T(8,128)(2,1)}', space=vmem, size = 0x18000, scoped, tag = 'scratch operand']
  #allocation8 [shape = 'f32[1,384]{1,0:T(1,128)}', space=vmem, size = 0x600, scoped, tag = 'scratch operand']
  #allocation9 [shape = 'f32[1,128]{1,0:T(1,128)}', space=vmem, size = 0x200, scoped, tag = 'scratch operand']
  #allocation10 [shape = 'f32[2,16,128]{2,1,0:T(8,128)}', space=vmem, size = 0x4000, scoped, tag = 'scratch operand']
  #allocation11 [shape = 'f32[128,384]{1,0:T(8,128)}', space=vmem, size = 0x30000, scoped, tag = 'scratch operand']
  #allocation12 [shape = 'f32[128,128]{1,0:T(8,128)}', space=vmem, size = 0x10000, scoped, tag = 'scratch operand']
  #allocation13 [shape = 's32[8]{0}', space=sflag, size = 0x20, scoped, tag = 'scratch operand']
  #allocation14 [shape = 's32[]', space=sflag, size = 0x4, offset = 0, fixed_abs, tag = 'sflag constant byte address 0x0 - dummy sync flag']
  #allocation15 [shape = 's32[]', space=sflag, size = 0x4, offset = 0, fixed_abs, tag = 'sflag constant byte address 0x0 - dummy sync flag']
  #allocation16 [shape = 's32[]', space=sflag, size = 0x4, offset = 0, fixed_abs, tag = 'sflag constant byte address 0x0 - dummy sync flag']
  #allocation17 [shape = 's32[]', space=sflag, size = 0x4, offset = 0, fixed_abs, tag = 'sflag constant byte address 0x0 - dummy sync flag']
  #allocation18 [shape = 's32[]', space=sflag, size = 0x4, offset = 0, fixed_abs, tag = 'sflag constant byte address 0x0 - dummy sync flag']
  #allocation19 [shape = 's32[]', space=sflag, size = 0x4, offset = 0, fixed_abs, tag = 'sflag constant byte address 0x0 - dummy sync flag']
  #allocation20 [shape = 's32[]', space=sflag, size = 0x4, offset = 0, fixed_abs, tag = 'sflag constant byte address 0x0 - dummy sync flag']
  #allocation21 [shape = 's32[]', space=sflag, size = 0x4, offset = 0, fixed_abs, tag = 'sflag constant byte address 0x0 - dummy sync flag']
  %s0 = inlined_call_operand.vmem [shape: bf16[128,32], index: 0, kind: input, shape index: {}]
  %s1 = inlined_call_operand.vmem [shape: bf16[32,384], index: 1, kind: input, shape index: {}]
  %s2 = inlined_call_operand.vmem [shape: bf16[128,384], index: 2, kind: input, shape index: {}]
  %s3 = inlined_call_operand.vmem [shape: f32[1,384], index: 3, kind: input, shape index: {}]
  %s4 = inlined_call_operand.vmem [shape: f32[1,128], index: 4, kind: input, shape index: {}]
  %s5 = inlined_call_operand.vmem [shape: bf16[128,384], index: 5, kind: input, shape index: {}]
  %s6 = inlined_call_operand.vmem [shape: bf16[128,384], index: 6, kind: input, shape index: {}]
  %s7 = inlined_call_operand.vmem [shape: f32[1,384], index: 7, kind: input, shape index: {}]
  %s8 = inlined_call_operand.vmem [shape: f32[1,128], index: 8, kind: input, shape index: {}]
  %s9 = inlined_call_operand.vmem [shape: f32[16,128], index: 9, kind: output, shape index: {}]
  %s10 = sld [smem:[#allocation0]]
  $region278: #{sequence_encoder_forward.1} parent=0
    _
  %s12 = ssub.s32 1, %s10
  %s13 = scalar_select 0, %s12, %s10
  // Predicated region
  $region2: #{sequence_encoder_forward.1} parent=0 // pred_check
    _
  $region3: #{sequence_encoder_forward.1} parent=0 // pred_check_branch
    %15 = sbr.rel (0) target = $region5
  $region4: #{sequence_encoder_forward.1} parent=0 // pred_region
    %s16 = sadd.s32 0, 0
    %s17 = smul.u32 16, %s16
    %p18 = scmp.lt.s32.totalorder %s17, 15
    %s19 = scalar_select %p18, %s17, 15
    %s20 = smul.addr %s19, 4
    %s21 = scalar_lea.vmem %s0, %s20
    %s22 = sadd.s32 0, 0
    %s23 = smul.u32 16, %s22
  $region5: #{sequence_encoder_forward.1} parent=0 // pred_fallthru
    _
  %s24 = sadd.s32 0, 0
  %s25 = smul.u32 16, %s24
  %p26 = scmp.lt.s32.totalorder %s25, 15
  %s27 = scalar_select %p26, %s25, 15
  %s28 = smul.addr %s27, 4
  %s29 = scalar_lea.vmem %s0, %s28
  %s30 = sadd.s32 0, 0
  %s31 = smul.u32 16, %s30
  %p32 = scmp.lt.s32.totalorder %s31, 15
  %s33 = scalar_select %p32, %s31, 15
  %s34 = smul.addr %s33, 4
  %s35 = scalar_lea.vmem %s0, %s34
  %s36 = sadd.s32 0, 0
  %s37 = smul.u32 16, %s36
  %p39 = scmp.eq.s32.totalorder 0, 0
  // Predicated region
  $region6: #{sequence_encoder_forward.1} parent=0 // pred_check
    %p40 = pneg %p39
  $region7: #{sequence_encoder_forward.1} parent=0 // pred_check_branch
    %42 = sbr.rel (%p40) target = $region9
  $region8: #{sequence_encoder_forward.1} parent=0 // pred_region
    %43 = vst [vmem:[#allocation10] sm:$0xff] 0.0
    %44 = vst [vmem:[#allocation10 + $0x8] sm:$0xff] 0.0
    %45 = vst [vmem:[#allocation10 + $0x10] sm:$0xff] 0.0
    %46 = vst [vmem:[#allocation10 + $0x18] sm:$0xff] 0.0
    %p48 = scmp.lt.u32.totalorder 48, 8
    %p49 = pneg %p48
    // Predicated region
    $region10: #{sequence_encoder_forward.1} parent=8 // pred_check
      _
    $region11: #{sequence_encoder_forward.1} parent=8 // pred_check_branch
      %51 = sbr.rel (%p48) target = $region13
    $region12: #{sequence_encoder_forward.1} parent=8 // pred_region
      %s67 = sand.u32 48, 7
      %p68 = scmp.eq.s32.totalorder %s67, 0
      // Predicated region
      $region25: #{sequence_encoder_forward.1} parent=12 // pred_check
        %p69 = pneg %p68
      $region26: #{sequence_encoder_forward.1} parent=12 // pred_check_branch
        %71 = sbr.rel (%p69) target = $region28
      $region27: #{sequence_encoder_forward.1} parent=12 // pred_region
        loop: start=0, step=1, limit=1
        $region29: #{sequence_encoder_forward.1} parent=27 // loop_pre_header
          _
        $region30: #{sequence_encoder_forward.1} parent=27 // loop_header
          %s73 = sphi 0, %s77
          %p74 = scmp.ge.s32.totalorder %s73, 1
          %s78 = sphi %s1, %s1
          %s79 = sphi [#allocation2], [#allocation2]
        $region31: #{sequence_encoder_forward.1} parent=27 // loop_header_branch
          %76 = sbr.rel (%p74) target = $region35
        $region32: #{sequence_encoder_forward.1} parent=27 // loop_body
          %v80 = vld [vmem:[%s78] sm:$0xff]
          %81 = vst [vmem:[%s79] sm:$0xff] %v80
          %v82 = vld [vmem:[%s78 + $0x8] sm:$0xff]
          %83 = vst [vmem:[%s79 + $0x8] sm:$0xff] %v82
          %v84 = vld [vmem:[%s78 + $0x10] sm:$0xff]
          %85 = vst [vmem:[%s79 + $0x10] sm:$0xff] %v84
          %v86 = vld [vmem:[%s78 + $0x18] sm:$0xff]
          %87 = vst [vmem:[%s79 + $0x18] sm:$0xff] %v86
          %v88 = vld [vmem:[%s78 + $0x20] sm:$0xff]
          %89 = vst [vmem:[%s79 + $0x20] sm:$0xff] %v88
          %v90 = vld [vmem:[%s78 + $0x28] sm:$0xff]
          %91 = vst [vmem:[%s79 + $0x28] sm:$0xff] %v90
        $region33: #{sequence_encoder_forward.1} parent=27 // loop_footer
          %s77 = sadd.s32 1, %s73
        $region34: #{sequence_encoder_forward.1} parent=27 // loop_footer_branch
          %72 = sbr.rel target = $region30
        $region35: #{sequence_encoder_forward.1} parent=27 // loop_exit
          _
      $region28: #{sequence_encoder_forward.1} parent=12 // pred_fallthru
        _
      %p92 = pneg %p68
      // Predicated region
      $region36: #{sequence_encoder_forward.1} parent=12 // pred_check
        _
      $region37: #{sequence_encoder_forward.1} parent=12 // pred_check_branch
        %94 = sbr.rel (%p68) target = $region39
      $region38: #{sequence_encoder_forward.1} parent=12 // pred_region
        %s95 = sand.u32 48, 7
      $region39: #{sequence_encoder_forward.1} parent=12 // pred_fallthru
        _
    $region13: #{sequence_encoder_forward.1} parent=8 // pred_fallthru
      _
    // Predicated region
    $region14: #{sequence_encoder_forward.1} parent=8 // pred_check
      %p52 = pneg %p48
    $region15: #{sequence_encoder_forward.1} parent=8 // pred_check_branch
      %54 = sbr.rel (%p52) target = $region17
    $region16: #{sequence_encoder_forward.1} parent=8 // pred_region
      %s55 = sshll.u32 1, 48
      %s56 = ssub.s32 %s55, 1
      loop: start=0, step=1, limit=1
      $region18: #{sequence_encoder_forward.1} parent=16 // loop_pre_header
        _
      $region19: #{sequence_encoder_forward.1} parent=16 // loop_header
        %s58 = sphi 0, %s62
        %p59 = scmp.ge.s32.totalorder %s58, 1
        %s63 = sphi %s1, %s1
        %s64 = sphi [#allocation2], [#allocation2]
      $region20: #{sequence_encoder_forward.1} parent=16 // loop_header_branch
        %61 = sbr.rel (%p59) target = $region24
      $region21: #{sequence_encoder_forward.1} parent=16 // loop_body
        %v65 = vld [vmem:[%s63] sm:%s56]
        %66 = vst [vmem:[%s64] sm:%s56] %v65
      $region22: #{sequence_encoder_forward.1} parent=16 // loop_footer
        %s62 = sadd.s32 1, %s58
      $region23: #{sequence_encoder_forward.1} parent=16 // loop_footer_branch
        %57 = sbr.rel target = $region19
      $region24: #{sequence_encoder_forward.1} parent=16 // loop_exit
        _
    $region17: #{sequence_encoder_forward.1} parent=8 // pred_fallthru
      _
    // Predicated region
    $region40: #{sequence_encoder_forward.1} parent=8 // pred_check
      _
    $region41: #{sequence_encoder_forward.1} parent=8 // pred_check_branch
      %98 = sbr.rel (0) target = $region43
    $region42: #{sequence_encoder_forward.1} parent=8 // pred_region
      %99 = vsyncadd [#allocation13], 768
    $region43: #{sequence_encoder_forward.1} parent=8 // pred_fallthru
      _
    %s100 = scalar_lea.sflag [#allocation13], 1
    %p102 = scmp.lt.u32.totalorder 192, 8
    %p103 = pneg %p102
    // Predicated region
    $region44: #{sequence_encoder_forward.1} parent=8 // pred_check
      _
    $region45: #{sequence_encoder_forward.1} parent=8 // pred_check_branch
      %105 = sbr.rel (%p102) target = $region47
    $region46: #{sequence_encoder_forward.1} parent=8 // pred_region
      %s121 = sand.u32 192, 7
      %p122 = scmp.eq.s32.totalorder %s121, 0
      // Predicated region
      $region59: #{sequence_encoder_forward.1} parent=46 // pred_check
        %p123 = pneg %p122
      $region60: #{sequence_encoder_forward.1} parent=46 // pred_check_branch
        %125 = sbr.rel (%p123) target = $region62
      $region61: #{sequence_encoder_forward.1} parent=46 // pred_region
        loop: start=0, step=1, limit=1
        $region63: #{sequence_encoder_forward.1} parent=61 // loop_pre_header
          _
        $region64: #{sequence_encoder_forward.1} parent=61 // loop_header
          %s127 = sphi 0, %s131
          %p128 = scmp.ge.s32.totalorder %s127, 1
          %s132 = sphi %s2, %s2
          %s133 = sphi [#allocation3], [#allocation3]
        $region65: #{sequence_encoder_forward.1} parent=61 // loop_header_branch
          %130 = sbr.rel (%p128) target = $region69
        $region66: #{sequence_encoder_forward.1} parent=61 // loop_body
          %v134 = vld [vmem:[%s132] sm:$0xff]
          %135 = vst [vmem:[%s133] sm:$0xff] %v134
          %v136 = vld [vmem:[%s132 + $0x8] sm:$0xff]
          %137 = vst [vmem:[%s133 + $0x8] sm:$0xff] %v136
          %v138 = vld [vmem:[%s132 + $0x10] sm:$0xff]
          %139 = vst [vmem:[%s133 + $0x10] sm:$0xff] %v138
          %v140 = vld [vmem:[%s132 + $0x18] sm:$0xff]
          %141 = vst [vmem:[%s133 + $0x18] sm:$0xff] %v140
          %v142 = vld [vmem:[%s132 + $0x20] sm:$0xff]
          %143 = vst [vmem:[%s133 + $0x20] sm:$0xff] %v142
          %v144 = vld [vmem:[%s132 + $0x28] sm:$0xff]
          %145 = vst [vmem:[%s133 + $0x28] sm:$0xff] %v144
          %v146 = vld [vmem:[%s132 + $0x30] sm:$0xff]
          %147 = vst [vmem:[%s133 + $0x30] sm:$0xff] %v146
          %v148 = vld [vmem:[%s132 + $0x38] sm:$0xff]
          %149 = vst [vmem:[%s133 + $0x38] sm:$0xff] %v148
          %v150 = vld [vmem:[%s132 + $0x40] sm:$0xff]
          %151 = vst [vmem:[%s133 + $0x40] sm:$0xff] %v150
          %v152 = vld [vmem:[%s132 + $0x48] sm:$0xff]
          %153 = vst [vmem:[%s133 + $0x48] sm:$0xff] %v152
          %v154 = vld [vmem:[%s132 + $0x50] sm:$0xff]
          %155 = vst [vmem:[%s133 + $0x50] sm:$0xff] %v154
          %v156 = vld [vmem:[%s132 + $0x58] sm:$0xff]
          %157 = vst [vmem:[%s133 + $0x58] sm:$0xff] %v156
          %v158 = vld [vmem:[%s132 + $0x60] sm:$0xff]
          %159 = vst [vmem:[%s133 + $0x60] sm:$0xff] %v158
          %v160 = vld [vmem:[%s132 + $0x68] sm:$0xff]
          %161 = vst [vmem:[%s133 + $0x68] sm:$0xff] %v160
          %v162 = vld [vmem:[%s132 + $0x70] sm:$0xff]
          %163 = vst [vmem:[%s133 + $0x70] sm:$0xff] %v162
          %v164 = vld [vmem:[%s132 + $0x78] sm:$0xff]
          %165 = vst [vmem:[%s133 + $0x78] sm:$0xff] %v164
          %v166 = vld [vmem:[%s132 + $0x80] sm:$0xff]
          %167 = vst [vmem:[%s133 + $0x80] sm:$0xff] %v166
          %v168 = vld [vmem:[%s132 + $0x88] sm:$0xff]
          %169 = vst [vmem:[%s133 + $0x88] sm:$0xff] %v168
          %v170 = vld [vmem:[%s132 + $0x90] sm:$0xff]
          %171 = vst [vmem:[%s133 + $0x90] sm:$0xff] %v170
          %v172 = vld [vmem:[%s132 + $0x98] sm:$0xff]
          %173 = vst [vmem:[%s133 + $0x98] sm:$0xff] %v172
          %v174 = vld [vmem:[%s132 + $0xa0] sm:$0xff]
          %175 = vst [vmem:[%s133 + $0xa0] sm:$0xff] %v174
          %v176 = vld [vmem:[%s132 + $0xa8] sm:$0xff]
          %177 = vst [vmem:[%s133 + $0xa8] sm:$0xff] %v176
          %v178 = vld [vmem:[%s132 + $0xb0] sm:$0xff]
          %179 = vst [vmem:[%s133 + $0xb0] sm:$0xff] %v178
          %v180 = vld [vmem:[%s132 + $0xb8] sm:$0xff]
          %181 = vst [vmem:[%s133 + $0xb8] sm:$0xff] %v180
        $region67: #{sequence_encoder_forward.1} parent=61 // loop_footer
          %s131 = sadd.s32 1, %s127
        $region68: #{sequence_encoder_forward.1} parent=61 // loop_footer_branch
          %126 = sbr.rel target = $region64
        $region69: #{sequence_encoder_forward.1} parent=61 // loop_exit
          _
      $region62: #{sequence_encoder_forward.1} parent=46 // pred_fallthru
        _
      %p182 = pneg %p122
      // Predicated region
      $region70: #{sequence_encoder_forward.1} parent=46 // pred_check
        _
      $region71: #{sequence_encoder_forward.1} parent=46 // pred_check_branch
        %184 = sbr.rel (%p122) target = $region73
      $region72: #{sequence_encoder_forward.1} parent=46 // pred_region
        %s185 = sand.u32 192, 7
      $region73: #{sequence_encoder_forward.1} parent=46 // pred_fallthru
        _
    $region47: #{sequence_encoder_forward.1} parent=8 // pred_fallthru
      _
    // Predicated region
    $region48: #{sequence_encoder_forward.1} parent=8 // pred_check
      %p106 = pneg %p102
    $region49: #{sequence_encoder_forward.1} parent=8 // pred_check_branch
      %108 = sbr.rel (%p106) target = $region51
    $region50: #{sequence_encoder_forward.1} parent=8 // pred_region
      %s109 = sshll.u32 1, 192
      %s110 = ssub.s32 %s109, 1
      loop: start=0, step=1, limit=1
      $region52: #{sequence_encoder_forward.1} parent=50 // loop_pre_header
        _
      $region53: #{sequence_encoder_forward.1} parent=50 // loop_header
        %s112 = sphi 0, %s116
        %p113 = scmp.ge.s32.totalorder %s112, 1
        %s117 = sphi %s2, %s2
        %s118 = sphi [#allocation3], [#allocation3]
      $region54: #{sequence_encoder_forward.1} parent=50 // loop_header_branch
        %115 = sbr.rel (%p113) target = $region58
      $region55: #{sequence_encoder_forward.1} parent=50 // loop_body
        %v119 = vld [vmem:[%s117] sm:%s110]
        %120 = vst [vmem:[%s118] sm:%s110] %v119
      $region56: #{sequence_encoder_forward.1} parent=50 // loop_footer
        %s116 = sadd.s32 1, %s112
      $region57: #{sequence_encoder_forward.1} parent=50 // loop_footer_branch
        %111 = sbr.rel target = $region53
      $region58: #{sequence_encoder_forward.1} parent=50 // loop_exit
        _
    $region51: #{sequence_encoder_forward.1} parent=8 // pred_fallthru
      _
    // Predicated region
    $region74: #{sequence_encoder_forward.1} parent=8 // pred_check
      _
    $region75: #{sequence_encoder_forward.1} parent=8 // pred_check_branch
      %188 = sbr.rel (0) target = $region77
    $region76: #{sequence_encoder_forward.1} parent=8 // pred_region
      %189 = vsyncadd %s100, 3072
    $region77: #{sequence_encoder_forward.1} parent=8 // pred_fallthru
      _
    %s190 = scalar_lea.sflag [#allocation13], 2
    %p192 = scmp.lt.u32.totalorder 3, 8
    %p193 = pneg %p192
    // Predicated region
    $region78: #{sequence_encoder_forward.1} parent=8 // pred_check
      _
    $region79: #{sequence_encoder_forward.1} parent=8 // pred_check_branch
      %195 = sbr.rel (%p192) target = $region81
    $region80: #{sequence_encoder_forward.1} parent=8 // pred_region
      %s211 = sand.u32 3, 7
      %p212 = scmp.eq.s32.totalorder %s211, 0
      %p213 = pneg %p212
      // Predicated region
      $region93: #{sequence_encoder_forward.1} parent=80 // pred_check
        _
      $region94: #{sequence_encoder_forward.1} parent=80 // pred_check_branch
        %215 = sbr.rel (%p212) target = $region96
      $region95: #{sequence_encoder_forward.1} parent=80 // pred_region
        %s216 = sand.u32 3, 7
        %s217 = ssub.s32 3, %s216
        %s218 = scalar_lea.vmem %s3, %s217
        %s219 = ssub.s32 3, %s216
        %s220 = scalar_lea.vmem [#allocation4], %s219
        %s221 = sshll.u32 1, %s216
        %s222 = ssub.s32 %s221, 1
        loop: start=0, step=1, limit=1
        $region97: #{sequence_encoder_forward.1} parent=95 // loop_pre_header
          _
        $region98: #{sequence_encoder_forward.1} parent=95 // loop_header
          %s224 = sphi 0, %s228
          %p225 = scmp.ge.s32.totalorder %s224, 1
          %s229 = sphi %s218, %s218
          %s230 = sphi %s220, %s220
        $region99: #{sequence_encoder_forward.1} parent=95 // loop_header_branch
          %227 = sbr.rel (%p225) target = $region103
        $region100: #{sequence_encoder_forward.1} parent=95 // loop_body
          %v231 = vld [vmem:[%s229] sm:%s222]
          %232 = vst [vmem:[%s230] sm:%s222] %v231
        $region101: #{sequence_encoder_forward.1} parent=95 // loop_footer
          %s228 = sadd.s32 1, %s224
        $region102: #{sequence_encoder_forward.1} parent=95 // loop_footer_branch
          %223 = sbr.rel target = $region98
        $region103: #{sequence_encoder_forward.1} parent=95 // loop_exit
          _
      $region96: #{sequence_encoder_forward.1} parent=80 // pred_fallthru
        _
    $region81: #{sequence_encoder_forward.1} parent=8 // pred_fallthru
      _
    // Predicated region
    $region82: #{sequence_encoder_forward.1} parent=8 // pred_check
      %p196 = pneg %p192
    $region83: #{sequence_encoder_forward.1} parent=8 // pred_check_branch
      %198 = sbr.rel (%p196) target = $region85
    $region84: #{sequence_encoder_forward.1} parent=8 // pred_region
      %s199 = sshll.u32 1, 3
      %s200 = ssub.s32 %s199, 1
      loop: start=0, step=1, limit=1
      $region86: #{sequence_encoder_forward.1} parent=84 // loop_pre_header
        _
      $region87: #{sequence_encoder_forward.1} parent=84 // loop_header
        %s202 = sphi 0, %s206
        %p203 = scmp.ge.s32.totalorder %s202, 1
        %s207 = sphi %s3, %s3
        %s208 = sphi [#allocation4], [#allocation4]
      $region88: #{sequence_encoder_forward.1} parent=84 // loop_header_branch
        %205 = sbr.rel (%p203) target = $region92
      $region89: #{sequence_encoder_forward.1} parent=84 // loop_body
        %v209 = vld [vmem:[%s207] sm:%s200]
        %210 = vst [vmem:[%s208] sm:%s200] %v209
      $region90: #{sequence_encoder_forward.1} parent=84 // loop_footer
        %s206 = sadd.s32 1, %s202
      $region91: #{sequence_encoder_forward.1} parent=84 // loop_footer_branch
        %201 = sbr.rel target = $region87
      $region92: #{sequence_encoder_forward.1} parent=84 // loop_exit
        _
    $region85: #{sequence_encoder_forward.1} parent=8 // pred_fallthru
      _
    // Predicated region
    $region104: #{sequence_encoder_forward.1} parent=8 // pred_check
      _
    $region105: #{sequence_encoder_forward.1} parent=8 // pred_check_branch
      %235 = sbr.rel (0) target = $region107
    $region106: #{sequence_encoder_forward.1} parent=8 // pred_region
      %236 = vsyncadd %s190, 48
    $region107: #{sequence_encoder_forward.1} parent=8 // pred_fallthru
      _
    %s237 = scalar_lea.sflag [#allocation13], 3
    %p239 = scmp.lt.u32.totalorder 1, 8
    %p240 = pneg %p239
    // Predicated region
    $region108: #{sequence_encoder_forward.1} parent=8 // pred_check
      _
    $region109: #{sequence_encoder_forward.1} parent=8 // pred_check_branch
      %242 = sbr.rel (%p239) target = $region111
    $region110: #{sequence_encoder_forward.1} parent=8 // pred_region
      %s258 = sand.u32 1, 7
      %p259 = scmp.eq.s32.totalorder %s258, 0
      %p260 = pneg %p259
      // Predicated region
      $region123: #{sequence_encoder_forward.1} parent=110 // pred_check
        _
      $region124: #{sequence_encoder_forward.1} parent=110 // pred_check_branch
        %262 = sbr.rel (%p259) target = $region126
      $region125: #{sequence_encoder_forward.1} parent=110 // pred_region
        %s263 = sand.u32 1, 7
        %s264 = ssub.s32 1, %s263
        %s265 = scalar_lea.vmem %s4, %s264
        %s266 = ssub.s32 1, %s263
        %s267 = scalar_lea.vmem [#allocation5], %s266
        %s268 = sshll.u32 1, %s263
        %s269 = ssub.s32 %s268, 1
        loop: start=0, step=1, limit=1
        $region127: #{sequence_encoder_forward.1} parent=125 // loop_pre_header
          _
        $region128: #{sequence_encoder_forward.1} parent=125 // loop_header
          %s271 = sphi 0, %s275
          %p272 = scmp.ge.s32.totalorder %s271, 1
          %s276 = sphi %s265, %s265
          %s277 = sphi %s267, %s267
        $region129: #{sequence_encoder_forward.1} parent=125 // loop_header_branch
          %274 = sbr.rel (%p272) target = $region133
        $region130: #{sequence_encoder_forward.1} parent=125 // loop_body
          %v278 = vld [vmem:[%s276] sm:%s269]
          %279 = vst [vmem:[%s277] sm:%s269] %v278
        $region131: #{sequence_encoder_forward.1} parent=125 // loop_footer
          %s275 = sadd.s32 1, %s271
        $region132: #{sequence_encoder_forward.1} parent=125 // loop_footer_branch
          %270 = sbr.rel target = $region128
        $region133: #{sequence_encoder_forward.1} parent=125 // loop_exit
          _
      $region126: #{sequence_encoder_forward.1} parent=110 // pred_fallthru
        _
    $region111: #{sequence_encoder_forward.1} parent=8 // pred_fallthru
      _
    // Predicated region
    $region112: #{sequence_encoder_forward.1} parent=8 // pred_check
      %p243 = pneg %p239
    $region113: #{sequence_encoder_forward.1} parent=8 // pred_check_branch
      %245 = sbr.rel (%p243) target = $region115
    $region114: #{sequence_encoder_forward.1} parent=8 // pred_region
      %s246 = sshll.u32 1, 1
      %s247 = ssub.s32 %s246, 1
      loop: start=0, step=1, limit=1
      $region116: #{sequence_encoder_forward.1} parent=114 // loop_pre_header
        _
      $region117: #{sequence_encoder_forward.1} parent=114 // loop_header
        %s249 = sphi 0, %s253
        %p250 = scmp.ge.s32.totalorder %s249, 1
        %s254 = sphi %s4, %s4
        %s255 = sphi [#allocation5], [#allocation5]
      $region118: #{sequence_encoder_forward.1} parent=114 // loop_header_branch
        %252 = sbr.rel (%p250) target = $region122
      $region119: #{sequence_encoder_forward.1} parent=114 // loop_body
        %v256 = vld [vmem:[%s254] sm:%s247]
        %257 = vst [vmem:[%s255] sm:%s247] %v256
      $region120: #{sequence_encoder_forward.1} parent=114 // loop_footer
        %s253 = sadd.s32 1, %s249
      $region121: #{sequence_encoder_forward.1} parent=114 // loop_footer_branch
        %248 = sbr.rel target = $region117
      $region122: #{sequence_encoder_forward.1} parent=114 // loop_exit
        _
    $region115: #{sequence_encoder_forward.1} parent=8 // pred_fallthru
      _
    // Predicated region
    $region134: #{sequence_encoder_forward.1} parent=8 // pred_check
      _
    $region135: #{sequence_encoder_forward.1} parent=8 // pred_check_branch
      %282 = sbr.rel (0) target = $region137
    $region136: #{sequence_encoder_forward.1} parent=8 // pred_region
      %283 = vsyncadd %s237, 16
    $region137: #{sequence_encoder_forward.1} parent=8 // pred_fallthru
      _
    %s284 = scalar_lea.sflag [#allocation13], 4
    %p286 = scmp.lt.u32.totalorder 192, 8
    %p287 = pneg %p286
    // Predicated region
    $region138: #{sequence_encoder_forward.1} parent=8 // pred_check
      _
    $region139: #{sequence_encoder_forward.1} parent=8 // pred_check_branch
      %289 = sbr.rel (%p286) target = $region141
    $region140: #{sequence_encoder_forward.1} parent=8 // pred_region
      %s305 = sand.u32 192, 7
      %p306 = scmp.eq.s32.totalorder %s305, 0
      // Predicated region
      $region153: #{sequence_encoder_forward.1} parent=140 // pred_check
        %p307 = pneg %p306
      $region154: #{sequence_encoder_forward.1} parent=140 // pred_check_branch
        %309 = sbr.rel (%p307) target = $region156
      $region155: #{sequence_encoder_forward.1} parent=140 // pred_region
        loop: start=0, step=1, limit=1
        $region157: #{sequence_encoder_forward.1} parent=155 // loop_pre_header
          _
        $region158: #{sequence_encoder_forward.1} parent=155 // loop_header
          %s311 = sphi 0, %s315
          %p312 = scmp.ge.s32.totalorder %s311, 1
          %s316 = sphi %s5, %s5
          %s317 = sphi [#allocation6], [#allocation6]
        $region159: #{sequence_encoder_forward.1} parent=155 // loop_header_branch
          %314 = sbr.rel (%p312) target = $region163
        $region160: #{sequence_encoder_forward.1} parent=155 // loop_body
          %v318 = vld [vmem:[%s316] sm:$0xff]
          %319 = vst [vmem:[%s317] sm:$0xff] %v318
          %v320 = vld [vmem:[%s316 + $0x8] sm:$0xff]
          %321 = vst [vmem:[%s317 + $0x8] sm:$0xff] %v320
          %v322 = vld [vmem:[%s316 + $0x10] sm:$0xff]
          %323 = vst [vmem:[%s317 + $0x10] sm:$0xff] %v322
          %v324 = vld [vmem:[%s316 + $0x18] sm:$0xff]
          %325 = vst [vmem:[%s317 + $0x18] sm:$0xff] %v324
          %v326 = vld [vmem:[%s316 + $0x20] sm:$0xff]
          %327 = vst [vmem:[%s317 + $0x20] sm:$0xff] %v326
          %v328 = vld [vmem:[%s316 + $0x28] sm:$0xff]
          %329 = vst [vmem:[%s317 + $0x28] sm:$0xff] %v328
          %v330 = vld [vmem:[%s316 + $0x30] sm:$0xff]
          %331 = vst [vmem:[%s317 + $0x30] sm:$0xff] %v330
          %v332 = vld [vmem:[%s316 + $0x38] sm:$0xff]
          %333 = vst [vmem:[%s317 + $0x38] sm:$0xff] %v332
          %v334 = vld [vmem:[%s316 + $0x40] sm:$0xff]
          %335 = vst [vmem:[%s317 + $0x40] sm:$0xff] %v334
          %v336 = vld [vmem:[%s316 + $0x48] sm:$0xff]
          %337 = vst [vmem:[%s317 + $0x48] sm:$0xff] %v336
          %v338 = vld [vmem:[%s316 + $0x50] sm:$0xff]
          %339 = vst [vmem:[%s317 + $0x50] sm:$0xff] %v338
          %v340 = vld [vmem:[%s316 + $0x58] sm:$0xff]
          %341 = vst [vmem:[%s317 + $0x58] sm:$0xff] %v340
          %v342 = vld [vmem:[%s316 + $0x60] sm:$0xff]
          %343 = vst [vmem:[%s317 + $0x60] sm:$0xff] %v342
          %v344 = vld [vmem:[%s316 + $0x68] sm:$0xff]
          %345 = vst [vmem:[%s317 + $0x68] sm:$0xff] %v344
          %v346 = vld [vmem:[%s316 + $0x70] sm:$0xff]
          %347 = vst [vmem:[%s317 + $0x70] sm:$0xff] %v346
          %v348 = vld [vmem:[%s316 + $0x78] sm:$0xff]
          %349 = vst [vmem:[%s317 + $0x78] sm:$0xff] %v348
          %v350 = vld [vmem:[%s316 + $0x80] sm:$0xff]
          %351 = vst [vmem:[%s317 + $0x80] sm:$0xff] %v350
          %v352 = vld [vmem:[%s316 + $0x88] sm:$0xff]
          %353 = vst [vmem:[%s317 + $0x88] sm:$0xff] %v352
          %v354 = vld [vmem:[%s316 + $0x90] sm:$0xff]
          %355 = vst [vmem:[%s317 + $0x90] sm:$0xff] %v354
          %v356 = vld [vmem:[%s316 + $0x98] sm:$0xff]
          %357 = vst [vmem:[%s317 + $0x98] sm:$0xff] %v356
          %v358 = vld [vmem:[%s316 + $0xa0] sm:$0xff]
          %359 = vst [vmem:[%s317 + $0xa0] sm:$0xff] %v358
          %v360 = vld [vmem:[%s316 + $0xa8] sm:$0xff]
          %361 = vst [vmem:[%s317 + $0xa8] sm:$0xff] %v360
          %v362 = vld [vmem:[%s316 + $0xb0] sm:$0xff]
          %363 = vst [vmem:[%s317 + $0xb0] sm:$0xff] %v362
          %v364 = vld [vmem:[%s316 + $0xb8] sm:$0xff]
          %365 = vst [vmem:[%s317 + $0xb8] sm:$0xff] %v364
        $region161: #{sequence_encoder_forward.1} parent=155 // loop_footer
          %s315 = sadd.s32 1, %s311
        $region162: #{sequence_encoder_forward.1} parent=155 // loop_footer_branch
          %310 = sbr.rel target = $region158
        $region163: #{sequence_encoder_forward.1} parent=155 // loop_exit
          _
      $region156: #{sequence_encoder_forward.1} parent=140 // pred_fallthru
        _
      %p366 = pneg %p306
      // Predicated region
      $region164: #{sequence_encoder_forward.1} parent=140 // pred_check
        _
      $region165: #{sequence_encoder_forward.1} parent=140 // pred_check_branch
        %368 = sbr.rel (%p306) target = $region167
      $region166: #{sequence_encoder_forward.1} parent=140 // pred_region
        %s369 = sand.u32 192, 7
      $region167: #{sequence_encoder_forward.1} parent=140 // pred_fallthru
        _
    $region141: #{sequence_encoder_forward.1} parent=8 // pred_fallthru
      _
    // Predicated region
    $region142: #{sequence_encoder_forward.1} parent=8 // pred_check
      %p290 = pneg %p286
    $region143: #{sequence_encoder_forward.1} parent=8 // pred_check_branch
      %292 = sbr.rel (%p290) target = $region145
    $region144: #{sequence_encoder_forward.1} parent=8 // pred_region
      %s293 = sshll.u32 1, 192
      %s294 = ssub.s32 %s293, 1
      loop: start=0, step=1, limit=1
      $region146: #{sequence_encoder_forward.1} parent=144 // loop_pre_header
        _
      $region147: #{sequence_encoder_forward.1} parent=144 // loop_header
        %s296 = sphi 0, %s300
        %p297 = scmp.ge.s32.totalorder %s296, 1
        %s301 = sphi %s5, %s5
        %s302 = sphi [#allocation6], [#allocation6]
      $region148: #{sequence_encoder_forward.1} parent=144 // loop_header_branch
        %299 = sbr.rel (%p297) target = $region152
      $region149: #{sequence_encoder_forward.1} parent=144 // loop_body
        %v303 = vld [vmem:[%s301] sm:%s294]
        %304 = vst [vmem:[%s302] sm:%s294] %v303
      $region150: #{sequence_encoder_forward.1} parent=144 // loop_footer
        %s300 = sadd.s32 1, %s296
      $region151: #{sequence_encoder_forward.1} parent=144 // loop_footer_branch
        %295 = sbr.rel target = $region147
      $region152: #{sequence_encoder_forward.1} parent=144 // loop_exit
        _
    $region145: #{sequence_encoder_forward.1} parent=8 // pred_fallthru
      _
    // Predicated region
    $region168: #{sequence_encoder_forward.1} parent=8 // pred_check
      _
    $region169: #{sequence_encoder_forward.1} parent=8 // pred_check_branch
      %372 = sbr.rel (0) target = $region171
    $region170: #{sequence_encoder_forward.1} parent=8 // pred_region
      %373 = vsyncadd %s284, 3072
    $region171: #{sequence_encoder_forward.1} parent=8 // pred_fallthru
      _
    %s374 = scalar_lea.sflag [#allocation13], 5
    %p376 = scmp.lt.u32.totalorder 192, 8
    %p377 = pneg %p376
    // Predicated region
    $region172: #{sequence_encoder_forward.1} parent=8 // pred_check
      _
    $region173: #{sequence_encoder_forward.1} parent=8 // pred_check_branch
      %379 = sbr.rel (%p376) target = $region175
    $region174: #{sequence_encoder_forward.1} parent=8 // pred_region
      %s395 = sand.u32 192, 7
      %p396 = scmp.eq.s32.totalorder %s395, 0
      // Predicated region
      $region187: #{sequence_encoder_forward.1} parent=174 // pred_check
        %p397 = pneg %p396
      $region188: #{sequence_encoder_forward.1} parent=174 // pred_check_branch
        %399 = sbr.rel (%p397) target = $region190
      $region189: #{sequence_encoder_forward.1} parent=174 // pred_region
        loop: start=0, step=1, limit=1
        $region191: #{sequence_encoder_forward.1} parent=189 // loop_pre_header
          _
        $region192: #{sequence_encoder_forward.1} parent=189 // loop_header
          %s401 = sphi 0, %s405
          %p402 = scmp.ge.s32.totalorder %s401, 1
          %s406 = sphi %s6, %s6
          %s407 = sphi [#allocation7], [#allocation7]
        $region193: #{sequence_encoder_forward.1} parent=189 // loop_header_branch
          %404 = sbr.rel (%p402) target = $region197
        $region194: #{sequence_encoder_forward.1} parent=189 // loop_body
          %v408 = vld [vmem:[%s406] sm:$0xff]
          %409 = vst [vmem:[%s407] sm:$0xff] %v408
          %v410 = vld [vmem:[%s406 + $0x8] sm:$0xff]
          %411 = vst [vmem:[%s407 + $0x8] sm:$0xff] %v410
          %v412 = vld [vmem:[%s406 + $0x10] sm:$0xff]
          %413 = vst [vmem:[%s407 + $0x10] sm:$0xff] %v412
          %v414 = vld [vmem:[%s406 + $0x18] sm:$0xff]
          %415 = vst [vmem:[%s407 + $0x18] sm:$0xff] %v414
          %v416 = vld [vmem:[%s406 + $0x20] sm:$0xff]
          %417 = vst [vmem:[%s407 + $0x20] sm:$0xff] %v416
          %v418 = vld [vmem:[%s406 + $0x28] sm:$0xff]
          %419 = vst [vmem:[%s407 + $0x28] sm:$0xff] %v418
          %v420 = vld [vmem:[%s406 + $0x30] sm:$0xff]
          %421 = vst [vmem:[%s407 + $0x30] sm:$0xff] %v420
          %v422 = vld [vmem:[%s406 + $0x38] sm:$0xff]
          %423 = vst [vmem:[%s407 + $0x38] sm:$0xff] %v422
          %v424 = vld [vmem:[%s406 + $0x40] sm:$0xff]
          %425 = vst [vmem:[%s407 + $0x40] sm:$0xff] %v424
          %v426 = vld [vmem:[%s406 + $0x48] sm:$0xff]
          %427 = vst [vmem:[%s407 + $0x48] sm:$0xff] %v426
          %v428 = vld [vmem:[%s406 + $0x50] sm:$0xff]
          %429 = vst [vmem:[%s407 + $0x50] sm:$0xff] %v428
          %v430 = vld [vmem:[%s406 + $0x58] sm:$0xff]
          %431 = vst [vmem:[%s407 + $0x58] sm:$0xff] %v430
          %v432 = vld [vmem:[%s406 + $0x60] sm:$0xff]
          %433 = vst [vmem:[%s407 + $0x60] sm:$0xff] %v432
          %v434 = vld [vmem:[%s406 + $0x68] sm:$0xff]
          %435 = vst [vmem:[%s407 + $0x68] sm:$0xff] %v434
          %v436 = vld [vmem:[%s406 + $0x70] sm:$0xff]
          %437 = vst [vmem:[%s407 + $0x70] sm:$0xff] %v436
          %v438 = vld [vmem:[%s406 + $0x78] sm:$0xff]
          %439 = vst [vmem:[%s407 + $0x78] sm:$0xff] %v438
          %v440 = vld [vmem:[%s406 + $0x80] sm:$0xff]
          %441 = vst [vmem:[%s407 + $0x80] sm:$0xff] %v440
          %v442 = vld [vmem:[%s406 + $0x88] sm:$0xff]
          %443 = vst [vmem:[%s407 + $0x88] sm:$0xff] %v442
          %v444 = vld [vmem:[%s406 + $0x90] sm:$0xff]
          %445 = vst [vmem:[%s407 + $0x90] sm:$0xff] %v444
          %v446 = vld [vmem:[%s406 + $0x98] sm:$0xff]
          %447 = vst [vmem:[%s407 + $0x98] sm:$0xff] %v446
          %v448 = vld [vmem:[%s406 + $0xa0] sm:$0xff]
          %449 = vst [vmem:[%s407 + $0xa0] sm:$0xff] %v448
          %v450 = vld [vmem:[%s406 + $0xa8] sm:$0xff]
          %451 = vst [vmem:[%s407 + $0xa8] sm:$0xff] %v450
          %v452 = vld [vmem:[%s406 + $0xb0] sm:$0xff]
          %453 = vst [vmem:[%s407 + $0xb0] sm:$0xff] %v452
          %v454 = vld [vmem:[%s406 + $0xb8] sm:$0xff]
          %455 = vst [vmem:[%s407 + $0xb8] sm:$0xff] %v454
        $region195: #{sequence_encoder_forward.1} parent=189 // loop_footer
          %s405 = sadd.s32 1, %s401
        $region196: #{sequence_encoder_forward.1} parent=189 // loop_footer_branch
          %400 = sbr.rel target = $region192
        $region197: #{sequence_encoder_forward.1} parent=189 // loop_exit
          _
      $region190: #{sequence_encoder_forward.1} parent=174 // pred_fallthru
        _
      %p456 = pneg %p396
      // Predicated region
      $region198: #{sequence_encoder_forward.1} parent=174 // pred_check
        _
      $region199: #{sequence_encoder_forward.1} parent=174 // pred_check_branch
        %458 = sbr.rel (%p396) target = $region201
      $region200: #{sequence_encoder_forward.1} parent=174 // pred_region
        %s459 = sand.u32 192, 7
      $region201: #{sequence_encoder_forward.1} parent=174 // pred_fallthru
        _
    $region175: #{sequence_encoder_forward.1} parent=8 // pred_fallthru
      _
    // Predicated region
    $region176: #{sequence_encoder_forward.1} parent=8 // pred_check
      %p380 = pneg %p376
    $region177: #{sequence_encoder_forward.1} parent=8 // pred_check_branch
      %382 = sbr.rel (%p380) target = $region179
    $region178: #{sequence_encoder_forward.1} parent=8 // pred_region
      %s383 = sshll.u32 1, 192
      %s384 = ssub.s32 %s383, 1
      loop: start=0, step=1, limit=1
      $region180: #{sequence_encoder_forward.1} parent=178 // loop_pre_header
        _
      $region181: #{sequence_encoder_forward.1} parent=178 // loop_header
        %s386 = sphi 0, %s390
        %p387 = scmp.ge.s32.totalorder %s386, 1
        %s391 = sphi %s6, %s6
        %s392 = sphi [#allocation7], [#allocation7]
      $region182: #{sequence_encoder_forward.1} parent=178 // loop_header_branch
        %389 = sbr.rel (%p387) target = $region186
      $region183: #{sequence_encoder_forward.1} parent=178 // loop_body
        %v393 = vld [vmem:[%s391] sm:%s384]
        %394 = vst [vmem:[%s392] sm:%s384] %v393
      $region184: #{sequence_encoder_forward.1} parent=178 // loop_footer
        %s390 = sadd.s32 1, %s386
      $region185: #{sequence_encoder_forward.1} parent=178 // loop_footer_branch
        %385 = sbr.rel target = $region181
      $region186: #{sequence_encoder_forward.1} parent=178 // loop_exit
        _
    $region179: #{sequence_encoder_forward.1} parent=8 // pred_fallthru
      _
    // Predicated region
    $region202: #{sequence_encoder_forward.1} parent=8 // pred_check
      _
    $region203: #{sequence_encoder_forward.1} parent=8 // pred_check_branch
      %462 = sbr.rel (0) target = $region205
    $region204: #{sequence_encoder_forward.1} parent=8 // pred_region
      %463 = vsyncadd %s374, 3072
    $region205: #{sequence_encoder_forward.1} parent=8 // pred_fallthru
      _
    %s464 = scalar_lea.sflag [#allocation13], 6
    %p466 = scmp.lt.u32.totalorder 3, 8
    %p467 = pneg %p466
    // Predicated region
    $region206: #{sequence_encoder_forward.1} parent=8 // pred_check
      _
    $region207: #{sequence_encoder_forward.1} parent=8 // pred_check_branch
      %469 = sbr.rel (%p466) target = $region209
    $region208: #{sequence_encoder_forward.1} parent=8 // pred_region
      %s485 = sand.u32 3, 7
      %p486 = scmp.eq.s32.totalorder %s485, 0
      %p487 = pneg %p486
      // Predicated region
      $region221: #{sequence_encoder_forward.1} parent=208 // pred_check
        _
      $region222: #{sequence_encoder_forward.1} parent=208 // pred_check_branch
        %489 = sbr.rel (%p486) target = $region224
      $region223: #{sequence_encoder_forward.1} parent=208 // pred_region
        %s490 = sand.u32 3, 7
        %s491 = ssub.s32 3, %s490
        %s492 = scalar_lea.vmem %s7, %s491
        %s493 = ssub.s32 3, %s490
        %s494 = scalar_lea.vmem [#allocation8], %s493
        %s495 = sshll.u32 1, %s490
        %s496 = ssub.s32 %s495, 1
        loop: start=0, step=1, limit=1
        $region225: #{sequence_encoder_forward.1} parent=223 // loop_pre_header
          _
        $region226: #{sequence_encoder_forward.1} parent=223 // loop_header
          %s498 = sphi 0, %s502
          %p499 = scmp.ge.s32.totalorder %s498, 1
          %s503 = sphi %s492, %s492
          %s504 = sphi %s494, %s494
        $region227: #{sequence_encoder_forward.1} parent=223 // loop_header_branch
          %501 = sbr.rel (%p499) target = $region231
        $region228: #{sequence_encoder_forward.1} parent=223 // loop_body
          %v505 = vld [vmem:[%s503] sm:%s496]
          %506 = vst [vmem:[%s504] sm:%s496] %v505
        $region229: #{sequence_encoder_forward.1} parent=223 // loop_footer
          %s502 = sadd.s32 1, %s498
        $region230: #{sequence_encoder_forward.1} parent=223 // loop_footer_branch
          %497 = sbr.rel target = $region226
        $region231: #{sequence_encoder_forward.1} parent=223 // loop_exit
          _
      $region224: #{sequence_encoder_forward.1} parent=208 // pred_fallthru
        _
    $region209: #{sequence_encoder_forward.1} parent=8 // pred_fallthru
      _
    // Predicated region
    $region210: #{sequence_encoder_forward.1} parent=8 // pred_check
      %p470 = pneg %p466
    $region211: #{sequence_encoder_forward.1} parent=8 // pred_check_branch
      %472 = sbr.rel (%p470) target = $region213
    $region212: #{sequence_encoder_forward.1} parent=8 // pred_region
      %s473 = sshll.u32 1, 3
      %s474 = ssub.s32 %s473, 1
      loop: start=0, step=1, limit=1
      $region214: #{sequence_encoder_forward.1} parent=212 // loop_pre_header
        _
      $region215: #{sequence_encoder_forward.1} parent=212 // loop_header
        %s476 = sphi 0, %s480
        %p477 = scmp.ge.s32.totalorder %s476, 1
        %s481 = sphi %s7, %s7
        %s482 = sphi [#allocation8], [#allocation8]
      $region216: #{sequence_encoder_forward.1} parent=212 // loop_header_branch
        %479 = sbr.rel (%p477) target = $region220
      $region217: #{sequence_encoder_forward.1} parent=212 // loop_body
        %v483 = vld [vmem:[%s481] sm:%s474]
        %484 = vst [vmem:[%s482] sm:%s474] %v483
      $region218: #{sequence_encoder_forward.1} parent=212 // loop_footer
        %s480 = sadd.s32 1, %s476
      $region219: #{sequence_encoder_forward.1} parent=212 // loop_footer_branch
        %475 = sbr.rel target = $region215
      $region220: #{sequence_encoder_forward.1} parent=212 // loop_exit
        _
    $region213: #{sequence_encoder_forward.1} parent=8 // pred_fallthru
      _
    // Predicated region
    $region232: #{sequence_encoder_forward.1} parent=8 // pred_check
      _
    $region233: #{sequence_encoder_forward.1} parent=8 // pred_check_branch
      %509 = sbr.rel (0) target = $region235
    $region234: #{sequence_encoder_forward.1} parent=8 // pred_region
      %510 = vsyncadd %s464, 48
    $region235: #{sequence_encoder_forward.1} parent=8 // pred_fallthru
      _
    %s511 = scalar_lea.sflag [#allocation13], 7
    %p513 = scmp.lt.u32.totalorder 1, 8
    %p514 = pneg %p513
    // Predicated region
    $region236: #{sequence_encoder_forward.1} parent=8 // pred_check
      _
    $region237: #{sequence_encoder_forward.1} parent=8 // pred_check_branch
      %516 = sbr.rel (%p513) target = $region239
    $region238: #{sequence_encoder_forward.1} parent=8 // pred_region
      %s532 = sand.u32 1, 7
      %p533 = scmp.eq.s32.totalorder %s532, 0
      %p534 = pneg %p533
      // Predicated region
      $region251: #{sequence_encoder_forward.1} parent=238 // pred_check
        _
      $region252: #{sequence_encoder_forward.1} parent=238 // pred_check_branch
        %536 = sbr.rel (%p533) target = $region254
      $region253: #{sequence_encoder_forward.1} parent=238 // pred_region
        %s537 = sand.u32 1, 7
        %s538 = ssub.s32 1, %s537
        %s539 = scalar_lea.vmem %s8, %s538
        %s540 = ssub.s32 1, %s537
        %s541 = scalar_lea.vmem [#allocation9], %s540
        %s542 = sshll.u32 1, %s537
        %s543 = ssub.s32 %s542, 1
        loop: start=0, step=1, limit=1
        $region255: #{sequence_encoder_forward.1} parent=253 // loop_pre_header
          _
        $region256: #{sequence_encoder_forward.1} parent=253 // loop_header
          %s545 = sphi 0, %s549
          %p546 = scmp.ge.s32.totalorder %s545, 1
          %s550 = sphi %s539, %s539
          %s551 = sphi %s541, %s541
        $region257: #{sequence_encoder_forward.1} parent=253 // loop_header_branch
          %548 = sbr.rel (%p546) target = $region261
        $region258: #{sequence_encoder_forward.1} parent=253 // loop_body
          %v552 = vld [vmem:[%s550] sm:%s543]
          %553 = vst [vmem:[%s551] sm:%s543] %v552
        $region259: #{sequence_encoder_forward.1} parent=253 // loop_footer
          %s549 = sadd.s32 1, %s545
        $region260: #{sequence_encoder_forward.1} parent=253 // loop_footer_branch
          %544 = sbr.rel target = $region256
        $region261: #{sequence_encoder_forward.1} parent=253 // loop_exit
          _
      $region254: #{sequence_encoder_forward.1} parent=238 // pred_fallthru
        _
    $region239: #{sequence_encoder_forward.1} parent=8 // pred_fallthru
      _
    // Predicated region
    $region240: #{sequence_encoder_forward.1} parent=8 // pred_check
      %p517 = pneg %p513
    $region241: #{sequence_encoder_forward.1} parent=8 // pred_check_branch
      %519 = sbr.rel (%p517) target = $region243
    $region242: #{sequence_encoder_forward.1} parent=8 // pred_region
      %s520 = sshll.u32 1, 1
      %s521 = ssub.s32 %s520, 1
      loop: start=0, step=1, limit=1
      $region244: #{sequence_encoder_forward.1} parent=242 // loop_pre_header
        _
      $region245: #{sequence_encoder_forward.1} parent=242 // loop_header
        %s523 = sphi 0, %s527
        %p524 = scmp.ge.s32.totalorder %s523, 1
        %s528 = sphi %s8, %s8
        %s529 = sphi [#allocation9], [#allocation9]
      $region246: #{sequence_encoder_forward.1} parent=242 // loop_header_branch
        %526 = sbr.rel (%p524) target = $region250
      $region247: #{sequence_encoder_forward.1} parent=242 // loop_body
        %v530 = vld [vmem:[%s528] sm:%s521]
        %531 = vst [vmem:[%s529] sm:%s521] %v530
      $region248: #{sequence_encoder_forward.1} parent=242 // loop_footer
        %s527 = sadd.s32 1, %s523
      $region249: #{sequence_encoder_forward.1} parent=242 // loop_footer_branch
        %522 = sbr.rel target = $region245
      $region250: #{sequence_encoder_forward.1} parent=242 // loop_exit
        _
    $region243: #{sequence_encoder_forward.1} parent=8 // pred_fallthru
      _
    // Predicated region
    $region262: #{sequence_encoder_forward.1} parent=8 // pred_check
      _
    $region263: #{sequence_encoder_forward.1} parent=8 // pred_check_branch
      %556 = sbr.rel (0) target = $region265
    $region264: #{sequence_encoder_forward.1} parent=8 // pred_region
      %557 = vsyncadd %s511, 16
    $region265: #{sequence_encoder_forward.1} parent=8 // pred_fallthru
      _
    %s558 = smul.u32 4, 4
    %s559 = smul.u32 %s558, 3
    %s560 = sshll.u32 %s559, 4
    %561 = dma.done [#allocation13], %s560
    %s562 = smul.u32 4, 16
    %s563 = smul.u32 %s562, 3
    %s564 = sshll.u32 %s563, 4
    %565 = dma.done %s100, %s564
    %s566 = smul.u32 1, 3
    %s567 = sshll.u32 %s566, 4
    %568 = dma.done %s190, %s567
    %s569 = smul.u32 1, 1
    %s570 = sshll.u32 %s569, 4
    %571 = dma.done %s237, %s570
    %s572 = sshll.u32 %s563, 4
    %573 = dma.done %s284, %s572
    %s574 = sshll.u32 %s563, 4
    %575 = dma.done %s374, %s574
    %s576 = sshll.u32 %s566, 4
    %577 = dma.done %s464, %s576
    %s578 = sshll.u32 %s569, 4
    %579 = dma.done %s511, %s578
  $region9: #{sequence_encoder_forward.1} parent=0 // pred_fallthru
    _
  %v580 = vld [vmem:[%s35] sm:$0xf]
  %v581 = vld [vmem:[%s35 + $0x4] sm:$0xf]
  %v582 = vld [vmem:[%s35 + $0x8] sm:$0xf]
  %v583 = vld [vmem:[%s35 + $0xc] sm:$0xf]
  %v584 = vld [vmem:[%s35 + $0x10] sm:$0xf]
  %v585 = vld [vmem:[%s35 + $0x14] sm:$0xf]
  %v586 = vld [vmem:[%s35 + $0x18] sm:$0xf]
  %v587 = vld [vmem:[%s35 + $0x1c] sm:$0xf]
  %v588 = vld [vmem:[%s35 + $0x20] sm:$0xf]
  %v589 = vld [vmem:[%s35 + $0x24] sm:$0xf]
  %v590 = vld [vmem:[%s35 + $0x28] sm:$0xf]
  %v591 = vld [vmem:[%s35 + $0x2c] sm:$0xf]
  %v592 = vld [vmem:[%s35 + $0x30] sm:$0xf]
  %v593 = vld [vmem:[%s35 + $0x34] sm:$0xf]
  %v594 = vld [vmem:[%s35 + $0x38] sm:$0xf]
  %v595 = vld [vmem:[%s35 + $0x3c] sm:$0xf]
  %v596 = vld [vmem:[#allocation2] sm:$0xff]
  %v597 = vld [vmem:[#allocation2 + $0x8] sm:$0xf]
  %v598 = vld [vmem:[#allocation2 + $0xc] sm:$0xff]
  %v599 = vld [vmem:[#allocation2 + $0x14] sm:$0xf]
  %v600 = vld [vmem:[#allocation2 + $0x18] sm:$0xff]
  %v601 = vld [vmem:[#allocation2 + $0x20] sm:$0xf]
  %v602 = vld [vmem:[#allocation2 + $0x24] sm:$0xff]
  %v603 = vld [vmem:[#allocation2 + $0x2c] sm:$0xf]
  %v604 = vld [vmem:[#allocation4] sm:$0x7]
  %v606 = vlaneseq
  %v607 = vshrl.u32 %v606, 7
  %v608 = vsub.s32 0, %v607
  %v609 = vrot.slane %v604, %v608
  %v610 = vlaneseq
  %v611 = vshrl.u32 %v610, 7
  %v612 = vsub.s32 1, %v611
  %v613 = vrot.slane %v604, %v612
  %v614 = vlaneseq
  %v615 = vshrl.u32 %v614, 7
  %v616 = vsub.s32 2, %v615
  %v617 = vrot.slane %v604, %v616
  %v637 = vunpack.c.l.b16 %v580
  %v638 = vunpack.c.l.b16 %v581
  %v639 = vunpack.c.l.b16 %v582
  %v640 = vunpack.c.l.b16 %v583
  %v641 = vunpack.c.l.b16 %v584
  %v642 = vunpack.c.l.b16 %v585
  %v643 = vunpack.c.l.b16 %v586
  %v644 = vunpack.c.l.b16 %v587
  %v645 = vunpack.c.l.b16 %v588
  %v646 = vunpack.c.l.b16 %v589
  %v647 = vunpack.c.l.b16 %v590
  %v648 = vunpack.c.l.b16 %v591
  %v649 = vunpack.c.l.b16 %v592
  %v650 = vunpack.c.l.b16 %v593
  %v651 = vunpack.c.l.b16 %v594
  %v652 = vunpack.c.l.b16 %v595
  %v653 = vpack.c.b16 %v638, %v637
  %v654 = vpack.c.b16 %v640, %v639
  %v655 = vpack.c.b16 %v642, %v641
  %v656 = vpack.c.b16 %v644, %v643
  %v657 = vpack.c.b16 %v646, %v645
  %v658 = vpack.c.b16 %v648, %v647
  %v659 = vpack.c.b16 %v650, %v649
  %v660 = vpack.c.b16 %v652, %v651
  %v669 = vunpack.c.l.b16 %v596
  %v670 = vunpack.c.h.b16 %v596
  %v671 = vunpack.c.l.b16 %v597
  %v672 = vunpack.c.l.b16 %v598
  %v673 = vunpack.c.h.b16 %v598
  %v674 = vunpack.c.l.b16 %v599
  %v675 = vunpack.c.l.b16 %v600
  %v676 = vunpack.c.h.b16 %v600
  %v677 = vunpack.c.l.b16 %v601
  %v678 = vunpack.c.l.b16 %v602
  %v679 = vunpack.c.h.b16 %v602
  %v680 = vunpack.c.l.b16 %v603
  %v681 = vpack.c.b16 %v672, %v669
  %v682 = vpack.c.b16 %v673, %v670
  %v683 = vpack.c.b16 %v674, %v671
  %v684 = vpack.c.b16 %v678, %v675
  %v685 = vpack.c.b16 %v679, %v676
  %v686 = vpack.c.b16 %v680, %v677
  %vm693 = vcmask 261120
  %v695 = vsel %vm693, %v653, 0
  %v698 = vsel %vm693, %v654, 0
  %v701 = vsel %vm693, %v655, 0
  %v704 = vsel %vm693, %v656, 0
  %v707 = vsel %vm693, %v657, 0
  %v710 = vsel %vm693, %v658, 0
  %v713 = vsel %vm693, %v659, 0
  %v716 = vsel %vm693, %v660, 0
  %718 = vmatprep.subr.bf16.mxu0 0
  %719 = vmatpush1.bf16.msra.mxu0 0
  %720 = vmatprep.subr.bf16.mxu0 0
  %721 = vmatpush1.bf16.msra.mxu0 0
  %722 = vmatprep.subr.bf16.mxu0 0
  %723 = vmatpush1.bf16.msra.mxu0 0
  %724 = vmatprep.subr.bf16.mxu0 0
  %725 = vmatpush1.bf16.msra.mxu0 0
  %726 = vmatprep.subr.bf16.mxu0 0
  %727 = vmatpush1.bf16.msra.mxu0 0
  %728 = vmatprep.subr.bf16.mxu0 0
  %729 = vmatpush1.bf16.msra.mxu0 0
  %730 = vmatprep.subr.bf16.mxu0 %v685
  %731 = vmatpush1.bf16.msra.mxu0 %v684
  %732 = vmatprep.subr.bf16.mxu0 %v682
  %733 = vmatpush1.bf16.msra.mxu0 %v681
  %734 = vmatprep.subr.bf16.mxu0 0
  %735 = vmatpush2.bf16.msra.mxu0 0
  %736 = vmatprep.subr.bf16.mxu0 0
  %737 = vmatpush2.bf16.msra.mxu0 0
  %738 = vmatprep.subr.bf16.mxu0 0
  %739 = vmatpush2.bf16.msra.mxu0 0
  %740 = vmatprep.subr.bf16.mxu0 0
  %741 = vmatpush2.bf16.msra.mxu0 0
  %742 = vmatprep.subr.bf16.mxu0 0
  %743 = vmatpush2.bf16.msra.mxu0 0
  %744 = vmatprep.subr.bf16.mxu0 0
  %745 = vmatpush2.bf16.msra.mxu0 0
  %746 = vmatprep.subr.bf16.mxu0 0
  %747 = vmatpush2.bf16.msra.mxu0 0
  %748 = vmatprep.subr.bf16.mxu0 0
  %749 = vmatpush2.bf16.msra.mxu0 0
  %750 = vmatprep.mubr.bf16.mxu0 0
  %751 = vmatmul.mubr.bf16.gmra.mxu0 %v695
  %v752 = vpop.f32.mrf.mxu0
  %v753 = vadd.f32 %v609, %v752
  %v754 = vpop.f32.mrf.mxu0
  %v755 = vadd.f32 %v613, %v754
  %v756 = vpop.f32.mrf.mxu0
  %v757 = vadd.f32 %v609, %v756
  %v758 = vpop.f32.mrf.mxu0
  %v759 = vadd.f32 %v613, %v758
  %760 = vmatprep.mubr.bf16.mxu0 0
  %761 = vmatmul.mubr.bf16.gmra.mxu0 %v698
  %v762 = vpop.f32.mrf.mxu0
  %v763 = vadd.f32 %v609, %v762
  %v764 = vpop.f32.mrf.mxu0
  %v765 = vadd.f32 %v613, %v764
  %v766 = vpop.f32.mrf.mxu0
  %v767 = vadd.f32 %v609, %v766
  %v768 = vpop.f32.mrf.mxu0
  %v769 = vadd.f32 %v613, %v768
  %770 = vmatprep.mubr.bf16.mxu0 0
  %771 = vmatmul.mubr.bf16.gmra.mxu0 %v701
  %v772 = vpop.f32.mrf.mxu0
  %v773 = vadd.f32 %v609, %v772
  %v774 = vpop.f32.mrf.mxu0
  %v775 = vadd.f32 %v613, %v774
  %v776 = vpop.f32.mrf.mxu0
  %v777 = vadd.f32 %v609, %v776
  %v778 = vpop.f32.mrf.mxu0
  %v779 = vadd.f32 %v613, %v778
  %780 = vmatprep.mubr.bf16.mxu0 0
  %781 = vmatmul.mubr.bf16.gmra.mxu0 %v704
  %v782 = vpop.f32.mrf.mxu0
  %v783 = vadd.f32 %v609, %v782
  %v784 = vpop.f32.mrf.mxu0
  %v785 = vadd.f32 %v613, %v784
  %v786 = vpop.f32.mrf.mxu0
  %v787 = vadd.f32 %v609, %v786
  %v788 = vpop.f32.mrf.mxu0
  %v789 = vadd.f32 %v613, %v788
  %790 = vmatprep.mubr.bf16.mxu0 0
  %791 = vmatmul.mubr.bf16.gmra.mxu0 %v707
  %v792 = vpop.f32.mrf.mxu0
  %v793 = vadd.f32 %v609, %v792
  %v794 = vpop.f32.mrf.mxu0
  %v795 = vadd.f32 %v613, %v794
  %v796 = vpop.f32.mrf.mxu0
  %v797 = vadd.f32 %v609, %v796
  %v798 = vpop.f32.mrf.mxu0
  %v799 = vadd.f32 %v613, %v798
  %800 = vmatprep.mubr.bf16.mxu0 0
  %801 = vmatmul.mubr.bf16.gmra.mxu0 %v710
  %v802 = vpop.f32.mrf.mxu0
  %v803 = vadd.f32 %v609, %v802
  %v804 = vpop.f32.mrf.mxu0
  %v805 = vadd.f32 %v613, %v804
  %v806 = vpop.f32.mrf.mxu0
  %v807 = vadd.f32 %v609, %v806
  %v808 = vpop.f32.mrf.mxu0
  %v809 = vadd.f32 %v613, %v808
  %810 = vmatprep.mubr.bf16.mxu0 0
  %811 = vmatmul.mubr.bf16.gmra.mxu0 %v713
  %v812 = vpop.f32.mrf.mxu0
  %v813 = vadd.f32 %v609, %v812
  %v814 = vpop.f32.mrf.mxu0
  %v815 = vadd.f32 %v613, %v814
  %v816 = vpop.f32.mrf.mxu0
  %v817 = vadd.f32 %v609, %v816
  %v818 = vpop.f32.mrf.mxu0
  %v819 = vadd.f32 %v613, %v818
  %820 = vmatprep.mubr.bf16.mxu0 0
  %821 = vmatmul.mubr.bf16.gmra.mxu0 %v716
  %v822 = vpop.f32.mrf.mxu0
  %v823 = vadd.f32 %v609, %v822
  %v824 = vpop.f32.mrf.mxu0
  %v825 = vadd.f32 %v613, %v824
  %v826 = vpop.f32.mrf.mxu0
  %v827 = vadd.f32 %v609, %v826
  %v828 = vpop.f32.mrf.mxu0
  %v829 = vadd.f32 %v613, %v828
  %830 = vdwg.mxu0
  %831 = vmatprep.subr.bf16.mxu0 0
  %832 = vmatpush1.bf16.msra.mxu0 0
  %833 = vmatprep.subr.bf16.mxu0 0
  %834 = vmatpush1.bf16.msra.mxu0 0
  %835 = vmatprep.subr.bf16.mxu0 0
  %836 = vmatpush1.bf16.msra.mxu0 0
  %837 = vmatprep.subr.bf16.mxu0 0
  %838 = vmatpush1.bf16.msra.mxu0 0
  %839 = vmatprep.subr.bf16.mxu0 0
  %840 = vmatpush1.bf16.msra.mxu0 0
  %841 = vmatprep.subr.bf16.mxu0 0
  %842 = vmatpush1.bf16.msra.mxu0 0
  %843 = vmatprep.subr.bf16.mxu0 0
  %844 = vmatpush1.bf16.msra.mxu0 %v686
  %845 = vmatprep.subr.bf16.mxu0 0
  %846 = vmatpush1.bf16.msra.mxu0 %v683
  %847 = vmatprep.subr.bf16.mxu0 0
  %848 = vmatpush2.bf16.msra.mxu0 0
  %849 = vmatprep.subr.bf16.mxu0 0
  %850 = vmatpush2.bf16.msra.mxu0 0
  %851 = vmatprep.subr.bf16.mxu0 0
  %852 = vmatpush2.bf16.msra.mxu0 0
  %853 = vmatprep.subr.bf16.mxu0 0
  %854 = vmatpush2.bf16.msra.mxu0 0
  %855 = vmatprep.subr.bf16.mxu0 0
  %856 = vmatpush2.bf16.msra.mxu0 0
  %857 = vmatprep.subr.bf16.mxu0 0
  %858 = vmatpush2.bf16.msra.mxu0 0
  %859 = vmatprep.subr.bf16.mxu0 0
  %860 = vmatpush2.bf16.msra.mxu0 0
  %861 = vmatprep.subr.bf16.mxu0 0
  %862 = vmatpush2.bf16.msra.mxu0 0
  %863 = vmatprep.mubr.bf16.mxu0 0
  %864 = vmatmul.mubr.bf16.gmra.mxu0 %v695
  %v865 = vpop.f32.mrf.mxu0
  %v866 = vadd.f32 %v617, %v865
  %v867 = vpop.f32.mrf.mxu0
  %v868 = vpop.f32.mrf.mxu0
  %v869 = vadd.f32 %v617, %v868
  %v870 = vpop.f32.mrf.mxu0
  %871 = vmatprep.mubr.bf16.mxu0 0
  %872 = vmatmul.mubr.bf16.gmra.mxu0 %v698
  %v873 = vpop.f32.mrf.mxu0
  %v874 = vadd.f32 %v617, %v873
  %v875 = vpop.f32.mrf.mxu0
  %v876 = vpop.f32.mrf.mxu0
  %v877 = vadd.f32 %v617, %v876
  %v878 = vpop.f32.mrf.mxu0
  %879 = vmatprep.mubr.bf16.mxu0 0
  %880 = vmatmul.mubr.bf16.gmra.mxu0 %v701
  %v881 = vpop.f32.mrf.mxu0
  %v882 = vadd.f32 %v617, %v881
  %v883 = vpop.f32.mrf.mxu0
  %v884 = vpop.f32.mrf.mxu0
  %v885 = vadd.f32 %v617, %v884
  %v886 = vpop.f32.mrf.mxu0
  %887 = vmatprep.mubr.bf16.mxu0 0
  %888 = vmatmul.mubr.bf16.gmra.mxu0 %v704
  %v889 = vpop.f32.mrf.mxu0
  %v890 = vadd.f32 %v617, %v889
  %v891 = vpop.f32.mrf.mxu0
  %v892 = vpop.f32.mrf.mxu0
  %v893 = vadd.f32 %v617, %v892
  %v894 = vpop.f32.mrf.mxu0
  %895 = vmatprep.mubr.bf16.mxu0 0
  %896 = vmatmul.mubr.bf16.gmra.mxu0 %v707
  %v897 = vpop.f32.mrf.mxu0
  %v898 = vadd.f32 %v617, %v897
  %v899 = vpop.f32.mrf.mxu0
  %v900 = vpop.f32.mrf.mxu0
  %v901 = vadd.f32 %v617, %v900
  %v902 = vpop.f32.mrf.mxu0
  %903 = vmatprep.mubr.bf16.mxu0 0
  %904 = vmatmul.mubr.bf16.gmra.mxu0 %v710
  %v905 = vpop.f32.mrf.mxu0
  %v906 = vadd.f32 %v617, %v905
  %v907 = vpop.f32.mrf.mxu0
  %v908 = vpop.f32.mrf.mxu0
  %v909 = vadd.f32 %v617, %v908
  %v910 = vpop.f32.mrf.mxu0
  %911 = vmatprep.mubr.bf16.mxu0 0
  %912 = vmatmul.mubr.bf16.gmra.mxu0 %v713
  %v913 = vpop.f32.mrf.mxu0
  %v914 = vadd.f32 %v617, %v913
  %v915 = vpop.f32.mrf.mxu0
  %v916 = vpop.f32.mrf.mxu0
  %v917 = vadd.f32 %v617, %v916
  %v918 = vpop.f32.mrf.mxu0
  %919 = vmatprep.mubr.bf16.mxu0 0
  %920 = vmatmul.mubr.bf16.gmra.mxu0 %v716
  %v921 = vpop.f32.mrf.mxu0
  %v922 = vadd.f32 %v617, %v921
  %v923 = vpop.f32.mrf.mxu0
  %v924 = vpop.f32.mrf.mxu0
  %v925 = vadd.f32 %v617, %v924
  %v926 = vpop.f32.mrf.mxu0
  %927 = vdwg.mxu0
  %928 = vst [vmem:[#allocation11] sm:$0xff] %v753
  %929 = vst [vmem:[#allocation11 + $0x8] sm:$0xff] %v755
  %930 = vst [vmem:[#allocation11 + $0x10] sm:$0xff] %v866
  %931 = vst [vmem:[#allocation11 + $0x18] sm:$0xff] %v757
  %932 = vst [vmem:[#allocation11 + $0x20] sm:$0xff] %v759
  %933 = vst [vmem:[#allocation11 + $0x28] sm:$0xff] %v869
  %934 = vst [vmem:[#allocation11 + $0x30] sm:$0xff] %v763
  %935 = vst [vmem:[#allocation11 + $0x38] sm:$0xff] %v765
  %936 = vst [vmem:[#allocation11 + $0x40] sm:$0xff] %v874
  %937 = vst [vmem:[#allocation11 + $0x48] sm:$0xff] %v767
  %938 = vst [vmem:[#allocation11 + $0x50] sm:$0xff] %v769
  %939 = vst [vmem:[#allocation11 + $0x58] sm:$0xff] %v877
  %940 = vst [vmem:[#allocation11 + $0x60] sm:$0xff] %v773
  %941 = vst [vmem:[#allocation11 + $0x68] sm:$0xff] %v775
  %942 = vst [vmem:[#allocation11 + $0x70] sm:$0xff] %v882
  %943 = vst [vmem:[#allocation11 + $0x78] sm:$0xff] %v777
  %944 = vst [vmem:[#allocation11 + $0x80] sm:$0xff] %v779
  %945 = vst [vmem:[#allocation11 + $0x88] sm:$0xff] %v885
  %946 = vst [vmem:[#allocation11 + $0x90] sm:$0xff] %v783
  %947 = vst [vmem:[#allocation11 + $0x98] sm:$0xff] %v785
  %948 = vst [vmem:[#allocation11 + $0xa0] sm:$0xff] %v890
  %949 = vst [vmem:[#allocation11 + $0xa8] sm:$0xff] %v787
  %950 = vst [vmem:[#allocation11 + $0xb0] sm:$0xff] %v789
  %951 = vst [vmem:[#allocation11 + $0xb8] sm:$0xff] %v893
  %952 = vst [vmem:[#allocation11 + $0xc0] sm:$0xff] %v793
  %953 = vst [vmem:[#allocation11 + $0xc8] sm:$0xff] %v795
  %954 = vst [vmem:[#allocation11 + $0xd0] sm:$0xff] %v898
  %955 = vst [vmem:[#allocation11 + $0xd8] sm:$0xff] %v797
  %956 = vst [vmem:[#allocation11 + $0xe0] sm:$0xff] %v799
  %957 = vst [vmem:[#allocation11 + $0xe8] sm:$0xff] %v901
  %958 = vst [vmem:[#allocation11 + $0xf0] sm:$0xff] %v803
  %959 = vst [vmem:[#allocation11 + $0xf8] sm:$0xff] %v805
  %960 = vst [vmem:[#allocation11 + $0x100] sm:$0xff] %v906
  %961 = vst [vmem:[#allocation11 + $0x108] sm:$0xff] %v807
  %962 = vst [vmem:[#allocation11 + $0x110] sm:$0xff] %v809
  %963 = vst [vmem:[#allocation11 + $0x118] sm:$0xff] %v909
  %964 = vst [vmem:[#allocation11 + $0x120] sm:$0xff] %v813
  %965 = vst [vmem:[#allocation11 + $0x128] sm:$0xff] %v815
  %966 = vst [vmem:[#allocation11 + $0x130] sm:$0xff] %v914
  %967 = vst [vmem:[#allocation11 + $0x138] sm:$0xff] %v817
  %968 = vst [vmem:[#allocation11 + $0x140] sm:$0xff] %v819
  %969 = vst [vmem:[#allocation11 + $0x148] sm:$0xff] %v917
  %970 = vst [vmem:[#allocation11 + $0x150] sm:$0xff] %v823
  %971 = vst [vmem:[#allocation11 + $0x158] sm:$0xff] %v825
  %972 = vst [vmem:[#allocation11 + $0x160] sm:$0xff] %v922
  %973 = vst [vmem:[#allocation11 + $0x168] sm:$0xff] %v827
  %974 = vst [vmem:[#allocation11 + $0x170] sm:$0xff] %v829
  %975 = vst [vmem:[#allocation11 + $0x178] sm:$0xff] %v925
  %v976 = vld [vmem:[#allocation10] sm:$0xff]
  %v977 = vld [vmem:[#allocation10 + $0x8] sm:$0xff]
  %s978 = smul.u32 0, 3
  %s979 = smul.addr %s978, 8
  %s980 = scalar_lea.vmem [#allocation11], %s979
  %v981 = vld [vmem:[%s980] sm:$0xff]
  %v982 = vld [vmem:[%s980 + $0x8] sm:$0xff]
  %v983 = vld [vmem:[%s980 + $0x10] sm:$0xff]
  %v984 = vld [vmem:[%s980 + $0x18] sm:$0xff]
  %v985 = vld [vmem:[%s980 + $0x20] sm:$0xff]
  %v986 = vld [vmem:[%s980 + $0x28] sm:$0xff]
  %v987 = vpack.c.bf16 %v977, %v976
  %v988 = vld [vmem:[#allocation3] sm:$0xff]
  %v989 = vld [vmem:[#allocation3 + $0x8] sm:$0xf]
  %v990 = vld [vmem:[#allocation3 + $0xc] sm:$0xff]
  %v991 = vld [vmem:[#allocation3 + $0x14] sm:$0xf]
  %v992 = vld [vmem:[#allocation3 + $0x18] sm:$0xff]
  %v993 = vld [vmem:[#allocation3 + $0x20] sm:$0xf]
  %v994 = vld [vmem:[#allocation3 + $0x24] sm:$0xff]
  %v995 = vld [vmem:[#allocation3 + $0x2c] sm:$0xf]
  %v996 = vld [vmem:[#allocation3 + $0x30] sm:$0xff]
  %v997 = vld [vmem:[#allocation3 + $0x38] sm:$0xf]
  %v998 = vld [vmem:[#allocation3 + $0x3c] sm:$0xff]
  %v999 = vld [vmem:[#allocation3 + $0x44] sm:$0xf]
  %v1000 = vld [vmem:[#allocation3 + $0x48] sm:$0xff]
  %v1001 = vld [vmem:[#allocation3 + $0x50] sm:$0xf]
  %v1002 = vld [vmem:[#allocation3 + $0x54] sm:$0xff]
  %v1003 = vld [vmem:[#allocation3 + $0x5c] sm:$0xf]
  %v1004 = vld [vmem:[#allocation3 + $0x60] sm:$0xff]
  %v1005 = vld [vmem:[#allocation3 + $0x68] sm:$0xf]
  %v1006 = vld [vmem:[#allocation3 + $0x6c] sm:$0xff]
  %v1007 = vld [vmem:[#allocation3 + $0x74] sm:$0xf]
  %v1008 = vld [vmem:[#allocation3 + $0x78] sm:$0xff]
  %v1009 = vld [vmem:[#allocation3 + $0x80] sm:$0xf]
  %v1010 = vld [vmem:[#allocation3 + $0x84] sm:$0xff]
  %v1011 = vld [vmem:[#allocation3 + $0x8c] sm:$0xf]
  %v1012 = vld [vmem:[#allocation3 + $0x90] sm:$0xff]
  %v1013 = vld [vmem:[#allocation3 + $0x98] sm:$0xf]
  %v1014 = vld [vmem:[#allocation3 + $0x9c] sm:$0xff]
  %v1015 = vld [vmem:[#allocation3 + $0xa4] sm:$0xf]
  %v1016 = vld [vmem:[#allocation3 + $0xa8] sm:$0xff]
  %v1017 = vld [vmem:[#allocation3 + $0xb0] sm:$0xf]
  %v1018 = vld [vmem:[#allocation3 + $0xb4] sm:$0xff]
  %v1019 = vld [vmem:[#allocation3 + $0xbc] sm:$0xf]
  %v1052 = vunpack.c.l.b16 %v988
  %v1053 = vunpack.c.h.b16 %v988
  %v1054 = vunpack.c.l.b16 %v989
  %v1055 = vunpack.c.l.b16 %v990
  %v1056 = vunpack.c.h.b16 %v990
  %v1057 = vunpack.c.l.b16 %v991
  %v1058 = vunpack.c.l.b16 %v992
  %v1059 = vunpack.c.h.b16 %v992
  %v1060 = vunpack.c.l.b16 %v993
  %v1061 = vunpack.c.l.b16 %v994
  %v1062 = vunpack.c.h.b16 %v994
  %v1063 = vunpack.c.l.b16 %v995
  %v1064 = vunpack.c.l.b16 %v996
  %v1065 = vunpack.c.h.b16 %v996
  %v1066 = vunpack.c.l.b16 %v997
  %v1067 = vunpack.c.l.b16 %v998
  %v1068 = vunpack.c.h.b16 %v998
  %v1069 = vunpack.c.l.b16 %v999
  %v1070 = vunpack.c.l.b16 %v1000
  %v1071 = vunpack.c.h.b16 %v1000
  %v1072 = vunpack.c.l.b16 %v1001
  %v1073 = vunpack.c.l.b16 %v1002
  %v1074 = vunpack.c.h.b16 %v1002
  %v1075 = vunpack.c.l.b16 %v1003
  %v1076 = vunpack.c.l.b16 %v1004
  %v1077 = vunpack.c.h.b16 %v1004
  %v1078 = vunpack.c.l.b16 %v1005
  %v1079 = vunpack.c.l.b16 %v1006
  %v1080 = vunpack.c.h.b16 %v1006
  %v1081 = vunpack.c.l.b16 %v1007
  %v1082 = vunpack.c.l.b16 %v1008
  %v1083 = vunpack.c.h.b16 %v1008
  %v1084 = vunpack.c.l.b16 %v1009
  %v1085 = vunpack.c.l.b16 %v1010
  %v1086 = vunpack.c.h.b16 %v1010
  %v1087 = vunpack.c.l.b16 %v1011
  %v1088 = vunpack.c.l.b16 %v1012
  %v1089 = vunpack.c.h.b16 %v1012
  %v1090 = vunpack.c.l.b16 %v1013
  %v1091 = vunpack.c.l.b16 %v1014
  %v1092 = vunpack.c.h.b16 %v1014
  %v1093 = vunpack.c.l.b16 %v1015
  %v1094 = vunpack.c.l.b16 %v1016
  %v1095 = vunpack.c.h.b16 %v1016
  %v1096 = vunpack.c.l.b16 %v1017
  %v1097 = vunpack.c.l.b16 %v1018
  %v1098 = vunpack.c.h.b16 %v1018
  %v1099 = vunpack.c.l.b16 %v1019
  %v1100 = vpack.c.b16 %v1055, %v1052
  %v1101 = vpack.c.b16 %v1056, %v1053
  %v1102 = vpack.c.b16 %v1057, %v1054
  %v1103 = vpack.c.b16 %v1061, %v1058
  %v1104 = vpack.c.b16 %v1062, %v1059
  %v1105 = vpack.c.b16 %v1063, %v1060
  %v1106 = vpack.c.b16 %v1067, %v1064
  %v1107 = vpack.c.b16 %v1068, %v1065
  %v1108 = vpack.c.b16 %v1069, %v1066
  %v1109 = vpack.c.b16 %v1073, %v1070
  %v1110 = vpack.c.b16 %v1074, %v1071
  %v1111 = vpack.c.b16 %v1075, %v1072
  %v1112 = vpack.c.b16 %v1079, %v1076
  %v1113 = vpack.c.b16 %v1080, %v1077
  %v1114 = vpack.c.b16 %v1081, %v1078
  %v1115 = vpack.c.b16 %v1085, %v1082
  %v1116 = vpack.c.b16 %v1086, %v1083
  %v1117 = vpack.c.b16 %v1087, %v1084
  %v1118 = vpack.c.b16 %v1091, %v1088
  %v1119 = vpack.c.b16 %v1092, %v1089
  %v1120 = vpack.c.b16 %v1093, %v1090
  %v1121 = vpack.c.b16 %v1097, %v1094
  %v1122 = vpack.c.b16 %v1098, %v1095
  %v1123 = vpack.c.b16 %v1099, %v1096
  %1148 = vmatprep.subr.bf16.mxu0 %v1122
  %1149 = vmatpush1.bf16.msra.mxu0 %v1121
  %1150 = vmatprep.subr.bf16.mxu0 %v1119
  %1151 = vmatpush1.bf16.msra.mxu0 %v1118
  %1152 = vmatprep.subr.bf16.mxu0 %v1116
  %1153 = vmatpush1.bf16.msra.mxu0 %v1115
  %1154 = vmatprep.subr.bf16.mxu0 %v1113
  %1155 = vmatpush1.bf16.msra.mxu0 %v1112
  %1156 = vmatprep.subr.bf16.mxu0 %v1110
  %1157 = vmatpush1.bf16.msra.mxu0 %v1109
  %1158 = vmatprep.subr.bf16.mxu0 %v1107
  %1159 = vmatpush1.bf16.msra.mxu0 %v1106
  %1160 = vmatprep.subr.bf16.mxu0 %v1104
  %1161 = vmatpush1.bf16.msra.mxu0 %v1103
  %1162 = vmatprep.subr.bf16.mxu0 %v1101
  %1163 = vmatpush1.bf16.msra.mxu0 %v1100
  %1164 = vmatprep.subr.bf16.mxu0 0
  %1165 = vmatpush2.bf16.msra.mxu0 0
  %1166 = vmatprep.subr.bf16.mxu0 0
  %1167 = vmatpush2.bf16.msra.mxu0 0
  %1168 = vmatprep.subr.bf16.mxu0 0
  %1169 = vmatpush2.bf16.msra.mxu0 0
  %1170 = vmatprep.subr.bf16.mxu0 0
  %1171 = vmatpush2.bf16.msra.mxu0 0
  %1172 = vmatprep.subr.bf16.mxu0 0
  %1173 = vmatpush2.bf16.msra.mxu0 0
  %1174 = vmatprep.subr.bf16.mxu0 0
  %1175 = vmatpush2.bf16.msra.mxu0 0
  %1176 = vmatprep.subr.bf16.mxu0 0
  %1177 = vmatpush2.bf16.msra.mxu0 0
  %1178 = vmatprep.subr.bf16.mxu0 0
  %1179 = vmatpush2.bf16.msra.mxu0 0
  %1180 = vmatprep.mubr.bf16.mxu0 0
  %1181 = vmatmul.mubr.bf16.gmra.mxu0 %v987
  %v1182 = vpop.f32.mrf.mxu0
  %v1183 = vadd.f32 0.0, %v1182
  %v1184 = vpop.f32.mrf.mxu0
  %v1185 = vadd.f32 0.0, %v1184
  %v1186 = vpop.f32.mrf.mxu0
  %v1187 = vadd.f32 0.0, %v1186
  %v1188 = vpop.f32.mrf.mxu0
  %v1189 = vadd.f32 0.0, %v1188
  %1190 = vdwg.mxu0
  %1191 = vmatprep.subr.bf16.mxu0 0
  %1192 = vmatpush1.bf16.msra.mxu0 %v1123
  %1193 = vmatprep.subr.bf16.mxu0 0
  %1194 = vmatpush1.bf16.msra.mxu0 %v1120
  %1195 = vmatprep.subr.bf16.mxu0 0
  %1196 = vmatpush1.bf16.msra.mxu0 %v1117
  %1197 = vmatprep.subr.bf16.mxu0 0
  %1198 = vmatpush1.bf16.msra.mxu0 %v1114
  %1199 = vmatprep.subr.bf16.mxu0 0
  %1200 = vmatpush1.bf16.msra.mxu0 %v1111
  %1201 = vmatprep.subr.bf16.mxu0 0
  %1202 = vmatpush1.bf16.msra.mxu0 %v1108
  %1203 = vmatprep.subr.bf16.mxu0 0
  %1204 = vmatpush1.bf16.msra.mxu0 %v1105
  %1205 = vmatprep.subr.bf16.mxu0 0
  %1206 = vmatpush1.bf16.msra.mxu0 %v1102
  %1207 = vmatprep.subr.bf16.mxu0 0
  %1208 = vmatpush2.bf16.msra.mxu0 0
  %1209 = vmatprep.subr.bf16.mxu0 0
  %1210 = vmatpush2.bf16.msra.mxu0 0
  %1211 = vmatprep.subr.bf16.mxu0 0
  %1212 = vmatpush2.bf16.msra.mxu0 0
  %1213 = vmatprep.subr.bf16.mxu0 0
  %1214 = vmatpush2.bf16.msra.mxu0 0
  %1215 = vmatprep.subr.bf16.mxu0 0
  %1216 = vmatpush2.bf16.msra.mxu0 0
  %1217 = vmatprep.subr.bf16.mxu0 0
  %1218 = vmatpush2.bf16.msra.mxu0 0
  %1219 = vmatprep.subr.bf16.mxu0 0
  %1220 = vmatpush2.bf16.msra.mxu0 0
  %1221 = vmatprep.subr.bf16.mxu0 0
  %1222 = vmatpush2.bf16.msra.mxu0 0
  %1223 = vmatprep.mubr.bf16.mxu0 0
  %1224 = vmatmul.mubr.bf16.gmra.mxu0 %v987
  %v1225 = vpop.f32.mrf.mxu0
  %v1226 = vadd.f32 0.0, %v1225
  %v1227 = vpop.f32.mrf.mxu0
  %v1228 = vpop.f32.mrf.mxu0
  %v1229 = vadd.f32 0.0, %v1228
  %v1230 = vpop.f32.mrf.mxu0
  %1231 = vdwg.mxu0
  %v1232 = vadd.f32 %v981, %v1183
  %v1233 = vadd.f32 %v984, %v1187
  %v1234 = vxor.u32 %v1232, 2147483648
  %v1235 = vxor.u32 %v1233, 2147483648
  %v1236 = vmul.f32 %v1234, 1.442695
  %v1237 = vpow.pop %v1236
  %v1238 = vmul.f32 %v1235, 1.442695
  %v1239 = vpow.pop %v1238
  %v1240 = vadd.f32 %v1237, 1.0
  %v1241 = vadd.f32 %v1239, 1.0
  %v1242 = vrcp.pop %v1240
  %v1243 = vmul.f32 1.0, %v1242
  %v1244 = vrcp.pop %v1241
  %v1245 = vmul.f32 1.0, %v1244
  %v1246 = vadd.f32 %v982, %v1185
  %v1247 = vadd.f32 %v985, %v1189
  %v1248 = vxor.u32 %v1246, 2147483648
  %v1249 = vxor.u32 %v1247, 2147483648
  %v1250 = vmul.f32 %v1248, 1.442695
  %v1251 = vpow.pop %v1250
  %v1252 = vmul.f32 %v1249, 1.442695
  %v1253 = vpow.pop %v1252
  %v1254 = vadd.f32 %v1251, 1.0
  %v1255 = vadd.f32 %v1253, 1.0
  %v1256 = vrcp.pop %v1254
  %v1257 = vmul.f32 1.0, %v1256
  %v1258 = vrcp.pop %v1255
  %v1259 = vmul.f32 1.0, %v1258
  %v1260 = vld [vmem:[#allocation5] sm:$0x1]
  %v1262 = vlaneseq
  %v1263 = vshrl.u32 %v1262, 7
  %v1264 = vsub.s32 0, %v1263
  %v1265 = vrot.slane %v1260, %v1264
  %v1267 = vadd.f32 %v1226, %v1265
  %v1268 = vadd.f32 %v1229, %v1265
  %v1269 = vmul.f32 %v1243, %v1267
  %v1270 = vmul.f32 %v1245, %v1268
  %v1271 = vadd.f32 %v983, %v1269
  %v1272 = vadd.f32 %v986, %v1270
  %v1273 = vtanh.pop %v1271
  %v1274 = vtanh.pop %v1272
  %v1275 = vsub.f32 1.0, %v1257
  %v1276 = vsub.f32 1.0, %v1259
  %v1277 = vmul.f32 %v1275, %v1273
  %v1278 = vmul.f32 %v1276, %v1274
  %v1279 = vmul.f32 %v1257, %v976
  %v1280 = vmul.f32 %v1259, %v977
  %v1281 = vadd.f32 %v1277, %v1279
  %v1282 = vadd.f32 %v1278, %v1280
  %1283 = vst [vmem:[#allocation12] sm:$0xff] %v1281
  %1284 = vst [vmem:[#allocation12 + $0x8] sm:$0xff] %v1282
  %s1285 = smul.u32 2, 3
  %s1286 = smul.addr %s1285, 8
  %s1287 = scalar_lea.vmem [#allocation11], %s1286
  %v1288 = vld [vmem:[%s1287] sm:$0xff]
  %v1289 = vld [vmem:[%s1287 + $0x8] sm:$0xff]
  %v1290 = vld [vmem:[%s1287 + $0x10] sm:$0xff]
  %v1291 = vld [vmem:[%s1287 + $0x18] sm:$0xff]
  %v1292 = vld [vmem:[%s1287 + $0x20] sm:$0xff]
  %v1293 = vld [vmem:[%s1287 + $0x28] sm:$0xff]
  %v1294 = vpack.c.bf16 %v1282, %v1281
  %v1295 = vld [vmem:[#allocation3] sm:$0xff]
  %v1296 = vld [vmem:[#allocation3 + $0x8] sm:$0xf]
  %v1297 = vld [vmem:[#allocation3 + $0xc] sm:$0xff]
  %v1298 = vld [vmem:[#allocation3 + $0x14] sm:$0xf]
  %v1299 = vld [vmem:[#allocation3 + $0x18] sm:$0xff]
  %v1300 = vld [vmem:[#allocation3 + $0x20] sm:$0xf]
  %v1301 = vld [vmem:[#allocation3 + $0x24] sm:$0xff]
  %v1302 = vld [vmem:[#allocation3 + $0x2c] sm:$0xf]
  %v1303 = vld [vmem:[#allocation3 + $0x30] sm:$0xff]
  %v1304 = vld [vmem:[#allocation3 + $0x38] sm:$0xf]
  %v1305 = vld [vmem:[#allocation3 + $0x3c] sm:$0xff]
  %v1306 = vld [vmem:[#allocation3 + $0x44] sm:$0xf]
  %v1307 = vld [vmem:[#allocation3 + $0x48] sm:$0xff]
  %v1308 = vld [vmem:[#allocation3 + $0x50] sm:$0xf]
  %v1309 = vld [vmem:[#allocation3 + $0x54] sm:$0xff]
  %v1310 = vld [vmem:[#allocation3 + $0x5c] sm:$0xf]
  %v1311 = vld [vmem:[#allocation3 + $0x60] sm:$0xff]
  %v1312 = vld [vmem:[#allocation3 + $0x68] sm:$0xf]
  %v1313 = vld [vmem:[#allocation3 + $0x6c] sm:$0xff]
  %v1314 = vld [vmem:[#allocation3 + $0x74] sm:$0xf]
  %v1315 = vld [vmem:[#allocation3 + $0x78] sm:$0xff]
  %v1316 = vld [vmem:[#allocation3 + $0x80] sm:$0xf]
  %v1317 = vld [vmem:[#allocation3 + $0x84] sm:$0xff]
  %v1318 = vld [vmem:[#allocation3 + $0x8c] sm:$0xf]
  %v1319 = vld [vmem:[#allocation3 + $0x90] sm:$0xff]
  %v1320 = vld [vmem:[#allocation3 + $0x98] sm:$0xf]
  %v1321 = vld [vmem:[#allocation3 + $0x9c] sm:$0xff]
  %v1322 = vld [vmem:[#allocation3 + $0xa4] sm:$0xf]
  %v1323 = vld [vmem:[#allocation3 + $0xa8] sm:$0xff]
  %v1324 = vld [vmem:[#allocation3 + $0xb0] sm:$0xf]
  %v1325 = vld [vmem:[#allocation3 + $0xb4] sm:$0xff]
  %v1326 = vld [vmem:[#allocation3 + $0xbc] sm:$0xf]
  %v1359 = vunpack.c.l.b16 %v1295
  %v1360 = vunpack.c.h.b16 %v1295
  %v1361 = vunpack.c.l.b16 %v1296
  %v1362 = vunpack.c.l.b16 %v1297
  %v1363 = vunpack.c.h.b16 %v1297
  %v1364 = vunpack.c.l.b16 %v1298
  %v1365 = vunpack.c.l.b16 %v1299
  %v1366 = vunpack.c.h.b16 %v1299
  %v1367 = vunpack.c.l.b16 %v1300
  %v1368 = vunpack.c.l.b16 %v1301
  %v1369 = vunpack.c.h.b16 %v1301
  %v1370 = vunpack.c.l.b16 %v1302
  %v1371 = vunpack.c.l.b16 %v1303
  %v1372 = vunpack.c.h.b16 %v1303
  %v1373 = vunpack.c.l.b16 %v1304
  %v1374 = vunpack.c.l.b16 %v1305
  %v1375 = vunpack.c.h.b16 %v1305
  %v1376 = vunpack.c.l.b16 %v1306
  %v1377 = vunpack.c.l.b16 %v1307
  %v1378 = vunpack.c.h.b16 %v1307
  %v1379 = vunpack.c.l.b16 %v1308
  %v1380 = vunpack.c.l.b16 %v1309
  %v1381 = vunpack.c.h.b16 %v1309
  %v1382 = vunpack.c.l.b16 %v1310
  %v1383 = vunpack.c.l.b16 %v1311
  %v1384 = vunpack.c.h.b16 %v1311
  %v1385 = vunpack.c.l.b16 %v1312
  %v1386 = vunpack.c.l.b16 %v1313
  %v1387 = vunpack.c.h.b16 %v1313
  %v1388 = vunpack.c.l.b16 %v1314
  %v1389 = vunpack.c.l.b16 %v1315
  %v1390 = vunpack.c.h.b16 %v1315
  %v1391 = vunpack.c.l.b16 %v1316
  %v1392 = vunpack.c.l.b16 %v1317
  %v1393 = vunpack.c.h.b16 %v1317
  %v1394 = vunpack.c.l.b16 %v1318
  %v1395 = vunpack.c.l.b16 %v1319
  %v1396 = vunpack.c.h.b16 %v1319
  %v1397 = vunpack.c.l.b16 %v1320
  %v1398 = vunpack.c.l.b16 %v1321
  %v1399 = vunpack.c.h.b16 %v1321
  %v1400 = vunpack.c.l.b16 %v1322
  %v1401 = vunpack.c.l.b16 %v1323
  %v1402 = vunpack.c.h.b16 %v1323
  %v1403 = vunpack.c.l.b16 %v1324
  %v1404 = vunpack.c.l.b16 %v1325
  %v1405 = vunpack.c.h.b16 %v1325
  %v1406 = vunpack.c.l.b16 %v1326
  %v1407 = vpack.c.b16 %v1362, %v1359
  %v1408 = vpack.c.b16 %v1363, %v1360
  %v1409 = vpack.c.b16 %v1364, %v1361
  %v1410 = vpack.c.b16 %v1368, %v1365
  %v1411 = vpack.c.b16 %v1369, %v1366
  %v1412 = vpack.c.b16 %v1370, %v1367
  %v1413 = vpack.c.b16 %v1374, %v1371
  %v1414 = vpack.c.b16 %v1375, %v1372
  %v1415 = vpack.c.b16 %v1376, %v1373
  %v1416 = vpack.c.b16 %v1380, %v1377
  %v1417 = vpack.c.b16 %v1381, %v1378
  %v1418 = vpack.c.b16 %v1382, %v1379
  %v1419 = vpack.c.b16 %v1386, %v1383
  %v1420 = vpack.c.b16 %v1387, %v1384
  %v1421 = vpack.c.b16 %v1388, %v1385
  %v1422 = vpack.c.b16 %v1392, %v1389
  %v1423 = vpack.c.b16 %v1393, %v1390
  %v1424 = vpack.c.b16 %v1394, %v1391
  %v1425 = vpack.c.b16 %v1398, %v1395
  %v1426 = vpack.c.b16 %v1399, %v1396
  %v1427 = vpack.c.b16 %v1400, %v1397
  %v1428 = vpack.c.b16 %v1404, %v1401
  %v1429 = vpack.c.b16 %v1405, %v1402
  %v1430 = vpack.c.b16 %v1406, %v1403
  %1455 = vmatprep.subr.bf16.mxu0 %v1429
  %1456 = vmatpush1.bf16.msra.mxu0 %v1428
  %1457 = vmatprep.subr.bf16.mxu0 %v1426
  %1458 = vmatpush1.bf16.msra.mxu0 %v1425
  %1459 = vmatprep.subr.bf16.mxu0 %v1423
  %1460 = vmatpush1.bf16.msra.mxu0 %v1422
  %1461 = vmatprep.subr.bf16.mxu0 %v1420
  %1462 = vmatpush1.bf16.msra.mxu0 %v1419
  %1463 = vmatprep.subr.bf16.mxu0 %v1417
  %1464 = vmatpush1.bf16.msra.mxu0 %v1416
  %1465 = vmatprep.subr.bf16.mxu0 %v1414
  %1466 = vmatpush1.bf16.msra.mxu0 %v1413
  %1467 = vmatprep.subr.bf16.mxu0 %v1411
  %1468 = vmatpush1.bf16.msra.mxu0 %v1410
  %1469 = vmatprep.subr.bf16.mxu0 %v1408
  %1470 = vmatpush1.bf16.msra.mxu0 %v1407
  %1471 = vmatprep.subr.bf16.mxu0 0
  %1472 = vmatpush2.bf16.msra.mxu0 0
  %1473 = vmatprep.subr.bf16.mxu0 0
  %1474 = vmatpush2.bf16.msra.mxu0 0
  %1475 = vmatprep.subr.bf16.mxu0 0
  %1476 = vmatpush2.bf16.msra.mxu0 0
  %1477 = vmatprep.subr.bf16.mxu0 0
  %1478 = vmatpush2.bf16.msra.mxu0 0
  %1479 = vmatprep.subr.bf16.mxu0 0
  %1480 = vmatpush2.bf16.msra.mxu0 0
  %1481 = vmatprep.subr.bf16.mxu0 0
  %1482 = vmatpush2.bf16.msra.mxu0 0
  %1483 = vmatprep.subr.bf16.mxu0 0
  %1484 = vmatpush2.bf16.msra.mxu0 0
  %1485 = vmatprep.subr.bf16.mxu0 0
  %1486 = vmatpush2.bf16.msra.mxu0 0
  %1487 = vmatprep.mubr.bf16.mxu0 0
  %1488 = vmatmul.mubr.bf16.gmra.mxu0 %v1294
  %v1489 = vpop.f32.mrf.mxu0
  %v1490 = vadd.f32 0.0, %v1489
  %v1491 = vpop.f32.mrf.mxu0
  %v1492 = vadd.f32 0.0, %v1491
  %v1493 = vpop.f32.mrf.mxu0
  %v1494 = vadd.f32 0.0, %v1493
  %v1495 = vpop.f32.mrf.mxu0
  %v1496 = vadd.f32 0.0, %v1495
  %1497 = vdwg.mxu0
  %1498 = vmatprep.subr.bf16.mxu0 0
  %1499 = vmatpush1.bf16.msra.mxu0 %v1430
  %1500 = vmatprep.subr.bf16.mxu0 0
  %1501 = vmatpush1.bf16.msra.mxu0 %v1427
  %1502 = vmatprep.subr.bf16.mxu0 0
  %1503 = vmatpush1.bf16.msra.mxu0 %v1424
  %1504 = vmatprep.subr.bf16.mxu0 0
  %1505 = vmatpush1.bf16.msra.mxu0 %v1421
  %1506 = vmatprep.subr.bf16.mxu0 0
  %1507 = vmatpush1.bf16.msra.mxu0 %v1418
  %1508 = vmatprep.subr.bf16.mxu0 0
  %1509 = vmatpush1.bf16.msra.mxu0 %v1415
  %1510 = vmatprep.subr.bf16.mxu0 0
  %1511 = vmatpush1.bf16.msra.mxu0 %v1412
  %1512 = vmatprep.subr.bf16.mxu0 0
  %1513 = vmatpush1.bf16.msra.mxu0 %v1409
  %1514 = vmatprep.subr.bf16.mxu0 0
  %1515 = vmatpush2.bf16.msra.mxu0 0
  %1516 = vmatprep.subr.bf16.mxu0 0
  %1517 = vmatpush2.bf16.msra.mxu0 0
  %1518 = vmatprep.subr.bf16.mxu0 0
  %1519 = vmatpush2.bf16.msra.mxu0 0
  %1520 = vmatprep.subr.bf16.mxu0 0
  %1521 = vmatpush2.bf16.msra.mxu0 0
  %1522 = vmatprep.subr.bf16.mxu0 0
  %1523 = vmatpush2.bf16.msra.mxu0 0
  %1524 = vmatprep.subr.bf16.mxu0 0
  %1525 = vmatpush2.bf16.msra.mxu0 0
  %1526 = vmatprep.subr.bf16.mxu0 0
  %1527 = vmatpush2.bf16.msra.mxu0 0
  %1528 = vmatprep.subr.bf16.mxu0 0
  %1529 = vmatpush2.bf16.msra.mxu0 0
  %1530 = vmatprep.mubr.bf16.mxu0 0
  %1531 = vmatmul.mubr.bf16.gmra.mxu0 %v1294
  %v1532 = vpop.f32.mrf.mxu0
  %v1533 = vadd.f32 0.0, %v1532
  %v1534 = vpop.f32.mrf.mxu0
  %v1535 = vpop.f32.mrf.mxu0
  %v1536 = vadd.f32 0.0, %v1535
  %v1537 = vpop.f32.mrf.mxu0
  %1538 = vdwg.mxu0
  %v1539 = vadd.f32 %v1288, %v1490
  %v1540 = vadd.f32 %v1291, %v1494
  %v1541 = vxor.u32 %v1539, 2147483648
  %v1542 = vxor.u32 %v1540, 2147483648
  %v1543 = vmul.f32 %v1541, 1.442695
  %v1544 = vpow.pop %v1543
  %v1545 = vmul.f32 %v1542, 1.442695
  %v1546 = vpow.pop %v1545
  %v1547 = vadd.f32 %v1544, 1.0
  %v1548 = vadd.f32 %v1546, 1.0
  %v1549 = vrcp.pop %v1547
  %v1550 = vmul.f32 1.0, %v1549
  %v1551 = vrcp.pop %v1548
  %v1552 = vmul.f32 1.0, %v1551
  %v1553 = vadd.f32 %v1289, %v1492
  %v1554 = vadd.f32 %v1292, %v1496
  %v1555 = vxor.u32 %v1553, 2147483648
  %v1556 = vxor.u32 %v1554, 2147483648
  %v1557 = vmul.f32 %v1555, 1.442695
  %v1558 = vpow.pop %v1557
  %v1559 = vmul.f32 %v1556, 1.442695
  %v1560 = vpow.pop %v1559
  %v1561 = vadd.f32 %v1558, 1.0
  %v1562 = vadd.f32 %v1560, 1.0
  %v1563 = vrcp.pop %v1561
  %v1564 = vmul.f32 1.0, %v1563
  %v1565 = vrcp.pop %v1562
  %v1566 = vmul.f32 1.0, %v1565
  %v1567 = vld [vmem:[#allocation5] sm:$0x1]
  %v1569 = vlaneseq
  %v1570 = vshrl.u32 %v1569, 7
  %v1571 = vsub.s32 0, %v1570
  %v1572 = vrot.slane %v1567, %v1571
  %v1574 = vadd.f32 %v1533, %v1572
  %v1575 = vadd.f32 %v1536, %v1572
  %v1576 = vmul.f32 %v1550, %v1574
  %v1577 = vmul.f32 %v1552, %v1575
  %v1578 = vadd.f32 %v1290, %v1576
  %v1579 = vadd.f32 %v1293, %v1577
  %v1580 = vtanh.pop %v1578
  %v1581 = vtanh.pop %v1579
  %v1582 = vsub.f32 1.0, %v1564
  %v1583 = vsub.f32 1.0, %v1566
  %v1584 = vmul.f32 %v1582, %v1580
  %v1585 = vmul.f32 %v1583, %v1581
  %v1586 = vmul.f32 %v1564, %v1281
  %v1587 = vmul.f32 %v1566, %v1282
  %v1588 = vadd.f32 %v1584, %v1586
  %v1589 = vadd.f32 %v1585, %v1587
  %s1590 = scalar_lea.vmem [#allocation12], 16
  %1591 = vst [vmem:[%s1590] sm:$0xff] %v1588
  %1592 = vst [vmem:[%s1590 + $0x8] sm:$0xff] %v1589
  %s1593 = smul.u32 4, 3
  %s1594 = smul.addr %s1593, 8
  %s1595 = scalar_lea.vmem [#allocation11], %s1594
  %v1596 = vld [vmem:[%s1595] sm:$0xff]
  %v1597 = vld [vmem:[%s1595 + $0x8] sm:$0xff]
  %v1598 = vld [vmem:[%s1595 + $0x10] sm:$0xff]
  %v1599 = vld [vmem:[%s1595 + $0x18] sm:$0xff]
  %v1600 = vld [vmem:[%s1595 + $0x20] sm:$0xff]
  %v1601 = vld [vmem:[%s1595 + $0x28] sm:$0xff]
  %v1602 = vpack.c.bf16 %v1589, %v1588
  %v1603 = vld [vmem:[#allocation3] sm:$0xff]
  %v1604 = vld [vmem:[#allocation3 + $0x8] sm:$0xf]
  %v1605 = vld [vmem:[#allocation3 + $0xc] sm:$0xff]
  %v1606 = vld [vmem:[#allocation3 + $0x14] sm:$0xf]
  %v1607 = vld [vmem:[#allocation3 + $0x18] sm:$0xff]
  %v1608 = vld [vmem:[#allocation3 + $0x20] sm:$0xf]
  %v1609 = vld [vmem:[#allocation3 + $0x24] sm:$0xff]
  %v1610 = vld [vmem:[#allocation3 + $0x2c] sm:$0xf]
  %v1611 = vld [vmem:[#allocation3 + $0x30] sm:$0xff]
  %v1612 = vld [vmem:[#allocation3 + $0x38] sm:$0xf]
  %v1613 = vld [vmem:[#allocation3 + $0x3c] sm:$0xff]
  %v1614 = vld [vmem:[#allocation3 + $0x44] sm:$0xf]
  %v1615 = vld [vmem:[#allocation3 + $0x48] sm:$0xff]
  %v1616 = vld [vmem:[#allocation3 + $0x50] sm:$0xf]
  %v1617 = vld [vmem:[#allocation3 + $0x54] sm:$0xff]
  %v1618 = vld [vmem:[#allocation3 + $0x5c] sm:$0xf]
  %v1619 = vld [vmem:[#allocation3 + $0x60] sm:$0xff]
  %v1620 = vld [vmem:[#allocation3 + $0x68] sm:$0xf]
  %v1621 = vld [vmem:[#allocation3 + $0x6c] sm:$0xff]
  %v1622 = vld [vmem:[#allocation3 + $0x74] sm:$0xf]
  %v1623 = vld [vmem:[#allocation3 + $0x78] sm:$0xff]
  %v1624 = vld [vmem:[#allocation3 + $0x80] sm:$0xf]
  %v1625 = vld [vmem:[#allocation3 + $0x84] sm:$0xff]
  %v1626 = vld [vmem:[#allocation3 + $0x8c] sm:$0xf]
  %v1627 = vld [vmem:[#allocation3 + $0x90] sm:$0xff]
  %v1628 = vld [vmem:[#allocation3 + $0x98] sm:$0xf]
  %v1629 = vld [vmem:[#allocation3 + $0x9c] sm:$0xff]
  %v1630 = vld [vmem:[#allocation3 + $0xa4] sm:$0xf]
  %v1631 = vld [vmem:[#allocation3 + $0xa8] sm:$0xff]
  %v1632 = vld [vmem:[#allocation3 + $0xb0] sm:$0xf]
  %v1633 = vld [vmem:[#allocation3 + $0xb4] sm:$0xff]
  %v1634 = vld [vmem:[#allocation3 + $0xbc] sm:$0xf]
  %v1667 = vunpack.c.l.b16 %v1603
  %v1668 = vunpack.c.h.b16 %v1603
  %v1669 = vunpack.c.l.b16 %v1604
  %v1670 = vunpack.c.l.b16 %v1605
  %v1671 = vunpack.c.h.b16 %v1605
  %v1672 = vunpack.c.l.b16 %v1606
  %v1673 = vunpack.c.l.b16 %v1607
  %v1674 = vunpack.c.h.b16 %v1607
  %v1675 = vunpack.c.l.b16 %v1608
  %v1676 = vunpack.c.l.b16 %v1609
  %v1677 = vunpack.c.h.b16 %v1609
  %v1678 = vunpack.c.l.b16 %v1610
  %v1679 = vunpack.c.l.b16 %v1611
  %v1680 = vunpack.c.h.b16 %v1611
  %v1681 = vunpack.c.l.b16 %v1612
  %v1682 = vunpack.c.l.b16 %v1613
  %v1683 = vunpack.c.h.b16 %v1613
  %v1684 = vunpack.c.l.b16 %v1614
  %v1685 = vunpack.c.l.b16 %v1615
  %v1686 = vunpack.c.h.b16 %v1615
  %v1687 = vunpack.c.l.b16 %v1616
  %v1688 = vunpack.c.l.b16 %v1617
  %v1689 = vunpack.c.h.b16 %v1617
  %v1690 = vunpack.c.l.b16 %v1618
  %v1691 = vunpack.c.l.b16 %v1619
  %v1692 = vunpack.c.h.b16 %v1619
  %v1693 = vunpack.c.l.b16 %v1620
  %v1694 = vunpack.c.l.b16 %v1621
  %v1695 = vunpack.c.h.b16 %v1621
  %v1696 = vunpack.c.l.b16 %v1622
  %v1697 = vunpack.c.l.b16 %v1623
  %v1698 = vunpack.c.h.b16 %v1623
  %v1699 = vunpack.c.l.b16 %v1624
  %v1700 = vunpack.c.l.b16 %v1625
  %v1701 = vunpack.c.h.b16 %v1625
  %v1702 = vunpack.c.l.b16 %v1626
  %v1703 = vunpack.c.l.b16 %v1627
  %v1704 = vunpack.c.h.b16 %v1627
  %v1705 = vunpack.c.l.b16 %v1628
  %v1706 = vunpack.c.l.b16 %v1629
  %v1707 = vunpack.c.h.b16 %v1629
  %v1708 = vunpack.c.l.b16 %v1630
  %v1709 = vunpack.c.l.b16 %v1631
  %v1710 = vunpack.c.h.b16 %v1631
  %v1711 = vunpack.c.l.b16 %v1632
  %v1712 = vunpack.c.l.b16 %v1633
  %v1713 = vunpack.c.h.b16 %v1633
  %v1714 = vunpack.c.l.b16 %v1634
  %v1715 = vpack.c.b16 %v1670, %v1667
  %v1716 = vpack.c.b16 %v1671, %v1668
  %v1717 = vpack.c.b16 %v1672, %v1669
  %v1718 = vpack.c.b16 %v1676, %v1673
  %v1719 = vpack.c.b16 %v1677, %v1674
  %v1720 = vpack.c.b16 %v1678, %v1675
  %v1721 = vpack.c.b16 %v1682, %v1679
  %v1722 = vpack.c.b16 %v1683, %v1680
  %v1723 = vpack.c.b16 %v1684, %v1681
  %v1724 = vpack.c.b16 %v1688, %v1685
  %v1725 = vpack.c.b16 %v1689, %v1686
  %v1726 = vpack.c.b16 %v1690, %v1687
  %v1727 = vpack.c.b16 %v1694, %v1691
  %v1728 = vpack.c.b16 %v1695, %v1692
  %v1729 = vpack.c.b16 %v1696, %v1693
  %v1730 = vpack.c.b16 %v1700, %v1697
  %v1731 = vpack.c.b16 %v1701, %v1698
  %v1732 = vpack.c.b16 %v1702, %v1699
  %v1733 = vpack.c.b16 %v1706, %v1703
  %v1734 = vpack.c.b16 %v1707, %v1704
  %v1735 = vpack.c.b16 %v1708, %v1705
  %v1736 = vpack.c.b16 %v1712, %v1709
  %v1737 = vpack.c.b16 %v1713, %v1710
  %v1738 = vpack.c.b16 %v1714, %v1711
  %1763 = vmatprep.subr.bf16.mxu0 %v1737
  %1764 = vmatpush1.bf16.msra.mxu0 %v1736
  %1765 = vmatprep.subr.bf16.mxu0 %v1734
  %1766 = vmatpush1.bf16.msra.mxu0 %v1733
  %1767 = vmatprep.subr.bf16.mxu0 %v1731
  %1768 = vmatpush1.bf16.msra.mxu0 %v1730
  %1769 = vmatprep.subr.bf16.mxu0 %v1728
  %1770 = vmatpush1.bf16.msra.mxu0 %v1727
  %1771 = vmatprep.subr.bf16.mxu0 %v1725
  %1772 = vmatpush1.bf16.msra.mxu0 %v1724
  %1773 = vmatprep.subr.bf16.mxu0 %v1722
  %1774 = vmatpush1.bf16.msra.mxu0 %v1721
  %1775 = vmatprep.subr.bf16.mxu0 %v1719
  %1776 = vmatpush1.bf16.msra.mxu0 %v1718
  %1777 = vmatprep.subr.bf16.mxu0 %v1716
  %1778 = vmatpush1.bf16.msra.mxu0 %v1715
  %1779 = vmatprep.subr.bf16.mxu0 0
  %1780 = vmatpush2.bf16.msra.mxu0 0
  %1781 = vmatprep.subr.bf16.mxu0 0
  %1782 = vmatpush2.bf16.msra.mxu0 0
  %1783 = vmatprep.subr.bf16.mxu0 0
  %1784 = vmatpush2.bf16.msra.mxu0 0
  %1785 = vmatprep.subr.bf16.mxu0 0
  %1786 = vmatpush2.bf16.msra.mxu0 0
  %1787 = vmatprep.subr.bf16.mxu0 0
  %1788 = vmatpush2.bf16.msra.mxu0 0
  %1789 = vmatprep.subr.bf16.mxu0 0
  %1790 = vmatpush2.bf16.msra.mxu0 0
  %1791 = vmatprep.subr.bf16.mxu0 0
  %1792 = vmatpush2.bf16.msra.mxu0 0
  %1793 = vmatprep.subr.bf16.mxu0 0
  %1794 = vmatpush2.bf16.msra.mxu0 0
  %1795 = vmatprep.mubr.bf16.mxu0 0
  %1796 = vmatmul.mubr.bf16.gmra.mxu0 %v1602
  %v1797 = vpop.f32.mrf.mxu0
  %v1798 = vadd.f32 0.0, %v1797
  %v1799 = vpop.f32.mrf.mxu0
  %v1800 = vadd.f32 0.0, %v1799
  %v1801 = vpop.f32.mrf.mxu0
  %v1802 = vadd.f32 0.0, %v1801
  %v1803 = vpop.f32.mrf.mxu0
  %v1804 = vadd.f32 0.0, %v1803
  %1805 = vdwg.mxu0
  %1806 = vmatprep.subr.bf16.mxu0 0
  %1807 = vmatpush1.bf16.msra.mxu0 %v1738
  %1808 = vmatprep.subr.bf16.mxu0 0
  %1809 = vmatpush1.bf16.msra.mxu0 %v1735
  %1810 = vmatprep.subr.bf16.mxu0 0
  %1811 = vmatpush1.bf16.msra.mxu0 %v1732
  %1812 = vmatprep.subr.bf16.mxu0 0
  %1813 = vmatpush1.bf16.msra.mxu0 %v1729
  %1814 = vmatprep.subr.bf16.mxu0 0
  %1815 = vmatpush1.bf16.msra.mxu0 %v1726
  %1816 = vmatprep.subr.bf16.mxu0 0
  %1817 = vmatpush1.bf16.msra.mxu0 %v1723
  %1818 = vmatprep.subr.bf16.mxu0 0
  %1819 = vmatpush1.bf16.msra.mxu0 %v1720
  %1820 = vmatprep.subr.bf16.mxu0 0
  %1821 = vmatpush1.bf16.msra.mxu0 %v1717
  %1822 = vmatprep.subr.bf16.mxu0 0
  %1823 = vmatpush2.bf16.msra.mxu0 0
  %1824 = vmatprep.subr.bf16.mxu0 0
  %1825 = vmatpush2.bf16.msra.mxu0 0
  %1826 = vmatprep.subr.bf16.mxu0 0
  %1827 = vmatpush2.bf16.msra.mxu0 0
  %1828 = vmatprep.subr.bf16.mxu0 0
  %1829 = vmatpush2.bf16.msra.mxu0 0
  %1830 = vmatprep.subr.bf16.mxu0 0
  %1831 = vmatpush2.bf16.msra.mxu0 0
  %1832 = vmatprep.subr.bf16.mxu0 0
  %1833 = vmatpush2.bf16.msra.mxu0 0
  %1834 = vmatprep.subr.bf16.mxu0 0
  %1835 = vmatpush2.bf16.msra.mxu0 0
  %1836 = vmatprep.subr.bf16.mxu0 0
  %1837 = vmatpush2.bf16.msra.mxu0 0
  %1838 = vmatprep.mubr.bf16.mxu0 0
  %1839 = vmatmul.mubr.bf16.gmra.mxu0 %v1602
  %v1840 = vpop.f32.mrf.mxu0
  %v1841 = vadd.f32 0.0, %v1840
  %v1842 = vpop.f32.mrf.mxu0
  %v1843 = vpop.f32.mrf.mxu0
  %v1844 = vadd.f32 0.0, %v1843
  %v1845 = vpop.f32.mrf.mxu0
  %1846 = vdwg.mxu0
  %v1847 = vadd.f32 %v1596, %v1798
  %v1848 = vadd.f32 %v1599, %v1802
  %v1849 = vxor.u32 %v1847, 2147483648
  %v1850 = vxor.u32 %v1848, 2147483648
  %v1851 = vmul.f32 %v1849, 1.442695
  %v1852 = vpow.pop %v1851
  %v1853 = vmul.f32 %v1850, 1.442695
  %v1854 = vpow.pop %v1853
  %v1855 = vadd.f32 %v1852, 1.0
  %v1856 = vadd.f32 %v1854, 1.0
  %v1857 = vrcp.pop %v1855
  %v1858 = vmul.f32 1.0, %v1857
  %v1859 = vrcp.pop %v1856
  %v1860 = vmul.f32 1.0, %v1859
  %v1861 = vadd.f32 %v1597, %v1800
  %v1862 = vadd.f32 %v1600, %v1804
  %v1863 = vxor.u32 %v1861, 2147483648
  %v1864 = vxor.u32 %v1862, 2147483648
  %v1865 = vmul.f32 %v1863, 1.442695
  %v1866 = vpow.pop %v1865
  %v1867 = vmul.f32 %v1864, 1.442695
  %v1868 = vpow.pop %v1867
  %v1869 = vadd.f32 %v1866, 1.0
  %v1870 = vadd.f32 %v1868, 1.0
  %v1871 = vrcp.pop %v1869
  %v1872 = vmul.f32 1.0, %v1871
  %v1873 = vrcp.pop %v1870
  %v1874 = vmul.f32 1.0, %v1873
  %v1875 = vld [vmem:[#allocation5] sm:$0x1]
  %v1877 = vlaneseq
  %v1878 = vshrl.u32 %v1877, 7
  %v1879 = vsub.s32 0, %v1878
  %v1880 = vrot.slane %v1875, %v1879
  %v1882 = vadd.f32 %v1841, %v1880
  %v1883 = vadd.f32 %v1844, %v1880
  %v1884 = vmul.f32 %v1858, %v1882
  %v1885 = vmul.f32 %v1860, %v1883
  %v1886 = vadd.f32 %v1598, %v1884
  %v1887 = vadd.f32 %v1601, %v1885
  %v1888 = vtanh.pop %v1886
  %v1889 = vtanh.pop %v1887
  %v1890 = vsub.f32 1.0, %v1872
  %v1891 = vsub.f32 1.0, %v1874
  %v1892 = vmul.f32 %v1890, %v1888
  %v1893 = vmul.f32 %v1891, %v1889
  %v1894 = vmul.f32 %v1872, %v1588
  %v1895 = vmul.f32 %v1874, %v1589
  %v1896 = vadd.f32 %v1892, %v1894
  %v1897 = vadd.f32 %v1893, %v1895
  %s1898 = scalar_lea.vmem [#allocation12], 32
  %1899 = vst [vmem:[%s1898] sm:$0xff] %v1896
  %1900 = vst [vmem:[%s1898 + $0x8] sm:$0xff] %v1897
  %s1901 = smul.u32 6, 3
  %s1902 = smul.addr %s1901, 8
  %s1903 = scalar_lea.vmem [#allocation11], %s1902
  %v1904 = vld [vmem:[%s1903] sm:$0xff]
  %v1905 = vld [vmem:[%s1903 + $0x8] sm:$0xff]
  %v1906 = vld [vmem:[%s1903 + $0x10] sm:$0xff]
  %v1907 = vld [vmem:[%s1903 + $0x18] sm:$0xff]
  %v1908 = vld [vmem:[%s1903 + $0x20] sm:$0xff]
  %v1909 = vld [vmem:[%s1903 + $0x28] sm:$0xff]
  %v1910 = vpack.c.bf16 %v1897, %v1896
  %v1911 = vld [vmem:[#allocation3] sm:$0xff]
  %v1912 = vld [vmem:[#allocation3 + $0x8] sm:$0xf]
  %v1913 = vld [vmem:[#allocation3 + $0xc] sm:$0xff]
  %v1914 = vld [vmem:[#allocation3 + $0x14] sm:$0xf]
  %v1915 = vld [vmem:[#allocation3 + $0x18] sm:$0xff]
  %v1916 = vld [vmem:[#allocation3 + $0x20] sm:$0xf]
  %v1917 = vld [vmem:[#allocation3 + $0x24] sm:$0xff]
  %v1918 = vld [vmem:[#allocation3 + $0x2c] sm:$0xf]
  %v1919 = vld [vmem:[#allocation3 + $0x30] sm:$0xff]
  %v1920 = vld [vmem:[#allocation3 + $0x38] sm:$0xf]
  %v1921 = vld [vmem:[#allocation3 + $0x3c] sm:$0xff]
  %v1922 = vld [vmem:[#allocation3 + $0x44] sm:$0xf]
  %v1923 = vld [vmem:[#allocation3 + $0x48] sm:$0xff]
  %v1924 = vld [vmem:[#allocation3 + $0x50] sm:$0xf]
  %v1925 = vld [vmem:[#allocation3 + $0x54] sm:$0xff]
  %v1926 = vld [vmem:[#allocation3 + $0x5c] sm:$0xf]
  %v1927 = vld [vmem:[#allocation3 + $0x60] sm:$0xff]
  %v1928 = vld [vmem:[#allocation3 + $0x68] sm:$0xf]
  %v1929 = vld [vmem:[#allocation3 + $0x6c] sm:$0xff]
  %v1930 = vld [vmem:[#allocation3 + $0x74] sm:$0xf]
  %v1931 = vld [vmem:[#allocation3 + $0x78] sm:$0xff]
  %v1932 = vld [vmem:[#allocation3 + $0x80] sm:$0xf]
  %v1933 = vld [vmem:[#allocation3 + $0x84] sm:$0xff]
  %v1934 = vld [vmem:[#allocation3 + $0x8c] sm:$0xf]
  %v1935 = vld [vmem:[#allocation3 + $0x90] sm:$0xff]
  %v1936 = vld [vmem:[#allocation3 + $0x98] sm:$0xf]
  %v1937 = vld [vmem:[#allocation3 + $0x9c] sm:$0xff]
  %v1938 = vld [vmem:[#allocation3 + $0xa4] sm:$0xf]
  %v1939 = vld [vmem:[#allocation3 + $0xa8] sm:$0xff]
  %v1940 = vld [vmem:[#allocation3 + $0xb0] sm:$0xf]
  %v1941 = vld [vmem:[#allocation3 + $0xb4] sm:$0xff]
  %v1942 = vld [vmem:[#allocation3 + $0xbc] sm:$0xf]
  %v1975 = vunpack.c.l.b16 %v1911
  %v1976 = vunpack.c.h.b16 %v1911
  %v1977 = vunpack.c.l.b16 %v1912
  %v1978 = vunpack.c.l.b16 %v1913
  %v1979 = vunpack.c.h.b16 %v1913
  %v1980 = vunpack.c.l.b16 %v1914
  %v1981 = vunpack.c.l.b16 %v1915
  %v1982 = vunpack.c.h.b16 %v1915
  %v1983 = vunpack.c.l.b16 %v1916
  %v1984 = vunpack.c.l.b16 %v1917
  %v1985 = vunpack.c.h.b16 %v1917
  %v1986 = vunpack.c.l.b16 %v1918
  %v1987 = vunpack.c.l.b16 %v1919
  %v1988 = vunpack.c.h.b16 %v1919
  %v1989 = vunpack.c.l.b16 %v1920
  %v1990 = vunpack.c.l.b16 %v1921
  %v1991 = vunpack.c.h.b16 %v1921
  %v1992 = vunpack.c.l.b16 %v1922
  %v1993 = vunpack.c.l.b16 %v1923
  %v1994 = vunpack.c.h.b16 %v1923
  %v1995 = vunpack.c.l.b16 %v1924
  %v1996 = vunpack.c.l.b16 %v1925
  %v1997 = vunpack.c.h.b16 %v1925
  %v1998 = vunpack.c.l.b16 %v1926
  %v1999 = vunpack.c.l.b16 %v1927
  %v2000 = vunpack.c.h.b16 %v1927
  %v2001 = vunpack.c.l.b16 %v1928
  %v2002 = vunpack.c.l.b16 %v1929
  %v2003 = vunpack.c.h.b16 %v1929
  %v2004 = vunpack.c.l.b16 %v1930
  %v2005 = vunpack.c.l.b16 %v1931
  %v2006 = vunpack.c.h.b16 %v1931
  %v2007 = vunpack.c.l.b16 %v1932
  %v2008 = vunpack.c.l.b16 %v1933
  %v2009 = vunpack.c.h.b16 %v1933
  %v2010 = vunpack.c.l.b16 %v1934
  %v2011 = vunpack.c.l.b16 %v1935
  %v2012 = vunpack.c.h.b16 %v1935
  %v2013 = vunpack.c.l.b16 %v1936
  %v2014 = vunpack.c.l.b16 %v1937
  %v2015 = vunpack.c.h.b16 %v1937
  %v2016 = vunpack.c.l.b16 %v1938
  %v2017 = vunpack.c.l.b16 %v1939
  %v2018 = vunpack.c.h.b16 %v1939
  %v2019 = vunpack.c.l.b16 %v1940
  %v2020 = vunpack.c.l.b16 %v1941
  %v2021 = vunpack.c.h.b16 %v1941
  %v2022 = vunpack.c.l.b16 %v1942
  %v2023 = vpack.c.b16 %v1978, %v1975
  %v2024 = vpack.c.b16 %v1979, %v1976
  %v2025 = vpack.c.b16 %v1980, %v1977
  %v2026 = vpack.c.b16 %v1984, %v1981
  %v2027 = vpack.c.b16 %v1985, %v1982
  %v2028 = vpack.c.b16 %v1986, %v1983
  %v2029 = vpack.c.b16 %v1990, %v1987
  %v2030 = vpack.c.b16 %v1991, %v1988
  %v2031 = vpack.c.b16 %v1992, %v1989
  %v2032 = vpack.c.b16 %v1996, %v1993
  %v2033 = vpack.c.b16 %v1997, %v1994
  %v2034 = vpack.c.b16 %v1998, %v1995
  %v2035 = vpack.c.b16 %v2002, %v1999
  %v2036 = vpack.c.b16 %v2003, %v2000
  %v2037 = vpack.c.b16 %v2004, %v2001
  %v2038 = vpack.c.b16 %v2008, %v2005
  %v2039 = vpack.c.b16 %v2009, %v2006
  %v2040 = vpack.c.b16 %v2010, %v2007
  %v2041 = vpack.c.b16 %v2014, %v2011
  %v2042 = vpack.c.b16 %v2015, %v2012
  %v2043 = vpack.c.b16 %v2016, %v2013
  %v2044 = vpack.c.b16 %v2020, %v2017
  %v2045 = vpack.c.b16 %v2021, %v2018
  %v2046 = vpack.c.b16 %v2022, %v2019
  %2071 = vmatprep.subr.bf16.mxu0 %v2045
  %2072 = vmatpush1.bf16.msra.mxu0 %v2044
  %2073 = vmatprep.subr.bf16.mxu0 %v2042
  %2074 = vmatpush1.bf16.msra.mxu0 %v2041
  %2075 = vmatprep.subr.bf16.mxu0 %v2039
  %2076 = vmatpush1.bf16.msra.mxu0 %v2038
  %2077 = vmatprep.subr.bf16.mxu0 %v2036
  %2078 = vmatpush1.bf16.msra.mxu0 %v2035
  %2079 = vmatprep.subr.bf16.mxu0 %v2033
  %2080 = vmatpush1.bf16.msra.mxu0 %v2032
  %2081 = vmatprep.subr.bf16.mxu0 %v2030
  %2082 = vmatpush1.bf16.msra.mxu0 %v2029
  %2083 = vmatprep.subr.bf16.mxu0 %v2027
  %2084 = vmatpush1.bf16.msra.mxu0 %v2026
  %2085 = vmatprep.subr.bf16.mxu0 %v2024
  %2086 = vmatpush1.bf16.msra.mxu0 %v2023
  %2087 = vmatprep.subr.bf16.mxu0 0
  %2088 = vmatpush2.bf16.msra.mxu0 0
  %2089 = vmatprep.subr.bf16.mxu0 0
  %2090 = vmatpush2.bf16.msra.mxu0 0
  %2091 = vmatprep.subr.bf16.mxu0 0
  %2092 = vmatpush2.bf16.msra.mxu0 0
  %2093 = vmatprep.subr.bf16.mxu0 0
  %2094 = vmatpush2.bf16.msra.mxu0 0
  %2095 = vmatprep.subr.bf16.mxu0 0
  %2096 = vmatpush2.bf16.msra.mxu0 0
  %2097 = vmatprep.subr.bf16.mxu0 0
  %2098 = vmatpush2.bf16.msra.mxu0 0
  %2099 = vmatprep.subr.bf16.mxu0 0
  %2100 = vmatpush2.bf16.msra.mxu0 0
  %2101 = vmatprep.subr.bf16.mxu0 0
  %2102 = vmatpush2.bf16.msra.mxu0 0
  %2103 = vmatprep.mubr.bf16.mxu0 0
  %2104 = vmatmul.mubr.bf16.gmra.mxu0 %v1910
  %v2105 = vpop.f32.mrf.mxu0
  %v2106 = vadd.f32 0.0, %v2105
  %v2107 = vpop.f32.mrf.mxu0
  %v2108 = vadd.f32 0.0, %v2107
  %v2109 = vpop.f32.mrf.mxu0
  %v2110 = vadd.f32 0.0, %v2109
  %v2111 = vpop.f32.mrf.mxu0
  %v2112 = vadd.f32 0.0, %v2111
  %2113 = vdwg.mxu0
  %2114 = vmatprep.subr.bf16.mxu0 0
  %2115 = vmatpush1.bf16.msra.mxu0 %v2046
  %2116 = vmatprep.subr.bf16.mxu0 0
  %2117 = vmatpush1.bf16.msra.mxu0 %v2043
  %2118 = vmatprep.subr.bf16.mxu0 0
  %2119 = vmatpush1.bf16.msra.mxu0 %v2040
  %2120 = vmatprep.subr.bf16.mxu0 0
  %2121 = vmatpush1.bf16.msra.mxu0 %v2037
  %2122 = vmatprep.subr.bf16.mxu0 0
  %2123 = vmatpush1.bf16.msra.mxu0 %v2034
  %2124 = vmatprep.subr.bf16.mxu0 0
  %2125 = vmatpush1.bf16.msra.mxu0 %v2031
  %2126 = vmatprep.subr.bf16.mxu0 0
  %2127 = vmatpush1.bf16.msra.mxu0 %v2028
  %2128 = vmatprep.subr.bf16.mxu0 0
  %2129 = vmatpush1.bf16.msra.mxu0 %v2025
  %2130 = vmatprep.subr.bf16.mxu0 0
  %2131 = vmatpush2.bf16.msra.mxu0 0
  %2132 = vmatprep.subr.bf16.mxu0 0
  %2133 = vmatpush2.bf16.msra.mxu0 0
  %2134 = vmatprep.subr.bf16.mxu0 0
  %2135 = vmatpush2.bf16.msra.mxu0 0
  %2136 = vmatprep.subr.bf16.mxu0 0
  %2137 = vmatpush2.bf16.msra.mxu0 0
  %2138 = vmatprep.subr.bf16.mxu0 0
  %2139 = vmatpush2.bf16.msra.mxu0 0
  %2140 = vmatprep.subr.bf16.mxu0 0
  %2141 = vmatpush2.bf16.msra.mxu0 0
  %2142 = vmatprep.subr.bf16.mxu0 0
  %2143 = vmatpush2.bf16.msra.mxu0 0
  %2144 = vmatprep.subr.bf16.mxu0 0
  %2145 = vmatpush2.bf16.msra.mxu0 0
  %2146 = vmatprep.mubr.bf16.mxu0 0
  %2147 = vmatmul.mubr.bf16.gmra.mxu0 %v1910
  %v2148 = vpop.f32.mrf.mxu0
  %v2149 = vadd.f32 0.0, %v2148
  %v2150 = vpop.f32.mrf.mxu0
  %v2151 = vpop.f32.mrf.mxu0
  %v2152 = vadd.f32 0.0, %v2151
  %v2153 = vpop.f32.mrf.mxu0
  %2154 = vdwg.mxu0
  %v2155 = vadd.f32 %v1904, %v2106
  %v2156 = vadd.f32 %v1907, %v2110
  %v2157 = vxor.u32 %v2155, 2147483648
  %v2158 = vxor.u32 %v2156, 2147483648
  %v2159 = vmul.f32 %v2157, 1.442695
  %v2160 = vpow.pop %v2159
  %v2161 = vmul.f32 %v2158, 1.442695
  %v2162 = vpow.pop %v2161
  %v2163 = vadd.f32 %v2160, 1.0
  %v2164 = vadd.f32 %v2162, 1.0
  %v2165 = vrcp.pop %v2163
  %v2166 = vmul.f32 1.0, %v2165
  %v2167 = vrcp.pop %v2164
  %v2168 = vmul.f32 1.0, %v2167
  %v2169 = vadd.f32 %v1905, %v2108
  %v2170 = vadd.f32 %v1908, %v2112
  %v2171 = vxor.u32 %v2169, 2147483648
  %v2172 = vxor.u32 %v2170, 2147483648
  %v2173 = vmul.f32 %v2171, 1.442695
  %v2174 = vpow.pop %v2173
  %v2175 = vmul.f32 %v2172, 1.442695
  %v2176 = vpow.pop %v2175
  %v2177 = vadd.f32 %v2174, 1.0
  %v2178 = vadd.f32 %v2176, 1.0
  %v2179 = vrcp.pop %v2177
  %v2180 = vmul.f32 1.0, %v2179
  %v2181 = vrcp.pop %v2178
  %v2182 = vmul.f32 1.0, %v2181
  %v2183 = vld [vmem:[#allocation5] sm:$0x1]
  %v2185 = vlaneseq
  %v2186 = vshrl.u32 %v2185, 7
  %v2187 = vsub.s32 0, %v2186
  %v2188 = vrot.slane %v2183, %v2187
  %v2190 = vadd.f32 %v2149, %v2188
  %v2191 = vadd.f32 %v2152, %v2188
  %v2192 = vmul.f32 %v2166, %v2190
  %v2193 = vmul.f32 %v2168, %v2191
  %v2194 = vadd.f32 %v1906, %v2192
  %v2195 = vadd.f32 %v1909, %v2193
  %v2196 = vtanh.pop %v2194
  %v2197 = vtanh.pop %v2195
  %v2198 = vsub.f32 1.0, %v2180
  %v2199 = vsub.f32 1.0, %v2182
  %v2200 = vmul.f32 %v2198, %v2196
  %v2201 = vmul.f32 %v2199, %v2197
  %v2202 = vmul.f32 %v2180, %v1896
  %v2203 = vmul.f32 %v2182, %v1897
  %v2204 = vadd.f32 %v2200, %v2202
  %v2205 = vadd.f32 %v2201, %v2203
  %s2206 = scalar_lea.vmem [#allocation12], 48
  %2207 = vst [vmem:[%s2206] sm:$0xff] %v2204
  %2208 = vst [vmem:[%s2206 + $0x8] sm:$0xff] %v2205
  %s2209 = smul.u32 8, 3
  %s2210 = smul.addr %s2209, 8
  %s2211 = scalar_lea.vmem [#allocation11], %s2210
  %v2212 = vld [vmem:[%s2211] sm:$0xff]
  %v2213 = vld [vmem:[%s2211 + $0x8] sm:$0xff]
  %v2214 = vld [vmem:[%s2211 + $0x10] sm:$0xff]
  %v2215 = vld [vmem:[%s2211 + $0x18] sm:$0xff]
  %v2216 = vld [vmem:[%s2211 + $0x20] sm:$0xff]
  %v2217 = vld [vmem:[%s2211 + $0x28] sm:$0xff]
  %v2218 = vpack.c.bf16 %v2205, %v2204
  %v2219 = vld [vmem:[#allocation3] sm:$0xff]
  %v2220 = vld [vmem:[#allocation3 + $0x8] sm:$0xf]
  %v2221 = vld [vmem:[#allocation3 + $0xc] sm:$0xff]
  %v2222 = vld [vmem:[#allocation3 + $0x14] sm:$0xf]
  %v2223 = vld [vmem:[#allocation3 + $0x18] sm:$0xff]
  %v2224 = vld [vmem:[#allocation3 + $0x20] sm:$0xf]
  %v2225 = vld [vmem:[#allocation3 + $0x24] sm:$0xff]
  %v2226 = vld [vmem:[#allocation3 + $0x2c] sm:$0xf]
  %v2227 = vld [vmem:[#allocation3 + $0x30] sm:$0xff]
  %v2228 = vld [vmem:[#allocation3 + $0x38] sm:$0xf]
  %v2229 = vld [vmem:[#allocation3 + $0x3c] sm:$0xff]
  %v2230 = vld [vmem:[#allocation3 + $0x44] sm:$0xf]
  %v2231 = vld [vmem:[#allocation3 + $0x48] sm:$0xff]
  %v2232 = vld [vmem:[#allocation3 + $0x50] sm:$0xf]
  %v2233 = vld [vmem:[#allocation3 + $0x54] sm:$0xff]
  %v2234 = vld [vmem:[#allocation3 + $0x5c] sm:$0xf]
  %v2235 = vld [vmem:[#allocation3 + $0x60] sm:$0xff]
  %v2236 = vld [vmem:[#allocation3 + $0x68] sm:$0xf]
  %v2237 = vld [vmem:[#allocation3 + $0x6c] sm:$0xff]
  %v2238 = vld [vmem:[#allocation3 + $0x74] sm:$0xf]
  %v2239 = vld [vmem:[#allocation3 + $0x78] sm:$0xff]
  %v2240 = vld [vmem:[#allocation3 + $0x80] sm:$0xf]
  %v2241 = vld [vmem:[#allocation3 + $0x84] sm:$0xff]
  %v2242 = vld [vmem:[#allocation3 + $0x8c] sm:$0xf]
  %v2243 = vld [vmem:[#allocation3 + $0x90] sm:$0xff]
  %v2244 = vld [vmem:[#allocation3 + $0x98] sm:$0xf]
  %v2245 = vld [vmem:[#allocation3 + $0x9c] sm:$0xff]
  %v2246 = vld [vmem:[#allocation3 + $0xa4] sm:$0xf]
  %v2247 = vld [vmem:[#allocation3 + $0xa8] sm:$0xff]
  %v2248 = vld [vmem:[#allocation3 + $0xb0] sm:$0xf]
  %v2249 = vld [vmem:[#allocation3 + $0xb4] sm:$0xff]
  %v2250 = vld [vmem:[#allocation3 + $0xbc] sm:$0xf]
  %v2283 = vunpack.c.l.b16 %v2219
  %v2284 = vunpack.c.h.b16 %v2219
  %v2285 = vunpack.c.l.b16 %v2220
  %v2286 = vunpack.c.l.b16 %v2221
  %v2287 = vunpack.c.h.b16 %v2221
  %v2288 = vunpack.c.l.b16 %v2222
  %v2289 = vunpack.c.l.b16 %v2223
  %v2290 = vunpack.c.h.b16 %v2223
  %v2291 = vunpack.c.l.b16 %v2224
  %v2292 = vunpack.c.l.b16 %v2225
  %v2293 = vunpack.c.h.b16 %v2225
  %v2294 = vunpack.c.l.b16 %v2226
  %v2295 = vunpack.c.l.b16 %v2227
  %v2296 = vunpack.c.h.b16 %v2227
  %v2297 = vunpack.c.l.b16 %v2228
  %v2298 = vunpack.c.l.b16 %v2229
  %v2299 = vunpack.c.h.b16 %v2229
  %v2300 = vunpack.c.l.b16 %v2230
  %v2301 = vunpack.c.l.b16 %v2231
  %v2302 = vunpack.c.h.b16 %v2231
  %v2303 = vunpack.c.l.b16 %v2232
  %v2304 = vunpack.c.l.b16 %v2233
  %v2305 = vunpack.c.h.b16 %v2233
  %v2306 = vunpack.c.l.b16 %v2234
  %v2307 = vunpack.c.l.b16 %v2235
  %v2308 = vunpack.c.h.b16 %v2235
  %v2309 = vunpack.c.l.b16 %v2236
  %v2310 = vunpack.c.l.b16 %v2237
  %v2311 = vunpack.c.h.b16 %v2237
  %v2312 = vunpack.c.l.b16 %v2238
  %v2313 = vunpack.c.l.b16 %v2239
  %v2314 = vunpack.c.h.b16 %v2239
  %v2315 = vunpack.c.l.b16 %v2240
  %v2316 = vunpack.c.l.b16 %v2241
  %v2317 = vunpack.c.h.b16 %v2241
  %v2318 = vunpack.c.l.b16 %v2242
  %v2319 = vunpack.c.l.b16 %v2243
  %v2320 = vunpack.c.h.b16 %v2243
  %v2321 = vunpack.c.l.b16 %v2244
  %v2322 = vunpack.c.l.b16 %v2245
  %v2323 = vunpack.c.h.b16 %v2245
  %v2324 = vunpack.c.l.b16 %v2246
  %v2325 = vunpack.c.l.b16 %v2247
  %v2326 = vunpack.c.h.b16 %v2247
  %v2327 = vunpack.c.l.b16 %v2248
  %v2328 = vunpack.c.l.b16 %v2249
  %v2329 = vunpack.c.h.b16 %v2249
  %v2330 = vunpack.c.l.b16 %v2250
  %v2331 = vpack.c.b16 %v2286, %v2283
  %v2332 = vpack.c.b16 %v2287, %v2284
  %v2333 = vpack.c.b16 %v2288, %v2285
  %v2334 = vpack.c.b16 %v2292, %v2289
  %v2335 = vpack.c.b16 %v2293, %v2290
  %v2336 = vpack.c.b16 %v2294, %v2291
  %v2337 = vpack.c.b16 %v2298, %v2295
  %v2338 = vpack.c.b16 %v2299, %v2296
  %v2339 = vpack.c.b16 %v2300, %v2297
  %v2340 = vpack.c.b16 %v2304, %v2301
  %v2341 = vpack.c.b16 %v2305, %v2302
  %v2342 = vpack.c.b16 %v2306, %v2303
  %v2343 = vpack.c.b16 %v2310, %v2307
  %v2344 = vpack.c.b16 %v2311, %v2308
  %v2345 = vpack.c.b16 %v2312, %v2309
  %v2346 = vpack.c.b16 %v2316, %v2313
  %v2347 = vpack.c.b16 %v2317, %v2314
  %v2348 = vpack.c.b16 %v2318, %v2315
  %v2349 = vpack.c.b16 %v2322, %v2319
  %v2350 = vpack.c.b16 %v2323, %v2320
  %v2351 = vpack.c.b16 %v2324, %v2321
  %v2352 = vpack.c.b16 %v2328, %v2325
  %v2353 = vpack.c.b16 %v2329, %v2326
  %v2354 = vpack.c.b16 %v2330, %v2327
  %2379 = vmatprep.subr.bf16.mxu0 %v2353
  %2380 = vmatpush1.bf16.msra.mxu0 %v2352
  %2381 = vmatprep.subr.bf16.mxu0 %v2350
  %2382 = vmatpush1.bf16.msra.mxu0 %v2349
  %2383 = vmatprep.subr.bf16.mxu0 %v2347
  %2384 = vmatpush1.bf16.msra.mxu0 %v2346
  %2385 = vmatprep.subr.bf16.mxu0 %v2344
  %2386 = vmatpush1.bf16.msra.mxu0 %v2343
  %2387 = vmatprep.subr.bf16.mxu0 %v2341
  %2388 = vmatpush1.bf16.msra.mxu0 %v2340
  %2389 = vmatprep.subr.bf16.mxu0 %v2338
  %2390 = vmatpush1.bf16.msra.mxu0 %v2337
  %2391 = vmatprep.subr.bf16.mxu0 %v2335
  %2392 = vmatpush1.bf16.msra.mxu0 %v2334
  %2393 = vmatprep.subr.bf16.mxu0 %v2332
  %2394 = vmatpush1.bf16.msra.mxu0 %v2331
  %2395 = vmatprep.subr.bf16.mxu0 0
  %2396 = vmatpush2.bf16.msra.mxu0 0
  %2397 = vmatprep.subr.bf16.mxu0 0
  %2398 = vmatpush2.bf16.msra.mxu0 0
  %2399 = vmatprep.subr.bf16.mxu0 0
  %2400 = vmatpush2.bf16.msra.mxu0 0
  %2401 = vmatprep.subr.bf16.mxu0 0
  %2402 = vmatpush2.bf16.msra.mxu0 0
  %2403 = vmatprep.subr.bf16.mxu0 0
  %2404 = vmatpush2.bf16.msra.mxu0 0
  %2405 = vmatprep.subr.bf16.mxu0 0
  %2406 = vmatpush2.bf16.msra.mxu0 0
  %2407 = vmatprep.subr.bf16.mxu0 0
  %2408 = vmatpush2.bf16.msra.mxu0 0
  %2409 = vmatprep.subr.bf16.mxu0 0
  %2410 = vmatpush2.bf16.msra.mxu0 0
  %2411 = vmatprep.mubr.bf16.mxu0 0
  %2412 = vmatmul.mubr.bf16.gmra.mxu0 %v2218
  %v2413 = vpop.f32.mrf.mxu0
  %v2414 = vadd.f32 0.0, %v2413
  %v2415 = vpop.f32.mrf.mxu0
  %v2416 = vadd.f32 0.0, %v2415
  %v2417 = vpop.f32.mrf.mxu0
  %v2418 = vadd.f32 0.0, %v2417
  %v2419 = vpop.f32.mrf.mxu0
  %v2420 = vadd.f32 0.0, %v2419
  %2421 = vdwg.mxu0
  %2422 = vmatprep.subr.bf16.mxu0 0
  %2423 = vmatpush1.bf16.msra.mxu0 %v2354
  %2424 = vmatprep.subr.bf16.mxu0 0
  %2425 = vmatpush1.bf16.msra.mxu0 %v2351
  %2426 = vmatprep.subr.bf16.mxu0 0
  %2427 = vmatpush1.bf16.msra.mxu0 %v2348
  %2428 = vmatprep.subr.bf16.mxu0 0
  %2429 = vmatpush1.bf16.msra.mxu0 %v2345
  %2430 = vmatprep.subr.bf16.mxu0 0
  %2431 = vmatpush1.bf16.msra.mxu0 %v2342
  %2432 = vmatprep.subr.bf16.mxu0 0
  %2433 = vmatpush1.bf16.msra.mxu0 %v2339
  %2434 = vmatprep.subr.bf16.mxu0 0
  %2435 = vmatpush1.bf16.msra.mxu0 %v2336
  %2436 = vmatprep.subr.bf16.mxu0 0
  %2437 = vmatpush1.bf16.msra.mxu0 %v2333
  %2438 = vmatprep.subr.bf16.mxu0 0
  %2439 = vmatpush2.bf16.msra.mxu0 0
  %2440 = vmatprep.subr.bf16.mxu0 0
  %2441 = vmatpush2.bf16.msra.mxu0 0
  %2442 = vmatprep.subr.bf16.mxu0 0
  %2443 = vmatpush2.bf16.msra.mxu0 0
  %2444 = vmatprep.subr.bf16.mxu0 0
  %2445 = vmatpush2.bf16.msra.mxu0 0
  %2446 = vmatprep.subr.bf16.mxu0 0
  %2447 = vmatpush2.bf16.msra.mxu0 0
  %2448 = vmatprep.subr.bf16.mxu0 0
  %2449 = vmatpush2.bf16.msra.mxu0 0
  %2450 = vmatprep.subr.bf16.mxu0 0
  %2451 = vmatpush2.bf16.msra.mxu0 0
  %2452 = vmatprep.subr.bf16.mxu0 0
  %2453 = vmatpush2.bf16.msra.mxu0 0
  %2454 = vmatprep.mubr.bf16.mxu0 0
  %2455 = vmatmul.mubr.bf16.gmra.mxu0 %v2218
  %v2456 = vpop.f32.mrf.mxu0
  %v2457 = vadd.f32 0.0, %v2456
  %v2458 = vpop.f32.mrf.mxu0
  %v2459 = vpop.f32.mrf.mxu0
  %v2460 = vadd.f32 0.0, %v2459
  %v2461 = vpop.f32.mrf.mxu0
  %2462 = vdwg.mxu0
  %v2463 = vadd.f32 %v2212, %v2414
  %v2464 = vadd.f32 %v2215, %v2418
  %v2465 = vxor.u32 %v2463, 2147483648
  %v2466 = vxor.u32 %v2464, 2147483648
  %v2467 = vmul.f32 %v2465, 1.442695
  %v2468 = vpow.pop %v2467
  %v2469 = vmul.f32 %v2466, 1.442695
  %v2470 = vpow.pop %v2469
  %v2471 = vadd.f32 %v2468, 1.0
  %v2472 = vadd.f32 %v2470, 1.0
  %v2473 = vrcp.pop %v2471
  %v2474 = vmul.f32 1.0, %v2473
  %v2475 = vrcp.pop %v2472
  %v2476 = vmul.f32 1.0, %v2475
  %v2477 = vadd.f32 %v2213, %v2416
  %v2478 = vadd.f32 %v2216, %v2420
  %v2479 = vxor.u32 %v2477, 2147483648
  %v2480 = vxor.u32 %v2478, 2147483648
  %v2481 = vmul.f32 %v2479, 1.442695
  %v2482 = vpow.pop %v2481
  %v2483 = vmul.f32 %v2480, 1.442695
  %v2484 = vpow.pop %v2483
  %v2485 = vadd.f32 %v2482, 1.0
  %v2486 = vadd.f32 %v2484, 1.0
  %v2487 = vrcp.pop %v2485
  %v2488 = vmul.f32 1.0, %v2487
  %v2489 = vrcp.pop %v2486
  %v2490 = vmul.f32 1.0, %v2489
  %v2491 = vld [vmem:[#allocation5] sm:$0x1]
  %v2493 = vlaneseq
  %v2494 = vshrl.u32 %v2493, 7
  %v2495 = vsub.s32 0, %v2494
  %v2496 = vrot.slane %v2491, %v2495
  %v2498 = vadd.f32 %v2457, %v2496
  %v2499 = vadd.f32 %v2460, %v2496
  %v2500 = vmul.f32 %v2474, %v2498
  %v2501 = vmul.f32 %v2476, %v2499
  %v2502 = vadd.f32 %v2214, %v2500
  %v2503 = vadd.f32 %v2217, %v2501
  %v2504 = vtanh.pop %v2502
  %v2505 = vtanh.pop %v2503
  %v2506 = vsub.f32 1.0, %v2488
  %v2507 = vsub.f32 1.0, %v2490
  %v2508 = vmul.f32 %v2506, %v2504
  %v2509 = vmul.f32 %v2507, %v2505
  %v2510 = vmul.f32 %v2488, %v2204
  %v2511 = vmul.f32 %v2490, %v2205
  %v2512 = vadd.f32 %v2508, %v2510
  %v2513 = vadd.f32 %v2509, %v2511
  %s2514 = scalar_lea.vmem [#allocation12], 64
  %2515 = vst [vmem:[%s2514] sm:$0xff] %v2512
  %2516 = vst [vmem:[%s2514 + $0x8] sm:$0xff] %v2513
  %s2517 = smul.u32 10, 3
  %s2518 = smul.addr %s2517, 8
  %s2519 = scalar_lea.vmem [#allocation11], %s2518
  %v2520 = vld [vmem:[%s2519] sm:$0xff]
  %v2521 = vld [vmem:[%s2519 + $0x8] sm:$0xff]
  %v2522 = vld [vmem:[%s2519 + $0x10] sm:$0xff]
  %v2523 = vld [vmem:[%s2519 + $0x18] sm:$0xff]
  %v2524 = vld [vmem:[%s2519 + $0x20] sm:$0xff]
  %v2525 = vld [vmem:[%s2519 + $0x28] sm:$0xff]
  %v2526 = vpack.c.bf16 %v2513, %v2512
  %v2527 = vld [vmem:[#allocation3] sm:$0xff]
  %v2528 = vld [vmem:[#allocation3 + $0x8] sm:$0xf]
  %v2529 = vld [vmem:[#allocation3 + $0xc] sm:$0xff]
  %v2530 = vld [vmem:[#allocation3 + $0x14] sm:$0xf]
  %v2531 = vld [vmem:[#allocation3 + $0x18] sm:$0xff]
  %v2532 = vld [vmem:[#allocation3 + $0x20] sm:$0xf]
  %v2533 = vld [vmem:[#allocation3 + $0x24] sm:$0xff]
  %v2534 = vld [vmem:[#allocation3 + $0x2c] sm:$0xf]
  %v2535 = vld [vmem:[#allocation3 + $0x30] sm:$0xff]
  %v2536 = vld [vmem:[#allocation3 + $0x38] sm:$0xf]
  %v2537 = vld [vmem:[#allocation3 + $0x3c] sm:$0xff]
  %v2538 = vld [vmem:[#allocation3 + $0x44] sm:$0xf]
  %v2539 = vld [vmem:[#allocation3 + $0x48] sm:$0xff]
  %v2540 = vld [vmem:[#allocation3 + $0x50] sm:$0xf]
  %v2541 = vld [vmem:[#allocation3 + $0x54] sm:$0xff]
  %v2542 = vld [vmem:[#allocation3 + $0x5c] sm:$0xf]
  %v2543 = vld [vmem:[#allocation3 + $0x60] sm:$0xff]
  %v2544 = vld [vmem:[#allocation3 + $0x68] sm:$0xf]
  %v2545 = vld [vmem:[#allocation3 + $0x6c] sm:$0xff]
  %v2546 = vld [vmem:[#allocation3 + $0x74] sm:$0xf]
  %v2547 = vld [vmem:[#allocation3 + $0x78] sm:$0xff]
  %v2548 = vld [vmem:[#allocation3 + $0x80] sm:$0xf]
  %v2549 = vld [vmem:[#allocation3 + $0x84] sm:$0xff]
  %v2550 = vld [vmem:[#allocation3 + $0x8c] sm:$0xf]
  %v2551 = vld [vmem:[#allocation3 + $0x90] sm:$0xff]
  %v2552 = vld [vmem:[#allocation3 + $0x98] sm:$0xf]
  %v2553 = vld [vmem:[#allocation3 + $0x9c] sm:$0xff]
  %v2554 = vld [vmem:[#allocation3 + $0xa4] sm:$0xf]
  %v2555 = vld [vmem:[#allocation3 + $0xa8] sm:$0xff]
  %v2556 = vld [vmem:[#allocation3 + $0xb0] sm:$0xf]
  %v2557 = vld [vmem:[#allocation3 + $0xb4] sm:$0xff]
  %v2558 = vld [vmem:[#allocation3 + $0xbc] sm:$0xf]
  %v2591 = vunpack.c.l.b16 %v2527
  %v2592 = vunpack.c.h.b16 %v2527
  %v2593 = vunpack.c.l.b16 %v2528
  %v2594 = vunpack.c.l.b16 %v2529
  %v2595 = vunpack.c.h.b16 %v2529
  %v2596 = vunpack.c.l.b16 %v2530
  %v2597 = vunpack.c.l.b16 %v2531
  %v2598 = vunpack.c.h.b16 %v2531
  %v2599 = vunpack.c.l.b16 %v2532
  %v2600 = vunpack.c.l.b16 %v2533
  %v2601 = vunpack.c.h.b16 %v2533
  %v2602 = vunpack.c.l.b16 %v2534
  %v2603 = vunpack.c.l.b16 %v2535
  %v2604 = vunpack.c.h.b16 %v2535
  %v2605 = vunpack.c.l.b16 %v2536
  %v2606 = vunpack.c.l.b16 %v2537
  %v2607 = vunpack.c.h.b16 %v2537
  %v2608 = vunpack.c.l.b16 %v2538
  %v2609 = vunpack.c.l.b16 %v2539
  %v2610 = vunpack.c.h.b16 %v2539
  %v2611 = vunpack.c.l.b16 %v2540
  %v2612 = vunpack.c.l.b16 %v2541
  %v2613 = vunpack.c.h.b16 %v2541
  %v2614 = vunpack.c.l.b16 %v2542
  %v2615 = vunpack.c.l.b16 %v2543
  %v2616 = vunpack.c.h.b16 %v2543
  %v2617 = vunpack.c.l.b16 %v2544
  %v2618 = vunpack.c.l.b16 %v2545
  %v2619 = vunpack.c.h.b16 %v2545
  %v2620 = vunpack.c.l.b16 %v2546
  %v2621 = vunpack.c.l.b16 %v2547
  %v2622 = vunpack.c.h.b16 %v2547
  %v2623 = vunpack.c.l.b16 %v2548
  %v2624 = vunpack.c.l.b16 %v2549
  %v2625 = vunpack.c.h.b16 %v2549
  %v2626 = vunpack.c.l.b16 %v2550
  %v2627 = vunpack.c.l.b16 %v2551
  %v2628 = vunpack.c.h.b16 %v2551
  %v2629 = vunpack.c.l.b16 %v2552
  %v2630 = vunpack.c.l.b16 %v2553
  %v2631 = vunpack.c.h.b16 %v2553
  %v2632 = vunpack.c.l.b16 %v2554
  %v2633 = vunpack.c.l.b16 %v2555
  %v2634 = vunpack.c.h.b16 %v2555
  %v2635 = vunpack.c.l.b16 %v2556
  %v2636 = vunpack.c.l.b16 %v2557
  %v2637 = vunpack.c.h.b16 %v2557
  %v2638 = vunpack.c.l.b16 %v2558
  %v2639 = vpack.c.b16 %v2594, %v2591
  %v2640 = vpack.c.b16 %v2595, %v2592
  %v2641 = vpack.c.b16 %v2596, %v2593
  %v2642 = vpack.c.b16 %v2600, %v2597
  %v2643 = vpack.c.b16 %v2601, %v2598
  %v2644 = vpack.c.b16 %v2602, %v2599
  %v2645 = vpack.c.b16 %v2606, %v2603
  %v2646 = vpack.c.b16 %v2607, %v2604
  %v2647 = vpack.c.b16 %v2608, %v2605
  %v2648 = vpack.c.b16 %v2612, %v2609
  %v2649 = vpack.c.b16 %v2613, %v2610
  %v2650 = vpack.c.b16 %v2614, %v2611
  %v2651 = vpack.c.b16 %v2618, %v2615
  %v2652 = vpack.c.b16 %v2619, %v2616
  %v2653 = vpack.c.b16 %v2620, %v2617
  %v2654 = vpack.c.b16 %v2624, %v2621
  %v2655 = vpack.c.b16 %v2625, %v2622
  %v2656 = vpack.c.b16 %v2626, %v2623
  %v2657 = vpack.c.b16 %v2630, %v2627
  %v2658 = vpack.c.b16 %v2631, %v2628
  %v2659 = vpack.c.b16 %v2632, %v2629
  %v2660 = vpack.c.b16 %v2636, %v2633
  %v2661 = vpack.c.b16 %v2637, %v2634
  %v2662 = vpack.c.b16 %v2638, %v2635
  %2687 = vmatprep.subr.bf16.mxu0 %v2661
  %2688 = vmatpush1.bf16.msra.mxu0 %v2660
  %2689 = vmatprep.subr.bf16.mxu0 %v2658
  %2690 = vmatpush1.bf16.msra.mxu0 %v2657
  %2691 = vmatprep.subr.bf16.mxu0 %v2655
  %2692 = vmatpush1.bf16.msra.mxu0 %v2654
  %2693 = vmatprep.subr.bf16.mxu0 %v2652
  %2694 = vmatpush1.bf16.msra.mxu0 %v2651
  %2695 = vmatprep.subr.bf16.mxu0 %v2649
  %2696 = vmatpush1.bf16.msra.mxu0 %v2648
  %2697 = vmatprep.subr.bf16.mxu0 %v2646
  %2698 = vmatpush1.bf16.msra.mxu0 %v2645
  %2699 = vmatprep.subr.bf16.mxu0 %v2643
  %2700 = vmatpush1.bf16.msra.mxu0 %v2642
  %2701 = vmatprep.subr.bf16.mxu0 %v2640
  %2702 = vmatpush1.bf16.msra.mxu0 %v2639
  %2703 = vmatprep.subr.bf16.mxu0 0
  %2704 = vmatpush2.bf16.msra.mxu0 0
  %2705 = vmatprep.subr.bf16.mxu0 0
  %2706 = vmatpush2.bf16.msra.mxu0 0
  %2707 = vmatprep.subr.bf16.mxu0 0
  %2708 = vmatpush2.bf16.msra.mxu0 0
  %2709 = vmatprep.subr.bf16.mxu0 0
  %2710 = vmatpush2.bf16.msra.mxu0 0
  %2711 = vmatprep.subr.bf16.mxu0 0
  %2712 = vmatpush2.bf16.msra.mxu0 0
  %2713 = vmatprep.subr.bf16.mxu0 0
  %2714 = vmatpush2.bf16.msra.mxu0 0
  %2715 = vmatprep.subr.bf16.mxu0 0
  %2716 = vmatpush2.bf16.msra.mxu0 0
  %2717 = vmatprep.subr.bf16.mxu0 0
  %2718 = vmatpush2.bf16.msra.mxu0 0
  %2719 = vmatprep.mubr.bf16.mxu0 0
  %2720 = vmatmul.mubr.bf16.gmra.mxu0 %v2526
  %v2721 = vpop.f32.mrf.mxu0
  %v2722 = vadd.f32 0.0, %v2721
  %v2723 = vpop.f32.mrf.mxu0
  %v2724 = vadd.f32 0.0, %v2723
  %v2725 = vpop.f32.mrf.mxu0
  %v2726 = vadd.f32 0.0, %v2725
  %v2727 = vpop.f32.mrf.mxu0
  %v2728 = vadd.f32 0.0, %v2727
  %2729 = vdwg.mxu0
  %2730 = vmatprep.subr.bf16.mxu0 0
  %2731 = vmatpush1.bf16.msra.mxu0 %v2662
  %2732 = vmatprep.subr.bf16.mxu0 0
  %2733 = vmatpush1.bf16.msra.mxu0 %v2659
  %2734 = vmatprep.subr.bf16.mxu0 0
  %2735 = vmatpush1.bf16.msra.mxu0 %v2656
  %2736 = vmatprep.subr.bf16.mxu0 0
  %2737 = vmatpush1.bf16.msra.mxu0 %v2653
  %2738 = vmatprep.subr.bf16.mxu0 0
  %2739 = vmatpush1.bf16.msra.mxu0 %v2650
  %2740 = vmatprep.subr.bf16.mxu0 0
  %2741 = vmatpush1.bf16.msra.mxu0 %v2647
  %2742 = vmatprep.subr.bf16.mxu0 0
  %2743 = vmatpush1.bf16.msra.mxu0 %v2644
  %2744 = vmatprep.subr.bf16.mxu0 0
  %2745 = vmatpush1.bf16.msra.mxu0 %v2641
  %2746 = vmatprep.subr.bf16.mxu0 0
  %2747 = vmatpush2.bf16.msra.mxu0 0
  %2748 = vmatprep.subr.bf16.mxu0 0
  %2749 = vmatpush2.bf16.msra.mxu0 0
  %2750 = vmatprep.subr.bf16.mxu0 0
  %2751 = vmatpush2.bf16.msra.mxu0 0
  %2752 = vmatprep.subr.bf16.mxu0 0
  %2753 = vmatpush2.bf16.msra.mxu0 0
  %2754 = vmatprep.subr.bf16.mxu0 0
  %2755 = vmatpush2.bf16.msra.mxu0 0
  %2756 = vmatprep.subr.bf16.mxu0 0
  %2757 = vmatpush2.bf16.msra.mxu0 0
  %2758 = vmatprep.subr.bf16.mxu0 0
  %2759 = vmatpush2.bf16.msra.mxu0 0
  %2760 = vmatprep.subr.bf16.mxu0 0
  %2761 = vmatpush2.bf16.msra.mxu0 0
  %2762 = vmatprep.mubr.bf16.mxu0 0
  %2763 = vmatmul.mubr.bf16.gmra.mxu0 %v2526
  %v2764 = vpop.f32.mrf.mxu0
  %v2765 = vadd.f32 0.0, %v2764
  %v2766 = vpop.f32.mrf.mxu0
  %v2767 = vpop.f32.mrf.mxu0
  %v2768 = vadd.f32 0.0, %v2767
  %v2769 = vpop.f32.mrf.mxu0
  %2770 = vdwg.mxu0
  %v2771 = vadd.f32 %v2520, %v2722
  %v2772 = vadd.f32 %v2523, %v2726
  %v2773 = vxor.u32 %v2771, 2147483648
  %v2774 = vxor.u32 %v2772, 2147483648
  %v2775 = vmul.f32 %v2773, 1.442695
  %v2776 = vpow.pop %v2775
  %v2777 = vmul.f32 %v2774, 1.442695
  %v2778 = vpow.pop %v2777
  %v2779 = vadd.f32 %v2776, 1.0
  %v2780 = vadd.f32 %v2778, 1.0
  %v2781 = vrcp.pop %v2779
  %v2782 = vmul.f32 1.0, %v2781
  %v2783 = vrcp.pop %v2780
  %v2784 = vmul.f32 1.0, %v2783
  %v2785 = vadd.f32 %v2521, %v2724
  %v2786 = vadd.f32 %v2524, %v2728
  %v2787 = vxor.u32 %v2785, 2147483648
  %v2788 = vxor.u32 %v2786, 2147483648
  %v2789 = vmul.f32 %v2787, 1.442695
  %v2790 = vpow.pop %v2789
  %v2791 = vmul.f32 %v2788, 1.442695
  %v2792 = vpow.pop %v2791
  %v2793 = vadd.f32 %v2790, 1.0
  %v2794 = vadd.f32 %v2792, 1.0
  %v2795 = vrcp.pop %v2793
  %v2796 = vmul.f32 1.0, %v2795
  %v2797 = vrcp.pop %v2794
  %v2798 = vmul.f32 1.0, %v2797
  %v2799 = vld [vmem:[#allocation5] sm:$0x1]
  %v2801 = vlaneseq
  %v2802 = vshrl.u32 %v2801, 7
  %v2803 = vsub.s32 0, %v2802
  %v2804 = vrot.slane %v2799, %v2803
  %v2806 = vadd.f32 %v2765, %v2804
  %v2807 = vadd.f32 %v2768, %v2804
  %v2808 = vmul.f32 %v2782, %v2806
  %v2809 = vmul.f32 %v2784, %v2807
  %v2810 = vadd.f32 %v2522, %v2808
  %v2811 = vadd.f32 %v2525, %v2809
  %v2812 = vtanh.pop %v2810
  %v2813 = vtanh.pop %v2811
  %v2814 = vsub.f32 1.0, %v2796
  %v2815 = vsub.f32 1.0, %v2798
  %v2816 = vmul.f32 %v2814, %v2812
  %v2817 = vmul.f32 %v2815, %v2813
  %v2818 = vmul.f32 %v2796, %v2512
  %v2819 = vmul.f32 %v2798, %v2513
  %v2820 = vadd.f32 %v2816, %v2818
  %v2821 = vadd.f32 %v2817, %v2819
  %s2822 = scalar_lea.vmem [#allocation12], 80
  %2823 = vst [vmem:[%s2822] sm:$0xff] %v2820
  %2824 = vst [vmem:[%s2822 + $0x8] sm:$0xff] %v2821
  %s2825 = smul.u32 12, 3
  %s2826 = smul.addr %s2825, 8
  %s2827 = scalar_lea.vmem [#allocation11], %s2826
  %v2828 = vld [vmem:[%s2827] sm:$0xff]
  %v2829 = vld [vmem:[%s2827 + $0x8] sm:$0xff]
  %v2830 = vld [vmem:[%s2827 + $0x10] sm:$0xff]
  %v2831 = vld [vmem:[%s2827 + $0x18] sm:$0xff]
  %v2832 = vld [vmem:[%s2827 + $0x20] sm:$0xff]
  %v2833 = vld [vmem:[%s2827 + $0x28] sm:$0xff]
  %v2834 = vpack.c.bf16 %v2821, %v2820
  %v2835 = vld [vmem:[#allocation3] sm:$0xff]
  %v2836 = vld [vmem:[#allocation3 + $0x8] sm:$0xf]
  %v2837 = vld [vmem:[#allocation3 + $0xc] sm:$0xff]
  %v2838 = vld [vmem:[#allocation3 + $0x14] sm:$0xf]
  %v2839 = vld [vmem:[#allocation3 + $0x18] sm:$0xff]
  %v2840 = vld [vmem:[#allocation3 + $0x20] sm:$0xf]
  %v2841 = vld [vmem:[#allocation3 + $0x24] sm:$0xff]
  %v2842 = vld [vmem:[#allocation3 + $0x2c] sm:$0xf]
  %v2843 = vld [vmem:[#allocation3 + $0x30] sm:$0xff]
  %v2844 = vld [vmem:[#allocation3 + $0x38] sm:$0xf]
  %v2845 = vld [vmem:[#allocation3 + $0x3c] sm:$0xff]
  %v2846 = vld [vmem:[#allocation3 + $0x44] sm:$0xf]
  %v2847 = vld [vmem:[#allocation3 + $0x48] sm:$0xff]
  %v2848 = vld [vmem:[#allocation3 + $0x50] sm:$0xf]
  %v2849 = vld [vmem:[#allocation3 + $0x54] sm:$0xff]
  %v2850 = vld [vmem:[#allocation3 + $0x5c] sm:$0xf]
  %v2851 = vld [vmem:[#allocation3 + $0x60] sm:$0xff]
  %v2852 = vld [vmem:[#allocation3 + $0x68] sm:$0xf]
  %v2853 = vld [vmem:[#allocation3 + $0x6c] sm:$0xff]
  %v2854 = vld [vmem:[#allocation3 + $0x74] sm:$0xf]
  %v2855 = vld [vmem:[#allocation3 + $0x78] sm:$0xff]
  %v2856 = vld [vmem:[#allocation3 + $0x80] sm:$0xf]
  %v2857 = vld [vmem:[#allocation3 + $0x84] sm:$0xff]
  %v2858 = vld [vmem:[#allocation3 + $0x8c] sm:$0xf]
  %v2859 = vld [vmem:[#allocation3 + $0x90] sm:$0xff]
  %v2860 = vld [vmem:[#allocation3 + $0x98] sm:$0xf]
  %v2861 = vld [vmem:[#allocation3 + $0x9c] sm:$0xff]
  %v2862 = vld [vmem:[#allocation3 + $0xa4] sm:$0xf]
  %v2863 = vld [vmem:[#allocation3 + $0xa8] sm:$0xff]
  %v2864 = vld [vmem:[#allocation3 + $0xb0] sm:$0xf]
  %v2865 = vld [vmem:[#allocation3 + $0xb4] sm:$0xff]
  %v2866 = vld [vmem:[#allocation3 + $0xbc] sm:$0xf]
  %v2899 = vunpack.c.l.b16 %v2835
  %v2900 = vunpack.c.h.b16 %v2835
  %v2901 = vunpack.c.l.b16 %v2836
  %v2902 = vunpack.c.l.b16 %v2837
  %v2903 = vunpack.c.h.b16 %v2837
  %v2904 = vunpack.c.l.b16 %v2838
  %v2905 = vunpack.c.l.b16 %v2839
  %v2906 = vunpack.c.h.b16 %v2839
  %v2907 = vunpack.c.l.b16 %v2840
  %v2908 = vunpack.c.l.b16 %v2841
  %v2909 = vunpack.c.h.b16 %v2841
  %v2910 = vunpack.c.l.b16 %v2842
  %v2911 = vunpack.c.l.b16 %v2843
  %v2912 = vunpack.c.h.b16 %v2843
  %v2913 = vunpack.c.l.b16 %v2844
  %v2914 = vunpack.c.l.b16 %v2845
  %v2915 = vunpack.c.h.b16 %v2845
  %v2916 = vunpack.c.l.b16 %v2846
  %v2917 = vunpack.c.l.b16 %v2847
  %v2918 = vunpack.c.h.b16 %v2847
  %v2919 = vunpack.c.l.b16 %v2848
  %v2920 = vunpack.c.l.b16 %v2849
  %v2921 = vunpack.c.h.b16 %v2849
  %v2922 = vunpack.c.l.b16 %v2850
  %v2923 = vunpack.c.l.b16 %v2851
  %v2924 = vunpack.c.h.b16 %v2851
  %v2925 = vunpack.c.l.b16 %v2852
  %v2926 = vunpack.c.l.b16 %v2853
  %v2927 = vunpack.c.h.b16 %v2853
  %v2928 = vunpack.c.l.b16 %v2854
  %v2929 = vunpack.c.l.b16 %v2855
  %v2930 = vunpack.c.h.b16 %v2855
  %v2931 = vunpack.c.l.b16 %v2856
  %v2932 = vunpack.c.l.b16 %v2857
  %v2933 = vunpack.c.h.b16 %v2857
  %v2934 = vunpack.c.l.b16 %v2858
  %v2935 = vunpack.c.l.b16 %v2859
  %v2936 = vunpack.c.h.b16 %v2859
  %v2937 = vunpack.c.l.b16 %v2860
  %v2938 = vunpack.c.l.b16 %v2861
  %v2939 = vunpack.c.h.b16 %v2861
  %v2940 = vunpack.c.l.b16 %v2862
  %v2941 = vunpack.c.l.b16 %v2863
  %v2942 = vunpack.c.h.b16 %v2863
  %v2943 = vunpack.c.l.b16 %v2864
  %v2944 = vunpack.c.l.b16 %v2865
  %v2945 = vunpack.c.h.b16 %v2865
  %v2946 = vunpack.c.l.b16 %v2866
  %v2947 = vpack.c.b16 %v2902, %v2899
  %v2948 = vpack.c.b16 %v2903, %v2900
  %v2949 = vpack.c.b16 %v2904, %v2901
  %v2950 = vpack.c.b16 %v2908, %v2905
  %v2951 = vpack.c.b16 %v2909, %v2906
  %v2952 = vpack.c.b16 %v2910, %v2907
  %v2953 = vpack.c.b16 %v2914, %v2911
  %v2954 = vpack.c.b16 %v2915, %v2912
  %v2955 = vpack.c.b16 %v2916, %v2913
  %v2956 = vpack.c.b16 %v2920, %v2917
  %v2957 = vpack.c.b16 %v2921, %v2918
  %v2958 = vpack.c.b16 %v2922, %v2919
  %v2959 = vpack.c.b16 %v2926, %v2923
  %v2960 = vpack.c.b16 %v2927, %v2924
  %v2961 = vpack.c.b16 %v2928, %v2925
  %v2962 = vpack.c.b16 %v2932, %v2929
  %v2963 = vpack.c.b16 %v2933, %v2930
  %v2964 = vpack.c.b16 %v2934, %v2931
  %v2965 = vpack.c.b16 %v2938, %v2935
  %v2966 = vpack.c.b16 %v2939, %v2936
  %v2967 = vpack.c.b16 %v2940, %v2937
  %v2968 = vpack.c.b16 %v2944, %v2941
  %v2969 = vpack.c.b16 %v2945, %v2942
  %v2970 = vpack.c.b16 %v2946, %v2943
  %2995 = vmatprep.subr.bf16.mxu0 %v2969
  %2996 = vmatpush1.bf16.msra.mxu0 %v2968
  %2997 = vmatprep.subr.bf16.mxu0 %v2966
  %2998 = vmatpush1.bf16.msra.mxu0 %v2965
  %2999 = vmatprep.subr.bf16.mxu0 %v2963
  %3000 = vmatpush1.bf16.msra.mxu0 %v2962
  %3001 = vmatprep.subr.bf16.mxu0 %v2960
  %3002 = vmatpush1.bf16.msra.mxu0 %v2959
  %3003 = vmatprep.subr.bf16.mxu0 %v2957
  %3004 = vmatpush1.bf16.msra.mxu0 %v2956
  %3005 = vmatprep.subr.bf16.mxu0 %v2954
  %3006 = vmatpush1.bf16.msra.mxu0 %v2953
  %3007 = vmatprep.subr.bf16.mxu0 %v2951
  %3008 = vmatpush1.bf16.msra.mxu0 %v2950
  %3009 = vmatprep.subr.bf16.mxu0 %v2948
  %3010 = vmatpush1.bf16.msra.mxu0 %v2947
  %3011 = vmatprep.subr.bf16.mxu0 0
  %3012 = vmatpush2.bf16.msra.mxu0 0
  %3013 = vmatprep.subr.bf16.mxu0 0
  %3014 = vmatpush2.bf16.msra.mxu0 0
  %3015 = vmatprep.subr.bf16.mxu0 0
  %3016 = vmatpush2.bf16.msra.mxu0 0
  %3017 = vmatprep.subr.bf16.mxu0 0
  %3018 = vmatpush2.bf16.msra.mxu0 0
  %3019 = vmatprep.subr.bf16.mxu0 0
  %3020 = vmatpush2.bf16.msra.mxu0 0
  %3021 = vmatprep.subr.bf16.mxu0 0
  %3022 = vmatpush2.bf16.msra.mxu0 0
  %3023 = vmatprep.subr.bf16.mxu0 0
  %3024 = vmatpush2.bf16.msra.mxu0 0
  %3025 = vmatprep.subr.bf16.mxu0 0
  %3026 = vmatpush2.bf16.msra.mxu0 0
  %3027 = vmatprep.mubr.bf16.mxu0 0
  %3028 = vmatmul.mubr.bf16.gmra.mxu0 %v2834
  %v3029 = vpop.f32.mrf.mxu0
  %v3030 = vadd.f32 0.0, %v3029
  %v3031 = vpop.f32.mrf.mxu0
  %v3032 = vadd.f32 0.0, %v3031
  %v3033 = vpop.f32.mrf.mxu0
  %v3034 = vadd.f32 0.0, %v3033
  %v3035 = vpop.f32.mrf.mxu0
  %v3036 = vadd.f32 0.0, %v3035
  %3037 = vdwg.mxu0
  %3038 = vmatprep.subr.bf16.mxu0 0
  %3039 = vmatpush1.bf16.msra.mxu0 %v2970
  %3040 = vmatprep.subr.bf16.mxu0 0
  %3041 = vmatpush1.bf16.msra.mxu0 %v2967
  %3042 = vmatprep.subr.bf16.mxu0 0
  %3043 = vmatpush1.bf16.msra.mxu0 %v2964
  %3044 = vmatprep.subr.bf16.mxu0 0
  %3045 = vmatpush1.bf16.msra.mxu0 %v2961
  %3046 = vmatprep.subr.bf16.mxu0 0
  %3047 = vmatpush1.bf16.msra.mxu0 %v2958
  %3048 = vmatprep.subr.bf16.mxu0 0
  %3049 = vmatpush1.bf16.msra.mxu0 %v2955
  %3050 = vmatprep.subr.bf16.mxu0 0
  %3051 = vmatpush1.bf16.msra.mxu0 %v2952
  %3052 = vmatprep.subr.bf16.mxu0 0
  %3053 = vmatpush1.bf16.msra.mxu0 %v2949
  %3054 = vmatprep.subr.bf16.mxu0 0
  %3055 = vmatpush2.bf16.msra.mxu0 0
  %3056 = vmatprep.subr.bf16.mxu0 0
  %3057 = vmatpush2.bf16.msra.mxu0 0
  %3058 = vmatprep.subr.bf16.mxu0 0
  %3059 = vmatpush2.bf16.msra.mxu0 0
  %3060 = vmatprep.subr.bf16.mxu0 0
  %3061 = vmatpush2.bf16.msra.mxu0 0
  %3062 = vmatprep.subr.bf16.mxu0 0
  %3063 = vmatpush2.bf16.msra.mxu0 0
  %3064 = vmatprep.subr.bf16.mxu0 0
  %3065 = vmatpush2.bf16.msra.mxu0 0
  %3066 = vmatprep.subr.bf16.mxu0 0
  %3067 = vmatpush2.bf16.msra.mxu0 0
  %3068 = vmatprep.subr.bf16.mxu0 0
  %3069 = vmatpush2.bf16.msra.mxu0 0
  %3070 = vmatprep.mubr.bf16.mxu0 0
  %3071 = vmatmul.mubr.bf16.gmra.mxu0 %v2834
  %v3072 = vpop.f32.mrf.mxu0
  %v3073 = vadd.f32 0.0, %v3072
  %v3074 = vpop.f32.mrf.mxu0
  %v3075 = vpop.f32.mrf.mxu0
  %v3076 = vadd.f32 0.0, %v3075
  %v3077 = vpop.f32.mrf.mxu0
  %3078 = vdwg.mxu0
  %v3079 = vadd.f32 %v2828, %v3030
  %v3080 = vadd.f32 %v2831, %v3034
  %v3081 = vxor.u32 %v3079, 2147483648
  %v3082 = vxor.u32 %v3080, 2147483648
  %v3083 = vmul.f32 %v3081, 1.442695
  %v3084 = vpow.pop %v3083
  %v3085 = vmul.f32 %v3082, 1.442695
  %v3086 = vpow.pop %v3085
  %v3087 = vadd.f32 %v3084, 1.0
  %v3088 = vadd.f32 %v3086, 1.0
  %v3089 = vrcp.pop %v3087
  %v3090 = vmul.f32 1.0, %v3089
  %v3091 = vrcp.pop %v3088
  %v3092 = vmul.f32 1.0, %v3091
  %v3093 = vadd.f32 %v2829, %v3032
  %v3094 = vadd.f32 %v2832, %v3036
  %v3095 = vxor.u32 %v3093, 2147483648
  %v3096 = vxor.u32 %v3094, 2147483648
  %v3097 = vmul.f32 %v3095, 1.442695
  %v3098 = vpow.pop %v3097
  %v3099 = vmul.f32 %v3096, 1.442695
  %v3100 = vpow.pop %v3099
  %v3101 = vadd.f32 %v3098, 1.0
  %v3102 = vadd.f32 %v3100, 1.0
  %v3103 = vrcp.pop %v3101
  %v3104 = vmul.f32 1.0, %v3103
  %v3105 = vrcp.pop %v3102
  %v3106 = vmul.f32 1.0, %v3105
  %v3107 = vld [vmem:[#allocation5] sm:$0x1]
  %v3109 = vlaneseq
  %v3110 = vshrl.u32 %v3109, 7
  %v3111 = vsub.s32 0, %v3110
  %v3112 = vrot.slane %v3107, %v3111
  %v3114 = vadd.f32 %v3073, %v3112
  %v3115 = vadd.f32 %v3076, %v3112
  %v3116 = vmul.f32 %v3090, %v3114
  %v3117 = vmul.f32 %v3092, %v3115
  %v3118 = vadd.f32 %v2830, %v3116
  %v3119 = vadd.f32 %v2833, %v3117
  %v3120 = vtanh.pop %v3118
  %v3121 = vtanh.pop %v3119
  %v3122 = vsub.f32 1.0, %v3104
  %v3123 = vsub.f32 1.0, %v3106
  %v3124 = vmul.f32 %v3122, %v3120
  %v3125 = vmul.f32 %v3123, %v3121
  %v3126 = vmul.f32 %v3104, %v2820
  %v3127 = vmul.f32 %v3106, %v2821
  %v3128 = vadd.f32 %v3124, %v3126
  %v3129 = vadd.f32 %v3125, %v3127
  %s3130 = scalar_lea.vmem [#allocation12], 96
  %3131 = vst [vmem:[%s3130] sm:$0xff] %v3128
  %3132 = vst [vmem:[%s3130 + $0x8] sm:$0xff] %v3129
  %s3133 = smul.u32 14, 3
  %s3134 = smul.addr %s3133, 8
  %s3135 = scalar_lea.vmem [#allocation11], %s3134
  %v3136 = vld [vmem:[%s3135] sm:$0xff]
  %v3137 = vld [vmem:[%s3135 + $0x8] sm:$0xff]
  %v3138 = vld [vmem:[%s3135 + $0x10] sm:$0xff]
  %v3139 = vld [vmem:[%s3135 + $0x18] sm:$0xff]
  %v3140 = vld [vmem:[%s3135 + $0x20] sm:$0xff]
  %v3141 = vld [vmem:[%s3135 + $0x28] sm:$0xff]
  %v3142 = vpack.c.bf16 %v3129, %v3128
  %v3143 = vld [vmem:[#allocation3] sm:$0xff]
  %v3144 = vld [vmem:[#allocation3 + $0x8] sm:$0xf]
  %v3145 = vld [vmem:[#allocation3 + $0xc] sm:$0xff]
  %v3146 = vld [vmem:[#allocation3 + $0x14] sm:$0xf]
  %v3147 = vld [vmem:[#allocation3 + $0x18] sm:$0xff]
  %v3148 = vld [vmem:[#allocation3 + $0x20] sm:$0xf]
  %v3149 = vld [vmem:[#allocation3 + $0x24] sm:$0xff]
  %v3150 = vld [vmem:[#allocation3 + $0x2c] sm:$0xf]
  %v3151 = vld [vmem:[#allocation3 + $0x30] sm:$0xff]
  %v3152 = vld [vmem:[#allocation3 + $0x38] sm:$0xf]
  %v3153 = vld [vmem:[#allocation3 + $0x3c] sm:$0xff]
  %v3154 = vld [vmem:[#allocation3 + $0x44] sm:$0xf]
  %v3155 = vld [vmem:[#allocation3 + $0x48] sm:$0xff]
  %v3156 = vld [vmem:[#allocation3 + $0x50] sm:$0xf]
  %v3157 = vld [vmem:[#allocation3 + $0x54] sm:$0xff]
  %v3158 = vld [vmem:[#allocation3 + $0x5c] sm:$0xf]
  %v3159 = vld [vmem:[#allocation3 + $0x60] sm:$0xff]
  %v3160 = vld [vmem:[#allocation3 + $0x68] sm:$0xf]
  %v3161 = vld [vmem:[#allocation3 + $0x6c] sm:$0xff]
  %v3162 = vld [vmem:[#allocation3 + $0x74] sm:$0xf]
  %v3163 = vld [vmem:[#allocation3 + $0x78] sm:$0xff]
  %v3164 = vld [vmem:[#allocation3 + $0x80] sm:$0xf]
  %v3165 = vld [vmem:[#allocation3 + $0x84] sm:$0xff]
  %v3166 = vld [vmem:[#allocation3 + $0x8c] sm:$0xf]
  %v3167 = vld [vmem:[#allocation3 + $0x90] sm:$0xff]
  %v3168 = vld [vmem:[#allocation3 + $0x98] sm:$0xf]
  %v3169 = vld [vmem:[#allocation3 + $0x9c] sm:$0xff]
  %v3170 = vld [vmem:[#allocation3 + $0xa4] sm:$0xf]
  %v3171 = vld [vmem:[#allocation3 + $0xa8] sm:$0xff]
  %v3172 = vld [vmem:[#allocation3 + $0xb0] sm:$0xf]
  %v3173 = vld [vmem:[#allocation3 + $0xb4] sm:$0xff]
  %v3174 = vld [vmem:[#allocation3 + $0xbc] sm:$0xf]
  %v3207 = vunpack.c.l.b16 %v3143
  %v3208 = vunpack.c.h.b16 %v3143
  %v3209 = vunpack.c.l.b16 %v3144
  %v3210 = vunpack.c.l.b16 %v3145
  %v3211 = vunpack.c.h.b16 %v3145
  %v3212 = vunpack.c.l.b16 %v3146
  %v3213 = vunpack.c.l.b16 %v3147
  %v3214 = vunpack.c.h.b16 %v3147
  %v3215 = vunpack.c.l.b16 %v3148
  %v3216 = vunpack.c.l.b16 %v3149
  %v3217 = vunpack.c.h.b16 %v3149
  %v3218 = vunpack.c.l.b16 %v3150
  %v3219 = vunpack.c.l.b16 %v3151
  %v3220 = vunpack.c.h.b16 %v3151
  %v3221 = vunpack.c.l.b16 %v3152
  %v3222 = vunpack.c.l.b16 %v3153
  %v3223 = vunpack.c.h.b16 %v3153
  %v3224 = vunpack.c.l.b16 %v3154
  %v3225 = vunpack.c.l.b16 %v3155
  %v3226 = vunpack.c.h.b16 %v3155
  %v3227 = vunpack.c.l.b16 %v3156
  %v3228 = vunpack.c.l.b16 %v3157
  %v3229 = vunpack.c.h.b16 %v3157
  %v3230 = vunpack.c.l.b16 %v3158
  %v3231 = vunpack.c.l.b16 %v3159
  %v3232 = vunpack.c.h.b16 %v3159
  %v3233 = vunpack.c.l.b16 %v3160
  %v3234 = vunpack.c.l.b16 %v3161
  %v3235 = vunpack.c.h.b16 %v3161
  %v3236 = vunpack.c.l.b16 %v3162
  %v3237 = vunpack.c.l.b16 %v3163
  %v3238 = vunpack.c.h.b16 %v3163
  %v3239 = vunpack.c.l.b16 %v3164
  %v3240 = vunpack.c.l.b16 %v3165
  %v3241 = vunpack.c.h.b16 %v3165
  %v3242 = vunpack.c.l.b16 %v3166
  %v3243 = vunpack.c.l.b16 %v3167
  %v3244 = vunpack.c.h.b16 %v3167
  %v3245 = vunpack.c.l.b16 %v3168
  %v3246 = vunpack.c.l.b16 %v3169
  %v3247 = vunpack.c.h.b16 %v3169
  %v3248 = vunpack.c.l.b16 %v3170
  %v3249 = vunpack.c.l.b16 %v3171
  %v3250 = vunpack.c.h.b16 %v3171
  %v3251 = vunpack.c.l.b16 %v3172
  %v3252 = vunpack.c.l.b16 %v3173
  %v3253 = vunpack.c.h.b16 %v3173
  %v3254 = vunpack.c.l.b16 %v3174
  %v3255 = vpack.c.b16 %v3210, %v3207
  %v3256 = vpack.c.b16 %v3211, %v3208
  %v3257 = vpack.c.b16 %v3212, %v3209
  %v3258 = vpack.c.b16 %v3216, %v3213
  %v3259 = vpack.c.b16 %v3217, %v3214
  %v3260 = vpack.c.b16 %v3218, %v3215
  %v3261 = vpack.c.b16 %v3222, %v3219
  %v3262 = vpack.c.b16 %v3223, %v3220
  %v3263 = vpack.c.b16 %v3224, %v3221
  %v3264 = vpack.c.b16 %v3228, %v3225
  %v3265 = vpack.c.b16 %v3229, %v3226
  %v3266 = vpack.c.b16 %v3230, %v3227
  %v3267 = vpack.c.b16 %v3234, %v3231
  %v3268 = vpack.c.b16 %v3235, %v3232
  %v3269 = vpack.c.b16 %v3236, %v3233
  %v3270 = vpack.c.b16 %v3240, %v3237
  %v3271 = vpack.c.b16 %v3241, %v3238
  %v3272 = vpack.c.b16 %v3242, %v3239
  %v3273 = vpack.c.b16 %v3246, %v3243
  %v3274 = vpack.c.b16 %v3247, %v3244
  %v3275 = vpack.c.b16 %v3248, %v3245
  %v3276 = vpack.c.b16 %v3252, %v3249
  %v3277 = vpack.c.b16 %v3253, %v3250
  %v3278 = vpack.c.b16 %v3254, %v3251
  %3303 = vmatprep.subr.bf16.mxu0 %v3277
  %3304 = vmatpush1.bf16.msra.mxu0 %v3276
  %3305 = vmatprep.subr.bf16.mxu0 %v3274
  %3306 = vmatpush1.bf16.msra.mxu0 %v3273
  %3307 = vmatprep.subr.bf16.mxu0 %v3271
  %3308 = vmatpush1.bf16.msra.mxu0 %v3270
  %3309 = vmatprep.subr.bf16.mxu0 %v3268
  %3310 = vmatpush1.bf16.msra.mxu0 %v3267
  %3311 = vmatprep.subr.bf16.mxu0 %v3265
  %3312 = vmatpush1.bf16.msra.mxu0 %v3264
  %3313 = vmatprep.subr.bf16.mxu0 %v3262
  %3314 = vmatpush1.bf16.msra.mxu0 %v3261
  %3315 = vmatprep.subr.bf16.mxu0 %v3259
  %3316 = vmatpush1.bf16.msra.mxu0 %v3258
  %3317 = vmatprep.subr.bf16.mxu0 %v3256
  %3318 = vmatpush1.bf16.msra.mxu0 %v3255
  %3319 = vmatprep.subr.bf16.mxu0 0
  %3320 = vmatpush2.bf16.msra.mxu0 0
  %3321 = vmatprep.subr.bf16.mxu0 0
  %3322 = vmatpush2.bf16.msra.mxu0 0
  %3323 = vmatprep.subr.bf16.mxu0 0
  %3324 = vmatpush2.bf16.msra.mxu0 0
  %3325 = vmatprep.subr.bf16.mxu0 0
  %3326 = vmatpush2.bf16.msra.mxu0 0
  %3327 = vmatprep.subr.bf16.mxu0 0
  %3328 = vmatpush2.bf16.msra.mxu0 0
  %3329 = vmatprep.subr.bf16.mxu0 0
  %3330 = vmatpush2.bf16.msra.mxu0 0
  %3331 = vmatprep.subr.bf16.mxu0 0
  %3332 = vmatpush2.bf16.msra.mxu0 0
  %3333 = vmatprep.subr.bf16.mxu0 0
  %3334 = vmatpush2.bf16.msra.mxu0 0
  %3335 = vmatprep.mubr.bf16.mxu0 0
  %3336 = vmatmul.mubr.bf16.gmra.mxu0 %v3142
  %v3337 = vpop.f32.mrf.mxu0
  %v3338 = vadd.f32 0.0, %v3337
  %v3339 = vpop.f32.mrf.mxu0
  %v3340 = vadd.f32 0.0, %v3339
  %v3341 = vpop.f32.mrf.mxu0
  %v3342 = vadd.f32 0.0, %v3341
  %v3343 = vpop.f32.mrf.mxu0
  %v3344 = vadd.f32 0.0, %v3343
  %3345 = vdwg.mxu0
  %3346 = vmatprep.subr.bf16.mxu0 0
  %3347 = vmatpush1.bf16.msra.mxu0 %v3278
  %3348 = vmatprep.subr.bf16.mxu0 0
  %3349 = vmatpush1.bf16.msra.mxu0 %v3275
  %3350 = vmatprep.subr.bf16.mxu0 0
  %3351 = vmatpush1.bf16.msra.mxu0 %v3272
  %3352 = vmatprep.subr.bf16.mxu0 0
  %3353 = vmatpush1.bf16.msra.mxu0 %v3269
  %3354 = vmatprep.subr.bf16.mxu0 0
  %3355 = vmatpush1.bf16.msra.mxu0 %v3266
  %3356 = vmatprep.subr.bf16.mxu0 0
  %3357 = vmatpush1.bf16.msra.mxu0 %v3263
  %3358 = vmatprep.subr.bf16.mxu0 0
  %3359 = vmatpush1.bf16.msra.mxu0 %v3260
  %3360 = vmatprep.subr.bf16.mxu0 0
  %3361 = vmatpush1.bf16.msra.mxu0 %v3257
  %3362 = vmatprep.subr.bf16.mxu0 0
  %3363 = vmatpush2.bf16.msra.mxu0 0
  %3364 = vmatprep.subr.bf16.mxu0 0
  %3365 = vmatpush2.bf16.msra.mxu0 0
  %3366 = vmatprep.subr.bf16.mxu0 0
  %3367 = vmatpush2.bf16.msra.mxu0 0
  %3368 = vmatprep.subr.bf16.mxu0 0
  %3369 = vmatpush2.bf16.msra.mxu0 0
  %3370 = vmatprep.subr.bf16.mxu0 0
  %3371 = vmatpush2.bf16.msra.mxu0 0
  %3372 = vmatprep.subr.bf16.mxu0 0
  %3373 = vmatpush2.bf16.msra.mxu0 0
  %3374 = vmatprep.subr.bf16.mxu0 0
  %3375 = vmatpush2.bf16.msra.mxu0 0
  %3376 = vmatprep.subr.bf16.mxu0 0
  %3377 = vmatpush2.bf16.msra.mxu0 0
  %3378 = vmatprep.mubr.bf16.mxu0 0
  %3379 = vmatmul.mubr.bf16.gmra.mxu0 %v3142
  %v3380 = vpop.f32.mrf.mxu0
  %v3381 = vadd.f32 0.0, %v3380
  %v3382 = vpop.f32.mrf.mxu0
  %v3383 = vpop.f32.mrf.mxu0
  %v3384 = vadd.f32 0.0, %v3383
  %v3385 = vpop.f32.mrf.mxu0
  %3386 = vdwg.mxu0
  %v3387 = vadd.f32 %v3136, %v3338
  %v3388 = vadd.f32 %v3139, %v3342
  %v3389 = vxor.u32 %v3387, 2147483648
  %v3390 = vxor.u32 %v3388, 2147483648
  %v3391 = vmul.f32 %v3389, 1.442695
  %v3392 = vpow.pop %v3391
  %v3393 = vmul.f32 %v3390, 1.442695
  %v3394 = vpow.pop %v3393
  %v3395 = vadd.f32 %v3392, 1.0
  %v3396 = vadd.f32 %v3394, 1.0
  %v3397 = vrcp.pop %v3395
  %v3398 = vmul.f32 1.0, %v3397
  %v3399 = vrcp.pop %v3396
  %v3400 = vmul.f32 1.0, %v3399
  %v3401 = vadd.f32 %v3137, %v3340
  %v3402 = vadd.f32 %v3140, %v3344
  %v3403 = vxor.u32 %v3401, 2147483648
  %v3404 = vxor.u32 %v3402, 2147483648
  %v3405 = vmul.f32 %v3403, 1.442695
  %v3406 = vpow.pop %v3405
  %v3407 = vmul.f32 %v3404, 1.442695
  %v3408 = vpow.pop %v3407
  %v3409 = vadd.f32 %v3406, 1.0
  %v3410 = vadd.f32 %v3408, 1.0
  %v3411 = vrcp.pop %v3409
  %v3412 = vmul.f32 1.0, %v3411
  %v3413 = vrcp.pop %v3410
  %v3414 = vmul.f32 1.0, %v3413
  %v3415 = vld [vmem:[#allocation5] sm:$0x1]
  %v3417 = vlaneseq
  %v3418 = vshrl.u32 %v3417, 7
  %v3419 = vsub.s32 0, %v3418
  %v3420 = vrot.slane %v3415, %v3419
  %v3422 = vadd.f32 %v3381, %v3420
  %v3423 = vadd.f32 %v3384, %v3420
  %v3424 = vmul.f32 %v3398, %v3422
  %v3425 = vmul.f32 %v3400, %v3423
  %v3426 = vadd.f32 %v3138, %v3424
  %v3427 = vadd.f32 %v3141, %v3425
  %v3428 = vtanh.pop %v3426
  %v3429 = vtanh.pop %v3427
  %v3430 = vsub.f32 1.0, %v3412
  %v3431 = vsub.f32 1.0, %v3414
  %v3432 = vmul.f32 %v3430, %v3428
  %v3433 = vmul.f32 %v3431, %v3429
  %v3434 = vmul.f32 %v3412, %v3128
  %v3435 = vmul.f32 %v3414, %v3129
  %v3436 = vadd.f32 %v3432, %v3434
  %v3437 = vadd.f32 %v3433, %v3435
  %s3438 = scalar_lea.vmem [#allocation12], 112
  %3439 = vst [vmem:[%s3438] sm:$0xff] %v3436
  %3440 = vst [vmem:[%s3438 + $0x8] sm:$0xff] %v3437
  %3441 = vst [vmem:[#allocation10] sm:$0xff] %v3436
  %3442 = vst [vmem:[#allocation10 + $0x8] sm:$0xff] %v3437
  %v3443 = vld [vmem:[#allocation12] sm:$0xff]
  %v3444 = vld [vmem:[#allocation12 + $0x8] sm:$0xff]
  %v3445 = vld [vmem:[#allocation12 + $0x10] sm:$0xff]
  %v3446 = vld [vmem:[#allocation12 + $0x18] sm:$0xff]
  %v3447 = vld [vmem:[#allocation12 + $0x20] sm:$0xff]
  %v3448 = vld [vmem:[#allocation12 + $0x28] sm:$0xff]
  %v3449 = vld [vmem:[#allocation12 + $0x30] sm:$0xff]
  %v3450 = vld [vmem:[#allocation12 + $0x38] sm:$0xff]
  %v3451 = vld [vmem:[#allocation12 + $0x40] sm:$0xff]
  %v3452 = vld [vmem:[#allocation12 + $0x48] sm:$0xff]
  %v3453 = vld [vmem:[#allocation12 + $0x50] sm:$0xff]
  %v3454 = vld [vmem:[#allocation12 + $0x58] sm:$0xff]
  %v3455 = vld [vmem:[#allocation12 + $0x60] sm:$0xff]
  %v3456 = vld [vmem:[#allocation12 + $0x68] sm:$0xff]
  %v3457 = vld [vmem:[#allocation12 + $0x70] sm:$0xff]
  %v3458 = vld [vmem:[#allocation12 + $0x78] sm:$0xff]
  %v3459 = vpack.c.bf16 %v3444, %v3443
  %v3460 = vpack.c.bf16 %v3446, %v3445
  %v3461 = vpack.c.bf16 %v3448, %v3447
  %v3462 = vpack.c.bf16 %v3450, %v3449
  %v3463 = vpack.c.bf16 %v3452, %v3451
  %v3464 = vpack.c.bf16 %v3454, %v3453
  %v3465 = vpack.c.bf16 %v3456, %v3455
  %v3466 = vpack.c.bf16 %v3458, %v3457
  %v3467 = vld [vmem:[#allocation6] sm:$0xff]
  %v3468 = vld [vmem:[#allocation6 + $0x8] sm:$0xf]
  %v3469 = vld [vmem:[#allocation6 + $0xc] sm:$0xff]
  %v3470 = vld [vmem:[#allocation6 + $0x14] sm:$0xf]
  %v3471 = vld [vmem:[#allocation6 + $0x18] sm:$0xff]
  %v3472 = vld [vmem:[#allocation6 + $0x20] sm:$0xf]
  %v3473 = vld [vmem:[#allocation6 + $0x24] sm:$0xff]
  %v3474 = vld [vmem:[#allocation6 + $0x2c] sm:$0xf]
  %v3475 = vld [vmem:[#allocation6 + $0x30] sm:$0xff]
  %v3476 = vld [vmem:[#allocation6 + $0x38] sm:$0xf]
  %v3477 = vld [vmem:[#allocation6 + $0x3c] sm:$0xff]
  %v3478 = vld [vmem:[#allocation6 + $0x44] sm:$0xf]
  %v3479 = vld [vmem:[#allocation6 + $0x48] sm:$0xff]
  %v3480 = vld [vmem:[#allocation6 + $0x50] sm:$0xf]
  %v3481 = vld [vmem:[#allocation6 + $0x54] sm:$0xff]
  %v3482 = vld [vmem:[#allocation6 + $0x5c] sm:$0xf]
  %v3483 = vld [vmem:[#allocation6 + $0x60] sm:$0xff]
  %v3484 = vld [vmem:[#allocation6 + $0x68] sm:$0xf]
  %v3485 = vld [vmem:[#allocation6 + $0x6c] sm:$0xff]
  %v3486 = vld [vmem:[#allocation6 + $0x74] sm:$0xf]
  %v3487 = vld [vmem:[#allocation6 + $0x78] sm:$0xff]
  %v3488 = vld [vmem:[#allocation6 + $0x80] sm:$0xf]
  %v3489 = vld [vmem:[#allocation6 + $0x84] sm:$0xff]
  %v3490 = vld [vmem:[#allocation6 + $0x8c] sm:$0xf]
  %v3491 = vld [vmem:[#allocation6 + $0x90] sm:$0xff]
  %v3492 = vld [vmem:[#allocation6 + $0x98] sm:$0xf]
  %v3493 = vld [vmem:[#allocation6 + $0x9c] sm:$0xff]
  %v3494 = vld [vmem:[#allocation6 + $0xa4] sm:$0xf]
  %v3495 = vld [vmem:[#allocation6 + $0xa8] sm:$0xff]
  %v3496 = vld [vmem:[#allocation6 + $0xb0] sm:$0xf]
  %v3497 = vld [vmem:[#allocation6 + $0xb4] sm:$0xff]
  %v3498 = vld [vmem:[#allocation6 + $0xbc] sm:$0xf]
  %v3499 = vld [vmem:[#allocation8] sm:$0x7]
  %v3501 = vlaneseq
  %v3502 = vshrl.u32 %v3501, 7
  %v3503 = vsub.s32 0, %v3502
  %v3504 = vrot.slane %v3499, %v3503
  %v3505 = vlaneseq
  %v3506 = vshrl.u32 %v3505, 7
  %v3507 = vsub.s32 1, %v3506
  %v3508 = vrot.slane %v3499, %v3507
  %v3509 = vlaneseq
  %v3510 = vshrl.u32 %v3509, 7
  %v3511 = vsub.s32 2, %v3510
  %v3512 = vrot.slane %v3499, %v3511
  %v3548 = vunpack.c.l.b16 %v3467
  %v3549 = vunpack.c.h.b16 %v3467
  %v3550 = vunpack.c.l.b16 %v3468
  %v3551 = vunpack.c.l.b16 %v3469
  %v3552 = vunpack.c.h.b16 %v3469
  %v3553 = vunpack.c.l.b16 %v3470
  %v3554 = vunpack.c.l.b16 %v3471
  %v3555 = vunpack.c.h.b16 %v3471
  %v3556 = vunpack.c.l.b16 %v3472
  %v3557 = vunpack.c.l.b16 %v3473
  %v3558 = vunpack.c.h.b16 %v3473
  %v3559 = vunpack.c.l.b16 %v3474
  %v3560 = vunpack.c.l.b16 %v3475
  %v3561 = vunpack.c.h.b16 %v3475
  %v3562 = vunpack.c.l.b16 %v3476
  %v3563 = vunpack.c.l.b16 %v3477
  %v3564 = vunpack.c.h.b16 %v3477
  %v3565 = vunpack.c.l.b16 %v3478
  %v3566 = vunpack.c.l.b16 %v3479
  %v3567 = vunpack.c.h.b16 %v3479
  %v3568 = vunpack.c.l.b16 %v3480
  %v3569 = vunpack.c.l.b16 %v3481
  %v3570 = vunpack.c.h.b16 %v3481
  %v3571 = vunpack.c.l.b16 %v3482
  %v3572 = vunpack.c.l.b16 %v3483
  %v3573 = vunpack.c.h.b16 %v3483
  %v3574 = vunpack.c.l.b16 %v3484
  %v3575 = vunpack.c.l.b16 %v3485
  %v3576 = vunpack.c.h.b16 %v3485
  %v3577 = vunpack.c.l.b16 %v3486
  %v3578 = vunpack.c.l.b16 %v3487
  %v3579 = vunpack.c.h.b16 %v3487
  %v3580 = vunpack.c.l.b16 %v3488
  %v3581 = vunpack.c.l.b16 %v3489
  %v3582 = vunpack.c.h.b16 %v3489
  %v3583 = vunpack.c.l.b16 %v3490
  %v3584 = vunpack.c.l.b16 %v3491
  %v3585 = vunpack.c.h.b16 %v3491
  %v3586 = vunpack.c.l.b16 %v3492
  %v3587 = vunpack.c.l.b16 %v3493
  %v3588 = vunpack.c.h.b16 %v3493
  %v3589 = vunpack.c.l.b16 %v3494
  %v3590 = vunpack.c.l.b16 %v3495
  %v3591 = vunpack.c.h.b16 %v3495
  %v3592 = vunpack.c.l.b16 %v3496
  %v3593 = vunpack.c.l.b16 %v3497
  %v3594 = vunpack.c.h.b16 %v3497
  %v3595 = vunpack.c.l.b16 %v3498
  %v3596 = vpack.c.b16 %v3551, %v3548
  %v3597 = vpack.c.b16 %v3552, %v3549
  %v3598 = vpack.c.b16 %v3553, %v3550
  %v3599 = vpack.c.b16 %v3557, %v3554
  %v3600 = vpack.c.b16 %v3558, %v3555
  %v3601 = vpack.c.b16 %v3559, %v3556
  %v3602 = vpack.c.b16 %v3563, %v3560
  %v3603 = vpack.c.b16 %v3564, %v3561
  %v3604 = vpack.c.b16 %v3565, %v3562
  %v3605 = vpack.c.b16 %v3569, %v3566
  %v3606 = vpack.c.b16 %v3570, %v3567
  %v3607 = vpack.c.b16 %v3571, %v3568
  %v3608 = vpack.c.b16 %v3575, %v3572
  %v3609 = vpack.c.b16 %v3576, %v3573
  %v3610 = vpack.c.b16 %v3577, %v3574
  %v3611 = vpack.c.b16 %v3581, %v3578
  %v3612 = vpack.c.b16 %v3582, %v3579
  %v3613 = vpack.c.b16 %v3583, %v3580
  %v3614 = vpack.c.b16 %v3587, %v3584
  %v3615 = vpack.c.b16 %v3588, %v3585
  %v3616 = vpack.c.b16 %v3589, %v3586
  %v3617 = vpack.c.b16 %v3593, %v3590
  %v3618 = vpack.c.b16 %v3594, %v3591
  %v3619 = vpack.c.b16 %v3595, %v3592
  %3644 = vmatprep.subr.bf16.mxu0 %v3618
  %3645 = vmatpush1.bf16.msra.mxu0 %v3617
  %3646 = vmatprep.subr.bf16.mxu0 %v3615
  %3647 = vmatpush1.bf16.msra.mxu0 %v3614
  %3648 = vmatprep.subr.bf16.mxu0 %v3612
  %3649 = vmatpush1.bf16.msra.mxu0 %v3611
  %3650 = vmatprep.subr.bf16.mxu0 %v3609
  %3651 = vmatpush1.bf16.msra.mxu0 %v3608
  %3652 = vmatprep.subr.bf16.mxu0 %v3606
  %3653 = vmatpush1.bf16.msra.mxu0 %v3605
  %3654 = vmatprep.subr.bf16.mxu0 %v3603
  %3655 = vmatpush1.bf16.msra.mxu0 %v3602
  %3656 = vmatprep.subr.bf16.mxu0 %v3600
  %3657 = vmatpush1.bf16.msra.mxu0 %v3599
  %3658 = vmatprep.subr.bf16.mxu0 %v3597
  %3659 = vmatpush1.bf16.msra.mxu0 %v3596
  %3660 = vmatprep.subr.bf16.mxu0 0
  %3661 = vmatpush2.bf16.msra.mxu0 0
  %3662 = vmatprep.subr.bf16.mxu0 0
  %3663 = vmatpush2.bf16.msra.mxu0 0
  %3664 = vmatprep.subr.bf16.mxu0 0
  %3665 = vmatpush2.bf16.msra.mxu0 0
  %3666 = vmatprep.subr.bf16.mxu0 0
  %3667 = vmatpush2.bf16.msra.mxu0 0
  %3668 = vmatprep.subr.bf16.mxu0 0
  %3669 = vmatpush2.bf16.msra.mxu0 0
  %3670 = vmatprep.subr.bf16.mxu0 0
  %3671 = vmatpush2.bf16.msra.mxu0 0
  %3672 = vmatprep.subr.bf16.mxu0 0
  %3673 = vmatpush2.bf16.msra.mxu0 0
  %3674 = vmatprep.subr.bf16.mxu0 0
  %3675 = vmatpush2.bf16.msra.mxu0 0
  %3676 = vmatprep.mubr.bf16.mxu0 0
  %3677 = vmatmul.mubr.bf16.gmra.mxu0 %v3459
  %v3678 = vpop.f32.mrf.mxu0
  %v3679 = vadd.f32 %v3504, %v3678
  %v3680 = vpop.f32.mrf.mxu0
  %v3681 = vadd.f32 %v3508, %v3680
  %v3682 = vpop.f32.mrf.mxu0
  %v3683 = vadd.f32 %v3504, %v3682
  %v3684 = vpop.f32.mrf.mxu0
  %v3685 = vadd.f32 %v3508, %v3684
  %3686 = vmatprep.mubr.bf16.mxu0 0
  %3687 = vmatmul.mubr.bf16.gmra.mxu0 %v3460
  %v3688 = vpop.f32.mrf.mxu0
  %v3689 = vadd.f32 %v3504, %v3688
  %v3690 = vpop.f32.mrf.mxu0
  %v3691 = vadd.f32 %v3508, %v3690
  %v3692 = vpop.f32.mrf.mxu0
  %v3693 = vadd.f32 %v3504, %v3692
  %v3694 = vpop.f32.mrf.mxu0
  %v3695 = vadd.f32 %v3508, %v3694
  %3696 = vmatprep.mubr.bf16.mxu0 0
  %3697 = vmatmul.mubr.bf16.gmra.mxu0 %v3461
  %v3698 = vpop.f32.mrf.mxu0
  %v3699 = vadd.f32 %v3504, %v3698
  %v3700 = vpop.f32.mrf.mxu0
  %v3701 = vadd.f32 %v3508, %v3700
  %v3702 = vpop.f32.mrf.mxu0
  %v3703 = vadd.f32 %v3504, %v3702
  %v3704 = vpop.f32.mrf.mxu0
  %v3705 = vadd.f32 %v3508, %v3704
  %3706 = vmatprep.mubr.bf16.mxu0 0
  %3707 = vmatmul.mubr.bf16.gmra.mxu0 %v3462
  %v3708 = vpop.f32.mrf.mxu0
  %v3709 = vadd.f32 %v3504, %v3708
  %v3710 = vpop.f32.mrf.mxu0
  %v3711 = vadd.f32 %v3508, %v3710
  %v3712 = vpop.f32.mrf.mxu0
  %v3713 = vadd.f32 %v3504, %v3712
  %v3714 = vpop.f32.mrf.mxu0
  %v3715 = vadd.f32 %v3508, %v3714
  %3716 = vmatprep.mubr.bf16.mxu0 0
  %3717 = vmatmul.mubr.bf16.gmra.mxu0 %v3463
  %v3718 = vpop.f32.mrf.mxu0
  %v3719 = vadd.f32 %v3504, %v3718
  %v3720 = vpop.f32.mrf.mxu0
  %v3721 = vadd.f32 %v3508, %v3720
  %v3722 = vpop.f32.mrf.mxu0
  %v3723 = vadd.f32 %v3504, %v3722
  %v3724 = vpop.f32.mrf.mxu0
  %v3725 = vadd.f32 %v3508, %v3724
  %3726 = vmatprep.mubr.bf16.mxu0 0
  %3727 = vmatmul.mubr.bf16.gmra.mxu0 %v3464
  %v3728 = vpop.f32.mrf.mxu0
  %v3729 = vadd.f32 %v3504, %v3728
  %v3730 = vpop.f32.mrf.mxu0
  %v3731 = vadd.f32 %v3508, %v3730
  %v3732 = vpop.f32.mrf.mxu0
  %v3733 = vadd.f32 %v3504, %v3732
  %v3734 = vpop.f32.mrf.mxu0
  %v3735 = vadd.f32 %v3508, %v3734
  %3736 = vmatprep.mubr.bf16.mxu0 0
  %3737 = vmatmul.mubr.bf16.gmra.mxu0 %v3465
  %v3738 = vpop.f32.mrf.mxu0
  %v3739 = vadd.f32 %v3504, %v3738
  %v3740 = vpop.f32.mrf.mxu0
  %v3741 = vadd.f32 %v3508, %v3740
  %v3742 = vpop.f32.mrf.mxu0
  %v3743 = vadd.f32 %v3504, %v3742
  %v3744 = vpop.f32.mrf.mxu0
  %v3745 = vadd.f32 %v3508, %v3744
  %3746 = vmatprep.mubr.bf16.mxu0 0
  %3747 = vmatmul.mubr.bf16.gmra.mxu0 %v3466
  %v3748 = vpop.f32.mrf.mxu0
  %v3749 = vadd.f32 %v3504, %v3748
  %v3750 = vpop.f32.mrf.mxu0
  %v3751 = vadd.f32 %v3508, %v3750
  %v3752 = vpop.f32.mrf.mxu0
  %v3753 = vadd.f32 %v3504, %v3752
  %v3754 = vpop.f32.mrf.mxu0
  %v3755 = vadd.f32 %v3508, %v3754
  %3756 = vdwg.mxu0
  %3757 = vmatprep.subr.bf16.mxu0 0
  %3758 = vmatpush1.bf16.msra.mxu0 %v3619
  %3759 = vmatprep.subr.bf16.mxu0 0
  %3760 = vmatpush1.bf16.msra.mxu0 %v3616
  %3761 = vmatprep.subr.bf16.mxu0 0
  %3762 = vmatpush1.bf16.msra.mxu0 %v3613
  %3763 = vmatprep.subr.bf16.mxu0 0
  %3764 = vmatpush1.bf16.msra.mxu0 %v3610
  %3765 = vmatprep.subr.bf16.mxu0 0
  %3766 = vmatpush1.bf16.msra.mxu0 %v3607
  %3767 = vmatprep.subr.bf16.mxu0 0
  %3768 = vmatpush1.bf16.msra.mxu0 %v3604
  %3769 = vmatprep.subr.bf16.mxu0 0
  %3770 = vmatpush1.bf16.msra.mxu0 %v3601
  %3771 = vmatprep.subr.bf16.mxu0 0
  %3772 = vmatpush1.bf16.msra.mxu0 %v3598
  %3773 = vmatprep.subr.bf16.mxu0 0
  %3774 = vmatpush2.bf16.msra.mxu0 0
  %3775 = vmatprep.subr.bf16.mxu0 0
  %3776 = vmatpush2.bf16.msra.mxu0 0
  %3777 = vmatprep.subr.bf16.mxu0 0
  %3778 = vmatpush2.bf16.msra.mxu0 0
  %3779 = vmatprep.subr.bf16.mxu0 0
  %3780 = vmatpush2.bf16.msra.mxu0 0
  %3781 = vmatprep.subr.bf16.mxu0 0
  %3782 = vmatpush2.bf16.msra.mxu0 0
  %3783 = vmatprep.subr.bf16.mxu0 0
  %3784 = vmatpush2.bf16.msra.mxu0 0
  %3785 = vmatprep.subr.bf16.mxu0 0
  %3786 = vmatpush2.bf16.msra.mxu0 0
  %3787 = vmatprep.subr.bf16.mxu0 0
  %3788 = vmatpush2.bf16.msra.mxu0 0
  %3789 = vmatprep.mubr.bf16.mxu0 0
  %3790 = vmatmul.mubr.bf16.gmra.mxu0 %v3459
  %v3791 = vpop.f32.mrf.mxu0
  %v3792 = vadd.f32 %v3512, %v3791
  %v3793 = vpop.f32.mrf.mxu0
  %v3794 = vpop.f32.mrf.mxu0
  %v3795 = vadd.f32 %v3512, %v3794
  %v3796 = vpop.f32.mrf.mxu0
  %3797 = vmatprep.mubr.bf16.mxu0 0
  %3798 = vmatmul.mubr.bf16.gmra.mxu0 %v3460
  %v3799 = vpop.f32.mrf.mxu0
  %v3800 = vadd.f32 %v3512, %v3799
  %v3801 = vpop.f32.mrf.mxu0
  %v3802 = vpop.f32.mrf.mxu0
  %v3803 = vadd.f32 %v3512, %v3802
  %v3804 = vpop.f32.mrf.mxu0
  %3805 = vmatprep.mubr.bf16.mxu0 0
  %3806 = vmatmul.mubr.bf16.gmra.mxu0 %v3461
  %v3807 = vpop.f32.mrf.mxu0
  %v3808 = vadd.f32 %v3512, %v3807
  %v3809 = vpop.f32.mrf.mxu0
  %v3810 = vpop.f32.mrf.mxu0
  %v3811 = vadd.f32 %v3512, %v3810
  %v3812 = vpop.f32.mrf.mxu0
  %3813 = vmatprep.mubr.bf16.mxu0 0
  %3814 = vmatmul.mubr.bf16.gmra.mxu0 %v3462
  %v3815 = vpop.f32.mrf.mxu0
  %v3816 = vadd.f32 %v3512, %v3815
  %v3817 = vpop.f32.mrf.mxu0
  %v3818 = vpop.f32.mrf.mxu0
  %v3819 = vadd.f32 %v3512, %v3818
  %v3820 = vpop.f32.mrf.mxu0
  %3821 = vmatprep.mubr.bf16.mxu0 0
  %3822 = vmatmul.mubr.bf16.gmra.mxu0 %v3463
  %v3823 = vpop.f32.mrf.mxu0
  %v3824 = vadd.f32 %v3512, %v3823
  %v3825 = vpop.f32.mrf.mxu0
  %v3826 = vpop.f32.mrf.mxu0
  %v3827 = vadd.f32 %v3512, %v3826
  %v3828 = vpop.f32.mrf.mxu0
  %3829 = vmatprep.mubr.bf16.mxu0 0
  %3830 = vmatmul.mubr.bf16.gmra.mxu0 %v3464
  %v3831 = vpop.f32.mrf.mxu0
  %v3832 = vadd.f32 %v3512, %v3831
  %v3833 = vpop.f32.mrf.mxu0
  %v3834 = vpop.f32.mrf.mxu0
  %v3835 = vadd.f32 %v3512, %v3834
  %v3836 = vpop.f32.mrf.mxu0
  %3837 = vmatprep.mubr.bf16.mxu0 0
  %3838 = vmatmul.mubr.bf16.gmra.mxu0 %v3465
  %v3839 = vpop.f32.mrf.mxu0
  %v3840 = vadd.f32 %v3512, %v3839
  %v3841 = vpop.f32.mrf.mxu0
  %v3842 = vpop.f32.mrf.mxu0
  %v3843 = vadd.f32 %v3512, %v3842
  %v3844 = vpop.f32.mrf.mxu0
  %3845 = vmatprep.mubr.bf16.mxu0 0
  %3846 = vmatmul.mubr.bf16.gmra.mxu0 %v3466
  %v3847 = vpop.f32.mrf.mxu0
  %v3848 = vadd.f32 %v3512, %v3847
  %v3849 = vpop.f32.mrf.mxu0
  %v3850 = vpop.f32.mrf.mxu0
  %v3851 = vadd.f32 %v3512, %v3850
  %v3852 = vpop.f32.mrf.mxu0
  %3853 = vdwg.mxu0
  %3854 = vst [vmem:[#allocation11] sm:$0xff] %v3679
  %3855 = vst [vmem:[#allocation11 + $0x8] sm:$0xff] %v3681
  %3856 = vst [vmem:[#allocation11 + $0x10] sm:$0xff] %v3792
  %3857 = vst [vmem:[#allocation11 + $0x18] sm:$0xff] %v3683
  %3858 = vst [vmem:[#allocation11 + $0x20] sm:$0xff] %v3685
  %3859 = vst [vmem:[#allocation11 + $0x28] sm:$0xff] %v3795
  %3860 = vst [vmem:[#allocation11 + $0x30] sm:$0xff] %v3689
  %3861 = vst [vmem:[#allocation11 + $0x38] sm:$0xff] %v3691
  %3862 = vst [vmem:[#allocation11 + $0x40] sm:$0xff] %v3800
  %3863 = vst [vmem:[#allocation11 + $0x48] sm:$0xff] %v3693
  %3864 = vst [vmem:[#allocation11 + $0x50] sm:$0xff] %v3695
  %3865 = vst [vmem:[#allocation11 + $0x58] sm:$0xff] %v3803
  %3866 = vst [vmem:[#allocation11 + $0x60] sm:$0xff] %v3699
  %3867 = vst [vmem:[#allocation11 + $0x68] sm:$0xff] %v3701
  %3868 = vst [vmem:[#allocation11 + $0x70] sm:$0xff] %v3808
  %3869 = vst [vmem:[#allocation11 + $0x78] sm:$0xff] %v3703
  %3870 = vst [vmem:[#allocation11 + $0x80] sm:$0xff] %v3705
  %3871 = vst [vmem:[#allocation11 + $0x88] sm:$0xff] %v3811
  %3872 = vst [vmem:[#allocation11 + $0x90] sm:$0xff] %v3709
  %3873 = vst [vmem:[#allocation11 + $0x98] sm:$0xff] %v3711
  %3874 = vst [vmem:[#allocation11 + $0xa0] sm:$0xff] %v3816
  %3875 = vst [vmem:[#allocation11 + $0xa8] sm:$0xff] %v3713
  %3876 = vst [vmem:[#allocation11 + $0xb0] sm:$0xff] %v3715
  %3877 = vst [vmem:[#allocation11 + $0xb8] sm:$0xff] %v3819
  %3878 = vst [vmem:[#allocation11 + $0xc0] sm:$0xff] %v3719
  %3879 = vst [vmem:[#allocation11 + $0xc8] sm:$0xff] %v3721
  %3880 = vst [vmem:[#allocation11 + $0xd0] sm:$0xff] %v3824
  %3881 = vst [vmem:[#allocation11 + $0xd8] sm:$0xff] %v3723
  %3882 = vst [vmem:[#allocation11 + $0xe0] sm:$0xff] %v3725
  %3883 = vst [vmem:[#allocation11 + $0xe8] sm:$0xff] %v3827
  %3884 = vst [vmem:[#allocation11 + $0xf0] sm:$0xff] %v3729
  %3885 = vst [vmem:[#allocation11 + $0xf8] sm:$0xff] %v3731
  %3886 = vst [vmem:[#allocation11 + $0x100] sm:$0xff] %v3832
  %3887 = vst [vmem:[#allocation11 + $0x108] sm:$0xff] %v3733
  %3888 = vst [vmem:[#allocation11 + $0x110] sm:$0xff] %v3735
  %3889 = vst [vmem:[#allocation11 + $0x118] sm:$0xff] %v3835
  %3890 = vst [vmem:[#allocation11 + $0x120] sm:$0xff] %v3739
  %3891 = vst [vmem:[#allocation11 + $0x128] sm:$0xff] %v3741
  %3892 = vst [vmem:[#allocation11 + $0x130] sm:$0xff] %v3840
  %3893 = vst [vmem:[#allocation11 + $0x138] sm:$0xff] %v3743
  %3894 = vst [vmem:[#allocation11 + $0x140] sm:$0xff] %v3745
  %3895 = vst [vmem:[#allocation11 + $0x148] sm:$0xff] %v3843
  %3896 = vst [vmem:[#allocation11 + $0x150] sm:$0xff] %v3749
  %3897 = vst [vmem:[#allocation11 + $0x158] sm:$0xff] %v3751
  %3898 = vst [vmem:[#allocation11 + $0x160] sm:$0xff] %v3848
  %3899 = vst [vmem:[#allocation11 + $0x168] sm:$0xff] %v3753
  %3900 = vst [vmem:[#allocation11 + $0x170] sm:$0xff] %v3755
  %3901 = vst [vmem:[#allocation11 + $0x178] sm:$0xff] %v3851
  %s3902 = scalar_lea.vmem [#allocation10], 16
  %v3903 = vld [vmem:[%s3902] sm:$0xff]
  %v3904 = vld [vmem:[%s3902 + $0x8] sm:$0xff]
  %v3905 = vld [vmem:[%s980] sm:$0xff]
  %v3906 = vld [vmem:[%s980 + $0x8] sm:$0xff]
  %v3907 = vld [vmem:[%s980 + $0x10] sm:$0xff]
  %v3908 = vld [vmem:[%s980 + $0x18] sm:$0xff]
  %v3909 = vld [vmem:[%s980 + $0x20] sm:$0xff]
  %v3910 = vld [vmem:[%s980 + $0x28] sm:$0xff]
  %v3911 = vpack.c.bf16 %v3904, %v3903
  %v3912 = vld [vmem:[#allocation7] sm:$0xff]
  %v3913 = vld [vmem:[#allocation7 + $0x8] sm:$0xf]
  %v3914 = vld [vmem:[#allocation7 + $0xc] sm:$0xff]
  %v3915 = vld [vmem:[#allocation7 + $0x14] sm:$0xf]
  %v3916 = vld [vmem:[#allocation7 + $0x18] sm:$0xff]
  %v3917 = vld [vmem:[#allocation7 + $0x20] sm:$0xf]
  %v3918 = vld [vmem:[#allocation7 + $0x24] sm:$0xff]
  %v3919 = vld [vmem:[#allocation7 + $0x2c] sm:$0xf]
  %v3920 = vld [vmem:[#allocation7 + $0x30] sm:$0xff]
  %v3921 = vld [vmem:[#allocation7 + $0x38] sm:$0xf]
  %v3922 = vld [vmem:[#allocation7 + $0x3c] sm:$0xff]
  %v3923 = vld [vmem:[#allocation7 + $0x44] sm:$0xf]
  %v3924 = vld [vmem:[#allocation7 + $0x48] sm:$0xff]
  %v3925 = vld [vmem:[#allocation7 + $0x50] sm:$0xf]
  %v3926 = vld [vmem:[#allocation7 + $0x54] sm:$0xff]
  %v3927 = vld [vmem:[#allocation7 + $0x5c] sm:$0xf]
  %v3928 = vld [vmem:[#allocation7 + $0x60] sm:$0xff]
  %v3929 = vld [vmem:[#allocation7 + $0x68] sm:$0xf]
  %v3930 = vld [vmem:[#allocation7 + $0x6c] sm:$0xff]
  %v3931 = vld [vmem:[#allocation7 + $0x74] sm:$0xf]
  %v3932 = vld [vmem:[#allocation7 + $0x78] sm:$0xff]
  %v3933 = vld [vmem:[#allocation7 + $0x80] sm:$0xf]
  %v3934 = vld [vmem:[#allocation7 + $0x84] sm:$0xff]
  %v3935 = vld [vmem:[#allocation7 + $0x8c] sm:$0xf]
  %v3936 = vld [vmem:[#allocation7 + $0x90] sm:$0xff]
  %v3937 = vld [vmem:[#allocation7 + $0x98] sm:$0xf]
  %v3938 = vld [vmem:[#allocation7 + $0x9c] sm:$0xff]
  %v3939 = vld [vmem:[#allocation7 + $0xa4] sm:$0xf]
  %v3940 = vld [vmem:[#allocation7 + $0xa8] sm:$0xff]
  %v3941 = vld [vmem:[#allocation7 + $0xb0] sm:$0xf]
  %v3942 = vld [vmem:[#allocation7 + $0xb4] sm:$0xff]
  %v3943 = vld [vmem:[#allocation7 + $0xbc] sm:$0xf]
  %v3976 = vunpack.c.l.b16 %v3912
  %v3977 = vunpack.c.h.b16 %v3912
  %v3978 = vunpack.c.l.b16 %v3913
  %v3979 = vunpack.c.l.b16 %v3914
  %v3980 = vunpack.c.h.b16 %v3914
  %v3981 = vunpack.c.l.b16 %v3915
  %v3982 = vunpack.c.l.b16 %v3916
  %v3983 = vunpack.c.h.b16 %v3916
  %v3984 = vunpack.c.l.b16 %v3917
  %v3985 = vunpack.c.l.b16 %v3918
  %v3986 = vunpack.c.h.b16 %v3918
  %v3987 = vunpack.c.l.b16 %v3919
  %v3988 = vunpack.c.l.b16 %v3920
  %v3989 = vunpack.c.h.b16 %v3920
  %v3990 = vunpack.c.l.b16 %v3921
  %v3991 = vunpack.c.l.b16 %v3922
  %v3992 = vunpack.c.h.b16 %v3922
  %v3993 = vunpack.c.l.b16 %v3923
  %v3994 = vunpack.c.l.b16 %v3924
  %v3995 = vunpack.c.h.b16 %v3924
  %v3996 = vunpack.c.l.b16 %v3925
  %v3997 = vunpack.c.l.b16 %v3926
  %v3998 = vunpack.c.h.b16 %v3926
  %v3999 = vunpack.c.l.b16 %v3927
  %v4000 = vunpack.c.l.b16 %v3928
  %v4001 = vunpack.c.h.b16 %v3928
  %v4002 = vunpack.c.l.b16 %v3929
  %v4003 = vunpack.c.l.b16 %v3930
  %v4004 = vunpack.c.h.b16 %v3930
  %v4005 = vunpack.c.l.b16 %v3931
  %v4006 = vunpack.c.l.b16 %v3932
  %v4007 = vunpack.c.h.b16 %v3932
  %v4008 = vunpack.c.l.b16 %v3933
  %v4009 = vunpack.c.l.b16 %v3934
  %v4010 = vunpack.c.h.b16 %v3934
  %v4011 = vunpack.c.l.b16 %v3935
  %v4012 = vunpack.c.l.b16 %v3936
  %v4013 = vunpack.c.h.b16 %v3936
  %v4014 = vunpack.c.l.b16 %v3937
  %v4015 = vunpack.c.l.b16 %v3938
  %v4016 = vunpack.c.h.b16 %v3938
  %v4017 = vunpack.c.l.b16 %v3939
  %v4018 = vunpack.c.l.b16 %v3940
  %v4019 = vunpack.c.h.b16 %v3940
  %v4020 = vunpack.c.l.b16 %v3941
  %v4021 = vunpack.c.l.b16 %v3942
  %v4022 = vunpack.c.h.b16 %v3942
  %v4023 = vunpack.c.l.b16 %v3943
  %v4024 = vpack.c.b16 %v3979, %v3976
  %v4025 = vpack.c.b16 %v3980, %v3977
  %v4026 = vpack.c.b16 %v3981, %v3978
  %v4027 = vpack.c.b16 %v3985, %v3982
  %v4028 = vpack.c.b16 %v3986, %v3983
  %v4029 = vpack.c.b16 %v3987, %v3984
  %v4030 = vpack.c.b16 %v3991, %v3988
  %v4031 = vpack.c.b16 %v3992, %v3989
  %v4032 = vpack.c.b16 %v3993, %v3990
  %v4033 = vpack.c.b16 %v3997, %v3994
  %v4034 = vpack.c.b16 %v3998, %v3995
  %v4035 = vpack.c.b16 %v3999, %v3996
  %v4036 = vpack.c.b16 %v4003, %v4000
  %v4037 = vpack.c.b16 %v4004, %v4001
  %v4038 = vpack.c.b16 %v4005, %v4002
  %v4039 = vpack.c.b16 %v4009, %v4006
  %v4040 = vpack.c.b16 %v4010, %v4007
  %v4041 = vpack.c.b16 %v4011, %v4008
  %v4042 = vpack.c.b16 %v4015, %v4012
  %v4043 = vpack.c.b16 %v4016, %v4013
  %v4044 = vpack.c.b16 %v4017, %v4014
  %v4045 = vpack.c.b16 %v4021, %v4018
  %v4046 = vpack.c.b16 %v4022, %v4019
  %v4047 = vpack.c.b16 %v4023, %v4020
  %4072 = vmatprep.subr.bf16.mxu0 %v4046
  %4073 = vmatpush1.bf16.msra.mxu0 %v4045
  %4074 = vmatprep.subr.bf16.mxu0 %v4043
  %4075 = vmatpush1.bf16.msra.mxu0 %v4042
  %4076 = vmatprep.subr.bf16.mxu0 %v4040
  %4077 = vmatpush1.bf16.msra.mxu0 %v4039
  %4078 = vmatprep.subr.bf16.mxu0 %v4037
  %4079 = vmatpush1.bf16.msra.mxu0 %v4036
  %4080 = vmatprep.subr.bf16.mxu0 %v4034
  %4081 = vmatpush1.bf16.msra.mxu0 %v4033
  %4082 = vmatprep.subr.bf16.mxu0 %v4031
  %4083 = vmatpush1.bf16.msra.mxu0 %v4030
  %4084 = vmatprep.subr.bf16.mxu0 %v4028
  %4085 = vmatpush1.bf16.msra.mxu0 %v4027
  %4086 = vmatprep.subr.bf16.mxu0 %v4025
  %4087 = vmatpush1.bf16.msra.mxu0 %v4024
  %4088 = vmatprep.subr.bf16.mxu0 0
  %4089 = vmatpush2.bf16.msra.mxu0 0
  %4090 = vmatprep.subr.bf16.mxu0 0
  %4091 = vmatpush2.bf16.msra.mxu0 0
  %4092 = vmatprep.subr.bf16.mxu0 0
  %4093 = vmatpush2.bf16.msra.mxu0 0
  %4094 = vmatprep.subr.bf16.mxu0 0
  %4095 = vmatpush2.bf16.msra.mxu0 0
  %4096 = vmatprep.subr.bf16.mxu0 0
  %4097 = vmatpush2.bf16.msra.mxu0 0
  %4098 = vmatprep.subr.bf16.mxu0 0
  %4099 = vmatpush2.bf16.msra.mxu0 0
  %4100 = vmatprep.subr.bf16.mxu0 0
  %4101 = vmatpush2.bf16.msra.mxu0 0
  %4102 = vmatprep.subr.bf16.mxu0 0
  %4103 = vmatpush2.bf16.msra.mxu0 0
  %4104 = vmatprep.mubr.bf16.mxu0 0
  %4105 = vmatmul.mubr.bf16.gmra.mxu0 %v3911
  %v4106 = vpop.f32.mrf.mxu0
  %v4107 = vadd.f32 0.0, %v4106
  %v4108 = vpop.f32.mrf.mxu0
  %v4109 = vadd.f32 0.0, %v4108
  %v4110 = vpop.f32.mrf.mxu0
  %v4111 = vadd.f32 0.0, %v4110
  %v4112 = vpop.f32.mrf.mxu0
  %v4113 = vadd.f32 0.0, %v4112
  %4114 = vdwg.mxu0
  %4115 = vmatprep.subr.bf16.mxu0 0
  %4116 = vmatpush1.bf16.msra.mxu0 %v4047
  %4117 = vmatprep.subr.bf16.mxu0 0
  %4118 = vmatpush1.bf16.msra.mxu0 %v4044
  %4119 = vmatprep.subr.bf16.mxu0 0
  %4120 = vmatpush1.bf16.msra.mxu0 %v4041
  %4121 = vmatprep.subr.bf16.mxu0 0
  %4122 = vmatpush1.bf16.msra.mxu0 %v4038
  %4123 = vmatprep.subr.bf16.mxu0 0
  %4124 = vmatpush1.bf16.msra.mxu0 %v4035
  %4125 = vmatprep.subr.bf16.mxu0 0
  %4126 = vmatpush1.bf16.msra.mxu0 %v4032
  %4127 = vmatprep.subr.bf16.mxu0 0
  %4128 = vmatpush1.bf16.msra.mxu0 %v4029
  %4129 = vmatprep.subr.bf16.mxu0 0
  %4130 = vmatpush1.bf16.msra.mxu0 %v4026
  %4131 = vmatprep.subr.bf16.mxu0 0
  %4132 = vmatpush2.bf16.msra.mxu0 0
  %4133 = vmatprep.subr.bf16.mxu0 0
  %4134 = vmatpush2.bf16.msra.mxu0 0
  %4135 = vmatprep.subr.bf16.mxu0 0
  %4136 = vmatpush2.bf16.msra.mxu0 0
  %4137 = vmatprep.subr.bf16.mxu0 0
  %4138 = vmatpush2.bf16.msra.mxu0 0
  %4139 = vmatprep.subr.bf16.mxu0 0
  %4140 = vmatpush2.bf16.msra.mxu0 0
  %4141 = vmatprep.subr.bf16.mxu0 0
  %4142 = vmatpush2.bf16.msra.mxu0 0
  %4143 = vmatprep.subr.bf16.mxu0 0
  %4144 = vmatpush2.bf16.msra.mxu0 0
  %4145 = vmatprep.subr.bf16.mxu0 0
  %4146 = vmatpush2.bf16.msra.mxu0 0
  %4147 = vmatprep.mubr.bf16.mxu0 0
  %4148 = vmatmul.mubr.bf16.gmra.mxu0 %v3911
  %v4149 = vpop.f32.mrf.mxu0
  %v4150 = vadd.f32 0.0, %v4149
  %v4151 = vpop.f32.mrf.mxu0
  %v4152 = vpop.f32.mrf.mxu0
  %v4153 = vadd.f32 0.0, %v4152
  %v4154 = vpop.f32.mrf.mxu0
  %4155 = vdwg.mxu0
  %v4156 = vadd.f32 %v3905, %v4107
  %v4157 = vadd.f32 %v3908, %v4111
  %v4158 = vxor.u32 %v4156, 2147483648
  %v4159 = vxor.u32 %v4157, 2147483648
  %v4160 = vmul.f32 %v4158, 1.442695
  %v4161 = vpow.pop %v4160
  %v4162 = vmul.f32 %v4159, 1.442695
  %v4163 = vpow.pop %v4162
  %v4164 = vadd.f32 %v4161, 1.0
  %v4165 = vadd.f32 %v4163, 1.0
  %v4166 = vrcp.pop %v4164
  %v4167 = vmul.f32 1.0, %v4166
  %v4168 = vrcp.pop %v4165
  %v4169 = vmul.f32 1.0, %v4168
  %v4170 = vadd.f32 %v3906, %v4109
  %v4171 = vadd.f32 %v3909, %v4113
  %v4172 = vxor.u32 %v4170, 2147483648
  %v4173 = vxor.u32 %v4171, 2147483648
  %v4174 = vmul.f32 %v4172, 1.442695
  %v4175 = vpow.pop %v4174
  %v4176 = vmul.f32 %v4173, 1.442695
  %v4177 = vpow.pop %v4176
  %v4178 = vadd.f32 %v4175, 1.0
  %v4179 = vadd.f32 %v4177, 1.0
  %v4180 = vrcp.pop %v4178
  %v4181 = vmul.f32 1.0, %v4180
  %v4182 = vrcp.pop %v4179
  %v4183 = vmul.f32 1.0, %v4182
  %v4184 = vld [vmem:[#allocation9] sm:$0x1]
  %v4186 = vlaneseq
  %v4187 = vshrl.u32 %v4186, 7
  %v4188 = vsub.s32 0, %v4187
  %v4189 = vrot.slane %v4184, %v4188
  %v4191 = vadd.f32 %v4150, %v4189
  %v4192 = vadd.f32 %v4153, %v4189
  %v4193 = vmul.f32 %v4167, %v4191
  %v4194 = vmul.f32 %v4169, %v4192
  %v4195 = vadd.f32 %v3907, %v4193
  %v4196 = vadd.f32 %v3910, %v4194
  %v4197 = vtanh.pop %v4195
  %v4198 = vtanh.pop %v4196
  %v4199 = vsub.f32 1.0, %v4181
  %v4200 = vsub.f32 1.0, %v4183
  %v4201 = vmul.f32 %v4199, %v4197
  %v4202 = vmul.f32 %v4200, %v4198
  %v4203 = vmul.f32 %v4181, %v3903
  %v4204 = vmul.f32 %v4183, %v3904
  %v4205 = vadd.f32 %v4201, %v4203
  %v4206 = vadd.f32 %v4202, %v4204
  %v4207 = vld [vmem:[%s1287] sm:$0xff]
  %v4208 = vld [vmem:[%s1287 + $0x8] sm:$0xff]
  %v4209 = vld [vmem:[%s1287 + $0x10] sm:$0xff]
  %v4210 = vld [vmem:[%s1287 + $0x18] sm:$0xff]
  %v4211 = vld [vmem:[%s1287 + $0x20] sm:$0xff]
  %v4212 = vld [vmem:[%s1287 + $0x28] sm:$0xff]
  %v4213 = vpack.c.bf16 %v4206, %v4205
  %4214 = vmatprep.subr.bf16.mxu0 %v4046
  %4215 = vmatpush1.bf16.msra.mxu0 %v4045
  %4216 = vmatprep.subr.bf16.mxu0 %v4043
  %4217 = vmatpush1.bf16.msra.mxu0 %v4042
  %4218 = vmatprep.subr.bf16.mxu0 %v4040
  %4219 = vmatpush1.bf16.msra.mxu0 %v4039
  %4220 = vmatprep.subr.bf16.mxu0 %v4037
  %4221 = vmatpush1.bf16.msra.mxu0 %v4036
  %4222 = vmatprep.subr.bf16.mxu0 %v4034
  %4223 = vmatpush1.bf16.msra.mxu0 %v4033
  %4224 = vmatprep.subr.bf16.mxu0 %v4031
  %4225 = vmatpush1.bf16.msra.mxu0 %v4030
  %4226 = vmatprep.subr.bf16.mxu0 %v4028
  %4227 = vmatpush1.bf16.msra.mxu0 %v4027
  %4228 = vmatprep.subr.bf16.mxu0 %v4025
  %4229 = vmatpush1.bf16.msra.mxu0 %v4024
  %4230 = vmatprep.subr.bf16.mxu0 0
  %4231 = vmatpush2.bf16.msra.mxu0 0
  %4232 = vmatprep.subr.bf16.mxu0 0
  %4233 = vmatpush2.bf16.msra.mxu0 0
  %4234 = vmatprep.subr.bf16.mxu0 0
  %4235 = vmatpush2.bf16.msra.mxu0 0
  %4236 = vmatprep.subr.bf16.mxu0 0
  %4237 = vmatpush2.bf16.msra.mxu0 0
  %4238 = vmatprep.subr.bf16.mxu0 0
  %4239 = vmatpush2.bf16.msra.mxu0 0
  %4240 = vmatprep.subr.bf16.mxu0 0
  %4241 = vmatpush2.bf16.msra.mxu0 0
  %4242 = vmatprep.subr.bf16.mxu0 0
  %4243 = vmatpush2.bf16.msra.mxu0 0
  %4244 = vmatprep.subr.bf16.mxu0 0
  %4245 = vmatpush2.bf16.msra.mxu0 0
  %4246 = vmatprep.mubr.bf16.mxu0 0
  %4247 = vmatmul.mubr.bf16.gmra.mxu0 %v4213
  %v4248 = vpop.f32.mrf.mxu0
  %v4249 = vadd.f32 0.0, %v4248
  %v4250 = vpop.f32.mrf.mxu0
  %v4251 = vadd.f32 0.0, %v4250
  %v4252 = vpop.f32.mrf.mxu0
  %v4253 = vadd.f32 0.0, %v4252
  %v4254 = vpop.f32.mrf.mxu0
  %v4255 = vadd.f32 0.0, %v4254
  %4256 = vdwg.mxu0
  %4257 = vmatprep.subr.bf16.mxu0 0
  %4258 = vmatpush1.bf16.msra.mxu0 %v4047
  %4259 = vmatprep.subr.bf16.mxu0 0
  %4260 = vmatpush1.bf16.msra.mxu0 %v4044
  %4261 = vmatprep.subr.bf16.mxu0 0
  %4262 = vmatpush1.bf16.msra.mxu0 %v4041
  %4263 = vmatprep.subr.bf16.mxu0 0
  %4264 = vmatpush1.bf16.msra.mxu0 %v4038
  %4265 = vmatprep.subr.bf16.mxu0 0
  %4266 = vmatpush1.bf16.msra.mxu0 %v4035
  %4267 = vmatprep.subr.bf16.mxu0 0
  %4268 = vmatpush1.bf16.msra.mxu0 %v4032
  %4269 = vmatprep.subr.bf16.mxu0 0
  %4270 = vmatpush1.bf16.msra.mxu0 %v4029
  %4271 = vmatprep.subr.bf16.mxu0 0
  %4272 = vmatpush1.bf16.msra.mxu0 %v4026
  %4273 = vmatprep.subr.bf16.mxu0 0
  %4274 = vmatpush2.bf16.msra.mxu0 0
  %4275 = vmatprep.subr.bf16.mxu0 0
  %4276 = vmatpush2.bf16.msra.mxu0 0
  %4277 = vmatprep.subr.bf16.mxu0 0
  %4278 = vmatpush2.bf16.msra.mxu0 0
  %4279 = vmatprep.subr.bf16.mxu0 0
  %4280 = vmatpush2.bf16.msra.mxu0 0
  %4281 = vmatprep.subr.bf16.mxu0 0
  %4282 = vmatpush2.bf16.msra.mxu0 0
  %4283 = vmatprep.subr.bf16.mxu0 0
  %4284 = vmatpush2.bf16.msra.mxu0 0
  %4285 = vmatprep.subr.bf16.mxu0 0
  %4286 = vmatpush2.bf16.msra.mxu0 0
  %4287 = vmatprep.subr.bf16.mxu0 0
  %4288 = vmatpush2.bf16.msra.mxu0 0
  %4289 = vmatprep.mubr.bf16.mxu0 0
  %4290 = vmatmul.mubr.bf16.gmra.mxu0 %v4213
  %v4291 = vpop.f32.mrf.mxu0
  %v4292 = vadd.f32 0.0, %v4291
  %v4293 = vpop.f32.mrf.mxu0
  %v4294 = vpop.f32.mrf.mxu0
  %v4295 = vadd.f32 0.0, %v4294
  %v4296 = vpop.f32.mrf.mxu0
  %4297 = vdwg.mxu0
  %v4298 = vadd.f32 %v4207, %v4249
  %v4299 = vadd.f32 %v4210, %v4253
  %v4300 = vxor.u32 %v4298, 2147483648
  %v4301 = vxor.u32 %v4299, 2147483648
  %v4302 = vmul.f32 %v4300, 1.442695
  %v4303 = vpow.pop %v4302
  %v4304 = vmul.f32 %v4301, 1.442695
  %v4305 = vpow.pop %v4304
  %v4306 = vadd.f32 %v4303, 1.0
  %v4307 = vadd.f32 %v4305, 1.0
  %v4308 = vrcp.pop %v4306
  %v4309 = vmul.f32 1.0, %v4308
  %v4310 = vrcp.pop %v4307
  %v4311 = vmul.f32 1.0, %v4310
  %v4312 = vadd.f32 %v4208, %v4251
  %v4313 = vadd.f32 %v4211, %v4255
  %v4314 = vxor.u32 %v4312, 2147483648
  %v4315 = vxor.u32 %v4313, 2147483648
  %v4316 = vmul.f32 %v4314, 1.442695
  %v4317 = vpow.pop %v4316
  %v4318 = vmul.f32 %v4315, 1.442695
  %v4319 = vpow.pop %v4318
  %v4320 = vadd.f32 %v4317, 1.0
  %v4321 = vadd.f32 %v4319, 1.0
  %v4322 = vrcp.pop %v4320
  %v4323 = vmul.f32 1.0, %v4322
  %v4324 = vrcp.pop %v4321
  %v4325 = vmul.f32 1.0, %v4324
  %v4326 = vadd.f32 %v4292, %v4189
  %v4327 = vadd.f32 %v4295, %v4189
  %v4328 = vmul.f32 %v4309, %v4326
  %v4329 = vmul.f32 %v4311, %v4327
  %v4330 = vadd.f32 %v4209, %v4328
  %v4331 = vadd.f32 %v4212, %v4329
  %v4332 = vtanh.pop %v4330
  %v4333 = vtanh.pop %v4331
  %v4334 = vsub.f32 1.0, %v4323
  %v4335 = vsub.f32 1.0, %v4325
  %v4336 = vmul.f32 %v4334, %v4332
  %v4337 = vmul.f32 %v4335, %v4333
  %v4338 = vmul.f32 %v4323, %v4205
  %v4339 = vmul.f32 %v4325, %v4206
  %v4340 = vadd.f32 %v4336, %v4338
  %v4341 = vadd.f32 %v4337, %v4339
  %v4342 = vld [vmem:[%s1595] sm:$0xff]
  %v4343 = vld [vmem:[%s1595 + $0x8] sm:$0xff]
  %v4344 = vld [vmem:[%s1595 + $0x10] sm:$0xff]
  %v4345 = vld [vmem:[%s1595 + $0x18] sm:$0xff]
  %v4346 = vld [vmem:[%s1595 + $0x20] sm:$0xff]
  %v4347 = vld [vmem:[%s1595 + $0x28] sm:$0xff]
  %v4348 = vpack.c.bf16 %v4341, %v4340
  %4349 = vmatprep.subr.bf16.mxu0 %v4046
  %4350 = vmatpush1.bf16.msra.mxu0 %v4045
  %4351 = vmatprep.subr.bf16.mxu0 %v4043
  %4352 = vmatpush1.bf16.msra.mxu0 %v4042
  %4353 = vmatprep.subr.bf16.mxu0 %v4040
  %4354 = vmatpush1.bf16.msra.mxu0 %v4039
  %4355 = vmatprep.subr.bf16.mxu0 %v4037
  %4356 = vmatpush1.bf16.msra.mxu0 %v4036
  %4357 = vmatprep.subr.bf16.mxu0 %v4034
  %4358 = vmatpush1.bf16.msra.mxu0 %v4033
  %4359 = vmatprep.subr.bf16.mxu0 %v4031
  %4360 = vmatpush1.bf16.msra.mxu0 %v4030
  %4361 = vmatprep.subr.bf16.mxu0 %v4028
  %4362 = vmatpush1.bf16.msra.mxu0 %v4027
  %4363 = vmatprep.subr.bf16.mxu0 %v4025
  %4364 = vmatpush1.bf16.msra.mxu0 %v4024
  %4365 = vmatprep.subr.bf16.mxu0 0
  %4366 = vmatpush2.bf16.msra.mxu0 0
  %4367 = vmatprep.subr.bf16.mxu0 0
  %4368 = vmatpush2.bf16.msra.mxu0 0
  %4369 = vmatprep.subr.bf16.mxu0 0
  %4370 = vmatpush2.bf16.msra.mxu0 0
  %4371 = vmatprep.subr.bf16.mxu0 0
  %4372 = vmatpush2.bf16.msra.mxu0 0
  %4373 = vmatprep.subr.bf16.mxu0 0
  %4374 = vmatpush2.bf16.msra.mxu0 0
  %4375 = vmatprep.subr.bf16.mxu0 0
  %4376 = vmatpush2.bf16.msra.mxu0 0
  %4377 = vmatprep.subr.bf16.mxu0 0
  %4378 = vmatpush2.bf16.msra.mxu0 0
  %4379 = vmatprep.subr.bf16.mxu0 0
  %4380 = vmatpush2.bf16.msra.mxu0 0
  %4381 = vmatprep.mubr.bf16.mxu0 0
  %4382 = vmatmul.mubr.bf16.gmra.mxu0 %v4348
  %v4383 = vpop.f32.mrf.mxu0
  %v4384 = vadd.f32 0.0, %v4383
  %v4385 = vpop.f32.mrf.mxu0
  %v4386 = vadd.f32 0.0, %v4385
  %v4387 = vpop.f32.mrf.mxu0
  %v4388 = vadd.f32 0.0, %v4387
  %v4389 = vpop.f32.mrf.mxu0
  %v4390 = vadd.f32 0.0, %v4389
  %4391 = vdwg.mxu0
  %4392 = vmatprep.subr.bf16.mxu0 0
  %4393 = vmatpush1.bf16.msra.mxu0 %v4047
  %4394 = vmatprep.subr.bf16.mxu0 0
  %4395 = vmatpush1.bf16.msra.mxu0 %v4044
  %4396 = vmatprep.subr.bf16.mxu0 0
  %4397 = vmatpush1.bf16.msra.mxu0 %v4041
  %4398 = vmatprep.subr.bf16.mxu0 0
  %4399 = vmatpush1.bf16.msra.mxu0 %v4038
  %4400 = vmatprep.subr.bf16.mxu0 0
  %4401 = vmatpush1.bf16.msra.mxu0 %v4035
  %4402 = vmatprep.subr.bf16.mxu0 0
  %4403 = vmatpush1.bf16.msra.mxu0 %v4032
  %4404 = vmatprep.subr.bf16.mxu0 0
  %4405 = vmatpush1.bf16.msra.mxu0 %v4029
  %4406 = vmatprep.subr.bf16.mxu0 0
  %4407 = vmatpush1.bf16.msra.mxu0 %v4026
  %4408 = vmatprep.subr.bf16.mxu0 0
  %4409 = vmatpush2.bf16.msra.mxu0 0
  %4410 = vmatprep.subr.bf16.mxu0 0
  %4411 = vmatpush2.bf16.msra.mxu0 0
  %4412 = vmatprep.subr.bf16.mxu0 0
  %4413 = vmatpush2.bf16.msra.mxu0 0
  %4414 = vmatprep.subr.bf16.mxu0 0
  %4415 = vmatpush2.bf16.msra.mxu0 0
  %4416 = vmatprep.subr.bf16.mxu0 0
  %4417 = vmatpush2.bf16.msra.mxu0 0
  %4418 = vmatprep.subr.bf16.mxu0 0
  %4419 = vmatpush2.bf16.msra.mxu0 0
  %4420 = vmatprep.subr.bf16.mxu0 0
  %4421 = vmatpush2.bf16.msra.mxu0 0
  %4422 = vmatprep.subr.bf16.mxu0 0
  %4423 = vmatpush2.bf16.msra.mxu0 0
  %4424 = vmatprep.mubr.bf16.mxu0 0
  %4425 = vmatmul.mubr.bf16.gmra.mxu0 %v4348
  %v4426 = vpop.f32.mrf.mxu0
  %v4427 = vadd.f32 0.0, %v4426
  %v4428 = vpop.f32.mrf.mxu0
  %v4429 = vpop.f32.mrf.mxu0
  %v4430 = vadd.f32 0.0, %v4429
  %v4431 = vpop.f32.mrf.mxu0
  %4432 = vdwg.mxu0
  %v4433 = vadd.f32 %v4342, %v4384
  %v4434 = vadd.f32 %v4345, %v4388
  %v4435 = vxor.u32 %v4433, 2147483648
  %v4436 = vxor.u32 %v4434, 2147483648
  %v4437 = vmul.f32 %v4435, 1.442695
  %v4438 = vpow.pop %v4437
  %v4439 = vmul.f32 %v4436, 1.442695
  %v4440 = vpow.pop %v4439
  %v4441 = vadd.f32 %v4438, 1.0
  %v4442 = vadd.f32 %v4440, 1.0
  %v4443 = vrcp.pop %v4441
  %v4444 = vmul.f32 1.0, %v4443
  %v4445 = vrcp.pop %v4442
  %v4446 = vmul.f32 1.0, %v4445
  %v4447 = vadd.f32 %v4343, %v4386
  %v4448 = vadd.f32 %v4346, %v4390
  %v4449 = vxor.u32 %v4447, 2147483648
  %v4450 = vxor.u32 %v4448, 2147483648
  %v4451 = vmul.f32 %v4449, 1.442695
  %v4452 = vpow.pop %v4451
  %v4453 = vmul.f32 %v4450, 1.442695
  %v4454 = vpow.pop %v4453
  %v4455 = vadd.f32 %v4452, 1.0
  %v4456 = vadd.f32 %v4454, 1.0
  %v4457 = vrcp.pop %v4455
  %v4458 = vmul.f32 1.0, %v4457
  %v4459 = vrcp.pop %v4456
  %v4460 = vmul.f32 1.0, %v4459
  %v4461 = vadd.f32 %v4427, %v4189
  %v4462 = vadd.f32 %v4430, %v4189
  %v4463 = vmul.f32 %v4444, %v4461
  %v4464 = vmul.f32 %v4446, %v4462
  %v4465 = vadd.f32 %v4344, %v4463
  %v4466 = vadd.f32 %v4347, %v4464
  %v4467 = vtanh.pop %v4465
  %v4468 = vtanh.pop %v4466
  %v4469 = vsub.f32 1.0, %v4458
  %v4470 = vsub.f32 1.0, %v4460
  %v4471 = vmul.f32 %v4469, %v4467
  %v4472 = vmul.f32 %v4470, %v4468
  %v4473 = vmul.f32 %v4458, %v4340
  %v4474 = vmul.f32 %v4460, %v4341
  %v4475 = vadd.f32 %v4471, %v4473
  %v4476 = vadd.f32 %v4472, %v4474
  %v4477 = vld [vmem:[%s1903] sm:$0xff]
  %v4478 = vld [vmem:[%s1903 + $0x8] sm:$0xff]
  %v4479 = vld [vmem:[%s1903 + $0x10] sm:$0xff]
  %v4480 = vld [vmem:[%s1903 + $0x18] sm:$0xff]
  %v4481 = vld [vmem:[%s1903 + $0x20] sm:$0xff]
  %v4482 = vld [vmem:[%s1903 + $0x28] sm:$0xff]
  %v4483 = vpack.c.bf16 %v4476, %v4475
  %4484 = vmatprep.subr.bf16.mxu0 %v4046
  %4485 = vmatpush1.bf16.msra.mxu0 %v4045
  %4486 = vmatprep.subr.bf16.mxu0 %v4043
  %4487 = vmatpush1.bf16.msra.mxu0 %v4042
  %4488 = vmatprep.subr.bf16.mxu0 %v4040
  %4489 = vmatpush1.bf16.msra.mxu0 %v4039
  %4490 = vmatprep.subr.bf16.mxu0 %v4037
  %4491 = vmatpush1.bf16.msra.mxu0 %v4036
  %4492 = vmatprep.subr.bf16.mxu0 %v4034
  %4493 = vmatpush1.bf16.msra.mxu0 %v4033
  %4494 = vmatprep.subr.bf16.mxu0 %v4031
  %4495 = vmatpush1.bf16.msra.mxu0 %v4030
  %4496 = vmatprep.subr.bf16.mxu0 %v4028
  %4497 = vmatpush1.bf16.msra.mxu0 %v4027
  %4498 = vmatprep.subr.bf16.mxu0 %v4025
  %4499 = vmatpush1.bf16.msra.mxu0 %v4024
  %4500 = vmatprep.subr.bf16.mxu0 0
  %4501 = vmatpush2.bf16.msra.mxu0 0
  %4502 = vmatprep.subr.bf16.mxu0 0
  %4503 = vmatpush2.bf16.msra.mxu0 0
  %4504 = vmatprep.subr.bf16.mxu0 0
  %4505 = vmatpush2.bf16.msra.mxu0 0
  %4506 = vmatprep.subr.bf16.mxu0 0
  %4507 = vmatpush2.bf16.msra.mxu0 0
  %4508 = vmatprep.subr.bf16.mxu0 0
  %4509 = vmatpush2.bf16.msra.mxu0 0
  %4510 = vmatprep.subr.bf16.mxu0 0
  %4511 = vmatpush2.bf16.msra.mxu0 0
  %4512 = vmatprep.subr.bf16.mxu0 0
  %4513 = vmatpush2.bf16.msra.mxu0 0
  %4514 = vmatprep.subr.bf16.mxu0 0
  %4515 = vmatpush2.bf16.msra.mxu0 0
  %4516 = vmatprep.mubr.bf16.mxu0 0
  %4517 = vmatmul.mubr.bf16.gmra.mxu0 %v4483
  %v4518 = vpop.f32.mrf.mxu0
  %v4519 = vadd.f32 0.0, %v4518
  %v4520 = vpop.f32.mrf.mxu0
  %v4521 = vadd.f32 0.0, %v4520
  %v4522 = vpop.f32.mrf.mxu0
  %v4523 = vadd.f32 0.0, %v4522
  %v4524 = vpop.f32.mrf.mxu0
  %v4525 = vadd.f32 0.0, %v4524
  %4526 = vdwg.mxu0
  %4527 = vmatprep.subr.bf16.mxu0 0
  %4528 = vmatpush1.bf16.msra.mxu0 %v4047
  %4529 = vmatprep.subr.bf16.mxu0 0
  %4530 = vmatpush1.bf16.msra.mxu0 %v4044
  %4531 = vmatprep.subr.bf16.mxu0 0
  %4532 = vmatpush1.bf16.msra.mxu0 %v4041
  %4533 = vmatprep.subr.bf16.mxu0 0
  %4534 = vmatpush1.bf16.msra.mxu0 %v4038
  %4535 = vmatprep.subr.bf16.mxu0 0
  %4536 = vmatpush1.bf16.msra.mxu0 %v4035
  %4537 = vmatprep.subr.bf16.mxu0 0
  %4538 = vmatpush1.bf16.msra.mxu0 %v4032
  %4539 = vmatprep.subr.bf16.mxu0 0
  %4540 = vmatpush1.bf16.msra.mxu0 %v4029
  %4541 = vmatprep.subr.bf16.mxu0 0
  %4542 = vmatpush1.bf16.msra.mxu0 %v4026
  %4543 = vmatprep.subr.bf16.mxu0 0
  %4544 = vmatpush2.bf16.msra.mxu0 0
  %4545 = vmatprep.subr.bf16.mxu0 0
  %4546 = vmatpush2.bf16.msra.mxu0 0
  %4547 = vmatprep.subr.bf16.mxu0 0
  %4548 = vmatpush2.bf16.msra.mxu0 0
  %4549 = vmatprep.subr.bf16.mxu0 0
  %4550 = vmatpush2.bf16.msra.mxu0 0
  %4551 = vmatprep.subr.bf16.mxu0 0
  %4552 = vmatpush2.bf16.msra.mxu0 0
  %4553 = vmatprep.subr.bf16.mxu0 0
  %4554 = vmatpush2.bf16.msra.mxu0 0
  %4555 = vmatprep.subr.bf16.mxu0 0
  %4556 = vmatpush2.bf16.msra.mxu0 0
  %4557 = vmatprep.subr.bf16.mxu0 0
  %4558 = vmatpush2.bf16.msra.mxu0 0
  %4559 = vmatprep.mubr.bf16.mxu0 0
  %4560 = vmatmul.mubr.bf16.gmra.mxu0 %v4483
  %v4561 = vpop.f32.mrf.mxu0
  %v4562 = vadd.f32 0.0, %v4561
  %v4563 = vpop.f32.mrf.mxu0
  %v4564 = vpop.f32.mrf.mxu0
  %v4565 = vadd.f32 0.0, %v4564
  %v4566 = vpop.f32.mrf.mxu0
  %4567 = vdwg.mxu0
  %v4568 = vadd.f32 %v4477, %v4519
  %v4569 = vadd.f32 %v4480, %v4523
  %v4570 = vxor.u32 %v4568, 2147483648
  %v4571 = vxor.u32 %v4569, 2147483648
  %v4572 = vmul.f32 %v4570, 1.442695
  %v4573 = vpow.pop %v4572
  %v4574 = vmul.f32 %v4571, 1.442695
  %v4575 = vpow.pop %v4574
  %v4576 = vadd.f32 %v4573, 1.0
  %v4577 = vadd.f32 %v4575, 1.0
  %v4578 = vrcp.pop %v4576
  %v4579 = vmul.f32 1.0, %v4578
  %v4580 = vrcp.pop %v4577
  %v4581 = vmul.f32 1.0, %v4580
  %v4582 = vadd.f32 %v4478, %v4521
  %v4583 = vadd.f32 %v4481, %v4525
  %v4584 = vxor.u32 %v4582, 2147483648
  %v4585 = vxor.u32 %v4583, 2147483648
  %v4586 = vmul.f32 %v4584, 1.442695
  %v4587 = vpow.pop %v4586
  %v4588 = vmul.f32 %v4585, 1.442695
  %v4589 = vpow.pop %v4588
  %v4590 = vadd.f32 %v4587, 1.0
  %v4591 = vadd.f32 %v4589, 1.0
  %v4592 = vrcp.pop %v4590
  %v4593 = vmul.f32 1.0, %v4592
  %v4594 = vrcp.pop %v4591
  %v4595 = vmul.f32 1.0, %v4594
  %v4596 = vadd.f32 %v4562, %v4189
  %v4597 = vadd.f32 %v4565, %v4189
  %v4598 = vmul.f32 %v4579, %v4596
  %v4599 = vmul.f32 %v4581, %v4597
  %v4600 = vadd.f32 %v4479, %v4598
  %v4601 = vadd.f32 %v4482, %v4599
  %v4602 = vtanh.pop %v4600
  %v4603 = vtanh.pop %v4601
  %v4604 = vsub.f32 1.0, %v4593
  %v4605 = vsub.f32 1.0, %v4595
  %v4606 = vmul.f32 %v4604, %v4602
  %v4607 = vmul.f32 %v4605, %v4603
  %v4608 = vmul.f32 %v4593, %v4475
  %v4609 = vmul.f32 %v4595, %v4476
  %v4610 = vadd.f32 %v4606, %v4608
  %v4611 = vadd.f32 %v4607, %v4609
  %v4612 = vld [vmem:[%s2211] sm:$0xff]
  %v4613 = vld [vmem:[%s2211 + $0x8] sm:$0xff]
  %v4614 = vld [vmem:[%s2211 + $0x10] sm:$0xff]
  %v4615 = vld [vmem:[%s2211 + $0x18] sm:$0xff]
  %v4616 = vld [vmem:[%s2211 + $0x20] sm:$0xff]
  %v4617 = vld [vmem:[%s2211 + $0x28] sm:$0xff]
  %v4618 = vpack.c.bf16 %v4611, %v4610
  %4619 = vmatprep.subr.bf16.mxu0 %v4046
  %4620 = vmatpush1.bf16.msra.mxu0 %v4045
  %4621 = vmatprep.subr.bf16.mxu0 %v4043
  %4622 = vmatpush1.bf16.msra.mxu0 %v4042
  %4623 = vmatprep.subr.bf16.mxu0 %v4040
  %4624 = vmatpush1.bf16.msra.mxu0 %v4039
  %4625 = vmatprep.subr.bf16.mxu0 %v4037
  %4626 = vmatpush1.bf16.msra.mxu0 %v4036
  %4627 = vmatprep.subr.bf16.mxu0 %v4034
  %4628 = vmatpush1.bf16.msra.mxu0 %v4033
  %4629 = vmatprep.subr.bf16.mxu0 %v4031
  %4630 = vmatpush1.bf16.msra.mxu0 %v4030
  %4631 = vmatprep.subr.bf16.mxu0 %v4028
  %4632 = vmatpush1.bf16.msra.mxu0 %v4027
  %4633 = vmatprep.subr.bf16.mxu0 %v4025
  %4634 = vmatpush1.bf16.msra.mxu0 %v4024
  %4635 = vmatprep.subr.bf16.mxu0 0
  %4636 = vmatpush2.bf16.msra.mxu0 0
  %4637 = vmatprep.subr.bf16.mxu0 0
  %4638 = vmatpush2.bf16.msra.mxu0 0
  %4639 = vmatprep.subr.bf16.mxu0 0
  %4640 = vmatpush2.bf16.msra.mxu0 0
  %4641 = vmatprep.subr.bf16.mxu0 0
  %4642 = vmatpush2.bf16.msra.mxu0 0
  %4643 = vmatprep.subr.bf16.mxu0 0
  %4644 = vmatpush2.bf16.msra.mxu0 0
  %4645 = vmatprep.subr.bf16.mxu0 0
  %4646 = vmatpush2.bf16.msra.mxu0 0
  %4647 = vmatprep.subr.bf16.mxu0 0
  %4648 = vmatpush2.bf16.msra.mxu0 0
  %4649 = vmatprep.subr.bf16.mxu0 0
  %4650 = vmatpush2.bf16.msra.mxu0 0
  %4651 = vmatprep.mubr.bf16.mxu0 0
  %4652 = vmatmul.mubr.bf16.gmra.mxu0 %v4618
  %v4653 = vpop.f32.mrf.mxu0
  %v4654 = vadd.f32 0.0, %v4653
  %v4655 = vpop.f32.mrf.mxu0
  %v4656 = vadd.f32 0.0, %v4655
  %v4657 = vpop.f32.mrf.mxu0
  %v4658 = vadd.f32 0.0, %v4657
  %v4659 = vpop.f32.mrf.mxu0
  %v4660 = vadd.f32 0.0, %v4659
  %4661 = vdwg.mxu0
  %4662 = vmatprep.subr.bf16.mxu0 0
  %4663 = vmatpush1.bf16.msra.mxu0 %v4047
  %4664 = vmatprep.subr.bf16.mxu0 0
  %4665 = vmatpush1.bf16.msra.mxu0 %v4044
  %4666 = vmatprep.subr.bf16.mxu0 0
  %4667 = vmatpush1.bf16.msra.mxu0 %v4041
  %4668 = vmatprep.subr.bf16.mxu0 0
  %4669 = vmatpush1.bf16.msra.mxu0 %v4038
  %4670 = vmatprep.subr.bf16.mxu0 0
  %4671 = vmatpush1.bf16.msra.mxu0 %v4035
  %4672 = vmatprep.subr.bf16.mxu0 0
  %4673 = vmatpush1.bf16.msra.mxu0 %v4032
  %4674 = vmatprep.subr.bf16.mxu0 0
  %4675 = vmatpush1.bf16.msra.mxu0 %v4029
  %4676 = vmatprep.subr.bf16.mxu0 0
  %4677 = vmatpush1.bf16.msra.mxu0 %v4026
  %4678 = vmatprep.subr.bf16.mxu0 0
  %4679 = vmatpush2.bf16.msra.mxu0 0
  %4680 = vmatprep.subr.bf16.mxu0 0
  %4681 = vmatpush2.bf16.msra.mxu0 0
  %4682 = vmatprep.subr.bf16.mxu0 0
  %4683 = vmatpush2.bf16.msra.mxu0 0
  %4684 = vmatprep.subr.bf16.mxu0 0
  %4685 = vmatpush2.bf16.msra.mxu0 0
  %4686 = vmatprep.subr.bf16.mxu0 0
  %4687 = vmatpush2.bf16.msra.mxu0 0
  %4688 = vmatprep.subr.bf16.mxu0 0
  %4689 = vmatpush2.bf16.msra.mxu0 0
  %4690 = vmatprep.subr.bf16.mxu0 0
  %4691 = vmatpush2.bf16.msra.mxu0 0
  %4692 = vmatprep.subr.bf16.mxu0 0
  %4693 = vmatpush2.bf16.msra.mxu0 0
  %4694 = vmatprep.mubr.bf16.mxu0 0
  %4695 = vmatmul.mubr.bf16.gmra.mxu0 %v4618
  %v4696 = vpop.f32.mrf.mxu0
  %v4697 = vadd.f32 0.0, %v4696
  %v4698 = vpop.f32.mrf.mxu0
  %v4699 = vpop.f32.mrf.mxu0
  %v4700 = vadd.f32 0.0, %v4699
  %v4701 = vpop.f32.mrf.mxu0
  %4702 = vdwg.mxu0
  %v4703 = vadd.f32 %v4612, %v4654
  %v4704 = vadd.f32 %v4615, %v4658
  %v4705 = vxor.u32 %v4703, 2147483648
  %v4706 = vxor.u32 %v4704, 2147483648
  %v4707 = vmul.f32 %v4705, 1.442695
  %v4708 = vpow.pop %v4707
  %v4709 = vmul.f32 %v4706, 1.442695
  %v4710 = vpow.pop %v4709
  %v4711 = vadd.f32 %v4708, 1.0
  %v4712 = vadd.f32 %v4710, 1.0
  %v4713 = vrcp.pop %v4711
  %v4714 = vmul.f32 1.0, %v4713
  %v4715 = vrcp.pop %v4712
  %v4716 = vmul.f32 1.0, %v4715
  %v4717 = vadd.f32 %v4613, %v4656
  %v4718 = vadd.f32 %v4616, %v4660
  %v4719 = vxor.u32 %v4717, 2147483648
  %v4720 = vxor.u32 %v4718, 2147483648
  %v4721 = vmul.f32 %v4719, 1.442695
  %v4722 = vpow.pop %v4721
  %v4723 = vmul.f32 %v4720, 1.442695
  %v4724 = vpow.pop %v4723
  %v4725 = vadd.f32 %v4722, 1.0
  %v4726 = vadd.f32 %v4724, 1.0
  %v4727 = vrcp.pop %v4725
  %v4728 = vmul.f32 1.0, %v4727
  %v4729 = vrcp.pop %v4726
  %v4730 = vmul.f32 1.0, %v4729
  %v4731 = vadd.f32 %v4697, %v4189
  %v4732 = vadd.f32 %v4700, %v4189
  %v4733 = vmul.f32 %v4714, %v4731
  %v4734 = vmul.f32 %v4716, %v4732
  %v4735 = vadd.f32 %v4614, %v4733
  %v4736 = vadd.f32 %v4617, %v4734
  %v4737 = vtanh.pop %v4735
  %v4738 = vtanh.pop %v4736
  %v4739 = vsub.f32 1.0, %v4728
  %v4740 = vsub.f32 1.0, %v4730
  %v4741 = vmul.f32 %v4739, %v4737
  %v4742 = vmul.f32 %v4740, %v4738
  %v4743 = vmul.f32 %v4728, %v4610
  %v4744 = vmul.f32 %v4730, %v4611
  %v4745 = vadd.f32 %v4741, %v4743
  %v4746 = vadd.f32 %v4742, %v4744
  %v4747 = vld [vmem:[%s2519] sm:$0xff]
  %v4748 = vld [vmem:[%s2519 + $0x8] sm:$0xff]
  %v4749 = vld [vmem:[%s2519 + $0x10] sm:$0xff]
  %v4750 = vld [vmem:[%s2519 + $0x18] sm:$0xff]
  %v4751 = vld [vmem:[%s2519 + $0x20] sm:$0xff]
  %v4752 = vld [vmem:[%s2519 + $0x28] sm:$0xff]
  %v4753 = vpack.c.bf16 %v4746, %v4745
  %4754 = vmatprep.subr.bf16.mxu0 %v4046
  %4755 = vmatpush1.bf16.msra.mxu0 %v4045
  %4756 = vmatprep.subr.bf16.mxu0 %v4043
  %4757 = vmatpush1.bf16.msra.mxu0 %v4042
  %4758 = vmatprep.subr.bf16.mxu0 %v4040
  %4759 = vmatpush1.bf16.msra.mxu0 %v4039
  %4760 = vmatprep.subr.bf16.mxu0 %v4037
  %4761 = vmatpush1.bf16.msra.mxu0 %v4036
  %4762 = vmatprep.subr.bf16.mxu0 %v4034
  %4763 = vmatpush1.bf16.msra.mxu0 %v4033
  %4764 = vmatprep.subr.bf16.mxu0 %v4031
  %4765 = vmatpush1.bf16.msra.mxu0 %v4030
  %4766 = vmatprep.subr.bf16.mxu0 %v4028
  %4767 = vmatpush1.bf16.msra.mxu0 %v4027
  %4768 = vmatprep.subr.bf16.mxu0 %v4025
  %4769 = vmatpush1.bf16.msra.mxu0 %v4024
  %4770 = vmatprep.subr.bf16.mxu0 0
  %4771 = vmatpush2.bf16.msra.mxu0 0
  %4772 = vmatprep.subr.bf16.mxu0 0
  %4773 = vmatpush2.bf16.msra.mxu0 0
  %4774 = vmatprep.subr.bf16.mxu0 0
  %4775 = vmatpush2.bf16.msra.mxu0 0
  %4776 = vmatprep.subr.bf16.mxu0 0
  %4777 = vmatpush2.bf16.msra.mxu0 0
  %4778 = vmatprep.subr.bf16.mxu0 0
  %4779 = vmatpush2.bf16.msra.mxu0 0
  %4780 = vmatprep.subr.bf16.mxu0 0
  %4781 = vmatpush2.bf16.msra.mxu0 0
  %4782 = vmatprep.subr.bf16.mxu0 0
  %4783 = vmatpush2.bf16.msra.mxu0 0
  %4784 = vmatprep.subr.bf16.mxu0 0
  %4785 = vmatpush2.bf16.msra.mxu0 0
  %4786 = vmatprep.mubr.bf16.mxu0 0
  %4787 = vmatmul.mubr.bf16.gmra.mxu0 %v4753
  %v4788 = vpop.f32.mrf.mxu0
  %v4789 = vadd.f32 0.0, %v4788
  %v4790 = vpop.f32.mrf.mxu0
  %v4791 = vadd.f32 0.0, %v4790
  %v4792 = vpop.f32.mrf.mxu0
  %v4793 = vadd.f32 0.0, %v4792
  %v4794 = vpop.f32.mrf.mxu0
  %v4795 = vadd.f32 0.0, %v4794
  %4796 = vdwg.mxu0
  %4797 = vmatprep.subr.bf16.mxu0 0
  %4798 = vmatpush1.bf16.msra.mxu0 %v4047
  %4799 = vmatprep.subr.bf16.mxu0 0
  %4800 = vmatpush1.bf16.msra.mxu0 %v4044
  %4801 = vmatprep.subr.bf16.mxu0 0
  %4802 = vmatpush1.bf16.msra.mxu0 %v4041
  %4803 = vmatprep.subr.bf16.mxu0 0
  %4804 = vmatpush1.bf16.msra.mxu0 %v4038
  %4805 = vmatprep.subr.bf16.mxu0 0
  %4806 = vmatpush1.bf16.msra.mxu0 %v4035
  %4807 = vmatprep.subr.bf16.mxu0 0
  %4808 = vmatpush1.bf16.msra.mxu0 %v4032
  %4809 = vmatprep.subr.bf16.mxu0 0
  %4810 = vmatpush1.bf16.msra.mxu0 %v4029
  %4811 = vmatprep.subr.bf16.mxu0 0
  %4812 = vmatpush1.bf16.msra.mxu0 %v4026
  %4813 = vmatprep.subr.bf16.mxu0 0
  %4814 = vmatpush2.bf16.msra.mxu0 0
  %4815 = vmatprep.subr.bf16.mxu0 0
  %4816 = vmatpush2.bf16.msra.mxu0 0
  %4817 = vmatprep.subr.bf16.mxu0 0
  %4818 = vmatpush2.bf16.msra.mxu0 0
  %4819 = vmatprep.subr.bf16.mxu0 0
  %4820 = vmatpush2.bf16.msra.mxu0 0
  %4821 = vmatprep.subr.bf16.mxu0 0
  %4822 = vmatpush2.bf16.msra.mxu0 0
  %4823 = vmatprep.subr.bf16.mxu0 0
  %4824 = vmatpush2.bf16.msra.mxu0 0
  %4825 = vmatprep.subr.bf16.mxu0 0
  %4826 = vmatpush2.bf16.msra.mxu0 0
  %4827 = vmatprep.subr.bf16.mxu0 0
  %4828 = vmatpush2.bf16.msra.mxu0 0
  %4829 = vmatprep.mubr.bf16.mxu0 0
  %4830 = vmatmul.mubr.bf16.gmra.mxu0 %v4753
  %v4831 = vpop.f32.mrf.mxu0
  %v4832 = vadd.f32 0.0, %v4831
  %v4833 = vpop.f32.mrf.mxu0
  %v4834 = vpop.f32.mrf.mxu0
  %v4835 = vadd.f32 0.0, %v4834
  %v4836 = vpop.f32.mrf.mxu0
  %4837 = vdwg.mxu0
  %v4838 = vadd.f32 %v4747, %v4789
  %v4839 = vadd.f32 %v4750, %v4793
  %v4840 = vxor.u32 %v4838, 2147483648
  %v4841 = vxor.u32 %v4839, 2147483648
  %v4842 = vmul.f32 %v4840, 1.442695
  %v4843 = vpow.pop %v4842
  %v4844 = vmul.f32 %v4841, 1.442695
  %v4845 = vpow.pop %v4844
  %v4846 = vadd.f32 %v4843, 1.0
  %v4847 = vadd.f32 %v4845, 1.0
  %v4848 = vrcp.pop %v4846
  %v4849 = vmul.f32 1.0, %v4848
  %v4850 = vrcp.pop %v4847
  %v4851 = vmul.f32 1.0, %v4850
  %v4852 = vadd.f32 %v4748, %v4791
  %v4853 = vadd.f32 %v4751, %v4795
  %v4854 = vxor.u32 %v4852, 2147483648
  %v4855 = vxor.u32 %v4853, 2147483648
  %v4856 = vmul.f32 %v4854, 1.442695
  %v4857 = vpow.pop %v4856
  %v4858 = vmul.f32 %v4855, 1.442695
  %v4859 = vpow.pop %v4858
  %v4860 = vadd.f32 %v4857, 1.0
  %v4861 = vadd.f32 %v4859, 1.0
  %v4862 = vrcp.pop %v4860
  %v4863 = vmul.f32 1.0, %v4862
  %v4864 = vrcp.pop %v4861
  %v4865 = vmul.f32 1.0, %v4864
  %v4866 = vadd.f32 %v4832, %v4189
  %v4867 = vadd.f32 %v4835, %v4189
  %v4868 = vmul.f32 %v4849, %v4866
  %v4869 = vmul.f32 %v4851, %v4867
  %v4870 = vadd.f32 %v4749, %v4868
  %v4871 = vadd.f32 %v4752, %v4869
  %v4872 = vtanh.pop %v4870
  %v4873 = vtanh.pop %v4871
  %v4874 = vsub.f32 1.0, %v4863
  %v4875 = vsub.f32 1.0, %v4865
  %v4876 = vmul.f32 %v4874, %v4872
  %v4877 = vmul.f32 %v4875, %v4873
  %v4878 = vmul.f32 %v4863, %v4745
  %v4879 = vmul.f32 %v4865, %v4746
  %v4880 = vadd.f32 %v4876, %v4878
  %v4881 = vadd.f32 %v4877, %v4879
  %v4882 = vld [vmem:[%s2827] sm:$0xff]
  %v4883 = vld [vmem:[%s2827 + $0x8] sm:$0xff]
  %v4884 = vld [vmem:[%s2827 + $0x10] sm:$0xff]
  %v4885 = vld [vmem:[%s2827 + $0x18] sm:$0xff]
  %v4886 = vld [vmem:[%s2827 + $0x20] sm:$0xff]
  %v4887 = vld [vmem:[%s2827 + $0x28] sm:$0xff]
  %v4888 = vpack.c.bf16 %v4881, %v4880
  %4889 = vmatprep.subr.bf16.mxu0 %v4046
  %4890 = vmatpush1.bf16.msra.mxu0 %v4045
  %4891 = vmatprep.subr.bf16.mxu0 %v4043
  %4892 = vmatpush1.bf16.msra.mxu0 %v4042
  %4893 = vmatprep.subr.bf16.mxu0 %v4040
  %4894 = vmatpush1.bf16.msra.mxu0 %v4039
  %4895 = vmatprep.subr.bf16.mxu0 %v4037
  %4896 = vmatpush1.bf16.msra.mxu0 %v4036
  %4897 = vmatprep.subr.bf16.mxu0 %v4034
  %4898 = vmatpush1.bf16.msra.mxu0 %v4033
  %4899 = vmatprep.subr.bf16.mxu0 %v4031
  %4900 = vmatpush1.bf16.msra.mxu0 %v4030
  %4901 = vmatprep.subr.bf16.mxu0 %v4028
  %4902 = vmatpush1.bf16.msra.mxu0 %v4027
  %4903 = vmatprep.subr.bf16.mxu0 %v4025
  %4904 = vmatpush1.bf16.msra.mxu0 %v4024
  %4905 = vmatprep.subr.bf16.mxu0 0
  %4906 = vmatpush2.bf16.msra.mxu0 0
  %4907 = vmatprep.subr.bf16.mxu0 0
  %4908 = vmatpush2.bf16.msra.mxu0 0
  %4909 = vmatprep.subr.bf16.mxu0 0
  %4910 = vmatpush2.bf16.msra.mxu0 0
  %4911 = vmatprep.subr.bf16.mxu0 0
  %4912 = vmatpush2.bf16.msra.mxu0 0
  %4913 = vmatprep.subr.bf16.mxu0 0
  %4914 = vmatpush2.bf16.msra.mxu0 0
  %4915 = vmatprep.subr.bf16.mxu0 0
  %4916 = vmatpush2.bf16.msra.mxu0 0
  %4917 = vmatprep.subr.bf16.mxu0 0
  %4918 = vmatpush2.bf16.msra.mxu0 0
  %4919 = vmatprep.subr.bf16.mxu0 0
  %4920 = vmatpush2.bf16.msra.mxu0 0
  %4921 = vmatprep.mubr.bf16.mxu0 0
  %4922 = vmatmul.mubr.bf16.gmra.mxu0 %v4888
  %v4923 = vpop.f32.mrf.mxu0
  %v4924 = vadd.f32 0.0, %v4923
  %v4925 = vpop.f32.mrf.mxu0
  %v4926 = vadd.f32 0.0, %v4925
  %v4927 = vpop.f32.mrf.mxu0
  %v4928 = vadd.f32 0.0, %v4927
  %v4929 = vpop.f32.mrf.mxu0
  %v4930 = vadd.f32 0.0, %v4929
  %4931 = vdwg.mxu0
  %4932 = vmatprep.subr.bf16.mxu0 0
  %4933 = vmatpush1.bf16.msra.mxu0 %v4047
  %4934 = vmatprep.subr.bf16.mxu0 0
  %4935 = vmatpush1.bf16.msra.mxu0 %v4044
  %4936 = vmatprep.subr.bf16.mxu0 0
  %4937 = vmatpush1.bf16.msra.mxu0 %v4041
  %4938 = vmatprep.subr.bf16.mxu0 0
  %4939 = vmatpush1.bf16.msra.mxu0 %v4038
  %4940 = vmatprep.subr.bf16.mxu0 0
  %4941 = vmatpush1.bf16.msra.mxu0 %v4035
  %4942 = vmatprep.subr.bf16.mxu0 0
  %4943 = vmatpush1.bf16.msra.mxu0 %v4032
  %4944 = vmatprep.subr.bf16.mxu0 0
  %4945 = vmatpush1.bf16.msra.mxu0 %v4029
  %4946 = vmatprep.subr.bf16.mxu0 0
  %4947 = vmatpush1.bf16.msra.mxu0 %v4026
  %4948 = vmatprep.subr.bf16.mxu0 0
  %4949 = vmatpush2.bf16.msra.mxu0 0
  %4950 = vmatprep.subr.bf16.mxu0 0
  %4951 = vmatpush2.bf16.msra.mxu0 0
  %4952 = vmatprep.subr.bf16.mxu0 0
  %4953 = vmatpush2.bf16.msra.mxu0 0
  %4954 = vmatprep.subr.bf16.mxu0 0
  %4955 = vmatpush2.bf16.msra.mxu0 0
  %4956 = vmatprep.subr.bf16.mxu0 0
  %4957 = vmatpush2.bf16.msra.mxu0 0
  %4958 = vmatprep.subr.bf16.mxu0 0
  %4959 = vmatpush2.bf16.msra.mxu0 0
  %4960 = vmatprep.subr.bf16.mxu0 0
  %4961 = vmatpush2.bf16.msra.mxu0 0
  %4962 = vmatprep.subr.bf16.mxu0 0
  %4963 = vmatpush2.bf16.msra.mxu0 0
  %4964 = vmatprep.mubr.bf16.mxu0 0
  %4965 = vmatmul.mubr.bf16.gmra.mxu0 %v4888
  %v4966 = vpop.f32.mrf.mxu0
  %v4967 = vadd.f32 0.0, %v4966
  %v4968 = vpop.f32.mrf.mxu0
  %v4969 = vpop.f32.mrf.mxu0
  %v4970 = vadd.f32 0.0, %v4969
  %v4971 = vpop.f32.mrf.mxu0
  %4972 = vdwg.mxu0
  %v4973 = vadd.f32 %v4882, %v4924
  %v4974 = vadd.f32 %v4885, %v4928
  %v4975 = vxor.u32 %v4973, 2147483648
  %v4976 = vxor.u32 %v4974, 2147483648
  %v4977 = vmul.f32 %v4975, 1.442695
  %v4978 = vpow.pop %v4977
  %v4979 = vmul.f32 %v4976, 1.442695
  %v4980 = vpow.pop %v4979
  %v4981 = vadd.f32 %v4978, 1.0
  %v4982 = vadd.f32 %v4980, 1.0
  %v4983 = vrcp.pop %v4981
  %v4984 = vmul.f32 1.0, %v4983
  %v4985 = vrcp.pop %v4982
  %v4986 = vmul.f32 1.0, %v4985
  %v4987 = vadd.f32 %v4883, %v4926
  %v4988 = vadd.f32 %v4886, %v4930
  %v4989 = vxor.u32 %v4987, 2147483648
  %v4990 = vxor.u32 %v4988, 2147483648
  %v4991 = vmul.f32 %v4989, 1.442695
  %v4992 = vpow.pop %v4991
  %v4993 = vmul.f32 %v4990, 1.442695
  %v4994 = vpow.pop %v4993
  %v4995 = vadd.f32 %v4992, 1.0
  %v4996 = vadd.f32 %v4994, 1.0
  %v4997 = vrcp.pop %v4995
  %v4998 = vmul.f32 1.0, %v4997
  %v4999 = vrcp.pop %v4996
  %v5000 = vmul.f32 1.0, %v4999
  %v5001 = vadd.f32 %v4967, %v4189
  %v5002 = vadd.f32 %v4970, %v4189
  %v5003 = vmul.f32 %v4984, %v5001
  %v5004 = vmul.f32 %v4986, %v5002
  %v5005 = vadd.f32 %v4884, %v5003
  %v5006 = vadd.f32 %v4887, %v5004
  %v5007 = vtanh.pop %v5005
  %v5008 = vtanh.pop %v5006
  %v5009 = vsub.f32 1.0, %v4998
  %v5010 = vsub.f32 1.0, %v5000
  %v5011 = vmul.f32 %v5009, %v5007
  %v5012 = vmul.f32 %v5010, %v5008
  %v5013 = vmul.f32 %v4998, %v4880
  %v5014 = vmul.f32 %v5000, %v4881
  %v5015 = vadd.f32 %v5011, %v5013
  %v5016 = vadd.f32 %v5012, %v5014
  %v5017 = vld [vmem:[%s3135] sm:$0xff]
  %v5018 = vld [vmem:[%s3135 + $0x8] sm:$0xff]
  %v5019 = vld [vmem:[%s3135 + $0x10] sm:$0xff]
  %v5020 = vld [vmem:[%s3135 + $0x18] sm:$0xff]
  %v5021 = vld [vmem:[%s3135 + $0x20] sm:$0xff]
  %v5022 = vld [vmem:[%s3135 + $0x28] sm:$0xff]
  %v5023 = vpack.c.bf16 %v5016, %v5015
  %5024 = vmatprep.subr.bf16.mxu0 %v4046
  %5025 = vmatpush1.bf16.msra.mxu0 %v4045
  %5026 = vmatprep.subr.bf16.mxu0 %v4043
  %5027 = vmatpush1.bf16.msra.mxu0 %v4042
  %5028 = vmatprep.subr.bf16.mxu0 %v4040
  %5029 = vmatpush1.bf16.msra.mxu0 %v4039
  %5030 = vmatprep.subr.bf16.mxu0 %v4037
  %5031 = vmatpush1.bf16.msra.mxu0 %v4036
  %5032 = vmatprep.subr.bf16.mxu0 %v4034
  %5033 = vmatpush1.bf16.msra.mxu0 %v4033
  %5034 = vmatprep.subr.bf16.mxu0 %v4031
  %5035 = vmatpush1.bf16.msra.mxu0 %v4030
  %5036 = vmatprep.subr.bf16.mxu0 %v4028
  %5037 = vmatpush1.bf16.msra.mxu0 %v4027
  %5038 = vmatprep.subr.bf16.mxu0 %v4025
  %5039 = vmatpush1.bf16.msra.mxu0 %v4024
  %5040 = vmatprep.subr.bf16.mxu0 0
  %5041 = vmatpush2.bf16.msra.mxu0 0
  %5042 = vmatprep.subr.bf16.mxu0 0
  %5043 = vmatpush2.bf16.msra.mxu0 0
  %5044 = vmatprep.subr.bf16.mxu0 0
  %5045 = vmatpush2.bf16.msra.mxu0 0
  %5046 = vmatprep.subr.bf16.mxu0 0
  %5047 = vmatpush2.bf16.msra.mxu0 0
  %5048 = vmatprep.subr.bf16.mxu0 0
  %5049 = vmatpush2.bf16.msra.mxu0 0
  %5050 = vmatprep.subr.bf16.mxu0 0
  %5051 = vmatpush2.bf16.msra.mxu0 0
  %5052 = vmatprep.subr.bf16.mxu0 0
  %5053 = vmatpush2.bf16.msra.mxu0 0
  %5054 = vmatprep.subr.bf16.mxu0 0
  %5055 = vmatpush2.bf16.msra.mxu0 0
  %5056 = vmatprep.mubr.bf16.mxu0 0
  %5057 = vmatmul.mubr.bf16.gmra.mxu0 %v5023
  %v5058 = vpop.f32.mrf.mxu0
  %v5059 = vadd.f32 0.0, %v5058
  %v5060 = vpop.f32.mrf.mxu0
  %v5061 = vadd.f32 0.0, %v5060
  %v5062 = vpop.f32.mrf.mxu0
  %v5063 = vadd.f32 0.0, %v5062
  %v5064 = vpop.f32.mrf.mxu0
  %v5065 = vadd.f32 0.0, %v5064
  %5066 = vdwg.mxu0
  %5067 = vmatprep.subr.bf16.mxu0 0
  %5068 = vmatpush1.bf16.msra.mxu0 %v4047
  %5069 = vmatprep.subr.bf16.mxu0 0
  %5070 = vmatpush1.bf16.msra.mxu0 %v4044
  %5071 = vmatprep.subr.bf16.mxu0 0
  %5072 = vmatpush1.bf16.msra.mxu0 %v4041
  %5073 = vmatprep.subr.bf16.mxu0 0
  %5074 = vmatpush1.bf16.msra.mxu0 %v4038
  %5075 = vmatprep.subr.bf16.mxu0 0
  %5076 = vmatpush1.bf16.msra.mxu0 %v4035
  %5077 = vmatprep.subr.bf16.mxu0 0
  %5078 = vmatpush1.bf16.msra.mxu0 %v4032
  %5079 = vmatprep.subr.bf16.mxu0 0
  %5080 = vmatpush1.bf16.msra.mxu0 %v4029
  %5081 = vmatprep.subr.bf16.mxu0 0
  %5082 = vmatpush1.bf16.msra.mxu0 %v4026
  %5083 = vmatprep.subr.bf16.mxu0 0
  %5084 = vmatpush2.bf16.msra.mxu0 0
  %5085 = vmatprep.subr.bf16.mxu0 0
  %5086 = vmatpush2.bf16.msra.mxu0 0
  %5087 = vmatprep.subr.bf16.mxu0 0
  %5088 = vmatpush2.bf16.msra.mxu0 0
  %5089 = vmatprep.subr.bf16.mxu0 0
  %5090 = vmatpush2.bf16.msra.mxu0 0
  %5091 = vmatprep.subr.bf16.mxu0 0
  %5092 = vmatpush2.bf16.msra.mxu0 0
  %5093 = vmatprep.subr.bf16.mxu0 0
  %5094 = vmatpush2.bf16.msra.mxu0 0
  %5095 = vmatprep.subr.bf16.mxu0 0
  %5096 = vmatpush2.bf16.msra.mxu0 0
  %5097 = vmatprep.subr.bf16.mxu0 0
  %5098 = vmatpush2.bf16.msra.mxu0 0
  %5099 = vmatprep.mubr.bf16.mxu0 0
  %5100 = vmatmul.mubr.bf16.gmra.mxu0 %v5023
  %v5101 = vpop.f32.mrf.mxu0
  %v5102 = vadd.f32 0.0, %v5101
  %v5103 = vpop.f32.mrf.mxu0
  %v5104 = vpop.f32.mrf.mxu0
  %v5105 = vadd.f32 0.0, %v5104
  %v5106 = vpop.f32.mrf.mxu0
  %5107 = vdwg.mxu0
  %v5108 = vadd.f32 %v5017, %v5059
  %v5109 = vadd.f32 %v5020, %v5063
  %v5110 = vxor.u32 %v5108, 2147483648
  %v5111 = vxor.u32 %v5109, 2147483648
  %v5112 = vmul.f32 %v5110, 1.442695
  %v5113 = vpow.pop %v5112
  %v5114 = vmul.f32 %v5111, 1.442695
  %v5115 = vpow.pop %v5114
  %v5116 = vadd.f32 %v5113, 1.0
  %v5117 = vadd.f32 %v5115, 1.0
  %v5118 = vrcp.pop %v5116
  %v5119 = vmul.f32 1.0, %v5118
  %v5120 = vrcp.pop %v5117
  %v5121 = vmul.f32 1.0, %v5120
  %v5122 = vadd.f32 %v5018, %v5061
  %v5123 = vadd.f32 %v5021, %v5065
  %v5124 = vxor.u32 %v5122, 2147483648
  %v5125 = vxor.u32 %v5123, 2147483648
  %v5126 = vmul.f32 %v5124, 1.442695
  %v5127 = vpow.pop %v5126
  %v5128 = vmul.f32 %v5125, 1.442695
  %v5129 = vpow.pop %v5128
  %v5130 = vadd.f32 %v5127, 1.0
  %v5131 = vadd.f32 %v5129, 1.0
  %v5132 = vrcp.pop %v5130
  %v5133 = vmul.f32 1.0, %v5132
  %v5134 = vrcp.pop %v5131
  %v5135 = vmul.f32 1.0, %v5134
  %v5136 = vadd.f32 %v5102, %v4189
  %v5137 = vadd.f32 %v5105, %v4189
  %v5138 = vmul.f32 %v5119, %v5136
  %v5139 = vmul.f32 %v5121, %v5137
  %v5140 = vadd.f32 %v5019, %v5138
  %v5141 = vadd.f32 %v5022, %v5139
  %v5142 = vtanh.pop %v5140
  %v5143 = vtanh.pop %v5141
  %v5144 = vsub.f32 1.0, %v5133
  %v5145 = vsub.f32 1.0, %v5135
  %v5146 = vmul.f32 %v5144, %v5142
  %v5147 = vmul.f32 %v5145, %v5143
  %v5148 = vmul.f32 %v5133, %v5015
  %v5149 = vmul.f32 %v5135, %v5016
  %v5150 = vadd.f32 %v5146, %v5148
  %v5151 = vadd.f32 %v5147, %v5149
  %5152 = vst [vmem:[%s3902] sm:$0xff] %v5150
  %5153 = vst [vmem:[%s3902 + $0x8] sm:$0xff] %v5151
  // Predicated region
  $region266: #{sequence_encoder_forward.1} parent=0 // pred_check
    %p5154 = pneg %p39
  $region267: #{sequence_encoder_forward.1} parent=0 // pred_check_branch
    %5156 = sbr.rel (%p5154) target = $region269
  $region268: #{sequence_encoder_forward.1} parent=0 // pred_region
    %v5157 = vld [vmem:[%s3902] sm:$0xff]
    %v5158 = vld [vmem:[%s3902 + $0x8] sm:$0xff]
    %5159 = vst [vmem:[%s9] sm:$0xff] %v5157
    %5160 = vst [vmem:[%s9 + $0x8] sm:$0xff] %v5158
  $region269: #{sequence_encoder_forward.1} parent=0 // pred_fallthru
    _
  // Predicated region
  $region270: #{sequence_encoder_forward.1} parent=0 // pred_check
    _
  $region271: #{sequence_encoder_forward.1} parent=0 // pred_check_branch
    %5162 = sbr.rel (0) target = $region273
  $region272: #{sequence_encoder_forward.1} parent=0 // pred_region
    _
  $region273: #{sequence_encoder_forward.1} parent=0 // pred_fallthru
    _
  // Predicated region
  $region274: #{sequence_encoder_forward.1} parent=0 // pred_check
    _
  $region275: #{sequence_encoder_forward.1} parent=0 // pred_check_branch
    %5164 = sbr.rel (0) target = $region277
  $region276: #{sequence_encoder_forward.1} parent=0 // pred_region
    _
  $region277: #{sequence_encoder_forward.1} parent=0 // pred_fallthru
    _
  %5165 = vsyncmov [#allocation13]
  %s5166 = vpop.sfrf %5165
  %p5167 = scmp.eq.s32.totalorder %s5166, 0
  %p5168 = pneg %p5167
  %5170 = shalt.err (%p5168)
  %s5171 = scalar_lea.sflag [#allocation13], 1
  %5172 = vsyncmov %s5171
  %s5173 = vpop.sfrf %5172
  %p5174 = scmp.eq.s32.totalorder %s5173, 0
  %p5175 = pneg %p5174
  %5177 = shalt.err (%p5175)
  %s5178 = scalar_lea.sflag [#allocation13], 2
  %5179 = vsyncmov %s5178
  %s5180 = vpop.sfrf %5179
  %p5181 = scmp.eq.s32.totalorder %s5180, 0
  %p5182 = pneg %p5181
  %5184 = shalt.err (%p5182)
  %s5185 = scalar_lea.sflag [#allocation13], 3
  %5186 = vsyncmov %s5185
  %s5187 = vpop.sfrf %5186
  %p5188 = scmp.eq.s32.totalorder %s5187, 0
  %p5189 = pneg %p5188
  %5191 = shalt.err (%p5189)
  %s5192 = scalar_lea.sflag [#allocation13], 4
  %5193 = vsyncmov %s5192
  %s5194 = vpop.sfrf %5193
  %p5195 = scmp.eq.s32.totalorder %s5194, 0
  %p5196 = pneg %p5195
  %5198 = shalt.err (%p5196)
  %s5199 = scalar_lea.sflag [#allocation13], 5
  %5200 = vsyncmov %s5199
  %s5201 = vpop.sfrf %5200
  %p5202 = scmp.eq.s32.totalorder %s5201, 0
  %p5203 = pneg %p5202
  %5205 = shalt.err (%p5203)
  %s5206 = scalar_lea.sflag [#allocation13], 6
  %5207 = vsyncmov %s5206
  %s5208 = vpop.sfrf %5207
  %p5209 = scmp.eq.s32.totalorder %s5208, 0
  %p5210 = pneg %p5209
  %5212 = shalt.err (%p5210)
  %s5213 = scalar_lea.sflag [#allocation13], 7
  %5214 = vsyncmov %s5213
  %s5215 = vpop.sfrf %5214
  %p5216 = scmp.eq.s32.totalorder %s5215, 0
  %p5217 = pneg %p5216
  %5219 = shalt.err (%p5217)

</llo_original>
